<compile_context>
chip_gen: v7x
topology: tpu7x:2x2x1
jax: 0.10.0
libtpu: 0.0.40
codegen_flags: <defaults>
</compile_context>

<pallas_src>
import functools

import jax
import jax.numpy as jnp
from jax import lax
from jax.experimental import pallas as pl
from jax.experimental.pallas import tpu as pltpu


def _bottleneck_kernel(xpad_ref, w_ref, t_ref, we1_ref, be1_ref, we2_ref,
                       be2_ref, out_ref, *, NB, H, W, Cin, Cp, dil):
    """One grid step processes NB batch elements.

    xpad_ref : (NB, H+2d, W+2d, Cin) bf16   spatially pre-padded NHWC input
    w_ref    : (9, Cin, Cp)          bf16   conv weight, BN scale folded, Cout->Cp pad
    t_ref    : (1, Cp)               f32    folded BN shift (eval mode)
    we1_ref  : (Cp, Cr)              bf16   SE squeeze 1x1 conv weight
    be1_ref  : (1, Cr)               f32    SE squeeze bias
    we2_ref  : (Cr, Cp)              bf16   SE excite 1x1 conv weight
    be2_ref  : (1, Cp)               f32    SE excite bias
    out_ref  : (NB, H*W, Cp)         f32    lane-dense output slab (unmasked vst)
    """
    M = NB * H * W

    # ---- dilated 3x3 conv: 9 accumulating (M, Cin) @ (Cin, Cp) MXU dots -----
    # (replaces the concat-based im2col; each tap is a cheap strided slice and
    #  a leading-dim-only reshape, no minor-dim relayout)
    acc = None
    for k in range(9):
        dh, dw = divmod(k, 3)
        tap = xpad_ref[:, pl.ds(dh * dil, H), pl.ds(dw * dil, W), :]
        part = jnp.dot(tap.reshape(M, Cin), w_ref[k],
                       preferred_element_type=jnp.float32)
        acc = part if acc is None else acc + part           # (M, Cp) f32

    # ---- BN shift (scale already folded into the weight) + ReLU -------------
    y = jnp.maximum(acc + t_ref[...], 0.0)                  # (M, Cp) f32
    y3 = y.reshape(NB, H * W, Cp)                           # leading-dim split only

    # ---- squeeze-and-excitation (bf16 matmul inputs, f32 accumulation) ------
    pooled = jnp.sum(y3, axis=1) * (1.0 / (H * W))          # (NB, Cp) f32
    e = jnp.maximum(
        jnp.dot(pooled.astype(jnp.bfloat16), we1_ref[...],
                preferred_element_type=jnp.float32) + be1_ref[...], 0.0)
    sc = jax.nn.sigmoid(
        jnp.dot(e.astype(jnp.bfloat16), we2_ref[...],
                preferred_element_type=jnp.float32) + be2_ref[...])  # (NB, Cp)

    # ---- channel rescale + lane-dense store (no W<->C interleave) -----------
    out_ref[...] = y3 * sc[:, None, :]


def bottleneck_forward(x_nchw, p, *, dilation=1, block_n=None, eps=1e-5):
    """PyTorch-compatible interface: NCHW in, NCHW out (same spatial size).

    block_n: batch elements per grid step.  Default (None) = whole batch in
    one grid step, which is best on single-TC chips (v5e/v6e).  On v7x use
    block_n = N // 2 so both TensorCores get work.
    """
    N, Cin, H, W = x_nchw.shape
    Cout = p['w'].shape[-1]
    Cr = p['we1'].shape[-1]
    d = dilation
    if block_n is None:
        block_n = N
    assert N % block_n == 0

    # lane-padded output channel count (multiple of 128)
    Cp = max(128, ((Cout + 127) // 128) * 128)

    # ---- fold BN (eval mode) into conv weight / shift, pad Cout -> Cp -------
    s = p['gamma'] / jnp.sqrt(p['var'] + eps)                          # (Cout,)
    t = p['beta'] - p['mean'] * s                                      # (Cout,)
    w = (p['w'].astype(jnp.float32) * s).reshape(9, Cin, Cout)         # fold in f32
    w = jnp.pad(w, ((0, 0), (0, 0), (0, Cp - Cout))).astype(jnp.bfloat16)
    t = jnp.pad(t, (0, Cp - Cout)).reshape(1, Cp).astype(jnp.float32)

    we1 = jnp.pad(p['we1'], ((0, Cp - Cout), (0, 0))).astype(jnp.bfloat16)
    be1 = p['be1'].reshape(1, Cr).astype(jnp.float32)
    we2 = jnp.pad(p['we2'], ((0, 0), (0, Cp - Cout))).astype(jnp.bfloat16)
    be2 = jnp.pad(p['be2'], (0, Cp - Cout)).reshape(1, Cp).astype(jnp.float32)

    # ---- input prep: NHWC + spatial halo pad + bf16 matmul inputs -----------
    # TODO(synk): fuse the NCHW->NHWC transpose / pad / cast into the kernel
    # (masked halo loads) and keep NHWC on the output when the consumer
    # accepts it; at these sizes they are tiny XLA passes over ~8 KB.
    x_nhwc = jnp.transpose(x_nchw, (0, 2, 3, 1))
    xpad = jnp.pad(x_nhwc, ((0, 0), (d, d), (d, d), (0, 0))).astype(jnp.bfloat16)

    kernel = functools.partial(_bottleneck_kernel, NB=block_n, H=H, W=W,
                               Cin=Cin, Cp=Cp, dil=d)

    def replicated(a):      # whole-array spec, same block every grid step
        nd = a.ndim
        return pl.BlockSpec(a.shape, lambda b, _n=nd: (0,) * _n)

    out = pl.pallas_call(
        kernel,
        out_shape=jax.ShapeDtypeStruct((N, H * W, Cp), jnp.float32),
        grid_spec=pltpu.PrefetchScalarGridSpec(
            num_scalar_prefetch=0,
            grid=(N // block_n,),
            in_specs=[
                pl.BlockSpec((block_n, H + 2 * d, W + 2 * d, Cin),
                             lambda b: (b, 0, 0, 0)),
                replicated(w), replicated(t),
                replicated(we1), replicated(be1),
                replicated(we2), replicated(be2),
            ],
            out_specs=pl.BlockSpec((block_n, H * W, Cp), lambda b: (b, 0, 0)),
        ),
        compiler_params=pltpu.CompilerParams(
            dimension_semantics=("parallel",),
            vmem_limit_bytes=32 * 1024 * 1024),
    )(xpad, w, t, we1, be1, we2, be2)

    # (N, H*W, Cp) -> slice padded channels -> (N, H, W, Cout) -> NCHW
    out = out[..., :Cout].reshape(N, H, W, Cout)
    return jnp.transpose(out, (0, 3, 1, 2))


def reference_forward(x_nchw, p, *, dilation=1, eps=1e-5):
    """Pure-JAX f32 reference (same math as the PyTorch module, eval mode)."""
    hp = lax.Precision.HIGHEST
    x = jnp.transpose(x_nchw, (0, 2, 3, 1)).astype(jnp.float32)
    dn = ('NHWC', 'HWIO', 'NHWC')
    s = p['gamma'] / jnp.sqrt(p['var'] + eps)
    t = p['beta'] - p['mean'] * s

    y = lax.conv_general_dilated(
        x, p['w'], window_strides=(1, 1),
        padding=[(dilation, dilation), (dilation, dilation)],
        rhs_dilation=(dilation, dilation),
        dimension_numbers=dn, precision=hp)
    y = jnp.maximum(y * s + t, 0.0)

    pooled = jnp.mean(y, axis=(1, 2))                        # global avg pool
    e = jnp.maximum(pooled @ p['we1'] + p['be1'], 0.0)
    sc = jax.nn.sigmoid(e @ p['we2'] + p['be2'])
    out = y * sc[:, None, None, :]
    return jnp.transpose(out, (0, 3, 1, 2))


def init_params(key, Cin, Cout, r):
    ks = jax.random.split(key, 8)
    Cr = Cout // r

    def uni(k, shape, fan_in):
        bound = 1.0 / (fan_in ** 0.5)
        return jax.random.uniform(k, shape, jnp.float32, -bound, bound)

    return {
        # dilated 3x3 conv weight stored in HWIO layout (no bias)
        'w': uni(ks[0], (3, 3, Cin, Cout), 9 * Cin),
        # BatchNorm params (fresh running stats, eval mode)
        'gamma': 1.0 + 0.1 * jax.random.normal(ks[1], (Cout,), jnp.float32),
        'beta': 0.1 * jax.random.normal(ks[2], (Cout,), jnp.float32),
        'mean': jnp.zeros((Cout,), jnp.float32),
        'var': jnp.ones((Cout,), jnp.float32),
        # SE 1x1 convs as matrices (with bias)
        'we1': uni(ks[3], (Cout, Cr), Cout),
        'be1': uni(ks[4], (Cr,), Cout),
        'we2': uni(ks[5], (Cr, Cout), Cr),
        'be2': uni(ks[6], (Cout,), Cr),
    }


if __name__ == "__main__":
    key = jax.random.PRNGKey(0)
    kx, kp = jax.random.split(key)

    # Bottleneck_block(in_channels=4, out_channels=8, dilation_rate=2,
    #                  reduction_ratio=2, dropout=False); x: (2, 4, 16, 16)
    N, Cin, Cout, r, H, W, dil = 2, 4, 8, 2, 16, 16, 2
    x = jax.random.normal(kx, (N, Cin, H, W), jnp.float32)
    params = init_params(kp, Cin, Cout, r)

    out = bottleneck_forward(x, params, dilation=dil)        # grid of 1
    out = jax.block_until_ready(out)

    ref = reference_forward(x, params, dilation=dil)
    assert out.shape == (N, Cout, H, W), out.shape
    max_err = float(jnp.max(jnp.abs(out - ref)))
    # tolerance accounts for bf16 matmul inputs (f32 accumulation everywhere)
    assert jnp.allclose(out, ref, atol=3e-2, rtol=3e-2), max_err

    print("KERNEL_OK")
</pallas_src>

<mosaic_0001>
module attributes {stable_mosaic.version = 11 : i64} {
  func.func @_bottleneck_kernel(%arg0: i32, %arg1: memref<2x20x20x4xbf16, #tpu.memory_space<vmem>>, %arg2: memref<9x4x128xbf16, #tpu.memory_space<vmem>>, %arg3: memref<1x128xf32, #tpu.memory_space<vmem>>, %arg4: memref<128x4xbf16, #tpu.memory_space<vmem>>, %arg5: memref<1x4xf32, #tpu.memory_space<vmem>>, %arg6: memref<4x128xbf16, #tpu.memory_space<vmem>>, %arg7: memref<1x128xf32, #tpu.memory_space<vmem>>, %arg8: memref<2x256x128xf32, #tpu.memory_space<vmem>>) attributes {dimension_semantics = [#tpu.dimension_semantics<parallel>], iteration_bounds = array<i64: 1>, scalar_prefetch = 0 : i64, scratch_operands = 0 : i64, tpu.core_type = #tpu.core_type<tc>, window_params = [{transform_indices = @transform_0, window_bounds = array<i64: 2, 20, 20, 4>}, {pipeline_mode = #tpu.pipeline_mode<synchronous>, transform_indices = @transform_1, window_bounds = array<i64: 9, 4, 128>}, {pipeline_mode = #tpu.pipeline_mode<synchronous>, transform_indices = @transform_2, window_bounds = array<i64: 1, 128>}, {pipeline_mode = #tpu.pipeline_mode<synchronous>, transform_indices = @transform_3, window_bounds = array<i64: 128, 4>}, {pipeline_mode = #tpu.pipeline_mode<synchronous>, transform_indices = @transform_4, window_bounds = array<i64: 1, 4>}, {pipeline_mode = #tpu.pipeline_mode<synchronous>, transform_indices = @transform_5, window_bounds = array<i64: 4, 128>}, {pipeline_mode = #tpu.pipeline_mode<synchronous>, transform_indices = @transform_6, window_bounds = array<i64: 1, 128>}, {transform_indices = @transform_7, window_bounds = array<i64: 2, 256, 128>}]} {
    %c0 = arith.constant 0 : index
    %c0_0 = arith.constant 0 : index
    %c0_1 = arith.constant 0 : index
    %c0_2 = arith.constant 0 : index
    %0 = vector.load %arg1[%c0, %c0_0, %c0_1, %c0_2] : memref<2x20x20x4xbf16, #tpu.memory_space<vmem>>, vector<2x16x16x4xbf16>
    %1 = vector.shape_cast %0 : vector<2x16x16x4xbf16> to vector<512x4xbf16>
    %c0_3 = arith.constant 0 : index
    %c0_4 = arith.constant 0 : index
    %c0_5 = arith.constant 0 : index
    %2 = vector.load %arg2[%c0_3, %c0_4, %c0_5] : memref<9x4x128xbf16, #tpu.memory_space<vmem>>, vector<1x4x128xbf16>
    %3 = vector.shape_cast %2 : vector<1x4x128xbf16> to vector<4x128xbf16>
    %cst = arith.constant dense<0.000000e+00> : vector<512x128xf32>
    %4 = tpu.matmul %1, %3, %cst {dimension_numbers = #tpu.dot_dimension_numbers<[1], [0], [0], [1], [0, 0, 1, 1], [], []>} : vector<512x4xbf16>, vector<4x128xbf16>, vector<512x128xf32> -> vector<512x128xf32>
    %c0_6 = arith.constant 0 : index
    %c0_7 = arith.constant 0 : index
    %c2 = arith.constant 2 : index
    %c0_8 = arith.constant 0 : index
    %5 = vector.load %arg1[%c0_6, %c0_7, %c2, %c0_8] : memref<2x20x20x4xbf16, #tpu.memory_space<vmem>>, vector<2x16x16x4xbf16>
    %6 = vector.shape_cast %5 : vector<2x16x16x4xbf16> to vector<512x4xbf16>
    %c1 = arith.constant 1 : index
    %c0_9 = arith.constant 0 : index
    %c0_10 = arith.constant 0 : index
    %7 = vector.load %arg2[%c1, %c0_9, %c0_10] : memref<9x4x128xbf16, #tpu.memory_space<vmem>>, vector<1x4x128xbf16>
    %8 = vector.shape_cast %7 : vector<1x4x128xbf16> to vector<4x128xbf16>
    %cst_11 = arith.constant dense<0.000000e+00> : vector<512x128xf32>
    %9 = tpu.matmul %6, %8, %cst_11 {dimension_numbers = #tpu.dot_dimension_numbers<[1], [0], [0], [1], [0, 0, 1, 1], [], []>} : vector<512x4xbf16>, vector<4x128xbf16>, vector<512x128xf32> -> vector<512x128xf32>
    %10 = arith.addf %4, %9 : vector<512x128xf32>
    %c0_12 = arith.constant 0 : index
    %c0_13 = arith.constant 0 : index
    %c4 = arith.constant 4 : index
    %c0_14 = arith.constant 0 : index
    %11 = vector.load %arg1[%c0_12, %c0_13, %c4, %c0_14] : memref<2x20x20x4xbf16, #tpu.memory_space<vmem>>, vector<2x16x16x4xbf16>
    %12 = vector.shape_cast %11 : vector<2x16x16x4xbf16> to vector<512x4xbf16>
    %c2_15 = arith.constant 2 : index
    %c0_16 = arith.constant 0 : index
    %c0_17 = arith.constant 0 : index
    %13 = vector.load %arg2[%c2_15, %c0_16, %c0_17] : memref<9x4x128xbf16, #tpu.memory_space<vmem>>, vector<1x4x128xbf16>
    %14 = vector.shape_cast %13 : vector<1x4x128xbf16> to vector<4x128xbf16>
    %cst_18 = arith.constant dense<0.000000e+00> : vector<512x128xf32>
    %15 = tpu.matmul %12, %14, %cst_18 {dimension_numbers = #tpu.dot_dimension_numbers<[1], [0], [0], [1], [0, 0, 1, 1], [], []>} : vector<512x4xbf16>, vector<4x128xbf16>, vector<512x128xf32> -> vector<512x128xf32>
    %16 = arith.addf %10, %15 : vector<512x128xf32>
    %c0_19 = arith.constant 0 : index
    %c2_20 = arith.constant 2 : index
    %c0_21 = arith.constant 0 : index
    %c0_22 = arith.constant 0 : index
    %17 = vector.load %arg1[%c0_19, %c2_20, %c0_21, %c0_22] : memref<2x20x20x4xbf16, #tpu.memory_space<vmem>>, vector<2x16x16x4xbf16>
    %18 = vector.shape_cast %17 : vector<2x16x16x4xbf16> to vector<512x4xbf16>
    %c3 = arith.constant 3 : index
    %c0_23 = arith.constant 0 : index
    %c0_24 = arith.constant 0 : index
    %19 = vector.load %arg2[%c3, %c0_23, %c0_24] : memref<9x4x128xbf16, #tpu.memory_space<vmem>>, vector<1x4x128xbf16>
    %20 = vector.shape_cast %19 : vector<1x4x128xbf16> to vector<4x128xbf16>
    %cst_25 = arith.constant dense<0.000000e+00> : vector<512x128xf32>
    %21 = tpu.matmul %18, %20, %cst_25 {dimension_numbers = #tpu.dot_dimension_numbers<[1], [0], [0], [1], [0, 0, 1, 1], [], []>} : vector<512x4xbf16>, vector<4x128xbf16>, vector<512x128xf32> -> vector<512x128xf32>
    %22 = arith.addf %16, %21 : vector<512x128xf32>
    %c0_26 = arith.constant 0 : index
    %c2_27 = arith.constant 2 : index
    %c2_28 = arith.constant 2 : index
    %c0_29 = arith.constant 0 : index
    %23 = vector.load %arg1[%c0_26, %c2_27, %c2_28, %c0_29] : memref<2x20x20x4xbf16, #tpu.memory_space<vmem>>, vector<2x16x16x4xbf16>
    %24 = vector.shape_cast %23 : vector<2x16x16x4xbf16> to vector<512x4xbf16>
    %c4_30 = arith.constant 4 : index
    %c0_31 = arith.constant 0 : index
    %c0_32 = arith.constant 0 : index
    %25 = vector.load %arg2[%c4_30, %c0_31, %c0_32] : memref<9x4x128xbf16, #tpu.memory_space<vmem>>, vector<1x4x128xbf16>
    %26 = vector.shape_cast %25 : vector<1x4x128xbf16> to vector<4x128xbf16>
    %cst_33 = arith.constant dense<0.000000e+00> : vector<512x128xf32>
    %27 = tpu.matmul %24, %26, %cst_33 {dimension_numbers = #tpu.dot_dimension_numbers<[1], [0], [0], [1], [0, 0, 1, 1], [], []>} : vector<512x4xbf16>, vector<4x128xbf16>, vector<512x128xf32> -> vector<512x128xf32>
    %28 = arith.addf %22, %27 : vector<512x128xf32>
    %c0_34 = arith.constant 0 : index
    %c2_35 = arith.constant 2 : index
    %c4_36 = arith.constant 4 : index
    %c0_37 = arith.constant 0 : index
    %29 = vector.load %arg1[%c0_34, %c2_35, %c4_36, %c0_37] : memref<2x20x20x4xbf16, #tpu.memory_space<vmem>>, vector<2x16x16x4xbf16>
    %30 = vector.shape_cast %29 : vector<2x16x16x4xbf16> to vector<512x4xbf16>
    %c5 = arith.constant 5 : index
    %c0_38 = arith.constant 0 : index
    %c0_39 = arith.constant 0 : index
    %31 = vector.load %arg2[%c5, %c0_38, %c0_39] : memref<9x4x128xbf16, #tpu.memory_space<vmem>>, vector<1x4x128xbf16>
    %32 = vector.shape_cast %31 : vector<1x4x128xbf16> to vector<4x128xbf16>
    %cst_40 = arith.constant dense<0.000000e+00> : vector<512x128xf32>
    %33 = tpu.matmul %30, %32, %cst_40 {dimension_numbers = #tpu.dot_dimension_numbers<[1], [0], [0], [1], [0, 0, 1, 1], [], []>} : vector<512x4xbf16>, vector<4x128xbf16>, vector<512x128xf32> -> vector<512x128xf32>
    %34 = arith.addf %28, %33 : vector<512x128xf32>
    %c0_41 = arith.constant 0 : index
    %c4_42 = arith.constant 4 : index
    %c0_43 = arith.constant 0 : index
    %c0_44 = arith.constant 0 : index
    %35 = vector.load %arg1[%c0_41, %c4_42, %c0_43, %c0_44] : memref<2x20x20x4xbf16, #tpu.memory_space<vmem>>, vector<2x16x16x4xbf16>
    %36 = vector.shape_cast %35 : vector<2x16x16x4xbf16> to vector<512x4xbf16>
    %c6 = arith.constant 6 : index
    %c0_45 = arith.constant 0 : index
    %c0_46 = arith.constant 0 : index
    %37 = vector.load %arg2[%c6, %c0_45, %c0_46] : memref<9x4x128xbf16, #tpu.memory_space<vmem>>, vector<1x4x128xbf16>
    %38 = vector.shape_cast %37 : vector<1x4x128xbf16> to vector<4x128xbf16>
    %cst_47 = arith.constant dense<0.000000e+00> : vector<512x128xf32>
    %39 = tpu.matmul %36, %38, %cst_47 {dimension_numbers = #tpu.dot_dimension_numbers<[1], [0], [0], [1], [0, 0, 1, 1], [], []>} : vector<512x4xbf16>, vector<4x128xbf16>, vector<512x128xf32> -> vector<512x128xf32>
    %40 = arith.addf %34, %39 : vector<512x128xf32>
    %c0_48 = arith.constant 0 : index
    %c4_49 = arith.constant 4 : index
    %c2_50 = arith.constant 2 : index
    %c0_51 = arith.constant 0 : index
    %41 = vector.load %arg1[%c0_48, %c4_49, %c2_50, %c0_51] : memref<2x20x20x4xbf16, #tpu.memory_space<vmem>>, vector<2x16x16x4xbf16>
    %42 = vector.shape_cast %41 : vector<2x16x16x4xbf16> to vector<512x4xbf16>
    %c7 = arith.constant 7 : index
    %c0_52 = arith.constant 0 : index
    %c0_53 = arith.constant 0 : index
    %43 = vector.load %arg2[%c7, %c0_52, %c0_53] : memref<9x4x128xbf16, #tpu.memory_space<vmem>>, vector<1x4x128xbf16>
    %44 = vector.shape_cast %43 : vector<1x4x128xbf16> to vector<4x128xbf16>
    %cst_54 = arith.constant dense<0.000000e+00> : vector<512x128xf32>
    %45 = tpu.matmul %42, %44, %cst_54 {dimension_numbers = #tpu.dot_dimension_numbers<[1], [0], [0], [1], [0, 0, 1, 1], [], []>} : vector<512x4xbf16>, vector<4x128xbf16>, vector<512x128xf32> -> vector<512x128xf32>
    %46 = arith.addf %40, %45 : vector<512x128xf32>
    %c0_55 = arith.constant 0 : index
    %c4_56 = arith.constant 4 : index
    %c4_57 = arith.constant 4 : index
    %c0_58 = arith.constant 0 : index
    %47 = vector.load %arg1[%c0_55, %c4_56, %c4_57, %c0_58] : memref<2x20x20x4xbf16, #tpu.memory_space<vmem>>, vector<2x16x16x4xbf16>
    %48 = vector.shape_cast %47 : vector<2x16x16x4xbf16> to vector<512x4xbf16>
    %c8 = arith.constant 8 : index
    %c0_59 = arith.constant 0 : index
    %c0_60 = arith.constant 0 : index
    %49 = vector.load %arg2[%c8, %c0_59, %c0_60] : memref<9x4x128xbf16, #tpu.memory_space<vmem>>, vector<1x4x128xbf16>
    %50 = vector.shape_cast %49 : vector<1x4x128xbf16> to vector<4x128xbf16>
    %cst_61 = arith.constant dense<0.000000e+00> : vector<512x128xf32>
    %51 = tpu.matmul %48, %50, %cst_61 {dimension_numbers = #tpu.dot_dimension_numbers<[1], [0], [0], [1], [0, 0, 1, 1], [], []>} : vector<512x4xbf16>, vector<4x128xbf16>, vector<512x128xf32> -> vector<512x128xf32>
    %52 = arith.addf %46, %51 : vector<512x128xf32>
    %c0_62 = arith.constant 0 : index
    %c0_63 = arith.constant 0 : index
    %53 = vector.load %arg3[%c0_62, %c0_63] : memref<1x128xf32, #tpu.memory_space<vmem>>, vector<1x128xf32>
    %54 = vector.broadcast %53 : vector<1x128xf32> to vector<512x128xf32>
    %55 = arith.addf %52, %54 : vector<512x128xf32>
    %cst_64 = arith.constant 0.000000e+00 : f32
    %56 = vector.broadcast %cst_64 : f32 to vector<512x128xf32>
    %57 = arith.maximumf %55, %56 : vector<512x128xf32>
    %58 = vector.shape_cast %57 : vector<512x128xf32> to vector<2x256x128xf32>
    %cst_65 = arith.constant dense<0.000000e+00> : vector<2x128xf32>
    %59 = vector.multi_reduction <add>, %58, %cst_65 [1] : vector<2x256x128xf32> to vector<2x128xf32>
    %cst_66 = arith.constant 3.906250e-03 : f32
    %60 = vector.broadcast %cst_66 : f32 to vector<2x128xf32>
    %61 = arith.mulf %59, %60 : vector<2x128xf32>
    %62 = arith.truncf %61 : vector<2x128xf32> to vector<2x128xbf16>
    %c0_67 = arith.constant 0 : index
    %c0_68 = arith.constant 0 : index
    %63 = vector.load %arg4[%c0_67, %c0_68] : memref<128x4xbf16, #tpu.memory_space<vmem>>, vector<128x4xbf16>
    %cst_69 = arith.constant dense<0.000000e+00> : vector<2x4xf32>
    %64 = tpu.matmul %62, %63, %cst_69 {dimension_numbers = #tpu.dot_dimension_numbers<[1], [0], [0], [1], [0, 0, 1, 1], [], []>} : vector<2x128xbf16>, vector<128x4xbf16>, vector<2x4xf32> -> vector<2x4xf32>
    %c0_70 = arith.constant 0 : index
    %c0_71 = arith.constant 0 : index
    %65 = vector.load %arg5[%c0_70, %c0_71] : memref<1x4xf32, #tpu.memory_space<vmem>>, vector<1x4xf32>
    %66 = vector.broadcast %65 : vector<1x4xf32> to vector<2x4xf32>
    %67 = arith.addf %64, %66 : vector<2x4xf32>
    %cst_72 = arith.constant 0.000000e+00 : f32
    %68 = vector.broadcast %cst_72 : f32 to vector<2x4xf32>
    %69 = arith.maximumf %67, %68 : vector<2x4xf32>
    %70 = arith.truncf %69 : vector<2x4xf32> to vector<2x4xbf16>
    %c0_73 = arith.constant 0 : index
    %c0_74 = arith.constant 0 : index
    %71 = vector.load %arg6[%c0_73, %c0_74] : memref<4x128xbf16, #tpu.memory_space<vmem>>, vector<4x128xbf16>
    %cst_75 = arith.constant dense<0.000000e+00> : vector<2x128xf32>
    %72 = tpu.matmul %70, %71, %cst_75 {dimension_numbers = #tpu.dot_dimension_numbers<[1], [0], [0], [1], [0, 0, 1, 1], [], []>} : vector<2x4xbf16>, vector<4x128xbf16>, vector<2x128xf32> -> vector<2x128xf32>
    %c0_76 = arith.constant 0 : index
    %c0_77 = arith.constant 0 : index
    %73 = vector.load %arg7[%c0_76, %c0_77] : memref<1x128xf32, #tpu.memory_space<vmem>>, vector<1x128xf32>
    %74 = vector.broadcast %73 : vector<1x128xf32> to vector<2x128xf32>
    %75 = arith.addf %72, %74 : vector<2x128xf32>
    %76 = arith.negf %75 : vector<2x128xf32>
    %77 = math.exp %76 : vector<2x128xf32>
    %cst_78 = arith.constant 1.000000e+00 : f32
    %78 = vector.broadcast %cst_78 : f32 to vector<2x128xf32>
    %79 = arith.addf %78, %77 : vector<2x128xf32>
    %80 = arith.divf %78, %79 : vector<2x128xf32>
    %81 = vector.shape_cast %80 : vector<2x128xf32> to vector<2x1x128xf32>
    %82 = vector.broadcast %81 : vector<2x1x128xf32> to vector<2x256x128xf32>
    %83 = arith.mulf %58, %82 : vector<2x256x128xf32>
    %c0_79 = arith.constant 0 : index
    %c0_80 = arith.constant 0 : index
    %c0_81 = arith.constant 0 : index
    %84 = vector.load %arg8[%c0_79, %c0_80, %c0_81] : memref<2x256x128xf32, #tpu.memory_space<vmem>>, vector<2x256x128xf32>
    tpu.vector_store %arg8[%c0_79, %c0_80, %c0_81], %83 {strides = array<i32>} : memref<2x256x128xf32, #tpu.memory_space<vmem>>, vector<2x256x128xf32>,
    return
  }
  func.func @transform_0(%arg0: i32) -> (i32, i32, i32, i32) {
    %c0_i32 = arith.constant 0 : i32
    %c0_i32_0 = arith.constant 0 : i32
    %c0_i32_1 = arith.constant 0 : i32
    %c0_i32_2 = arith.constant 0 : i32
    return %arg0, %c0_i32, %c0_i32_0, %c0_i32_1 : i32, i32, i32, i32
  }
  func.func @transform_1(%arg0: i32) -> (i32, i32, i32) {
    %c0_i32 = arith.constant 0 : i32
    %c0_i32_0 = arith.constant 0 : i32
    %c0_i32_1 = arith.constant 0 : i32
    %c0_i32_2 = arith.constant 0 : i32
    return %c0_i32, %c0_i32_0, %c0_i32_1 : i32, i32, i32
  }
  func.func @transform_2(%arg0: i32) -> (i32, i32) {
    %c0_i32 = arith.constant 0 : i32
    %c0_i32_0 = arith.constant 0 : i32
    %c0_i32_1 = arith.constant 0 : i32
    return %c0_i32, %c0_i32_0 : i32, i32
  }
  func.func @transform_3(%arg0: i32) -> (i32, i32) {
    %c0_i32 = arith.constant 0 : i32
    %c0_i32_0 = arith.constant 0 : i32
    %c0_i32_1 = arith.constant 0 : i32
    return %c0_i32, %c0_i32_0 : i32, i32
  }
  func.func @transform_4(%arg0: i32) -> (i32, i32) {
    %c0_i32 = arith.constant 0 : i32
    %c0_i32_0 = arith.constant 0 : i32
    %c0_i32_1 = arith.constant 0 : i32
    return %c0_i32, %c0_i32_0 : i32, i32
  }
  func.func @transform_5(%arg0: i32) -> (i32, i32) {
    %c0_i32 = arith.constant 0 : i32
    %c0_i32_0 = arith.constant 0 : i32
    %c0_i32_1 = arith.constant 0 : i32
    return %c0_i32, %c0_i32_0 : i32, i32
  }
  func.func @transform_6(%arg0: i32) -> (i32, i32) {
    %c0_i32 = arith.constant 0 : i32
    %c0_i32_0 = arith.constant 0 : i32
    %c0_i32_1 = arith.constant 0 : i32
    return %c0_i32, %c0_i32_0 : i32, i32
  }
  func.func @transform_7(%arg0: i32) -> (i32, i32, i32) {
    %c0_i32 = arith.constant 0 : i32
    %c0_i32_0 = arith.constant 0 : i32
    %c0_i32_1 = arith.constant 0 : i32
    return %arg0, %c0_i32, %c0_i32_0 : i32, i32, i32
  }
}

</mosaic_0001>

<llo_original>
// kernel: tpu_custom_call.1
$region0: #{tpu_custom_call.1}
  #allocation0 [shape = 'u32[]', space=smem, size = 0x4, offset = 0x4, fixed_abs, tag = 'smem constant byte address 0x4 - core index']
  #allocation1 [shape = 'u32[144,128]{1,0:T(1,128)}', space=vmem, size = 0x12000, scoped, tag = 'internal scratch']
  %s0 = inlined_call_operand.vmem [shape: bf16[2,20,20,4], index: 0, kind: input, shape index: {}]
  %s1 = inlined_call_operand.vmem [shape: bf16[9,4,128], index: 1, kind: input, shape index: {}]
  %s2 = inlined_call_operand.vmem [shape: f32[1,128], index: 2, kind: input, shape index: {}]
  %s3 = inlined_call_operand.vmem [shape: bf16[128,4], index: 3, kind: input, shape index: {}]
  %s4 = inlined_call_operand.vmem [shape: f32[1,4], index: 4, kind: input, shape index: {}]
  %s5 = inlined_call_operand.vmem [shape: bf16[4,128], index: 5, kind: input, shape index: {}]
  %s6 = inlined_call_operand.vmem [shape: f32[1,128], index: 6, kind: input, shape index: {}]
  %s7 = inlined_call_operand.hbm [shape: f32[2,256,128], index: 7, kind: output, shape index: {}]
  %s8 = sld [smem:[#allocation0]]
  $region38: #{tpu_custom_call.1} parent=0
    _
  %s10 = ssub.s32 1, %s8
  %s11 = scalar_select 0, %s10, %s8
  $region1: #{tpu_custom_call.1} parent=0
    #allocation2 [shape = 'u8[262144]{0}', space=vmem, size = 0x40000, scoped, tag = 'output window, operand 0, single buffered']
    #allocation3 [shape = 's32[1]{0}', space=sflag, size = 0x4, scoped, tag = 'scoped memory for tpu_custom_call.1']
    %12 = vsyncpa [#allocation3], 0
    // Predicated region
    $region2: #{tpu_custom_call.1} parent=1 // pred_check
      _
    $region3: #{tpu_custom_call.1} parent=1 // pred_check_branch
      %14 = sbr.rel (0) target = $region5
    $region4: #{tpu_custom_call.1} parent=1 // pred_region
      _
    $region5: #{tpu_custom_call.1} parent=1 // pred_fallthru
      _
    // Predicated region
    $region6: #{tpu_custom_call.1} parent=1 // pred_check
      _
    $region7: #{tpu_custom_call.1} parent=1 // pred_check_branch
      %16 = sbr.rel (0) target = $region9
    $region8: #{tpu_custom_call.1} parent=1 // pred_region
      _
    $region9: #{tpu_custom_call.1} parent=1 // pred_fallthru
      _
    // Predicated region
    $region10: #{tpu_custom_call.1} parent=1 // pred_check
      _
    $region11: #{tpu_custom_call.1} parent=1 // pred_check_branch
      %18 = sbr.rel (0) target = $region13
    $region12: #{tpu_custom_call.1} parent=1 // pred_region
      _
    $region13: #{tpu_custom_call.1} parent=1 // pred_fallthru
      _
    // Predicated region
    $region14: #{tpu_custom_call.1} parent=1 // pred_check
      _
    $region15: #{tpu_custom_call.1} parent=1 // pred_check_branch
      %20 = sbr.rel (0) target = $region17
    $region16: #{tpu_custom_call.1} parent=1 // pred_region
      _
    $region17: #{tpu_custom_call.1} parent=1 // pred_fallthru
      _
    // Predicated region
    $region18: #{tpu_custom_call.1} parent=1 // pred_check
      _
    $region19: #{tpu_custom_call.1} parent=1 // pred_check_branch
      %22 = sbr.rel (0) target = $region21
    $region20: #{tpu_custom_call.1} parent=1 // pred_region
      _
    $region21: #{tpu_custom_call.1} parent=1 // pred_fallthru
      _
    // Predicated region
    $region22: #{tpu_custom_call.1} parent=1 // pred_check
      _
    $region23: #{tpu_custom_call.1} parent=1 // pred_check_branch
      %24 = sbr.rel (0) target = $region25
    $region24: #{tpu_custom_call.1} parent=1 // pred_region
      _
    $region25: #{tpu_custom_call.1} parent=1 // pred_fallthru
      _
    // Predicated region
    $region26: #{tpu_custom_call.1} parent=1 // pred_check
      _
    $region27: #{tpu_custom_call.1} parent=1 // pred_check_branch
      %26 = sbr.rel (0) target = $region29
    $region28: #{tpu_custom_call.1} parent=1 // pred_region
      _
    $region29: #{tpu_custom_call.1} parent=1 // pred_fallthru
      _
    %v28 = vld [vmem:[%s0] sm:$0xf]
    %v29 = vld [vmem:[%s0 + $0x4] sm:$0xf]
    %v30 = vld [vmem:[%s0 + $0xc] sm:$0xf]
    %v31 = vld [vmem:[%s0 + $0x10] sm:$0xf]
    %v32 = vld [vmem:[%s0 + $0x18] sm:$0xf]
    %v33 = vld [vmem:[%s0 + $0x1c] sm:$0xf]
    %v34 = vld [vmem:[%s0 + $0x24] sm:$0xf]
    %v35 = vld [vmem:[%s0 + $0x28] sm:$0xf]
    %v36 = vld [vmem:[%s0 + $0x30] sm:$0xf]
    %v37 = vld [vmem:[%s0 + $0x34] sm:$0xf]
    %v38 = vld [vmem:[%s0 + $0x3c] sm:$0xf]
    %v39 = vld [vmem:[%s0 + $0x40] sm:$0xf]
    %v40 = vld [vmem:[%s0 + $0x48] sm:$0xf]
    %v41 = vld [vmem:[%s0 + $0x4c] sm:$0xf]
    %v42 = vld [vmem:[%s0 + $0x54] sm:$0xf]
    %v43 = vld [vmem:[%s0 + $0x58] sm:$0xf]
    %v44 = vld [vmem:[%s0 + $0x60] sm:$0xf]
    %v45 = vld [vmem:[%s0 + $0x64] sm:$0xf]
    %v46 = vld [vmem:[%s0 + $0x6c] sm:$0xf]
    %v47 = vld [vmem:[%s0 + $0x70] sm:$0xf]
    %v48 = vld [vmem:[%s0 + $0x78] sm:$0xf]
    %v49 = vld [vmem:[%s0 + $0x7c] sm:$0xf]
    %v50 = vld [vmem:[%s0 + $0x84] sm:$0xf]
    %v51 = vld [vmem:[%s0 + $0x88] sm:$0xf]
    %v52 = vld [vmem:[%s0 + $0x90] sm:$0xf]
    %v53 = vld [vmem:[%s0 + $0x94] sm:$0xf]
    %v54 = vld [vmem:[%s0 + $0x9c] sm:$0xf]
    %v55 = vld [vmem:[%s0 + $0xa0] sm:$0xf]
    %v56 = vld [vmem:[%s0 + $0xa8] sm:$0xf]
    %v57 = vld [vmem:[%s0 + $0xac] sm:$0xf]
    %v58 = vld [vmem:[%s0 + $0xb4] sm:$0xf]
    %v59 = vld [vmem:[%s0 + $0xb8] sm:$0xf]
    %v60 = vld [vmem:[%s0 + $0xf0] sm:$0xf]
    %v61 = vld [vmem:[%s0 + $0xf4] sm:$0xf]
    %v62 = vld [vmem:[%s0 + $0xfc] sm:$0xf]
    %v63 = vld [vmem:[%s0 + $0x100] sm:$0xf]
    %v64 = vld [vmem:[%s0 + $0x108] sm:$0xf]
    %v65 = vld [vmem:[%s0 + $0x10c] sm:$0xf]
    %v66 = vld [vmem:[%s0 + $0x114] sm:$0xf]
    %v67 = vld [vmem:[%s0 + $0x118] sm:$0xf]
    %v68 = vld [vmem:[%s0 + $0x120] sm:$0xf]
    %v69 = vld [vmem:[%s0 + $0x124] sm:$0xf]
    %v70 = vld [vmem:[%s0 + $0x12c] sm:$0xf]
    %v71 = vld [vmem:[%s0 + $0x130] sm:$0xf]
    %v72 = vld [vmem:[%s0 + $0x138] sm:$0xf]
    %v73 = vld [vmem:[%s0 + $0x13c] sm:$0xf]
    %v74 = vld [vmem:[%s0 + $0x144] sm:$0xf]
    %v75 = vld [vmem:[%s0 + $0x148] sm:$0xf]
    %v76 = vld [vmem:[%s0 + $0x150] sm:$0xf]
    %v77 = vld [vmem:[%s0 + $0x154] sm:$0xf]
    %v78 = vld [vmem:[%s0 + $0x15c] sm:$0xf]
    %v79 = vld [vmem:[%s0 + $0x160] sm:$0xf]
    %v80 = vld [vmem:[%s0 + $0x168] sm:$0xf]
    %v81 = vld [vmem:[%s0 + $0x16c] sm:$0xf]
    %v82 = vld [vmem:[%s0 + $0x174] sm:$0xf]
    %v83 = vld [vmem:[%s0 + $0x178] sm:$0xf]
    %v84 = vld [vmem:[%s0 + $0x180] sm:$0xf]
    %v85 = vld [vmem:[%s0 + $0x184] sm:$0xf]
    %v86 = vld [vmem:[%s0 + $0x18c] sm:$0xf]
    %v87 = vld [vmem:[%s0 + $0x190] sm:$0xf]
    %v88 = vld [vmem:[%s0 + $0x198] sm:$0xf]
    %v89 = vld [vmem:[%s0 + $0x19c] sm:$0xf]
    %v90 = vld [vmem:[%s0 + $0x1a4] sm:$0xf]
    %v91 = vld [vmem:[%s0 + $0x1a8] sm:$0xf]
    %v92 = vld [vmem:[%s1] sm:$0x3]
    %v93 = vld [vmem:[%s0] sm:$0xe]
    %v94 = vld [vmem:[%s0 + $0x8] sm:$0x1]
    %v95 = vld [vmem:[%s0 + $0xc] sm:$0xe]
    %v96 = vld [vmem:[%s0 + $0x14] sm:$0x1]
    %v97 = vld [vmem:[%s0 + $0x18] sm:$0xe]
    %v98 = vld [vmem:[%s0 + $0x20] sm:$0x1]
    %v99 = vld [vmem:[%s0 + $0x24] sm:$0xe]
    %v100 = vld [vmem:[%s0 + $0x2c] sm:$0x1]
    %v101 = vld [vmem:[%s0 + $0x30] sm:$0xe]
    %v102 = vld [vmem:[%s0 + $0x38] sm:$0x1]
    %v103 = vld [vmem:[%s0 + $0x3c] sm:$0xe]
    %v104 = vld [vmem:[%s0 + $0x44] sm:$0x1]
    %v105 = vld [vmem:[%s0 + $0x48] sm:$0xe]
    %v106 = vld [vmem:[%s0 + $0x50] sm:$0x1]
    %v107 = vld [vmem:[%s0 + $0x54] sm:$0xe]
    %v108 = vld [vmem:[%s0 + $0x5c] sm:$0x1]
    %v109 = vld [vmem:[%s0 + $0x60] sm:$0xe]
    %v110 = vld [vmem:[%s0 + $0x68] sm:$0x1]
    %v111 = vld [vmem:[%s0 + $0x6c] sm:$0xe]
    %v112 = vld [vmem:[%s0 + $0x74] sm:$0x1]
    %v113 = vld [vmem:[%s0 + $0x78] sm:$0xe]
    %v114 = vld [vmem:[%s0 + $0x80] sm:$0x1]
    %v115 = vld [vmem:[%s0 + $0x84] sm:$0xe]
    %v116 = vld [vmem:[%s0 + $0x8c] sm:$0x1]
    %v117 = vld [vmem:[%s0 + $0x90] sm:$0xe]
    %v118 = vld [vmem:[%s0 + $0x98] sm:$0x1]
    %v119 = vld [vmem:[%s0 + $0x9c] sm:$0xe]
    %v120 = vld [vmem:[%s0 + $0xa4] sm:$0x1]
    %v121 = vld [vmem:[%s0 + $0xa8] sm:$0xe]
    %v122 = vld [vmem:[%s0 + $0xb0] sm:$0x1]
    %v123 = vld [vmem:[%s0 + $0xb4] sm:$0xe]
    %v124 = vld [vmem:[%s0 + $0xbc] sm:$0x1]
    %v125 = vld [vmem:[%s0 + $0xf0] sm:$0xe]
    %v126 = vld [vmem:[%s0 + $0xf8] sm:$0x1]
    %v127 = vld [vmem:[%s0 + $0xfc] sm:$0xe]
    %v128 = vld [vmem:[%s0 + $0x104] sm:$0x1]
    %v129 = vld [vmem:[%s0 + $0x108] sm:$0xe]
    %v130 = vld [vmem:[%s0 + $0x110] sm:$0x1]
    %v131 = vld [vmem:[%s0 + $0x114] sm:$0xe]
    %v132 = vld [vmem:[%s0 + $0x11c] sm:$0x1]
    %v133 = vld [vmem:[%s0 + $0x120] sm:$0xe]
    %v134 = vld [vmem:[%s0 + $0x128] sm:$0x1]
    %v135 = vld [vmem:[%s0 + $0x12c] sm:$0xe]
    %v136 = vld [vmem:[%s0 + $0x134] sm:$0x1]
    %v137 = vld [vmem:[%s0 + $0x138] sm:$0xe]
    %v138 = vld [vmem:[%s0 + $0x140] sm:$0x1]
    %v139 = vld [vmem:[%s0 + $0x144] sm:$0xe]
    %v140 = vld [vmem:[%s0 + $0x14c] sm:$0x1]
    %v141 = vld [vmem:[%s0 + $0x150] sm:$0xe]
    %v142 = vld [vmem:[%s0 + $0x158] sm:$0x1]
    %v143 = vld [vmem:[%s0 + $0x15c] sm:$0xe]
    %v144 = vld [vmem:[%s0 + $0x164] sm:$0x1]
    %v145 = vld [vmem:[%s0 + $0x168] sm:$0xe]
    %v146 = vld [vmem:[%s0 + $0x170] sm:$0x1]
    %v147 = vld [vmem:[%s0 + $0x174] sm:$0xe]
    %v148 = vld [vmem:[%s0 + $0x17c] sm:$0x1]
    %v149 = vld [vmem:[%s0 + $0x180] sm:$0xe]
    %v150 = vld [vmem:[%s0 + $0x188] sm:$0x1]
    %v151 = vld [vmem:[%s0 + $0x18c] sm:$0xe]
    %v152 = vld [vmem:[%s0 + $0x194] sm:$0x1]
    %v153 = vld [vmem:[%s0 + $0x198] sm:$0xe]
    %v154 = vld [vmem:[%s0 + $0x1a0] sm:$0x1]
    %v155 = vld [vmem:[%s0 + $0x1a4] sm:$0xe]
    %v156 = vld [vmem:[%s0 + $0x1ac] sm:$0x1]
    %vm253 = vcmask 1042432
    %vm254 = vcmask 1046532
    %vm255 = vmor %vm253, %vm254
    %v256 = vrot.slane %v93, 5
    %v257 = vrot.slane %v256, 4
    %v258 = vrot.slane %v29, 5
    %v259 = vsel %vm255, %v257, %v258
    %v260 = vrot.slane %v258, 4
    %v261 = vrot.slane %v94, 5
    %v262 = vsel %vm255, %v260, %v261
    %v263 = vrot.slane %v95, 5
    %v264 = vrot.slane %v263, 4
    %v265 = vrot.slane %v31, 5
    %v266 = vsel %vm255, %v264, %v265
    %v267 = vrot.slane %v265, 4
    %v268 = vrot.slane %v96, 5
    %v269 = vsel %vm255, %v267, %v268
    %v270 = vrot.slane %v97, 5
    %v271 = vrot.slane %v270, 4
    %v272 = vrot.slane %v33, 5
    %v273 = vsel %vm255, %v271, %v272
    %v274 = vrot.slane %v272, 4
    %v275 = vrot.slane %v98, 5
    %v276 = vsel %vm255, %v274, %v275
    %v277 = vrot.slane %v99, 5
    %v278 = vrot.slane %v277, 4
    %v279 = vrot.slane %v35, 5
    %v280 = vsel %vm255, %v278, %v279
    %v281 = vrot.slane %v279, 4
    %v282 = vrot.slane %v100, 5
    %v283 = vsel %vm255, %v281, %v282
    %v284 = vrot.slane %v101, 5
    %v285 = vrot.slane %v284, 4
    %v286 = vrot.slane %v37, 5
    %v287 = vsel %vm255, %v285, %v286
    %v288 = vrot.slane %v286, 4
    %v289 = vrot.slane %v102, 5
    %v290 = vsel %vm255, %v288, %v289
    %v291 = vrot.slane %v103, 5
    %v292 = vrot.slane %v291, 4
    %v293 = vrot.slane %v39, 5
    %v294 = vsel %vm255, %v292, %v293
    %v295 = vrot.slane %v293, 4
    %v296 = vrot.slane %v104, 5
    %v297 = vsel %vm255, %v295, %v296
    %v298 = vrot.slane %v105, 5
    %v299 = vrot.slane %v298, 4
    %v300 = vrot.slane %v41, 5
    %v301 = vsel %vm255, %v299, %v300
    %v302 = vrot.slane %v300, 4
    %v303 = vrot.slane %v106, 5
    %v304 = vsel %vm255, %v302, %v303
    %v305 = vrot.slane %v107, 5
    %v306 = vrot.slane %v305, 4
    %v307 = vrot.slane %v43, 5
    %v308 = vsel %vm255, %v306, %v307
    %v309 = vrot.slane %v307, 4
    %v310 = vrot.slane %v108, 5
    %v311 = vsel %vm255, %v309, %v310
    %v312 = vrot.slane %v109, 5
    %v313 = vrot.slane %v312, 4
    %v314 = vrot.slane %v45, 5
    %v315 = vsel %vm255, %v313, %v314
    %v316 = vrot.slane %v314, 4
    %v317 = vrot.slane %v110, 5
    %v318 = vsel %vm255, %v316, %v317
    %v319 = vrot.slane %v111, 5
    %v320 = vrot.slane %v319, 4
    %v321 = vrot.slane %v47, 5
    %v322 = vsel %vm255, %v320, %v321
    %v323 = vrot.slane %v321, 4
    %v324 = vrot.slane %v112, 5
    %v325 = vsel %vm255, %v323, %v324
    %v326 = vrot.slane %v113, 5
    %v327 = vrot.slane %v326, 4
    %v328 = vrot.slane %v49, 5
    %v329 = vsel %vm255, %v327, %v328
    %v330 = vrot.slane %v328, 4
    %v331 = vrot.slane %v114, 5
    %v332 = vsel %vm255, %v330, %v331
    %v333 = vrot.slane %v115, 5
    %v334 = vrot.slane %v333, 4
    %v335 = vrot.slane %v51, 5
    %v336 = vsel %vm255, %v334, %v335
    %v337 = vrot.slane %v335, 4
    %v338 = vrot.slane %v116, 5
    %v339 = vsel %vm255, %v337, %v338
    %v340 = vrot.slane %v117, 5
    %v341 = vrot.slane %v340, 4
    %v342 = vrot.slane %v53, 5
    %v343 = vsel %vm255, %v341, %v342
    %v344 = vrot.slane %v342, 4
    %v345 = vrot.slane %v118, 5
    %v346 = vsel %vm255, %v344, %v345
    %v347 = vrot.slane %v119, 5
    %v348 = vrot.slane %v347, 4
    %v349 = vrot.slane %v55, 5
    %v350 = vsel %vm255, %v348, %v349
    %v351 = vrot.slane %v349, 4
    %v352 = vrot.slane %v120, 5
    %v353 = vsel %vm255, %v351, %v352
    %v354 = vrot.slane %v121, 5
    %v355 = vrot.slane %v354, 4
    %v356 = vrot.slane %v57, 5
    %v357 = vsel %vm255, %v355, %v356
    %v358 = vrot.slane %v356, 4
    %v359 = vrot.slane %v122, 5
    %v360 = vsel %vm255, %v358, %v359
    %v361 = vrot.slane %v123, 5
    %v362 = vrot.slane %v361, 4
    %v363 = vrot.slane %v59, 5
    %v364 = vsel %vm255, %v362, %v363
    %v365 = vrot.slane %v363, 4
    %v366 = vrot.slane %v124, 5
    %v367 = vsel %vm255, %v365, %v366
    %v368 = vrot.slane %v125, 5
    %v369 = vrot.slane %v368, 4
    %v370 = vrot.slane %v61, 5
    %v371 = vsel %vm255, %v369, %v370
    %v372 = vrot.slane %v370, 4
    %v373 = vrot.slane %v126, 5
    %v374 = vsel %vm255, %v372, %v373
    %v375 = vrot.slane %v127, 5
    %v376 = vrot.slane %v375, 4
    %v377 = vrot.slane %v63, 5
    %v378 = vsel %vm255, %v376, %v377
    %v379 = vrot.slane %v377, 4
    %v380 = vrot.slane %v128, 5
    %v381 = vsel %vm255, %v379, %v380
    %v382 = vrot.slane %v129, 5
    %v383 = vrot.slane %v382, 4
    %v384 = vrot.slane %v65, 5
    %v385 = vsel %vm255, %v383, %v384
    %v386 = vrot.slane %v384, 4
    %v387 = vrot.slane %v130, 5
    %v388 = vsel %vm255, %v386, %v387
    %v389 = vrot.slane %v131, 5
    %v390 = vrot.slane %v389, 4
    %v391 = vrot.slane %v67, 5
    %v392 = vsel %vm255, %v390, %v391
    %v393 = vrot.slane %v391, 4
    %v394 = vrot.slane %v132, 5
    %v395 = vsel %vm255, %v393, %v394
    %v396 = vrot.slane %v133, 5
    %v397 = vrot.slane %v396, 4
    %v398 = vrot.slane %v69, 5
    %v399 = vsel %vm255, %v397, %v398
    %v400 = vrot.slane %v398, 4
    %v401 = vrot.slane %v134, 5
    %v402 = vsel %vm255, %v400, %v401
    %v403 = vrot.slane %v135, 5
    %v404 = vrot.slane %v403, 4
    %v405 = vrot.slane %v71, 5
    %v406 = vsel %vm255, %v404, %v405
    %v407 = vrot.slane %v405, 4
    %v408 = vrot.slane %v136, 5
    %v409 = vsel %vm255, %v407, %v408
    %v410 = vrot.slane %v137, 5
    %v411 = vrot.slane %v410, 4
    %v412 = vrot.slane %v73, 5
    %v413 = vsel %vm255, %v411, %v412
    %v414 = vrot.slane %v412, 4
    %v415 = vrot.slane %v138, 5
    %v416 = vsel %vm255, %v414, %v415
    %v417 = vrot.slane %v139, 5
    %v418 = vrot.slane %v417, 4
    %v419 = vrot.slane %v75, 5
    %v420 = vsel %vm255, %v418, %v419
    %v421 = vrot.slane %v419, 4
    %v422 = vrot.slane %v140, 5
    %v423 = vsel %vm255, %v421, %v422
    %v424 = vrot.slane %v141, 5
    %v425 = vrot.slane %v424, 4
    %v426 = vrot.slane %v77, 5
    %v427 = vsel %vm255, %v425, %v426
    %v428 = vrot.slane %v426, 4
    %v429 = vrot.slane %v142, 5
    %v430 = vsel %vm255, %v428, %v429
    %v431 = vrot.slane %v143, 5
    %v432 = vrot.slane %v431, 4
    %v433 = vrot.slane %v79, 5
    %v434 = vsel %vm255, %v432, %v433
    %v435 = vrot.slane %v433, 4
    %v436 = vrot.slane %v144, 5
    %v437 = vsel %vm255, %v435, %v436
    %v438 = vrot.slane %v145, 5
    %v439 = vrot.slane %v438, 4
    %v440 = vrot.slane %v81, 5
    %v441 = vsel %vm255, %v439, %v440
    %v442 = vrot.slane %v440, 4
    %v443 = vrot.slane %v146, 5
    %v444 = vsel %vm255, %v442, %v443
    %v445 = vrot.slane %v147, 5
    %v446 = vrot.slane %v445, 4
    %v447 = vrot.slane %v83, 5
    %v448 = vsel %vm255, %v446, %v447
    %v449 = vrot.slane %v447, 4
    %v450 = vrot.slane %v148, 5
    %v451 = vsel %vm255, %v449, %v450
    %v452 = vrot.slane %v149, 5
    %v453 = vrot.slane %v452, 4
    %v454 = vrot.slane %v85, 5
    %v455 = vsel %vm255, %v453, %v454
    %v456 = vrot.slane %v454, 4
    %v457 = vrot.slane %v150, 5
    %v458 = vsel %vm255, %v456, %v457
    %v459 = vrot.slane %v151, 5
    %v460 = vrot.slane %v459, 4
    %v461 = vrot.slane %v87, 5
    %v462 = vsel %vm255, %v460, %v461
    %v463 = vrot.slane %v461, 4
    %v464 = vrot.slane %v152, 5
    %v465 = vsel %vm255, %v463, %v464
    %v466 = vrot.slane %v153, 5
    %v467 = vrot.slane %v466, 4
    %v468 = vrot.slane %v89, 5
    %v469 = vsel %vm255, %v467, %v468
    %v470 = vrot.slane %v468, 4
    %v471 = vrot.slane %v154, 5
    %v472 = vsel %vm255, %v470, %v471
    %v473 = vrot.slane %v155, 5
    %v474 = vrot.slane %v473, 4
    %v475 = vrot.slane %v91, 5
    %v476 = vsel %vm255, %v474, %v475
    %v477 = vrot.slane %v475, 4
    %v478 = vrot.slane %v156, 5
    %v479 = vsel %vm255, %v477, %v478
    %s480 = scalar_lea.vmem %s1, 2
    %v481 = vld [vmem:[%s480] sm:$0x3]
    %v482 = vunpack.c.l.b16 %v259
    %v483 = vunpack.c.l.b16 %v262
    %v484 = vunpack.c.l.b16 %v266
    %v485 = vunpack.c.l.b16 %v269
    %v486 = vunpack.c.l.b16 %v273
    %v487 = vunpack.c.l.b16 %v276
    %v488 = vunpack.c.l.b16 %v280
    %v489 = vunpack.c.l.b16 %v283
    %v490 = vunpack.c.l.b16 %v287
    %v491 = vunpack.c.l.b16 %v290
    %v492 = vunpack.c.l.b16 %v294
    %v493 = vunpack.c.l.b16 %v297
    %v494 = vunpack.c.l.b16 %v301
    %v495 = vunpack.c.l.b16 %v304
    %v496 = vunpack.c.l.b16 %v308
    %v497 = vunpack.c.l.b16 %v311
    %v498 = vunpack.c.l.b16 %v315
    %v499 = vunpack.c.l.b16 %v318
    %v500 = vunpack.c.l.b16 %v322
    %v501 = vunpack.c.l.b16 %v325
    %v502 = vunpack.c.l.b16 %v329
    %v503 = vunpack.c.l.b16 %v332
    %v504 = vunpack.c.l.b16 %v336
    %v505 = vunpack.c.l.b16 %v339
    %v506 = vunpack.c.l.b16 %v343
    %v507 = vunpack.c.l.b16 %v346
    %v508 = vunpack.c.l.b16 %v350
    %v509 = vunpack.c.l.b16 %v353
    %v510 = vunpack.c.l.b16 %v357
    %v511 = vunpack.c.l.b16 %v360
    %v512 = vunpack.c.l.b16 %v364
    %v513 = vunpack.c.l.b16 %v367
    %v514 = vunpack.c.l.b16 %v371
    %v515 = vunpack.c.l.b16 %v374
    %v516 = vunpack.c.l.b16 %v378
    %v517 = vunpack.c.l.b16 %v381
    %v518 = vunpack.c.l.b16 %v385
    %v519 = vunpack.c.l.b16 %v388
    %v520 = vunpack.c.l.b16 %v392
    %v521 = vunpack.c.l.b16 %v395
    %v522 = vunpack.c.l.b16 %v399
    %v523 = vunpack.c.l.b16 %v402
    %v524 = vunpack.c.l.b16 %v406
    %v525 = vunpack.c.l.b16 %v409
    %v526 = vunpack.c.l.b16 %v413
    %v527 = vunpack.c.l.b16 %v416
    %v528 = vunpack.c.l.b16 %v420
    %v529 = vunpack.c.l.b16 %v423
    %v530 = vunpack.c.l.b16 %v427
    %v531 = vunpack.c.l.b16 %v430
    %v532 = vunpack.c.l.b16 %v434
    %v533 = vunpack.c.l.b16 %v437
    %v534 = vunpack.c.l.b16 %v441
    %v535 = vunpack.c.l.b16 %v444
    %v536 = vunpack.c.l.b16 %v448
    %v537 = vunpack.c.l.b16 %v451
    %v538 = vunpack.c.l.b16 %v455
    %v539 = vunpack.c.l.b16 %v458
    %v540 = vunpack.c.l.b16 %v462
    %v541 = vunpack.c.l.b16 %v465
    %v542 = vunpack.c.l.b16 %v469
    %v543 = vunpack.c.l.b16 %v472
    %v544 = vunpack.c.l.b16 %v476
    %v545 = vunpack.c.l.b16 %v479
    %v546 = vpack.c.b16 %v483, %v482
    %v547 = vpack.c.b16 %v485, %v484
    %v548 = vpack.c.b16 %v487, %v486
    %v549 = vpack.c.b16 %v489, %v488
    %v550 = vpack.c.b16 %v491, %v490
    %v551 = vpack.c.b16 %v493, %v492
    %v552 = vpack.c.b16 %v495, %v494
    %v553 = vpack.c.b16 %v497, %v496
    %v554 = vpack.c.b16 %v499, %v498
    %v555 = vpack.c.b16 %v501, %v500
    %v556 = vpack.c.b16 %v503, %v502
    %v557 = vpack.c.b16 %v505, %v504
    %v558 = vpack.c.b16 %v507, %v506
    %v559 = vpack.c.b16 %v509, %v508
    %v560 = vpack.c.b16 %v511, %v510
    %v561 = vpack.c.b16 %v513, %v512
    %v562 = vpack.c.b16 %v515, %v514
    %v563 = vpack.c.b16 %v517, %v516
    %v564 = vpack.c.b16 %v519, %v518
    %v565 = vpack.c.b16 %v521, %v520
    %v566 = vpack.c.b16 %v523, %v522
    %v567 = vpack.c.b16 %v525, %v524
    %v568 = vpack.c.b16 %v527, %v526
    %v569 = vpack.c.b16 %v529, %v528
    %v570 = vpack.c.b16 %v531, %v530
    %v571 = vpack.c.b16 %v533, %v532
    %v572 = vpack.c.b16 %v535, %v534
    %v573 = vpack.c.b16 %v537, %v536
    %v574 = vpack.c.b16 %v539, %v538
    %v575 = vpack.c.b16 %v541, %v540
    %v576 = vpack.c.b16 %v543, %v542
    %v577 = vpack.c.b16 %v545, %v544
    %vm578 = vcmask 31744
    %v580 = vsel %vm578, %v546, 0
    %v583 = vsel %vm578, %v547, 0
    %v586 = vsel %vm578, %v548, 0
    %v589 = vsel %vm578, %v549, 0
    %v592 = vsel %vm578, %v550, 0
    %v595 = vsel %vm578, %v551, 0
    %v598 = vsel %vm578, %v552, 0
    %v601 = vsel %vm578, %v553, 0
    %v604 = vsel %vm578, %v554, 0
    %v607 = vsel %vm578, %v555, 0
    %v610 = vsel %vm578, %v556, 0
    %v613 = vsel %vm578, %v557, 0
    %v616 = vsel %vm578, %v558, 0
    %v619 = vsel %vm578, %v559, 0
    %v622 = vsel %vm578, %v560, 0
    %v625 = vsel %vm578, %v561, 0
    %v628 = vsel %vm578, %v562, 0
    %v631 = vsel %vm578, %v563, 0
    %v634 = vsel %vm578, %v564, 0
    %v637 = vsel %vm578, %v565, 0
    %v640 = vsel %vm578, %v566, 0
    %v643 = vsel %vm578, %v567, 0
    %v646 = vsel %vm578, %v568, 0
    %v649 = vsel %vm578, %v569, 0
    %v652 = vsel %vm578, %v570, 0
    %v655 = vsel %vm578, %v571, 0
    %v658 = vsel %vm578, %v572, 0
    %v661 = vsel %vm578, %v573, 0
    %v664 = vsel %vm578, %v574, 0
    %v667 = vsel %vm578, %v575, 0
    %v670 = vsel %vm578, %v576, 0
    %v673 = vsel %vm578, %v577, 0
    %vm675 = vcmask 1041408
    %v677 = vsel %vm675, %v481, 0
    %679 = vmatprep.subr.bf16.mxu0 0
    %680 = vmatpush1.bf16.msra.mxu0 %v677
    %681 = vmatprep.subr.bf16.mxu0 0
    %682 = vmatpush1.bf16.msra.mxu0 0
    %683 = vmatprep.subr.bf16.mxu0 0
    %684 = vmatpush1.bf16.msra.mxu0 0
    %685 = vmatprep.subr.bf16.mxu0 0
    %686 = vmatpush1.bf16.msra.mxu0 0
    %687 = vmatprep.subr.bf16.mxu0 0
    %688 = vmatpush1.bf16.msra.mxu0 0
    %689 = vmatprep.subr.bf16.mxu0 0
    %690 = vmatpush1.bf16.msra.mxu0 0
    %691 = vmatprep.subr.bf16.mxu0 0
    %692 = vmatpush1.bf16.msra.mxu0 0
    %693 = vmatprep.subr.bf16.mxu0 0
    %694 = vmatpush1.bf16.msra.mxu0 0
    %695 = vmatprep.subr.bf16.mxu0 0
    %696 = vmatpush1.bf16.msra.mxu0 0
    %697 = vmatprep.subr.bf16.mxu0 0
    %698 = vmatpush1.bf16.msra.mxu0 0
    %699 = vmatprep.subr.bf16.mxu0 0
    %700 = vmatpush1.bf16.msra.mxu0 0
    %701 = vmatprep.subr.bf16.mxu0 0
    %702 = vmatpush1.bf16.msra.mxu0 0
    %703 = vmatprep.subr.bf16.mxu0 0
    %704 = vmatpush1.bf16.msra.mxu0 0
    %705 = vmatprep.subr.bf16.mxu0 0
    %706 = vmatpush1.bf16.msra.mxu0 0
    %707 = vmatprep.subr.bf16.mxu0 0
    %708 = vmatpush1.bf16.msra.mxu0 0
    %709 = vmatprep.subr.bf16.mxu0 0
    %710 = vmatpush1.bf16.msra.mxu0 0
    %711 = vmatprep.mubr.bf16.mxu0 0
    %712 = vmatmul.mubr.bf16.gmra.mrb[0].mxu0 %v580
    %v713 = vpop.f32.mrb[0].mxu0
    %v714 = vadd.f32 0.0, %v713
    %v715 = vpop.f32.mrb[0].mxu0
    %v716 = vpop.f32.mrb[0].mxu0
    %v717 = vadd.f32 0.0, %v716
    %v718 = vpop.f32.mrb[0].mxu0
    %719 = vmatprep.mubr.bf16.mxu0 0
    %720 = vmatmul.mubr.bf16.gmra.mrb[0].mxu0 %v583
    %v721 = vpop.f32.mrb[0].mxu0
    %v722 = vadd.f32 0.0, %v721
    %v723 = vpop.f32.mrb[0].mxu0
    %v724 = vpop.f32.mrb[0].mxu0
    %v725 = vadd.f32 0.0, %v724
    %v726 = vpop.f32.mrb[0].mxu0
    %727 = vmatprep.mubr.bf16.mxu0 0
    %728 = vmatmul.mubr.bf16.gmra.mrb[0].mxu0 %v586
    %v729 = vpop.f32.mrb[0].mxu0
    %v730 = vadd.f32 0.0, %v729
    %v731 = vpop.f32.mrb[0].mxu0
    %v732 = vpop.f32.mrb[0].mxu0
    %v733 = vadd.f32 0.0, %v732
    %v734 = vpop.f32.mrb[0].mxu0
    %735 = vmatprep.mubr.bf16.mxu0 0
    %736 = vmatmul.mubr.bf16.gmra.mrb[0].mxu0 %v589
    %v737 = vpop.f32.mrb[0].mxu0
    %v738 = vadd.f32 0.0, %v737
    %v739 = vpop.f32.mrb[0].mxu0
    %v740 = vpop.f32.mrb[0].mxu0
    %v741 = vadd.f32 0.0, %v740
    %v742 = vpop.f32.mrb[0].mxu0
    %743 = vmatprep.mubr.bf16.mxu0 0
    %744 = vmatmul.mubr.bf16.gmra.mrb[0].mxu0 %v592
    %v745 = vpop.f32.mrb[0].mxu0
    %v746 = vadd.f32 0.0, %v745
    %v747 = vpop.f32.mrb[0].mxu0
    %v748 = vpop.f32.mrb[0].mxu0
    %v749 = vadd.f32 0.0, %v748
    %v750 = vpop.f32.mrb[0].mxu0
    %751 = vmatprep.mubr.bf16.mxu0 0
    %752 = vmatmul.mubr.bf16.gmra.mrb[0].mxu0 %v595
    %v753 = vpop.f32.mrb[0].mxu0
    %v754 = vadd.f32 0.0, %v753
    %v755 = vpop.f32.mrb[0].mxu0
    %v756 = vpop.f32.mrb[0].mxu0
    %v757 = vadd.f32 0.0, %v756
    %v758 = vpop.f32.mrb[0].mxu0
    %759 = vmatprep.mubr.bf16.mxu0 0
    %760 = vmatmul.mubr.bf16.gmra.mrb[0].mxu0 %v598
    %v761 = vpop.f32.mrb[0].mxu0
    %v762 = vadd.f32 0.0, %v761
    %v763 = vpop.f32.mrb[0].mxu0
    %v764 = vpop.f32.mrb[0].mxu0
    %v765 = vadd.f32 0.0, %v764
    %v766 = vpop.f32.mrb[0].mxu0
    %767 = vmatprep.mubr.bf16.mxu0 0
    %768 = vmatmul.mubr.bf16.gmra.mrb[0].mxu0 %v601
    %v769 = vpop.f32.mrb[0].mxu0
    %v770 = vadd.f32 0.0, %v769
    %v771 = vpop.f32.mrb[0].mxu0
    %v772 = vpop.f32.mrb[0].mxu0
    %v773 = vadd.f32 0.0, %v772
    %v774 = vpop.f32.mrb[0].mxu0
    %775 = vmatprep.mubr.bf16.mxu0 0
    %776 = vmatmul.mubr.bf16.gmra.mrb[0].mxu0 %v604
    %v777 = vpop.f32.mrb[0].mxu0
    %v778 = vadd.f32 0.0, %v777
    %v779 = vpop.f32.mrb[0].mxu0
    %v780 = vpop.f32.mrb[0].mxu0
    %v781 = vadd.f32 0.0, %v780
    %v782 = vpop.f32.mrb[0].mxu0
    %783 = vmatprep.mubr.bf16.mxu0 0
    %784 = vmatmul.mubr.bf16.gmra.mrb[0].mxu0 %v607
    %v785 = vpop.f32.mrb[0].mxu0
    %v786 = vadd.f32 0.0, %v785
    %v787 = vpop.f32.mrb[0].mxu0
    %v788 = vpop.f32.mrb[0].mxu0
    %v789 = vadd.f32 0.0, %v788
    %v790 = vpop.f32.mrb[0].mxu0
    %791 = vmatprep.mubr.bf16.mxu0 0
    %792 = vmatmul.mubr.bf16.gmra.mrb[0].mxu0 %v610
    %v793 = vpop.f32.mrb[0].mxu0
    %v794 = vadd.f32 0.0, %v793
    %v795 = vpop.f32.mrb[0].mxu0
    %v796 = vpop.f32.mrb[0].mxu0
    %v797 = vadd.f32 0.0, %v796
    %v798 = vpop.f32.mrb[0].mxu0
    %799 = vmatprep.mubr.bf16.mxu0 0
    %800 = vmatmul.mubr.bf16.gmra.mrb[0].mxu0 %v613
    %v801 = vpop.f32.mrb[0].mxu0
    %v802 = vadd.f32 0.0, %v801
    %v803 = vpop.f32.mrb[0].mxu0
    %v804 = vpop.f32.mrb[0].mxu0
    %v805 = vadd.f32 0.0, %v804
    %v806 = vpop.f32.mrb[0].mxu0
    %807 = vmatprep.mubr.bf16.mxu0 0
    %808 = vmatmul.mubr.bf16.gmra.mrb[0].mxu0 %v616
    %v809 = vpop.f32.mrb[0].mxu0
    %v810 = vadd.f32 0.0, %v809
    %v811 = vpop.f32.mrb[0].mxu0
    %v812 = vpop.f32.mrb[0].mxu0
    %v813 = vadd.f32 0.0, %v812
    %v814 = vpop.f32.mrb[0].mxu0
    %815 = vmatprep.mubr.bf16.mxu0 0
    %816 = vmatmul.mubr.bf16.gmra.mrb[0].mxu0 %v619
    %v817 = vpop.f32.mrb[0].mxu0
    %v818 = vadd.f32 0.0, %v817
    %v819 = vpop.f32.mrb[0].mxu0
    %v820 = vpop.f32.mrb[0].mxu0
    %v821 = vadd.f32 0.0, %v820
    %v822 = vpop.f32.mrb[0].mxu0
    %823 = vmatprep.mubr.bf16.mxu0 0
    %824 = vmatmul.mubr.bf16.gmra.mrb[0].mxu0 %v622
    %v825 = vpop.f32.mrb[0].mxu0
    %v826 = vadd.f32 0.0, %v825
    %v827 = vpop.f32.mrb[0].mxu0
    %v828 = vpop.f32.mrb[0].mxu0
    %v829 = vadd.f32 0.0, %v828
    %v830 = vpop.f32.mrb[0].mxu0
    %831 = vmatprep.mubr.bf16.mxu0 0
    %832 = vmatmul.mubr.bf16.gmra.mrb[0].mxu0 %v625
    %v833 = vpop.f32.mrb[0].mxu0
    %v834 = vadd.f32 0.0, %v833
    %v835 = vpop.f32.mrb[0].mxu0
    %v836 = vpop.f32.mrb[0].mxu0
    %v837 = vadd.f32 0.0, %v836
    %v838 = vpop.f32.mrb[0].mxu0
    %839 = vmatprep.mubr.bf16.mxu0 0
    %840 = vmatmul.mubr.bf16.gmra.mrb[0].mxu0 %v628
    %v841 = vpop.f32.mrb[0].mxu0
    %v842 = vadd.f32 0.0, %v841
    %v843 = vpop.f32.mrb[0].mxu0
    %v844 = vpop.f32.mrb[0].mxu0
    %v845 = vadd.f32 0.0, %v844
    %v846 = vpop.f32.mrb[0].mxu0
    %847 = vmatprep.mubr.bf16.mxu0 0
    %848 = vmatmul.mubr.bf16.gmra.mrb[0].mxu0 %v631
    %v849 = vpop.f32.mrb[0].mxu0
    %v850 = vadd.f32 0.0, %v849
    %v851 = vpop.f32.mrb[0].mxu0
    %v852 = vpop.f32.mrb[0].mxu0
    %v853 = vadd.f32 0.0, %v852
    %v854 = vpop.f32.mrb[0].mxu0
    %855 = vmatprep.mubr.bf16.mxu0 0
    %856 = vmatmul.mubr.bf16.gmra.mrb[0].mxu0 %v634
    %v857 = vpop.f32.mrb[0].mxu0
    %v858 = vadd.f32 0.0, %v857
    %v859 = vpop.f32.mrb[0].mxu0
    %v860 = vpop.f32.mrb[0].mxu0
    %v861 = vadd.f32 0.0, %v860
    %v862 = vpop.f32.mrb[0].mxu0
    %863 = vmatprep.mubr.bf16.mxu0 0
    %864 = vmatmul.mubr.bf16.gmra.mrb[0].mxu0 %v637
    %v865 = vpop.f32.mrb[0].mxu0
    %v866 = vadd.f32 0.0, %v865
    %v867 = vpop.f32.mrb[0].mxu0
    %v868 = vpop.f32.mrb[0].mxu0
    %v869 = vadd.f32 0.0, %v868
    %v870 = vpop.f32.mrb[0].mxu0
    %871 = vmatprep.mubr.bf16.mxu0 0
    %872 = vmatmul.mubr.bf16.gmra.mrb[0].mxu0 %v640
    %v873 = vpop.f32.mrb[0].mxu0
    %v874 = vadd.f32 0.0, %v873
    %v875 = vpop.f32.mrb[0].mxu0
    %v876 = vpop.f32.mrb[0].mxu0
    %v877 = vadd.f32 0.0, %v876
    %v878 = vpop.f32.mrb[0].mxu0
    %879 = vmatprep.mubr.bf16.mxu0 0
    %880 = vmatmul.mubr.bf16.gmra.mrb[0].mxu0 %v643
    %v881 = vpop.f32.mrb[0].mxu0
    %v882 = vadd.f32 0.0, %v881
    %v883 = vpop.f32.mrb[0].mxu0
    %v884 = vpop.f32.mrb[0].mxu0
    %v885 = vadd.f32 0.0, %v884
    %v886 = vpop.f32.mrb[0].mxu0
    %887 = vmatprep.mubr.bf16.mxu0 0
    %888 = vmatmul.mubr.bf16.gmra.mrb[0].mxu0 %v646
    %v889 = vpop.f32.mrb[0].mxu0
    %v890 = vadd.f32 0.0, %v889
    %v891 = vpop.f32.mrb[0].mxu0
    %v892 = vpop.f32.mrb[0].mxu0
    %v893 = vadd.f32 0.0, %v892
    %v894 = vpop.f32.mrb[0].mxu0
    %895 = vmatprep.mubr.bf16.mxu0 0
    %896 = vmatmul.mubr.bf16.gmra.mrb[0].mxu0 %v649
    %v897 = vpop.f32.mrb[0].mxu0
    %v898 = vadd.f32 0.0, %v897
    %v899 = vpop.f32.mrb[0].mxu0
    %v900 = vpop.f32.mrb[0].mxu0
    %v901 = vadd.f32 0.0, %v900
    %v902 = vpop.f32.mrb[0].mxu0
    %903 = vmatprep.mubr.bf16.mxu0 0
    %904 = vmatmul.mubr.bf16.gmra.mrb[0].mxu0 %v652
    %v905 = vpop.f32.mrb[0].mxu0
    %v906 = vadd.f32 0.0, %v905
    %v907 = vpop.f32.mrb[0].mxu0
    %v908 = vpop.f32.mrb[0].mxu0
    %v909 = vadd.f32 0.0, %v908
    %v910 = vpop.f32.mrb[0].mxu0
    %911 = vmatprep.mubr.bf16.mxu0 0
    %912 = vmatmul.mubr.bf16.gmra.mrb[0].mxu0 %v655
    %v913 = vpop.f32.mrb[0].mxu0
    %v914 = vadd.f32 0.0, %v913
    %v915 = vpop.f32.mrb[0].mxu0
    %v916 = vpop.f32.mrb[0].mxu0
    %v917 = vadd.f32 0.0, %v916
    %v918 = vpop.f32.mrb[0].mxu0
    %919 = vmatprep.mubr.bf16.mxu0 0
    %920 = vmatmul.mubr.bf16.gmra.mrb[0].mxu0 %v658
    %v921 = vpop.f32.mrb[0].mxu0
    %v922 = vadd.f32 0.0, %v921
    %v923 = vpop.f32.mrb[0].mxu0
    %v924 = vpop.f32.mrb[0].mxu0
    %v925 = vadd.f32 0.0, %v924
    %v926 = vpop.f32.mrb[0].mxu0
    %927 = vmatprep.mubr.bf16.mxu0 0
    %928 = vmatmul.mubr.bf16.gmra.mrb[0].mxu0 %v661
    %v929 = vpop.f32.mrb[0].mxu0
    %v930 = vadd.f32 0.0, %v929
    %v931 = vpop.f32.mrb[0].mxu0
    %v932 = vpop.f32.mrb[0].mxu0
    %v933 = vadd.f32 0.0, %v932
    %v934 = vpop.f32.mrb[0].mxu0
    %935 = vmatprep.mubr.bf16.mxu0 0
    %936 = vmatmul.mubr.bf16.gmra.mrb[0].mxu0 %v664
    %v937 = vpop.f32.mrb[0].mxu0
    %v938 = vadd.f32 0.0, %v937
    %v939 = vpop.f32.mrb[0].mxu0
    %v940 = vpop.f32.mrb[0].mxu0
    %v941 = vadd.f32 0.0, %v940
    %v942 = vpop.f32.mrb[0].mxu0
    %943 = vmatprep.mubr.bf16.mxu0 0
    %944 = vmatmul.mubr.bf16.gmra.mrb[0].mxu0 %v667
    %v945 = vpop.f32.mrb[0].mxu0
    %v946 = vadd.f32 0.0, %v945
    %v947 = vpop.f32.mrb[0].mxu0
    %v948 = vpop.f32.mrb[0].mxu0
    %v949 = vadd.f32 0.0, %v948
    %v950 = vpop.f32.mrb[0].mxu0
    %951 = vmatprep.mubr.bf16.mxu0 0
    %952 = vmatmul.mubr.bf16.gmra.mrb[0].mxu0 %v670
    %v953 = vpop.f32.mrb[0].mxu0
    %v954 = vadd.f32 0.0, %v953
    %v955 = vpop.f32.mrb[0].mxu0
    %v956 = vpop.f32.mrb[0].mxu0
    %v957 = vadd.f32 0.0, %v956
    %v958 = vpop.f32.mrb[0].mxu0
    %959 = vmatprep.mubr.bf16.mxu0 0
    %960 = vmatmul.mubr.bf16.gmra.mrb[0].mxu0 %v673
    %v961 = vpop.f32.mrb[0].mxu0
    %v962 = vadd.f32 0.0, %v961
    %v963 = vpop.f32.mrb[0].mxu0
    %v964 = vpop.f32.mrb[0].mxu0
    %v965 = vadd.f32 0.0, %v964
    %v966 = vpop.f32.mrb[0].mxu0
    %967 = vdwg.mxu0
    %v1000 = vunpack.c.l.b16 %v28
    %v1001 = vunpack.c.l.b16 %v29
    %v1002 = vunpack.c.l.b16 %v30
    %v1003 = vunpack.c.l.b16 %v31
    %v1004 = vunpack.c.l.b16 %v32
    %v1005 = vunpack.c.l.b16 %v33
    %v1006 = vunpack.c.l.b16 %v34
    %v1007 = vunpack.c.l.b16 %v35
    %v1008 = vunpack.c.l.b16 %v36
    %v1009 = vunpack.c.l.b16 %v37
    %v1010 = vunpack.c.l.b16 %v38
    %v1011 = vunpack.c.l.b16 %v39
    %v1012 = vunpack.c.l.b16 %v40
    %v1013 = vunpack.c.l.b16 %v41
    %v1014 = vunpack.c.l.b16 %v42
    %v1015 = vunpack.c.l.b16 %v43
    %v1016 = vunpack.c.l.b16 %v44
    %v1017 = vunpack.c.l.b16 %v45
    %v1018 = vunpack.c.l.b16 %v46
    %v1019 = vunpack.c.l.b16 %v47
    %v1020 = vunpack.c.l.b16 %v48
    %v1021 = vunpack.c.l.b16 %v49
    %v1022 = vunpack.c.l.b16 %v50
    %v1023 = vunpack.c.l.b16 %v51
    %v1024 = vunpack.c.l.b16 %v52
    %v1025 = vunpack.c.l.b16 %v53
    %v1026 = vunpack.c.l.b16 %v54
    %v1027 = vunpack.c.l.b16 %v55
    %v1028 = vunpack.c.l.b16 %v56
    %v1029 = vunpack.c.l.b16 %v57
    %v1030 = vunpack.c.l.b16 %v58
    %v1031 = vunpack.c.l.b16 %v59
    %v1032 = vunpack.c.l.b16 %v60
    %v1033 = vunpack.c.l.b16 %v61
    %v1034 = vunpack.c.l.b16 %v62
    %v1035 = vunpack.c.l.b16 %v63
    %v1036 = vunpack.c.l.b16 %v64
    %v1037 = vunpack.c.l.b16 %v65
    %v1038 = vunpack.c.l.b16 %v66
    %v1039 = vunpack.c.l.b16 %v67
    %v1040 = vunpack.c.l.b16 %v68
    %v1041 = vunpack.c.l.b16 %v69
    %v1042 = vunpack.c.l.b16 %v70
    %v1043 = vunpack.c.l.b16 %v71
    %v1044 = vunpack.c.l.b16 %v72
    %v1045 = vunpack.c.l.b16 %v73
    %v1046 = vunpack.c.l.b16 %v74
    %v1047 = vunpack.c.l.b16 %v75
    %v1048 = vunpack.c.l.b16 %v76
    %v1049 = vunpack.c.l.b16 %v77
    %v1050 = vunpack.c.l.b16 %v78
    %v1051 = vunpack.c.l.b16 %v79
    %v1052 = vunpack.c.l.b16 %v80
    %v1053 = vunpack.c.l.b16 %v81
    %v1054 = vunpack.c.l.b16 %v82
    %v1055 = vunpack.c.l.b16 %v83
    %v1056 = vunpack.c.l.b16 %v84
    %v1057 = vunpack.c.l.b16 %v85
    %v1058 = vunpack.c.l.b16 %v86
    %v1059 = vunpack.c.l.b16 %v87
    %v1060 = vunpack.c.l.b16 %v88
    %v1061 = vunpack.c.l.b16 %v89
    %v1062 = vunpack.c.l.b16 %v90
    %v1063 = vunpack.c.l.b16 %v91
    %v1064 = vpack.c.b16 %v1001, %v1000
    %v1065 = vpack.c.b16 %v1003, %v1002
    %v1066 = vpack.c.b16 %v1005, %v1004
    %v1067 = vpack.c.b16 %v1007, %v1006
    %v1068 = vpack.c.b16 %v1009, %v1008
    %v1069 = vpack.c.b16 %v1011, %v1010
    %v1070 = vpack.c.b16 %v1013, %v1012
    %v1071 = vpack.c.b16 %v1015, %v1014
    %v1072 = vpack.c.b16 %v1017, %v1016
    %v1073 = vpack.c.b16 %v1019, %v1018
    %v1074 = vpack.c.b16 %v1021, %v1020
    %v1075 = vpack.c.b16 %v1023, %v1022
    %v1076 = vpack.c.b16 %v1025, %v1024
    %v1077 = vpack.c.b16 %v1027, %v1026
    %v1078 = vpack.c.b16 %v1029, %v1028
    %v1079 = vpack.c.b16 %v1031, %v1030
    %v1080 = vpack.c.b16 %v1033, %v1032
    %v1081 = vpack.c.b16 %v1035, %v1034
    %v1082 = vpack.c.b16 %v1037, %v1036
    %v1083 = vpack.c.b16 %v1039, %v1038
    %v1084 = vpack.c.b16 %v1041, %v1040
    %v1085 = vpack.c.b16 %v1043, %v1042
    %v1086 = vpack.c.b16 %v1045, %v1044
    %v1087 = vpack.c.b16 %v1047, %v1046
    %v1088 = vpack.c.b16 %v1049, %v1048
    %v1089 = vpack.c.b16 %v1051, %v1050
    %v1090 = vpack.c.b16 %v1053, %v1052
    %v1091 = vpack.c.b16 %v1055, %v1054
    %v1092 = vpack.c.b16 %v1057, %v1056
    %v1093 = vpack.c.b16 %v1059, %v1058
    %v1094 = vpack.c.b16 %v1061, %v1060
    %v1095 = vpack.c.b16 %v1063, %v1062
    %v1097 = vsel %vm578, %v1064, 0
    %v1100 = vsel %vm578, %v1065, 0
    %v1103 = vsel %vm578, %v1066, 0
    %v1106 = vsel %vm578, %v1067, 0
    %v1109 = vsel %vm578, %v1068, 0
    %v1112 = vsel %vm578, %v1069, 0
    %v1115 = vsel %vm578, %v1070, 0
    %v1118 = vsel %vm578, %v1071, 0
    %v1121 = vsel %vm578, %v1072, 0
    %v1124 = vsel %vm578, %v1073, 0
    %v1127 = vsel %vm578, %v1074, 0
    %v1130 = vsel %vm578, %v1075, 0
    %v1133 = vsel %vm578, %v1076, 0
    %v1136 = vsel %vm578, %v1077, 0
    %v1139 = vsel %vm578, %v1078, 0
    %v1142 = vsel %vm578, %v1079, 0
    %v1145 = vsel %vm578, %v1080, 0
    %v1148 = vsel %vm578, %v1081, 0
    %v1151 = vsel %vm578, %v1082, 0
    %v1154 = vsel %vm578, %v1083, 0
    %v1157 = vsel %vm578, %v1084, 0
    %v1160 = vsel %vm578, %v1085, 0
    %v1163 = vsel %vm578, %v1086, 0
    %v1166 = vsel %vm578, %v1087, 0
    %v1169 = vsel %vm578, %v1088, 0
    %v1172 = vsel %vm578, %v1089, 0
    %v1175 = vsel %vm578, %v1090, 0
    %v1178 = vsel %vm578, %v1091, 0
    %v1181 = vsel %vm578, %v1092, 0
    %v1184 = vsel %vm578, %v1093, 0
    %v1187 = vsel %vm578, %v1094, 0
    %v1190 = vsel %vm578, %v1095, 0
    %v1193 = vsel %vm675, %v92, 0
    %1195 = vmatprep.subr.bf16.mxu0 0
    %1196 = vmatpush1.bf16.msra.mxu0 %v1193
    %1197 = vmatprep.subr.bf16.mxu0 0
    %1198 = vmatpush1.bf16.msra.mxu0 0
    %1199 = vmatprep.subr.bf16.mxu0 0
    %1200 = vmatpush1.bf16.msra.mxu0 0
    %1201 = vmatprep.subr.bf16.mxu0 0
    %1202 = vmatpush1.bf16.msra.mxu0 0
    %1203 = vmatprep.subr.bf16.mxu0 0
    %1204 = vmatpush1.bf16.msra.mxu0 0
    %1205 = vmatprep.subr.bf16.mxu0 0
    %1206 = vmatpush1.bf16.msra.mxu0 0
    %1207 = vmatprep.subr.bf16.mxu0 0
    %1208 = vmatpush1.bf16.msra.mxu0 0
    %1209 = vmatprep.subr.bf16.mxu0 0
    %1210 = vmatpush1.bf16.msra.mxu0 0
    %1211 = vmatprep.subr.bf16.mxu0 0
    %1212 = vmatpush1.bf16.msra.mxu0 0
    %1213 = vmatprep.subr.bf16.mxu0 0
    %1214 = vmatpush1.bf16.msra.mxu0 0
    %1215 = vmatprep.subr.bf16.mxu0 0
    %1216 = vmatpush1.bf16.msra.mxu0 0
    %1217 = vmatprep.subr.bf16.mxu0 0
    %1218 = vmatpush1.bf16.msra.mxu0 0
    %1219 = vmatprep.subr.bf16.mxu0 0
    %1220 = vmatpush1.bf16.msra.mxu0 0
    %1221 = vmatprep.subr.bf16.mxu0 0
    %1222 = vmatpush1.bf16.msra.mxu0 0
    %1223 = vmatprep.subr.bf16.mxu0 0
    %1224 = vmatpush1.bf16.msra.mxu0 0
    %1225 = vmatprep.subr.bf16.mxu0 0
    %1226 = vmatpush1.bf16.msra.mxu0 0
    %1227 = vmatprep.mubr.bf16.mxu0 0
    %1228 = vmatmul.mubr.bf16.gmra.mrb[0].mxu0 %v1097
    %v1229 = vpop.f32.mrb[0].mxu0
    %v1230 = vadd.f32 %v714, %v1229
    %v1231 = vpop.f32.mrb[0].mxu0
    %v1232 = vpop.f32.mrb[0].mxu0
    %v1233 = vadd.f32 %v717, %v1232
    %v1234 = vpop.f32.mrb[0].mxu0
    %1235 = vmatprep.mubr.bf16.mxu0 0
    %1236 = vmatmul.mubr.bf16.gmra.mrb[0].mxu0 %v1100
    %v1237 = vpop.f32.mrb[0].mxu0
    %v1238 = vadd.f32 %v722, %v1237
    %v1239 = vpop.f32.mrb[0].mxu0
    %v1240 = vpop.f32.mrb[0].mxu0
    %v1241 = vadd.f32 %v725, %v1240
    %v1242 = vpop.f32.mrb[0].mxu0
    %1243 = vmatprep.mubr.bf16.mxu0 0
    %1244 = vmatmul.mubr.bf16.gmra.mrb[0].mxu0 %v1103
    %v1245 = vpop.f32.mrb[0].mxu0
    %v1246 = vadd.f32 %v730, %v1245
    %v1247 = vpop.f32.mrb[0].mxu0
    %v1248 = vpop.f32.mrb[0].mxu0
    %v1249 = vadd.f32 %v733, %v1248
    %v1250 = vpop.f32.mrb[0].mxu0
    %1251 = vmatprep.mubr.bf16.mxu0 0
    %1252 = vmatmul.mubr.bf16.gmra.mrb[0].mxu0 %v1106
    %v1253 = vpop.f32.mrb[0].mxu0
    %v1254 = vadd.f32 %v738, %v1253
    %v1255 = vpop.f32.mrb[0].mxu0
    %v1256 = vpop.f32.mrb[0].mxu0
    %v1257 = vadd.f32 %v741, %v1256
    %v1258 = vpop.f32.mrb[0].mxu0
    %1259 = vmatprep.mubr.bf16.mxu0 0
    %1260 = vmatmul.mubr.bf16.gmra.mrb[0].mxu0 %v1109
    %v1261 = vpop.f32.mrb[0].mxu0
    %v1262 = vadd.f32 %v746, %v1261
    %v1263 = vpop.f32.mrb[0].mxu0
    %v1264 = vpop.f32.mrb[0].mxu0
    %v1265 = vadd.f32 %v749, %v1264
    %v1266 = vpop.f32.mrb[0].mxu0
    %1267 = vmatprep.mubr.bf16.mxu0 0
    %1268 = vmatmul.mubr.bf16.gmra.mrb[0].mxu0 %v1112
    %v1269 = vpop.f32.mrb[0].mxu0
    %v1270 = vadd.f32 %v754, %v1269
    %v1271 = vpop.f32.mrb[0].mxu0
    %v1272 = vpop.f32.mrb[0].mxu0
    %v1273 = vadd.f32 %v757, %v1272
    %v1274 = vpop.f32.mrb[0].mxu0
    %1275 = vmatprep.mubr.bf16.mxu0 0
    %1276 = vmatmul.mubr.bf16.gmra.mrb[0].mxu0 %v1115
    %v1277 = vpop.f32.mrb[0].mxu0
    %v1278 = vadd.f32 %v762, %v1277
    %v1279 = vpop.f32.mrb[0].mxu0
    %v1280 = vpop.f32.mrb[0].mxu0
    %v1281 = vadd.f32 %v765, %v1280
    %v1282 = vpop.f32.mrb[0].mxu0
    %1283 = vmatprep.mubr.bf16.mxu0 0
    %1284 = vmatmul.mubr.bf16.gmra.mrb[0].mxu0 %v1118
    %v1285 = vpop.f32.mrb[0].mxu0
    %v1286 = vadd.f32 %v770, %v1285
    %v1287 = vpop.f32.mrb[0].mxu0
    %v1288 = vpop.f32.mrb[0].mxu0
    %v1289 = vadd.f32 %v773, %v1288
    %v1290 = vpop.f32.mrb[0].mxu0
    %1291 = vmatprep.mubr.bf16.mxu0 0
    %1292 = vmatmul.mubr.bf16.gmra.mrb[0].mxu0 %v1121
    %v1293 = vpop.f32.mrb[0].mxu0
    %v1294 = vadd.f32 %v778, %v1293
    %v1295 = vpop.f32.mrb[0].mxu0
    %v1296 = vpop.f32.mrb[0].mxu0
    %v1297 = vadd.f32 %v781, %v1296
    %v1298 = vpop.f32.mrb[0].mxu0
    %1299 = vmatprep.mubr.bf16.mxu0 0
    %1300 = vmatmul.mubr.bf16.gmra.mrb[0].mxu0 %v1124
    %v1301 = vpop.f32.mrb[0].mxu0
    %v1302 = vadd.f32 %v786, %v1301
    %v1303 = vpop.f32.mrb[0].mxu0
    %v1304 = vpop.f32.mrb[0].mxu0
    %v1305 = vadd.f32 %v789, %v1304
    %v1306 = vpop.f32.mrb[0].mxu0
    %1307 = vmatprep.mubr.bf16.mxu0 0
    %1308 = vmatmul.mubr.bf16.gmra.mrb[0].mxu0 %v1127
    %v1309 = vpop.f32.mrb[0].mxu0
    %v1310 = vadd.f32 %v794, %v1309
    %v1311 = vpop.f32.mrb[0].mxu0
    %v1312 = vpop.f32.mrb[0].mxu0
    %v1313 = vadd.f32 %v797, %v1312
    %v1314 = vpop.f32.mrb[0].mxu0
    %1315 = vmatprep.mubr.bf16.mxu0 0
    %1316 = vmatmul.mubr.bf16.gmra.mrb[0].mxu0 %v1130
    %v1317 = vpop.f32.mrb[0].mxu0
    %v1318 = vadd.f32 %v802, %v1317
    %v1319 = vpop.f32.mrb[0].mxu0
    %v1320 = vpop.f32.mrb[0].mxu0
    %v1321 = vadd.f32 %v805, %v1320
    %v1322 = vpop.f32.mrb[0].mxu0
    %1323 = vmatprep.mubr.bf16.mxu0 0
    %1324 = vmatmul.mubr.bf16.gmra.mrb[0].mxu0 %v1133
    %v1325 = vpop.f32.mrb[0].mxu0
    %v1326 = vadd.f32 %v810, %v1325
    %v1327 = vpop.f32.mrb[0].mxu0
    %v1328 = vpop.f32.mrb[0].mxu0
    %v1329 = vadd.f32 %v813, %v1328
    %v1330 = vpop.f32.mrb[0].mxu0
    %1331 = vmatprep.mubr.bf16.mxu0 0
    %1332 = vmatmul.mubr.bf16.gmra.mrb[0].mxu0 %v1136
    %v1333 = vpop.f32.mrb[0].mxu0
    %v1334 = vadd.f32 %v818, %v1333
    %v1335 = vpop.f32.mrb[0].mxu0
    %v1336 = vpop.f32.mrb[0].mxu0
    %v1337 = vadd.f32 %v821, %v1336
    %v1338 = vpop.f32.mrb[0].mxu0
    %1339 = vmatprep.mubr.bf16.mxu0 0
    %1340 = vmatmul.mubr.bf16.gmra.mrb[0].mxu0 %v1139
    %v1341 = vpop.f32.mrb[0].mxu0
    %v1342 = vadd.f32 %v826, %v1341
    %v1343 = vpop.f32.mrb[0].mxu0
    %v1344 = vpop.f32.mrb[0].mxu0
    %v1345 = vadd.f32 %v829, %v1344
    %v1346 = vpop.f32.mrb[0].mxu0
    %1347 = vmatprep.mubr.bf16.mxu0 0
    %1348 = vmatmul.mubr.bf16.gmra.mrb[0].mxu0 %v1142
    %v1349 = vpop.f32.mrb[0].mxu0
    %v1350 = vadd.f32 %v834, %v1349
    %v1351 = vpop.f32.mrb[0].mxu0
    %v1352 = vpop.f32.mrb[0].mxu0
    %v1353 = vadd.f32 %v837, %v1352
    %v1354 = vpop.f32.mrb[0].mxu0
    %1355 = vmatprep.mubr.bf16.mxu0 0
    %1356 = vmatmul.mubr.bf16.gmra.mrb[0].mxu0 %v1145
    %v1357 = vpop.f32.mrb[0].mxu0
    %v1358 = vadd.f32 %v842, %v1357
    %v1359 = vpop.f32.mrb[0].mxu0
    %v1360 = vpop.f32.mrb[0].mxu0
    %v1361 = vadd.f32 %v845, %v1360
    %v1362 = vpop.f32.mrb[0].mxu0
    %1363 = vmatprep.mubr.bf16.mxu0 0
    %1364 = vmatmul.mubr.bf16.gmra.mrb[0].mxu0 %v1148
    %v1365 = vpop.f32.mrb[0].mxu0
    %v1366 = vadd.f32 %v850, %v1365
    %v1367 = vpop.f32.mrb[0].mxu0
    %v1368 = vpop.f32.mrb[0].mxu0
    %v1369 = vadd.f32 %v853, %v1368
    %v1370 = vpop.f32.mrb[0].mxu0
    %1371 = vmatprep.mubr.bf16.mxu0 0
    %1372 = vmatmul.mubr.bf16.gmra.mrb[0].mxu0 %v1151
    %v1373 = vpop.f32.mrb[0].mxu0
    %v1374 = vadd.f32 %v858, %v1373
    %v1375 = vpop.f32.mrb[0].mxu0
    %v1376 = vpop.f32.mrb[0].mxu0
    %v1377 = vadd.f32 %v861, %v1376
    %v1378 = vpop.f32.mrb[0].mxu0
    %1379 = vmatprep.mubr.bf16.mxu0 0
    %1380 = vmatmul.mubr.bf16.gmra.mrb[0].mxu0 %v1154
    %v1381 = vpop.f32.mrb[0].mxu0
    %v1382 = vadd.f32 %v866, %v1381
    %v1383 = vpop.f32.mrb[0].mxu0
    %v1384 = vpop.f32.mrb[0].mxu0
    %v1385 = vadd.f32 %v869, %v1384
    %v1386 = vpop.f32.mrb[0].mxu0
    %1387 = vmatprep.mubr.bf16.mxu0 0
    %1388 = vmatmul.mubr.bf16.gmra.mrb[0].mxu0 %v1157
    %v1389 = vpop.f32.mrb[0].mxu0
    %v1390 = vadd.f32 %v874, %v1389
    %v1391 = vpop.f32.mrb[0].mxu0
    %v1392 = vpop.f32.mrb[0].mxu0
    %v1393 = vadd.f32 %v877, %v1392
    %v1394 = vpop.f32.mrb[0].mxu0
    %1395 = vmatprep.mubr.bf16.mxu0 0
    %1396 = vmatmul.mubr.bf16.gmra.mrb[0].mxu0 %v1160
    %v1397 = vpop.f32.mrb[0].mxu0
    %v1398 = vadd.f32 %v882, %v1397
    %v1399 = vpop.f32.mrb[0].mxu0
    %v1400 = vpop.f32.mrb[0].mxu0
    %v1401 = vadd.f32 %v885, %v1400
    %v1402 = vpop.f32.mrb[0].mxu0
    %1403 = vmatprep.mubr.bf16.mxu0 0
    %1404 = vmatmul.mubr.bf16.gmra.mrb[0].mxu0 %v1163
    %v1405 = vpop.f32.mrb[0].mxu0
    %v1406 = vadd.f32 %v890, %v1405
    %v1407 = vpop.f32.mrb[0].mxu0
    %v1408 = vpop.f32.mrb[0].mxu0
    %v1409 = vadd.f32 %v893, %v1408
    %v1410 = vpop.f32.mrb[0].mxu0
    %1411 = vmatprep.mubr.bf16.mxu0 0
    %1412 = vmatmul.mubr.bf16.gmra.mrb[0].mxu0 %v1166
    %v1413 = vpop.f32.mrb[0].mxu0
    %v1414 = vadd.f32 %v898, %v1413
    %v1415 = vpop.f32.mrb[0].mxu0
    %v1416 = vpop.f32.mrb[0].mxu0
    %v1417 = vadd.f32 %v901, %v1416
    %v1418 = vpop.f32.mrb[0].mxu0
    %1419 = vmatprep.mubr.bf16.mxu0 0
    %1420 = vmatmul.mubr.bf16.gmra.mrb[0].mxu0 %v1169
    %v1421 = vpop.f32.mrb[0].mxu0
    %v1422 = vadd.f32 %v906, %v1421
    %v1423 = vpop.f32.mrb[0].mxu0
    %v1424 = vpop.f32.mrb[0].mxu0
    %v1425 = vadd.f32 %v909, %v1424
    %v1426 = vpop.f32.mrb[0].mxu0
    %1427 = vmatprep.mubr.bf16.mxu0 0
    %1428 = vmatmul.mubr.bf16.gmra.mrb[0].mxu0 %v1172
    %v1429 = vpop.f32.mrb[0].mxu0
    %v1430 = vadd.f32 %v914, %v1429
    %v1431 = vpop.f32.mrb[0].mxu0
    %v1432 = vpop.f32.mrb[0].mxu0
    %v1433 = vadd.f32 %v917, %v1432
    %v1434 = vpop.f32.mrb[0].mxu0
    %1435 = vmatprep.mubr.bf16.mxu0 0
    %1436 = vmatmul.mubr.bf16.gmra.mrb[0].mxu0 %v1175
    %v1437 = vpop.f32.mrb[0].mxu0
    %v1438 = vadd.f32 %v922, %v1437
    %v1439 = vpop.f32.mrb[0].mxu0
    %v1440 = vpop.f32.mrb[0].mxu0
    %v1441 = vadd.f32 %v925, %v1440
    %v1442 = vpop.f32.mrb[0].mxu0
    %1443 = vmatprep.mubr.bf16.mxu0 0
    %1444 = vmatmul.mubr.bf16.gmra.mrb[0].mxu0 %v1178
    %v1445 = vpop.f32.mrb[0].mxu0
    %v1446 = vadd.f32 %v930, %v1445
    %v1447 = vpop.f32.mrb[0].mxu0
    %v1448 = vpop.f32.mrb[0].mxu0
    %v1449 = vadd.f32 %v933, %v1448
    %v1450 = vpop.f32.mrb[0].mxu0
    %1451 = vmatprep.mubr.bf16.mxu0 0
    %1452 = vmatmul.mubr.bf16.gmra.mrb[0].mxu0 %v1181
    %v1453 = vpop.f32.mrb[0].mxu0
    %v1454 = vadd.f32 %v938, %v1453
    %v1455 = vpop.f32.mrb[0].mxu0
    %v1456 = vpop.f32.mrb[0].mxu0
    %v1457 = vadd.f32 %v941, %v1456
    %v1458 = vpop.f32.mrb[0].mxu0
    %1459 = vmatprep.mubr.bf16.mxu0 0
    %1460 = vmatmul.mubr.bf16.gmra.mrb[0].mxu0 %v1184
    %v1461 = vpop.f32.mrb[0].mxu0
    %v1462 = vadd.f32 %v946, %v1461
    %v1463 = vpop.f32.mrb[0].mxu0
    %v1464 = vpop.f32.mrb[0].mxu0
    %v1465 = vadd.f32 %v949, %v1464
    %v1466 = vpop.f32.mrb[0].mxu0
    %1467 = vmatprep.mubr.bf16.mxu0 0
    %1468 = vmatmul.mubr.bf16.gmra.mrb[0].mxu0 %v1187
    %v1469 = vpop.f32.mrb[0].mxu0
    %v1470 = vadd.f32 %v954, %v1469
    %v1471 = vpop.f32.mrb[0].mxu0
    %v1472 = vpop.f32.mrb[0].mxu0
    %v1473 = vadd.f32 %v957, %v1472
    %v1474 = vpop.f32.mrb[0].mxu0
    %1475 = vmatprep.mubr.bf16.mxu0 0
    %1476 = vmatmul.mubr.bf16.gmra.mrb[0].mxu0 %v1190
    %v1477 = vpop.f32.mrb[0].mxu0
    %v1478 = vadd.f32 %v962, %v1477
    %v1479 = vpop.f32.mrb[0].mxu0
    %v1480 = vpop.f32.mrb[0].mxu0
    %v1481 = vadd.f32 %v965, %v1480
    %v1482 = vpop.f32.mrb[0].mxu0
    %1483 = vdwg.mxu0
    %v1484 = vld [vmem:[%s0] sm:$0xc]
    %v1485 = vld [vmem:[%s0 + $0x8] sm:$0x3]
    %v1486 = vld [vmem:[%s0 + $0xc] sm:$0xc]
    %v1487 = vld [vmem:[%s0 + $0x14] sm:$0x3]
    %v1488 = vld [vmem:[%s0 + $0x18] sm:$0xc]
    %v1489 = vld [vmem:[%s0 + $0x20] sm:$0x3]
    %v1490 = vld [vmem:[%s0 + $0x24] sm:$0xc]
    %v1491 = vld [vmem:[%s0 + $0x2c] sm:$0x3]
    %v1492 = vld [vmem:[%s0 + $0x30] sm:$0xc]
    %v1493 = vld [vmem:[%s0 + $0x38] sm:$0x3]
    %v1494 = vld [vmem:[%s0 + $0x3c] sm:$0xc]
    %v1495 = vld [vmem:[%s0 + $0x44] sm:$0x3]
    %v1496 = vld [vmem:[%s0 + $0x48] sm:$0xc]
    %v1497 = vld [vmem:[%s0 + $0x50] sm:$0x3]
    %v1498 = vld [vmem:[%s0 + $0x54] sm:$0xc]
    %v1499 = vld [vmem:[%s0 + $0x5c] sm:$0x3]
    %v1500 = vld [vmem:[%s0 + $0x60] sm:$0xc]
    %v1501 = vld [vmem:[%s0 + $0x68] sm:$0x3]
    %v1502 = vld [vmem:[%s0 + $0x6c] sm:$0xc]
    %v1503 = vld [vmem:[%s0 + $0x74] sm:$0x3]
    %v1504 = vld [vmem:[%s0 + $0x78] sm:$0xc]
    %v1505 = vld [vmem:[%s0 + $0x80] sm:$0x3]
    %v1506 = vld [vmem:[%s0 + $0x84] sm:$0xc]
    %v1507 = vld [vmem:[%s0 + $0x8c] sm:$0x3]
    %v1508 = vld [vmem:[%s0 + $0x90] sm:$0xc]
    %v1509 = vld [vmem:[%s0 + $0x98] sm:$0x3]
    %v1510 = vld [vmem:[%s0 + $0x9c] sm:$0xc]
    %v1511 = vld [vmem:[%s0 + $0xa4] sm:$0x3]
    %v1512 = vld [vmem:[%s0 + $0xa8] sm:$0xc]
    %v1513 = vld [vmem:[%s0 + $0xb0] sm:$0x3]
    %v1514 = vld [vmem:[%s0 + $0xb4] sm:$0xc]
    %v1515 = vld [vmem:[%s0 + $0xbc] sm:$0x3]
    %v1516 = vld [vmem:[%s0 + $0xf0] sm:$0xc]
    %v1517 = vld [vmem:[%s0 + $0xf8] sm:$0x3]
    %v1518 = vld [vmem:[%s0 + $0xfc] sm:$0xc]
    %v1519 = vld [vmem:[%s0 + $0x104] sm:$0x3]
    %v1520 = vld [vmem:[%s0 + $0x108] sm:$0xc]
    %v1521 = vld [vmem:[%s0 + $0x110] sm:$0x3]
    %v1522 = vld [vmem:[%s0 + $0x114] sm:$0xc]
    %v1523 = vld [vmem:[%s0 + $0x11c] sm:$0x3]
    %v1524 = vld [vmem:[%s0 + $0x120] sm:$0xc]
    %v1525 = vld [vmem:[%s0 + $0x128] sm:$0x3]
    %v1526 = vld [vmem:[%s0 + $0x12c] sm:$0xc]
    %v1527 = vld [vmem:[%s0 + $0x134] sm:$0x3]
    %v1528 = vld [vmem:[%s0 + $0x138] sm:$0xc]
    %v1529 = vld [vmem:[%s0 + $0x140] sm:$0x3]
    %v1530 = vld [vmem:[%s0 + $0x144] sm:$0xc]
    %v1531 = vld [vmem:[%s0 + $0x14c] sm:$0x3]
    %v1532 = vld [vmem:[%s0 + $0x150] sm:$0xc]
    %v1533 = vld [vmem:[%s0 + $0x158] sm:$0x3]
    %v1534 = vld [vmem:[%s0 + $0x15c] sm:$0xc]
    %v1535 = vld [vmem:[%s0 + $0x164] sm:$0x3]
    %v1536 = vld [vmem:[%s0 + $0x168] sm:$0xc]
    %v1537 = vld [vmem:[%s0 + $0x170] sm:$0x3]
    %v1538 = vld [vmem:[%s0 + $0x174] sm:$0xc]
    %v1539 = vld [vmem:[%s0 + $0x17c] sm:$0x3]
    %v1540 = vld [vmem:[%s0 + $0x180] sm:$0xc]
    %v1541 = vld [vmem:[%s0 + $0x188] sm:$0x3]
    %v1542 = vld [vmem:[%s0 + $0x18c] sm:$0xc]
    %v1543 = vld [vmem:[%s0 + $0x194] sm:$0x3]
    %v1544 = vld [vmem:[%s0 + $0x198] sm:$0xc]
    %v1545 = vld [vmem:[%s0 + $0x1a0] sm:$0x3]
    %v1546 = vld [vmem:[%s0 + $0x1a4] sm:$0xc]
    %v1547 = vld [vmem:[%s0 + $0x1ac] sm:$0x3]
    %vm1612 = vcmask 1041408
    %vm1613 = vcmask 1045508
    %vm1614 = vmor %vm1612, %vm1613
    %v1615 = vrot.slane %v1484, 6
    %v1616 = vrot.slane %v1615, 4
    %v1617 = vrot.slane %v29, 6
    %v1618 = vsel %vm1614, %v1616, %v1617
    %v1619 = vrot.slane %v1617, 4
    %v1620 = vrot.slane %v1485, 6
    %v1621 = vsel %vm1614, %v1619, %v1620
    %v1622 = vrot.slane %v1486, 6
    %v1623 = vrot.slane %v1622, 4
    %v1624 = vrot.slane %v31, 6
    %v1625 = vsel %vm1614, %v1623, %v1624
    %v1626 = vrot.slane %v1624, 4
    %v1627 = vrot.slane %v1487, 6
    %v1628 = vsel %vm1614, %v1626, %v1627
    %v1629 = vrot.slane %v1488, 6
    %v1630 = vrot.slane %v1629, 4
    %v1631 = vrot.slane %v33, 6
    %v1632 = vsel %vm1614, %v1630, %v1631
    %v1633 = vrot.slane %v1631, 4
    %v1634 = vrot.slane %v1489, 6
    %v1635 = vsel %vm1614, %v1633, %v1634
    %v1636 = vrot.slane %v1490, 6
    %v1637 = vrot.slane %v1636, 4
    %v1638 = vrot.slane %v35, 6
    %v1639 = vsel %vm1614, %v1637, %v1638
    %v1640 = vrot.slane %v1638, 4
    %v1641 = vrot.slane %v1491, 6
    %v1642 = vsel %vm1614, %v1640, %v1641
    %v1643 = vrot.slane %v1492, 6
    %v1644 = vrot.slane %v1643, 4
    %v1645 = vrot.slane %v37, 6
    %v1646 = vsel %vm1614, %v1644, %v1645
    %v1647 = vrot.slane %v1645, 4
    %v1648 = vrot.slane %v1493, 6
    %v1649 = vsel %vm1614, %v1647, %v1648
    %v1650 = vrot.slane %v1494, 6
    %v1651 = vrot.slane %v1650, 4
    %v1652 = vrot.slane %v39, 6
    %v1653 = vsel %vm1614, %v1651, %v1652
    %v1654 = vrot.slane %v1652, 4
    %v1655 = vrot.slane %v1495, 6
    %v1656 = vsel %vm1614, %v1654, %v1655
    %v1657 = vrot.slane %v1496, 6
    %v1658 = vrot.slane %v1657, 4
    %v1659 = vrot.slane %v41, 6
    %v1660 = vsel %vm1614, %v1658, %v1659
    %v1661 = vrot.slane %v1659, 4
    %v1662 = vrot.slane %v1497, 6
    %v1663 = vsel %vm1614, %v1661, %v1662
    %v1664 = vrot.slane %v1498, 6
    %v1665 = vrot.slane %v1664, 4
    %v1666 = vrot.slane %v43, 6
    %v1667 = vsel %vm1614, %v1665, %v1666
    %v1668 = vrot.slane %v1666, 4
    %v1669 = vrot.slane %v1499, 6
    %v1670 = vsel %vm1614, %v1668, %v1669
    %v1671 = vrot.slane %v1500, 6
    %v1672 = vrot.slane %v1671, 4
    %v1673 = vrot.slane %v45, 6
    %v1674 = vsel %vm1614, %v1672, %v1673
    %v1675 = vrot.slane %v1673, 4
    %v1676 = vrot.slane %v1501, 6
    %v1677 = vsel %vm1614, %v1675, %v1676
    %v1678 = vrot.slane %v1502, 6
    %v1679 = vrot.slane %v1678, 4
    %v1680 = vrot.slane %v47, 6
    %v1681 = vsel %vm1614, %v1679, %v1680
    %v1682 = vrot.slane %v1680, 4
    %v1683 = vrot.slane %v1503, 6
    %v1684 = vsel %vm1614, %v1682, %v1683
    %v1685 = vrot.slane %v1504, 6
    %v1686 = vrot.slane %v1685, 4
    %v1687 = vrot.slane %v49, 6
    %v1688 = vsel %vm1614, %v1686, %v1687
    %v1689 = vrot.slane %v1687, 4
    %v1690 = vrot.slane %v1505, 6
    %v1691 = vsel %vm1614, %v1689, %v1690
    %v1692 = vrot.slane %v1506, 6
    %v1693 = vrot.slane %v1692, 4
    %v1694 = vrot.slane %v51, 6
    %v1695 = vsel %vm1614, %v1693, %v1694
    %v1696 = vrot.slane %v1694, 4
    %v1697 = vrot.slane %v1507, 6
    %v1698 = vsel %vm1614, %v1696, %v1697
    %v1699 = vrot.slane %v1508, 6
    %v1700 = vrot.slane %v1699, 4
    %v1701 = vrot.slane %v53, 6
    %v1702 = vsel %vm1614, %v1700, %v1701
    %v1703 = vrot.slane %v1701, 4
    %v1704 = vrot.slane %v1509, 6
    %v1705 = vsel %vm1614, %v1703, %v1704
    %v1706 = vrot.slane %v1510, 6
    %v1707 = vrot.slane %v1706, 4
    %v1708 = vrot.slane %v55, 6
    %v1709 = vsel %vm1614, %v1707, %v1708
    %v1710 = vrot.slane %v1708, 4
    %v1711 = vrot.slane %v1511, 6
    %v1712 = vsel %vm1614, %v1710, %v1711
    %v1713 = vrot.slane %v1512, 6
    %v1714 = vrot.slane %v1713, 4
    %v1715 = vrot.slane %v57, 6
    %v1716 = vsel %vm1614, %v1714, %v1715
    %v1717 = vrot.slane %v1715, 4
    %v1718 = vrot.slane %v1513, 6
    %v1719 = vsel %vm1614, %v1717, %v1718
    %v1720 = vrot.slane %v1514, 6
    %v1721 = vrot.slane %v1720, 4
    %v1722 = vrot.slane %v59, 6
    %v1723 = vsel %vm1614, %v1721, %v1722
    %v1724 = vrot.slane %v1722, 4
    %v1725 = vrot.slane %v1515, 6
    %v1726 = vsel %vm1614, %v1724, %v1725
    %v1727 = vrot.slane %v1516, 6
    %v1728 = vrot.slane %v1727, 4
    %v1729 = vrot.slane %v61, 6
    %v1730 = vsel %vm1614, %v1728, %v1729
    %v1731 = vrot.slane %v1729, 4
    %v1732 = vrot.slane %v1517, 6
    %v1733 = vsel %vm1614, %v1731, %v1732
    %v1734 = vrot.slane %v1518, 6
    %v1735 = vrot.slane %v1734, 4
    %v1736 = vrot.slane %v63, 6
    %v1737 = vsel %vm1614, %v1735, %v1736
    %v1738 = vrot.slane %v1736, 4
    %v1739 = vrot.slane %v1519, 6
    %v1740 = vsel %vm1614, %v1738, %v1739
    %v1741 = vrot.slane %v1520, 6
    %v1742 = vrot.slane %v1741, 4
    %v1743 = vrot.slane %v65, 6
    %v1744 = vsel %vm1614, %v1742, %v1743
    %v1745 = vrot.slane %v1743, 4
    %v1746 = vrot.slane %v1521, 6
    %v1747 = vsel %vm1614, %v1745, %v1746
    %v1748 = vrot.slane %v1522, 6
    %v1749 = vrot.slane %v1748, 4
    %v1750 = vrot.slane %v67, 6
    %v1751 = vsel %vm1614, %v1749, %v1750
    %v1752 = vrot.slane %v1750, 4
    %v1753 = vrot.slane %v1523, 6
    %v1754 = vsel %vm1614, %v1752, %v1753
    %v1755 = vrot.slane %v1524, 6
    %v1756 = vrot.slane %v1755, 4
    %v1757 = vrot.slane %v69, 6
    %v1758 = vsel %vm1614, %v1756, %v1757
    %v1759 = vrot.slane %v1757, 4
    %v1760 = vrot.slane %v1525, 6
    %v1761 = vsel %vm1614, %v1759, %v1760
    %v1762 = vrot.slane %v1526, 6
    %v1763 = vrot.slane %v1762, 4
    %v1764 = vrot.slane %v71, 6
    %v1765 = vsel %vm1614, %v1763, %v1764
    %v1766 = vrot.slane %v1764, 4
    %v1767 = vrot.slane %v1527, 6
    %v1768 = vsel %vm1614, %v1766, %v1767
    %v1769 = vrot.slane %v1528, 6
    %v1770 = vrot.slane %v1769, 4
    %v1771 = vrot.slane %v73, 6
    %v1772 = vsel %vm1614, %v1770, %v1771
    %v1773 = vrot.slane %v1771, 4
    %v1774 = vrot.slane %v1529, 6
    %v1775 = vsel %vm1614, %v1773, %v1774
    %v1776 = vrot.slane %v1530, 6
    %v1777 = vrot.slane %v1776, 4
    %v1778 = vrot.slane %v75, 6
    %v1779 = vsel %vm1614, %v1777, %v1778
    %v1780 = vrot.slane %v1778, 4
    %v1781 = vrot.slane %v1531, 6
    %v1782 = vsel %vm1614, %v1780, %v1781
    %v1783 = vrot.slane %v1532, 6
    %v1784 = vrot.slane %v1783, 4
    %v1785 = vrot.slane %v77, 6
    %v1786 = vsel %vm1614, %v1784, %v1785
    %v1787 = vrot.slane %v1785, 4
    %v1788 = vrot.slane %v1533, 6
    %v1789 = vsel %vm1614, %v1787, %v1788
    %v1790 = vrot.slane %v1534, 6
    %v1791 = vrot.slane %v1790, 4
    %v1792 = vrot.slane %v79, 6
    %v1793 = vsel %vm1614, %v1791, %v1792
    %v1794 = vrot.slane %v1792, 4
    %v1795 = vrot.slane %v1535, 6
    %v1796 = vsel %vm1614, %v1794, %v1795
    %v1797 = vrot.slane %v1536, 6
    %v1798 = vrot.slane %v1797, 4
    %v1799 = vrot.slane %v81, 6
    %v1800 = vsel %vm1614, %v1798, %v1799
    %v1801 = vrot.slane %v1799, 4
    %v1802 = vrot.slane %v1537, 6
    %v1803 = vsel %vm1614, %v1801, %v1802
    %v1804 = vrot.slane %v1538, 6
    %v1805 = vrot.slane %v1804, 4
    %v1806 = vrot.slane %v83, 6
    %v1807 = vsel %vm1614, %v1805, %v1806
    %v1808 = vrot.slane %v1806, 4
    %v1809 = vrot.slane %v1539, 6
    %v1810 = vsel %vm1614, %v1808, %v1809
    %v1811 = vrot.slane %v1540, 6
    %v1812 = vrot.slane %v1811, 4
    %v1813 = vrot.slane %v85, 6
    %v1814 = vsel %vm1614, %v1812, %v1813
    %v1815 = vrot.slane %v1813, 4
    %v1816 = vrot.slane %v1541, 6
    %v1817 = vsel %vm1614, %v1815, %v1816
    %v1818 = vrot.slane %v1542, 6
    %v1819 = vrot.slane %v1818, 4
    %v1820 = vrot.slane %v87, 6
    %v1821 = vsel %vm1614, %v1819, %v1820
    %v1822 = vrot.slane %v1820, 4
    %v1823 = vrot.slane %v1543, 6
    %v1824 = vsel %vm1614, %v1822, %v1823
    %v1825 = vrot.slane %v1544, 6
    %v1826 = vrot.slane %v1825, 4
    %v1827 = vrot.slane %v89, 6
    %v1828 = vsel %vm1614, %v1826, %v1827
    %v1829 = vrot.slane %v1827, 4
    %v1830 = vrot.slane %v1545, 6
    %v1831 = vsel %vm1614, %v1829, %v1830
    %v1832 = vrot.slane %v1546, 6
    %v1833 = vrot.slane %v1832, 4
    %v1834 = vrot.slane %v91, 6
    %v1835 = vsel %vm1614, %v1833, %v1834
    %v1836 = vrot.slane %v1834, 4
    %v1837 = vrot.slane %v1547, 6
    %v1838 = vsel %vm1614, %v1836, %v1837
    %s1839 = scalar_lea.vmem %s1, 4
    %v1840 = vld [vmem:[%s1839] sm:$0x3]
    %v1841 = vunpack.c.l.b16 %v1618
    %v1842 = vunpack.c.l.b16 %v1621
    %v1843 = vunpack.c.l.b16 %v1625
    %v1844 = vunpack.c.l.b16 %v1628
    %v1845 = vunpack.c.l.b16 %v1632
    %v1846 = vunpack.c.l.b16 %v1635
    %v1847 = vunpack.c.l.b16 %v1639
    %v1848 = vunpack.c.l.b16 %v1642
    %v1849 = vunpack.c.l.b16 %v1646
    %v1850 = vunpack.c.l.b16 %v1649
    %v1851 = vunpack.c.l.b16 %v1653
    %v1852 = vunpack.c.l.b16 %v1656
    %v1853 = vunpack.c.l.b16 %v1660
    %v1854 = vunpack.c.l.b16 %v1663
    %v1855 = vunpack.c.l.b16 %v1667
    %v1856 = vunpack.c.l.b16 %v1670
    %v1857 = vunpack.c.l.b16 %v1674
    %v1858 = vunpack.c.l.b16 %v1677
    %v1859 = vunpack.c.l.b16 %v1681
    %v1860 = vunpack.c.l.b16 %v1684
    %v1861 = vunpack.c.l.b16 %v1688
    %v1862 = vunpack.c.l.b16 %v1691
    %v1863 = vunpack.c.l.b16 %v1695
    %v1864 = vunpack.c.l.b16 %v1698
    %v1865 = vunpack.c.l.b16 %v1702
    %v1866 = vunpack.c.l.b16 %v1705
    %v1867 = vunpack.c.l.b16 %v1709
    %v1868 = vunpack.c.l.b16 %v1712
    %v1869 = vunpack.c.l.b16 %v1716
    %v1870 = vunpack.c.l.b16 %v1719
    %v1871 = vunpack.c.l.b16 %v1723
    %v1872 = vunpack.c.l.b16 %v1726
    %v1873 = vunpack.c.l.b16 %v1730
    %v1874 = vunpack.c.l.b16 %v1733
    %v1875 = vunpack.c.l.b16 %v1737
    %v1876 = vunpack.c.l.b16 %v1740
    %v1877 = vunpack.c.l.b16 %v1744
    %v1878 = vunpack.c.l.b16 %v1747
    %v1879 = vunpack.c.l.b16 %v1751
    %v1880 = vunpack.c.l.b16 %v1754
    %v1881 = vunpack.c.l.b16 %v1758
    %v1882 = vunpack.c.l.b16 %v1761
    %v1883 = vunpack.c.l.b16 %v1765
    %v1884 = vunpack.c.l.b16 %v1768
    %v1885 = vunpack.c.l.b16 %v1772
    %v1886 = vunpack.c.l.b16 %v1775
    %v1887 = vunpack.c.l.b16 %v1779
    %v1888 = vunpack.c.l.b16 %v1782
    %v1889 = vunpack.c.l.b16 %v1786
    %v1890 = vunpack.c.l.b16 %v1789
    %v1891 = vunpack.c.l.b16 %v1793
    %v1892 = vunpack.c.l.b16 %v1796
    %v1893 = vunpack.c.l.b16 %v1800
    %v1894 = vunpack.c.l.b16 %v1803
    %v1895 = vunpack.c.l.b16 %v1807
    %v1896 = vunpack.c.l.b16 %v1810
    %v1897 = vunpack.c.l.b16 %v1814
    %v1898 = vunpack.c.l.b16 %v1817
    %v1899 = vunpack.c.l.b16 %v1821
    %v1900 = vunpack.c.l.b16 %v1824
    %v1901 = vunpack.c.l.b16 %v1828
    %v1902 = vunpack.c.l.b16 %v1831
    %v1903 = vunpack.c.l.b16 %v1835
    %v1904 = vunpack.c.l.b16 %v1838
    %v1905 = vpack.c.b16 %v1842, %v1841
    %v1906 = vpack.c.b16 %v1844, %v1843
    %v1907 = vpack.c.b16 %v1846, %v1845
    %v1908 = vpack.c.b16 %v1848, %v1847
    %v1909 = vpack.c.b16 %v1850, %v1849
    %v1910 = vpack.c.b16 %v1852, %v1851
    %v1911 = vpack.c.b16 %v1854, %v1853
    %v1912 = vpack.c.b16 %v1856, %v1855
    %v1913 = vpack.c.b16 %v1858, %v1857
    %v1914 = vpack.c.b16 %v1860, %v1859
    %v1915 = vpack.c.b16 %v1862, %v1861
    %v1916 = vpack.c.b16 %v1864, %v1863
    %v1917 = vpack.c.b16 %v1866, %v1865
    %v1918 = vpack.c.b16 %v1868, %v1867
    %v1919 = vpack.c.b16 %v1870, %v1869
    %v1920 = vpack.c.b16 %v1872, %v1871
    %v1921 = vpack.c.b16 %v1874, %v1873
    %v1922 = vpack.c.b16 %v1876, %v1875
    %v1923 = vpack.c.b16 %v1878, %v1877
    %v1924 = vpack.c.b16 %v1880, %v1879
    %v1925 = vpack.c.b16 %v1882, %v1881
    %v1926 = vpack.c.b16 %v1884, %v1883
    %v1927 = vpack.c.b16 %v1886, %v1885
    %v1928 = vpack.c.b16 %v1888, %v1887
    %v1929 = vpack.c.b16 %v1890, %v1889
    %v1930 = vpack.c.b16 %v1892, %v1891
    %v1931 = vpack.c.b16 %v1894, %v1893
    %v1932 = vpack.c.b16 %v1896, %v1895
    %v1933 = vpack.c.b16 %v1898, %v1897
    %v1934 = vpack.c.b16 %v1900, %v1899
    %v1935 = vpack.c.b16 %v1902, %v1901
    %v1936 = vpack.c.b16 %v1904, %v1903
    %v1938 = vsel %vm578, %v1905, 0
    %v1941 = vsel %vm578, %v1906, 0
    %v1944 = vsel %vm578, %v1907, 0
    %v1947 = vsel %vm578, %v1908, 0
    %v1950 = vsel %vm578, %v1909, 0
    %v1953 = vsel %vm578, %v1910, 0
    %v1956 = vsel %vm578, %v1911, 0
    %v1959 = vsel %vm578, %v1912, 0
    %v1962 = vsel %vm578, %v1913, 0
    %v1965 = vsel %vm578, %v1914, 0
    %v1968 = vsel %vm578, %v1915, 0
    %v1971 = vsel %vm578, %v1916, 0
    %v1974 = vsel %vm578, %v1917, 0
    %v1977 = vsel %vm578, %v1918, 0
    %v1980 = vsel %vm578, %v1919, 0
    %v1983 = vsel %vm578, %v1920, 0
    %v1986 = vsel %vm578, %v1921, 0
    %v1989 = vsel %vm578, %v1922, 0
    %v1992 = vsel %vm578, %v1923, 0
    %v1995 = vsel %vm578, %v1924, 0
    %v1998 = vsel %vm578, %v1925, 0
    %v2001 = vsel %vm578, %v1926, 0
    %v2004 = vsel %vm578, %v1927, 0
    %v2007 = vsel %vm578, %v1928, 0
    %v2010 = vsel %vm578, %v1929, 0
    %v2013 = vsel %vm578, %v1930, 0
    %v2016 = vsel %vm578, %v1931, 0
    %v2019 = vsel %vm578, %v1932, 0
    %v2022 = vsel %vm578, %v1933, 0
    %v2025 = vsel %vm578, %v1934, 0
    %v2028 = vsel %vm578, %v1935, 0
    %v2031 = vsel %vm578, %v1936, 0
    %v2034 = vsel %vm675, %v1840, 0
    %2036 = vmatprep.subr.bf16.mxu0 0
    %2037 = vmatpush1.bf16.msra.mxu0 %v2034
    %2038 = vmatprep.subr.bf16.mxu0 0
    %2039 = vmatpush1.bf16.msra.mxu0 0
    %2040 = vmatprep.subr.bf16.mxu0 0
    %2041 = vmatpush1.bf16.msra.mxu0 0
    %2042 = vmatprep.subr.bf16.mxu0 0
    %2043 = vmatpush1.bf16.msra.mxu0 0
    %2044 = vmatprep.subr.bf16.mxu0 0
    %2045 = vmatpush1.bf16.msra.mxu0 0
    %2046 = vmatprep.subr.bf16.mxu0 0
    %2047 = vmatpush1.bf16.msra.mxu0 0
    %2048 = vmatprep.subr.bf16.mxu0 0
    %2049 = vmatpush1.bf16.msra.mxu0 0
    %2050 = vmatprep.subr.bf16.mxu0 0
    %2051 = vmatpush1.bf16.msra.mxu0 0
    %2052 = vmatprep.subr.bf16.mxu0 0
    %2053 = vmatpush1.bf16.msra.mxu0 0
    %2054 = vmatprep.subr.bf16.mxu0 0
    %2055 = vmatpush1.bf16.msra.mxu0 0
    %2056 = vmatprep.subr.bf16.mxu0 0
    %2057 = vmatpush1.bf16.msra.mxu0 0
    %2058 = vmatprep.subr.bf16.mxu0 0
    %2059 = vmatpush1.bf16.msra.mxu0 0
    %2060 = vmatprep.subr.bf16.mxu0 0
    %2061 = vmatpush1.bf16.msra.mxu0 0
    %2062 = vmatprep.subr.bf16.mxu0 0
    %2063 = vmatpush1.bf16.msra.mxu0 0
    %2064 = vmatprep.subr.bf16.mxu0 0
    %2065 = vmatpush1.bf16.msra.mxu0 0
    %2066 = vmatprep.subr.bf16.mxu0 0
    %2067 = vmatpush1.bf16.msra.mxu0 0
    %2068 = vmatprep.mubr.bf16.mxu0 0
    %2069 = vmatmul.mubr.bf16.gmra.mrb[0].mxu0 %v1938
    %v2070 = vpop.f32.mrb[0].mxu0
    %v2071 = vadd.f32 0.0, %v2070
    %v2072 = vpop.f32.mrb[0].mxu0
    %v2073 = vpop.f32.mrb[0].mxu0
    %v2074 = vadd.f32 0.0, %v2073
    %v2075 = vpop.f32.mrb[0].mxu0
    %2076 = vmatprep.mubr.bf16.mxu0 0
    %2077 = vmatmul.mubr.bf16.gmra.mrb[0].mxu0 %v1941
    %v2078 = vpop.f32.mrb[0].mxu0
    %v2079 = vadd.f32 0.0, %v2078
    %v2080 = vpop.f32.mrb[0].mxu0
    %v2081 = vpop.f32.mrb[0].mxu0
    %v2082 = vadd.f32 0.0, %v2081
    %v2083 = vpop.f32.mrb[0].mxu0
    %2084 = vmatprep.mubr.bf16.mxu0 0
    %2085 = vmatmul.mubr.bf16.gmra.mrb[0].mxu0 %v1944
    %v2086 = vpop.f32.mrb[0].mxu0
    %v2087 = vadd.f32 0.0, %v2086
    %v2088 = vpop.f32.mrb[0].mxu0
    %v2089 = vpop.f32.mrb[0].mxu0
    %v2090 = vadd.f32 0.0, %v2089
    %v2091 = vpop.f32.mrb[0].mxu0
    %2092 = vmatprep.mubr.bf16.mxu0 0
    %2093 = vmatmul.mubr.bf16.gmra.mrb[0].mxu0 %v1947
    %v2094 = vpop.f32.mrb[0].mxu0
    %v2095 = vadd.f32 0.0, %v2094
    %v2096 = vpop.f32.mrb[0].mxu0
    %v2097 = vpop.f32.mrb[0].mxu0
    %v2098 = vadd.f32 0.0, %v2097
    %v2099 = vpop.f32.mrb[0].mxu0
    %2100 = vmatprep.mubr.bf16.mxu0 0
    %2101 = vmatmul.mubr.bf16.gmra.mrb[0].mxu0 %v1950
    %v2102 = vpop.f32.mrb[0].mxu0
    %v2103 = vadd.f32 0.0, %v2102
    %v2104 = vpop.f32.mrb[0].mxu0
    %v2105 = vpop.f32.mrb[0].mxu0
    %v2106 = vadd.f32 0.0, %v2105
    %v2107 = vpop.f32.mrb[0].mxu0
    %2108 = vmatprep.mubr.bf16.mxu0 0
    %2109 = vmatmul.mubr.bf16.gmra.mrb[0].mxu0 %v1953
    %v2110 = vpop.f32.mrb[0].mxu0
    %v2111 = vadd.f32 0.0, %v2110
    %v2112 = vpop.f32.mrb[0].mxu0
    %v2113 = vpop.f32.mrb[0].mxu0
    %v2114 = vadd.f32 0.0, %v2113
    %v2115 = vpop.f32.mrb[0].mxu0
    %2116 = vmatprep.mubr.bf16.mxu0 0
    %2117 = vmatmul.mubr.bf16.gmra.mrb[0].mxu0 %v1956
    %v2118 = vpop.f32.mrb[0].mxu0
    %v2119 = vadd.f32 0.0, %v2118
    %v2120 = vpop.f32.mrb[0].mxu0
    %v2121 = vpop.f32.mrb[0].mxu0
    %v2122 = vadd.f32 0.0, %v2121
    %v2123 = vpop.f32.mrb[0].mxu0
    %2124 = vmatprep.mubr.bf16.mxu0 0
    %2125 = vmatmul.mubr.bf16.gmra.mrb[0].mxu0 %v1959
    %v2126 = vpop.f32.mrb[0].mxu0
    %v2127 = vadd.f32 0.0, %v2126
    %v2128 = vpop.f32.mrb[0].mxu0
    %v2129 = vpop.f32.mrb[0].mxu0
    %v2130 = vadd.f32 0.0, %v2129
    %v2131 = vpop.f32.mrb[0].mxu0
    %2132 = vmatprep.mubr.bf16.mxu0 0
    %2133 = vmatmul.mubr.bf16.gmra.mrb[0].mxu0 %v1962
    %v2134 = vpop.f32.mrb[0].mxu0
    %v2135 = vadd.f32 0.0, %v2134
    %v2136 = vpop.f32.mrb[0].mxu0
    %v2137 = vpop.f32.mrb[0].mxu0
    %v2138 = vadd.f32 0.0, %v2137
    %v2139 = vpop.f32.mrb[0].mxu0
    %2140 = vmatprep.mubr.bf16.mxu0 0
    %2141 = vmatmul.mubr.bf16.gmra.mrb[0].mxu0 %v1965
    %v2142 = vpop.f32.mrb[0].mxu0
    %v2143 = vadd.f32 0.0, %v2142
    %v2144 = vpop.f32.mrb[0].mxu0
    %v2145 = vpop.f32.mrb[0].mxu0
    %v2146 = vadd.f32 0.0, %v2145
    %v2147 = vpop.f32.mrb[0].mxu0
    %2148 = vmatprep.mubr.bf16.mxu0 0
    %2149 = vmatmul.mubr.bf16.gmra.mrb[0].mxu0 %v1968
    %v2150 = vpop.f32.mrb[0].mxu0
    %v2151 = vadd.f32 0.0, %v2150
    %v2152 = vpop.f32.mrb[0].mxu0
    %v2153 = vpop.f32.mrb[0].mxu0
    %v2154 = vadd.f32 0.0, %v2153
    %v2155 = vpop.f32.mrb[0].mxu0
    %2156 = vmatprep.mubr.bf16.mxu0 0
    %2157 = vmatmul.mubr.bf16.gmra.mrb[0].mxu0 %v1971
    %v2158 = vpop.f32.mrb[0].mxu0
    %v2159 = vadd.f32 0.0, %v2158
    %v2160 = vpop.f32.mrb[0].mxu0
    %v2161 = vpop.f32.mrb[0].mxu0
    %v2162 = vadd.f32 0.0, %v2161
    %v2163 = vpop.f32.mrb[0].mxu0
    %2164 = vmatprep.mubr.bf16.mxu0 0
    %2165 = vmatmul.mubr.bf16.gmra.mrb[0].mxu0 %v1974
    %v2166 = vpop.f32.mrb[0].mxu0
    %v2167 = vadd.f32 0.0, %v2166
    %v2168 = vpop.f32.mrb[0].mxu0
    %v2169 = vpop.f32.mrb[0].mxu0
    %v2170 = vadd.f32 0.0, %v2169
    %v2171 = vpop.f32.mrb[0].mxu0
    %2172 = vmatprep.mubr.bf16.mxu0 0
    %2173 = vmatmul.mubr.bf16.gmra.mrb[0].mxu0 %v1977
    %v2174 = vpop.f32.mrb[0].mxu0
    %v2175 = vadd.f32 0.0, %v2174
    %v2176 = vpop.f32.mrb[0].mxu0
    %v2177 = vpop.f32.mrb[0].mxu0
    %v2178 = vadd.f32 0.0, %v2177
    %v2179 = vpop.f32.mrb[0].mxu0
    %2180 = vmatprep.mubr.bf16.mxu0 0
    %2181 = vmatmul.mubr.bf16.gmra.mrb[0].mxu0 %v1980
    %v2182 = vpop.f32.mrb[0].mxu0
    %v2183 = vadd.f32 0.0, %v2182
    %v2184 = vpop.f32.mrb[0].mxu0
    %v2185 = vpop.f32.mrb[0].mxu0
    %v2186 = vadd.f32 0.0, %v2185
    %v2187 = vpop.f32.mrb[0].mxu0
    %2188 = vmatprep.mubr.bf16.mxu0 0
    %2189 = vmatmul.mubr.bf16.gmra.mrb[0].mxu0 %v1983
    %v2190 = vpop.f32.mrb[0].mxu0
    %v2191 = vadd.f32 0.0, %v2190
    %v2192 = vpop.f32.mrb[0].mxu0
    %v2193 = vpop.f32.mrb[0].mxu0
    %v2194 = vadd.f32 0.0, %v2193
    %v2195 = vpop.f32.mrb[0].mxu0
    %2196 = vmatprep.mubr.bf16.mxu0 0
    %2197 = vmatmul.mubr.bf16.gmra.mrb[0].mxu0 %v1986
    %v2198 = vpop.f32.mrb[0].mxu0
    %v2199 = vadd.f32 0.0, %v2198
    %v2200 = vpop.f32.mrb[0].mxu0
    %v2201 = vpop.f32.mrb[0].mxu0
    %v2202 = vadd.f32 0.0, %v2201
    %v2203 = vpop.f32.mrb[0].mxu0
    %2204 = vmatprep.mubr.bf16.mxu0 0
    %2205 = vmatmul.mubr.bf16.gmra.mrb[0].mxu0 %v1989
    %v2206 = vpop.f32.mrb[0].mxu0
    %v2207 = vadd.f32 0.0, %v2206
    %v2208 = vpop.f32.mrb[0].mxu0
    %v2209 = vpop.f32.mrb[0].mxu0
    %v2210 = vadd.f32 0.0, %v2209
    %v2211 = vpop.f32.mrb[0].mxu0
    %2212 = vmatprep.mubr.bf16.mxu0 0
    %2213 = vmatmul.mubr.bf16.gmra.mrb[0].mxu0 %v1992
    %v2214 = vpop.f32.mrb[0].mxu0
    %v2215 = vadd.f32 0.0, %v2214
    %v2216 = vpop.f32.mrb[0].mxu0
    %v2217 = vpop.f32.mrb[0].mxu0
    %v2218 = vadd.f32 0.0, %v2217
    %v2219 = vpop.f32.mrb[0].mxu0
    %2220 = vmatprep.mubr.bf16.mxu0 0
    %2221 = vmatmul.mubr.bf16.gmra.mrb[0].mxu0 %v1995
    %v2222 = vpop.f32.mrb[0].mxu0
    %v2223 = vadd.f32 0.0, %v2222
    %v2224 = vpop.f32.mrb[0].mxu0
    %v2225 = vpop.f32.mrb[0].mxu0
    %v2226 = vadd.f32 0.0, %v2225
    %v2227 = vpop.f32.mrb[0].mxu0
    %2228 = vmatprep.mubr.bf16.mxu0 0
    %2229 = vmatmul.mubr.bf16.gmra.mrb[0].mxu0 %v1998
    %v2230 = vpop.f32.mrb[0].mxu0
    %v2231 = vadd.f32 0.0, %v2230
    %v2232 = vpop.f32.mrb[0].mxu0
    %v2233 = vpop.f32.mrb[0].mxu0
    %v2234 = vadd.f32 0.0, %v2233
    %v2235 = vpop.f32.mrb[0].mxu0
    %2236 = vmatprep.mubr.bf16.mxu0 0
    %2237 = vmatmul.mubr.bf16.gmra.mrb[0].mxu0 %v2001
    %v2238 = vpop.f32.mrb[0].mxu0
    %v2239 = vadd.f32 0.0, %v2238
    %v2240 = vpop.f32.mrb[0].mxu0
    %v2241 = vpop.f32.mrb[0].mxu0
    %v2242 = vadd.f32 0.0, %v2241
    %v2243 = vpop.f32.mrb[0].mxu0
    %2244 = vmatprep.mubr.bf16.mxu0 0
    %2245 = vmatmul.mubr.bf16.gmra.mrb[0].mxu0 %v2004
    %v2246 = vpop.f32.mrb[0].mxu0
    %v2247 = vadd.f32 0.0, %v2246
    %v2248 = vpop.f32.mrb[0].mxu0
    %v2249 = vpop.f32.mrb[0].mxu0
    %v2250 = vadd.f32 0.0, %v2249
    %v2251 = vpop.f32.mrb[0].mxu0
    %2252 = vmatprep.mubr.bf16.mxu0 0
    %2253 = vmatmul.mubr.bf16.gmra.mrb[0].mxu0 %v2007
    %v2254 = vpop.f32.mrb[0].mxu0
    %v2255 = vadd.f32 0.0, %v2254
    %v2256 = vpop.f32.mrb[0].mxu0
    %v2257 = vpop.f32.mrb[0].mxu0
    %v2258 = vadd.f32 0.0, %v2257
    %v2259 = vpop.f32.mrb[0].mxu0
    %2260 = vmatprep.mubr.bf16.mxu0 0
    %2261 = vmatmul.mubr.bf16.gmra.mrb[0].mxu0 %v2010
    %v2262 = vpop.f32.mrb[0].mxu0
    %v2263 = vadd.f32 0.0, %v2262
    %v2264 = vpop.f32.mrb[0].mxu0
    %v2265 = vpop.f32.mrb[0].mxu0
    %v2266 = vadd.f32 0.0, %v2265
    %v2267 = vpop.f32.mrb[0].mxu0
    %2268 = vmatprep.mubr.bf16.mxu0 0
    %2269 = vmatmul.mubr.bf16.gmra.mrb[0].mxu0 %v2013
    %v2270 = vpop.f32.mrb[0].mxu0
    %v2271 = vadd.f32 0.0, %v2270
    %v2272 = vpop.f32.mrb[0].mxu0
    %v2273 = vpop.f32.mrb[0].mxu0
    %v2274 = vadd.f32 0.0, %v2273
    %v2275 = vpop.f32.mrb[0].mxu0
    %2276 = vmatprep.mubr.bf16.mxu0 0
    %2277 = vmatmul.mubr.bf16.gmra.mrb[0].mxu0 %v2016
    %v2278 = vpop.f32.mrb[0].mxu0
    %v2279 = vadd.f32 0.0, %v2278
    %v2280 = vpop.f32.mrb[0].mxu0
    %v2281 = vpop.f32.mrb[0].mxu0
    %v2282 = vadd.f32 0.0, %v2281
    %v2283 = vpop.f32.mrb[0].mxu0
    %2284 = vmatprep.mubr.bf16.mxu0 0
    %2285 = vmatmul.mubr.bf16.gmra.mrb[0].mxu0 %v2019
    %v2286 = vpop.f32.mrb[0].mxu0
    %v2287 = vadd.f32 0.0, %v2286
    %v2288 = vpop.f32.mrb[0].mxu0
    %v2289 = vpop.f32.mrb[0].mxu0
    %v2290 = vadd.f32 0.0, %v2289
    %v2291 = vpop.f32.mrb[0].mxu0
    %2292 = vmatprep.mubr.bf16.mxu0 0
    %2293 = vmatmul.mubr.bf16.gmra.mrb[0].mxu0 %v2022
    %v2294 = vpop.f32.mrb[0].mxu0
    %v2295 = vadd.f32 0.0, %v2294
    %v2296 = vpop.f32.mrb[0].mxu0
    %v2297 = vpop.f32.mrb[0].mxu0
    %v2298 = vadd.f32 0.0, %v2297
    %v2299 = vpop.f32.mrb[0].mxu0
    %2300 = vmatprep.mubr.bf16.mxu0 0
    %2301 = vmatmul.mubr.bf16.gmra.mrb[0].mxu0 %v2025
    %v2302 = vpop.f32.mrb[0].mxu0
    %v2303 = vadd.f32 0.0, %v2302
    %v2304 = vpop.f32.mrb[0].mxu0
    %v2305 = vpop.f32.mrb[0].mxu0
    %v2306 = vadd.f32 0.0, %v2305
    %v2307 = vpop.f32.mrb[0].mxu0
    %2308 = vmatprep.mubr.bf16.mxu0 0
    %2309 = vmatmul.mubr.bf16.gmra.mrb[0].mxu0 %v2028
    %v2310 = vpop.f32.mrb[0].mxu0
    %v2311 = vadd.f32 0.0, %v2310
    %v2312 = vpop.f32.mrb[0].mxu0
    %v2313 = vpop.f32.mrb[0].mxu0
    %v2314 = vadd.f32 0.0, %v2313
    %v2315 = vpop.f32.mrb[0].mxu0
    %2316 = vmatprep.mubr.bf16.mxu0 0
    %2317 = vmatmul.mubr.bf16.gmra.mrb[0].mxu0 %v2031
    %v2318 = vpop.f32.mrb[0].mxu0
    %v2319 = vadd.f32 0.0, %v2318
    %v2320 = vpop.f32.mrb[0].mxu0
    %v2321 = vpop.f32.mrb[0].mxu0
    %v2322 = vadd.f32 0.0, %v2321
    %v2323 = vpop.f32.mrb[0].mxu0
    %2324 = vdwg.mxu0
    %v2325 = vadd.f32 %v1230, %v2071
    %v2326 = vadd.f32 %v1233, %v2074
    %v2327 = vadd.f32 %v1238, %v2079
    %v2328 = vadd.f32 %v1241, %v2082
    %v2329 = vadd.f32 %v1246, %v2087
    %v2330 = vadd.f32 %v1249, %v2090
    %v2331 = vadd.f32 %v1254, %v2095
    %v2332 = vadd.f32 %v1257, %v2098
    %v2333 = vadd.f32 %v1262, %v2103
    %v2334 = vadd.f32 %v1265, %v2106
    %v2335 = vadd.f32 %v1270, %v2111
    %v2336 = vadd.f32 %v1273, %v2114
    %v2337 = vadd.f32 %v1278, %v2119
    %v2338 = vadd.f32 %v1281, %v2122
    %v2339 = vadd.f32 %v1286, %v2127
    %v2340 = vadd.f32 %v1289, %v2130
    %v2341 = vadd.f32 %v1294, %v2135
    %v2342 = vadd.f32 %v1297, %v2138
    %v2343 = vadd.f32 %v1302, %v2143
    %v2344 = vadd.f32 %v1305, %v2146
    %v2345 = vadd.f32 %v1310, %v2151
    %v2346 = vadd.f32 %v1313, %v2154
    %v2347 = vadd.f32 %v1318, %v2159
    %v2348 = vadd.f32 %v1321, %v2162
    %v2349 = vadd.f32 %v1326, %v2167
    %v2350 = vadd.f32 %v1329, %v2170
    %v2351 = vadd.f32 %v1334, %v2175
    %v2352 = vadd.f32 %v1337, %v2178
    %v2353 = vadd.f32 %v1342, %v2183
    %v2354 = vadd.f32 %v1345, %v2186
    %v2355 = vadd.f32 %v1350, %v2191
    %v2356 = vadd.f32 %v1353, %v2194
    %v2357 = vadd.f32 %v1358, %v2199
    %v2358 = vadd.f32 %v1361, %v2202
    %v2359 = vadd.f32 %v1366, %v2207
    %v2360 = vadd.f32 %v1369, %v2210
    %v2361 = vadd.f32 %v1374, %v2215
    %v2362 = vadd.f32 %v1377, %v2218
    %v2363 = vadd.f32 %v1382, %v2223
    %v2364 = vadd.f32 %v1385, %v2226
    %v2365 = vadd.f32 %v1390, %v2231
    %v2366 = vadd.f32 %v1393, %v2234
    %v2367 = vadd.f32 %v1398, %v2239
    %v2368 = vadd.f32 %v1401, %v2242
    %v2369 = vadd.f32 %v1406, %v2247
    %v2370 = vadd.f32 %v1409, %v2250
    %v2371 = vadd.f32 %v1414, %v2255
    %v2372 = vadd.f32 %v1417, %v2258
    %v2373 = vadd.f32 %v1422, %v2263
    %v2374 = vadd.f32 %v1425, %v2266
    %v2375 = vadd.f32 %v1430, %v2271
    %v2376 = vadd.f32 %v1433, %v2274
    %v2377 = vadd.f32 %v1438, %v2279
    %v2378 = vadd.f32 %v1441, %v2282
    %v2379 = vadd.f32 %v1446, %v2287
    %v2380 = vadd.f32 %v1449, %v2290
    %v2381 = vadd.f32 %v1454, %v2295
    %v2382 = vadd.f32 %v1457, %v2298
    %v2383 = vadd.f32 %v1462, %v2303
    %v2384 = vadd.f32 %v1465, %v2306
    %v2385 = vadd.f32 %v1470, %v2311
    %v2386 = vadd.f32 %v1473, %v2314
    %v2387 = vadd.f32 %v1478, %v2319
    %v2388 = vadd.f32 %v1481, %v2322
    %s2389 = scalar_lea.vmem %s0, 24
    %v2390 = vld [vmem:[%s2389] sm:$0xf]
    %v2391 = vld [vmem:[%s2389 + $0x4] sm:$0xf]
    %v2392 = vld [vmem:[%s2389 + $0xc] sm:$0xf]
    %v2393 = vld [vmem:[%s2389 + $0x10] sm:$0xf]
    %v2394 = vld [vmem:[%s2389 + $0x18] sm:$0xf]
    %v2395 = vld [vmem:[%s2389 + $0x1c] sm:$0xf]
    %v2396 = vld [vmem:[%s2389 + $0x24] sm:$0xf]
    %v2397 = vld [vmem:[%s2389 + $0x28] sm:$0xf]
    %v2398 = vld [vmem:[%s2389 + $0x30] sm:$0xf]
    %v2399 = vld [vmem:[%s2389 + $0x34] sm:$0xf]
    %v2400 = vld [vmem:[%s2389 + $0x3c] sm:$0xf]
    %v2401 = vld [vmem:[%s2389 + $0x40] sm:$0xf]
    %v2402 = vld [vmem:[%s2389 + $0x48] sm:$0xf]
    %v2403 = vld [vmem:[%s2389 + $0x4c] sm:$0xf]
    %v2404 = vld [vmem:[%s2389 + $0x54] sm:$0xf]
    %v2405 = vld [vmem:[%s2389 + $0x58] sm:$0xf]
    %v2406 = vld [vmem:[%s2389 + $0x60] sm:$0xf]
    %v2407 = vld [vmem:[%s2389 + $0x64] sm:$0xf]
    %v2408 = vld [vmem:[%s2389 + $0x6c] sm:$0xf]
    %v2409 = vld [vmem:[%s2389 + $0x70] sm:$0xf]
    %v2410 = vld [vmem:[%s2389 + $0x78] sm:$0xf]
    %v2411 = vld [vmem:[%s2389 + $0x7c] sm:$0xf]
    %v2412 = vld [vmem:[%s2389 + $0x84] sm:$0xf]
    %v2413 = vld [vmem:[%s2389 + $0x88] sm:$0xf]
    %v2414 = vld [vmem:[%s2389 + $0x90] sm:$0xf]
    %v2415 = vld [vmem:[%s2389 + $0x94] sm:$0xf]
    %v2416 = vld [vmem:[%s2389 + $0x9c] sm:$0xf]
    %v2417 = vld [vmem:[%s2389 + $0xa0] sm:$0xf]
    %v2418 = vld [vmem:[%s2389 + $0xa8] sm:$0xf]
    %v2419 = vld [vmem:[%s2389 + $0xac] sm:$0xf]
    %v2420 = vld [vmem:[%s2389 + $0xb4] sm:$0xf]
    %v2421 = vld [vmem:[%s2389 + $0xb8] sm:$0xf]
    %v2422 = vld [vmem:[%s2389 + $0xf0] sm:$0xf]
    %v2423 = vld [vmem:[%s2389 + $0xf4] sm:$0xf]
    %v2424 = vld [vmem:[%s2389 + $0xfc] sm:$0xf]
    %v2425 = vld [vmem:[%s2389 + $0x100] sm:$0xf]
    %v2426 = vld [vmem:[%s2389 + $0x108] sm:$0xf]
    %v2427 = vld [vmem:[%s2389 + $0x10c] sm:$0xf]
    %v2428 = vld [vmem:[%s2389 + $0x114] sm:$0xf]
    %v2429 = vld [vmem:[%s2389 + $0x118] sm:$0xf]
    %v2430 = vld [vmem:[%s2389 + $0x120] sm:$0xf]
    %v2431 = vld [vmem:[%s2389 + $0x124] sm:$0xf]
    %v2432 = vld [vmem:[%s2389 + $0x12c] sm:$0xf]
    %v2433 = vld [vmem:[%s2389 + $0x130] sm:$0xf]
    %v2434 = vld [vmem:[%s2389 + $0x138] sm:$0xf]
    %v2435 = vld [vmem:[%s2389 + $0x13c] sm:$0xf]
    %v2436 = vld [vmem:[%s2389 + $0x144] sm:$0xf]
    %v2437 = vld [vmem:[%s2389 + $0x148] sm:$0xf]
    %v2438 = vld [vmem:[%s2389 + $0x150] sm:$0xf]
    %v2439 = vld [vmem:[%s2389 + $0x154] sm:$0xf]
    %v2440 = vld [vmem:[%s2389 + $0x15c] sm:$0xf]
    %v2441 = vld [vmem:[%s2389 + $0x160] sm:$0xf]
    %v2442 = vld [vmem:[%s2389 + $0x168] sm:$0xf]
    %v2443 = vld [vmem:[%s2389 + $0x16c] sm:$0xf]
    %v2444 = vld [vmem:[%s2389 + $0x174] sm:$0xf]
    %v2445 = vld [vmem:[%s2389 + $0x178] sm:$0xf]
    %v2446 = vld [vmem:[%s2389 + $0x180] sm:$0xf]
    %v2447 = vld [vmem:[%s2389 + $0x184] sm:$0xf]
    %v2448 = vld [vmem:[%s2389 + $0x18c] sm:$0xf]
    %v2449 = vld [vmem:[%s2389 + $0x190] sm:$0xf]
    %v2450 = vld [vmem:[%s2389 + $0x198] sm:$0xf]
    %v2451 = vld [vmem:[%s2389 + $0x19c] sm:$0xf]
    %v2452 = vld [vmem:[%s2389 + $0x1a4] sm:$0xf]
    %v2453 = vld [vmem:[%s2389 + $0x1a8] sm:$0xf]
    %s2454 = scalar_lea.vmem %s1, 6
    %v2455 = vld [vmem:[%s2454] sm:$0x3]
    %v2520 = vunpack.c.l.b16 %v2390
    %v2521 = vunpack.c.l.b16 %v2391
    %v2522 = vunpack.c.l.b16 %v2392
    %v2523 = vunpack.c.l.b16 %v2393
    %v2524 = vunpack.c.l.b16 %v2394
    %v2525 = vunpack.c.l.b16 %v2395
    %v2526 = vunpack.c.l.b16 %v2396
    %v2527 = vunpack.c.l.b16 %v2397
    %v2528 = vunpack.c.l.b16 %v2398
    %v2529 = vunpack.c.l.b16 %v2399
    %v2530 = vunpack.c.l.b16 %v2400
    %v2531 = vunpack.c.l.b16 %v2401
    %v2532 = vunpack.c.l.b16 %v2402
    %v2533 = vunpack.c.l.b16 %v2403
    %v2534 = vunpack.c.l.b16 %v2404
    %v2535 = vunpack.c.l.b16 %v2405
    %v2536 = vunpack.c.l.b16 %v2406
    %v2537 = vunpack.c.l.b16 %v2407
    %v2538 = vunpack.c.l.b16 %v2408
    %v2539 = vunpack.c.l.b16 %v2409
    %v2540 = vunpack.c.l.b16 %v2410
    %v2541 = vunpack.c.l.b16 %v2411
    %v2542 = vunpack.c.l.b16 %v2412
    %v2543 = vunpack.c.l.b16 %v2413
    %v2544 = vunpack.c.l.b16 %v2414
    %v2545 = vunpack.c.l.b16 %v2415
    %v2546 = vunpack.c.l.b16 %v2416
    %v2547 = vunpack.c.l.b16 %v2417
    %v2548 = vunpack.c.l.b16 %v2418
    %v2549 = vunpack.c.l.b16 %v2419
    %v2550 = vunpack.c.l.b16 %v2420
    %v2551 = vunpack.c.l.b16 %v2421
    %v2552 = vunpack.c.l.b16 %v2422
    %v2553 = vunpack.c.l.b16 %v2423
    %v2554 = vunpack.c.l.b16 %v2424
    %v2555 = vunpack.c.l.b16 %v2425
    %v2556 = vunpack.c.l.b16 %v2426
    %v2557 = vunpack.c.l.b16 %v2427
    %v2558 = vunpack.c.l.b16 %v2428
    %v2559 = vunpack.c.l.b16 %v2429
    %v2560 = vunpack.c.l.b16 %v2430
    %v2561 = vunpack.c.l.b16 %v2431
    %v2562 = vunpack.c.l.b16 %v2432
    %v2563 = vunpack.c.l.b16 %v2433
    %v2564 = vunpack.c.l.b16 %v2434
    %v2565 = vunpack.c.l.b16 %v2435
    %v2566 = vunpack.c.l.b16 %v2436
    %v2567 = vunpack.c.l.b16 %v2437
    %v2568 = vunpack.c.l.b16 %v2438
    %v2569 = vunpack.c.l.b16 %v2439
    %v2570 = vunpack.c.l.b16 %v2440
    %v2571 = vunpack.c.l.b16 %v2441
    %v2572 = vunpack.c.l.b16 %v2442
    %v2573 = vunpack.c.l.b16 %v2443
    %v2574 = vunpack.c.l.b16 %v2444
    %v2575 = vunpack.c.l.b16 %v2445
    %v2576 = vunpack.c.l.b16 %v2446
    %v2577 = vunpack.c.l.b16 %v2447
    %v2578 = vunpack.c.l.b16 %v2448
    %v2579 = vunpack.c.l.b16 %v2449
    %v2580 = vunpack.c.l.b16 %v2450
    %v2581 = vunpack.c.l.b16 %v2451
    %v2582 = vunpack.c.l.b16 %v2452
    %v2583 = vunpack.c.l.b16 %v2453
    %v2584 = vpack.c.b16 %v2521, %v2520
    %v2585 = vpack.c.b16 %v2523, %v2522
    %v2586 = vpack.c.b16 %v2525, %v2524
    %v2587 = vpack.c.b16 %v2527, %v2526
    %v2588 = vpack.c.b16 %v2529, %v2528
    %v2589 = vpack.c.b16 %v2531, %v2530
    %v2590 = vpack.c.b16 %v2533, %v2532
    %v2591 = vpack.c.b16 %v2535, %v2534
    %v2592 = vpack.c.b16 %v2537, %v2536
    %v2593 = vpack.c.b16 %v2539, %v2538
    %v2594 = vpack.c.b16 %v2541, %v2540
    %v2595 = vpack.c.b16 %v2543, %v2542
    %v2596 = vpack.c.b16 %v2545, %v2544
    %v2597 = vpack.c.b16 %v2547, %v2546
    %v2598 = vpack.c.b16 %v2549, %v2548
    %v2599 = vpack.c.b16 %v2551, %v2550
    %v2600 = vpack.c.b16 %v2553, %v2552
    %v2601 = vpack.c.b16 %v2555, %v2554
    %v2602 = vpack.c.b16 %v2557, %v2556
    %v2603 = vpack.c.b16 %v2559, %v2558
    %v2604 = vpack.c.b16 %v2561, %v2560
    %v2605 = vpack.c.b16 %v2563, %v2562
    %v2606 = vpack.c.b16 %v2565, %v2564
    %v2607 = vpack.c.b16 %v2567, %v2566
    %v2608 = vpack.c.b16 %v2569, %v2568
    %v2609 = vpack.c.b16 %v2571, %v2570
    %v2610 = vpack.c.b16 %v2573, %v2572
    %v2611 = vpack.c.b16 %v2575, %v2574
    %v2612 = vpack.c.b16 %v2577, %v2576
    %v2613 = vpack.c.b16 %v2579, %v2578
    %v2614 = vpack.c.b16 %v2581, %v2580
    %v2615 = vpack.c.b16 %v2583, %v2582
    %v2617 = vsel %vm578, %v2584, 0
    %v2620 = vsel %vm578, %v2585, 0
    %v2623 = vsel %vm578, %v2586, 0
    %v2626 = vsel %vm578, %v2587, 0
    %v2629 = vsel %vm578, %v2588, 0
    %v2632 = vsel %vm578, %v2589, 0
    %v2635 = vsel %vm578, %v2590, 0
    %v2638 = vsel %vm578, %v2591, 0
    %v2641 = vsel %vm578, %v2592, 0
    %v2644 = vsel %vm578, %v2593, 0
    %v2647 = vsel %vm578, %v2594, 0
    %v2650 = vsel %vm578, %v2595, 0
    %v2653 = vsel %vm578, %v2596, 0
    %v2656 = vsel %vm578, %v2597, 0
    %v2659 = vsel %vm578, %v2598, 0
    %v2662 = vsel %vm578, %v2599, 0
    %v2665 = vsel %vm578, %v2600, 0
    %v2668 = vsel %vm578, %v2601, 0
    %v2671 = vsel %vm578, %v2602, 0
    %v2674 = vsel %vm578, %v2603, 0
    %v2677 = vsel %vm578, %v2604, 0
    %v2680 = vsel %vm578, %v2605, 0
    %v2683 = vsel %vm578, %v2606, 0
    %v2686 = vsel %vm578, %v2607, 0
    %v2689 = vsel %vm578, %v2608, 0
    %v2692 = vsel %vm578, %v2609, 0
    %v2695 = vsel %vm578, %v2610, 0
    %v2698 = vsel %vm578, %v2611, 0
    %v2701 = vsel %vm578, %v2612, 0
    %v2704 = vsel %vm578, %v2613, 0
    %v2707 = vsel %vm578, %v2614, 0
    %v2710 = vsel %vm578, %v2615, 0
    %v2713 = vsel %vm675, %v2455, 0
    %2715 = vmatprep.subr.bf16.mxu0 0
    %2716 = vmatpush1.bf16.msra.mxu0 %v2713
    %2717 = vmatprep.subr.bf16.mxu0 0
    %2718 = vmatpush1.bf16.msra.mxu0 0
    %2719 = vmatprep.subr.bf16.mxu0 0
    %2720 = vmatpush1.bf16.msra.mxu0 0
    %2721 = vmatprep.subr.bf16.mxu0 0
    %2722 = vmatpush1.bf16.msra.mxu0 0
    %2723 = vmatprep.subr.bf16.mxu0 0
    %2724 = vmatpush1.bf16.msra.mxu0 0
    %2725 = vmatprep.subr.bf16.mxu0 0
    %2726 = vmatpush1.bf16.msra.mxu0 0
    %2727 = vmatprep.subr.bf16.mxu0 0
    %2728 = vmatpush1.bf16.msra.mxu0 0
    %2729 = vmatprep.subr.bf16.mxu0 0
    %2730 = vmatpush1.bf16.msra.mxu0 0
    %2731 = vmatprep.subr.bf16.mxu0 0
    %2732 = vmatpush1.bf16.msra.mxu0 0
    %2733 = vmatprep.subr.bf16.mxu0 0
    %2734 = vmatpush1.bf16.msra.mxu0 0
    %2735 = vmatprep.subr.bf16.mxu0 0
    %2736 = vmatpush1.bf16.msra.mxu0 0
    %2737 = vmatprep.subr.bf16.mxu0 0
    %2738 = vmatpush1.bf16.msra.mxu0 0
    %2739 = vmatprep.subr.bf16.mxu0 0
    %2740 = vmatpush1.bf16.msra.mxu0 0
    %2741 = vmatprep.subr.bf16.mxu0 0
    %2742 = vmatpush1.bf16.msra.mxu0 0
    %2743 = vmatprep.subr.bf16.mxu0 0
    %2744 = vmatpush1.bf16.msra.mxu0 0
    %2745 = vmatprep.subr.bf16.mxu0 0
    %2746 = vmatpush1.bf16.msra.mxu0 0
    %2747 = vmatprep.mubr.bf16.mxu0 0
    %2748 = vmatmul.mubr.bf16.gmra.mrb[0].mxu0 %v2617
    %v2749 = vpop.f32.mrb[0].mxu0
    %v2750 = vadd.f32 0.0, %v2749
    %v2751 = vpop.f32.mrb[0].mxu0
    %v2752 = vpop.f32.mrb[0].mxu0
    %v2753 = vadd.f32 0.0, %v2752
    %v2754 = vpop.f32.mrb[0].mxu0
    %2755 = vmatprep.mubr.bf16.mxu0 0
    %2756 = vmatmul.mubr.bf16.gmra.mrb[0].mxu0 %v2620
    %v2757 = vpop.f32.mrb[0].mxu0
    %v2758 = vadd.f32 0.0, %v2757
    %v2759 = vpop.f32.mrb[0].mxu0
    %v2760 = vpop.f32.mrb[0].mxu0
    %v2761 = vadd.f32 0.0, %v2760
    %v2762 = vpop.f32.mrb[0].mxu0
    %2763 = vmatprep.mubr.bf16.mxu0 0
    %2764 = vmatmul.mubr.bf16.gmra.mrb[0].mxu0 %v2623
    %v2765 = vpop.f32.mrb[0].mxu0
    %v2766 = vadd.f32 0.0, %v2765
    %v2767 = vpop.f32.mrb[0].mxu0
    %v2768 = vpop.f32.mrb[0].mxu0
    %v2769 = vadd.f32 0.0, %v2768
    %v2770 = vpop.f32.mrb[0].mxu0
    %2771 = vmatprep.mubr.bf16.mxu0 0
    %2772 = vmatmul.mubr.bf16.gmra.mrb[0].mxu0 %v2626
    %v2773 = vpop.f32.mrb[0].mxu0
    %v2774 = vadd.f32 0.0, %v2773
    %v2775 = vpop.f32.mrb[0].mxu0
    %v2776 = vpop.f32.mrb[0].mxu0
    %v2777 = vadd.f32 0.0, %v2776
    %v2778 = vpop.f32.mrb[0].mxu0
    %2779 = vmatprep.mubr.bf16.mxu0 0
    %2780 = vmatmul.mubr.bf16.gmra.mrb[0].mxu0 %v2629
    %v2781 = vpop.f32.mrb[0].mxu0
    %v2782 = vadd.f32 0.0, %v2781
    %v2783 = vpop.f32.mrb[0].mxu0
    %v2784 = vpop.f32.mrb[0].mxu0
    %v2785 = vadd.f32 0.0, %v2784
    %v2786 = vpop.f32.mrb[0].mxu0
    %2787 = vmatprep.mubr.bf16.mxu0 0
    %2788 = vmatmul.mubr.bf16.gmra.mrb[0].mxu0 %v2632
    %v2789 = vpop.f32.mrb[0].mxu0
    %v2790 = vadd.f32 0.0, %v2789
    %v2791 = vpop.f32.mrb[0].mxu0
    %v2792 = vpop.f32.mrb[0].mxu0
    %v2793 = vadd.f32 0.0, %v2792
    %v2794 = vpop.f32.mrb[0].mxu0
    %2795 = vmatprep.mubr.bf16.mxu0 0
    %2796 = vmatmul.mubr.bf16.gmra.mrb[0].mxu0 %v2635
    %v2797 = vpop.f32.mrb[0].mxu0
    %v2798 = vadd.f32 0.0, %v2797
    %v2799 = vpop.f32.mrb[0].mxu0
    %v2800 = vpop.f32.mrb[0].mxu0
    %v2801 = vadd.f32 0.0, %v2800
    %v2802 = vpop.f32.mrb[0].mxu0
    %2803 = vmatprep.mubr.bf16.mxu0 0
    %2804 = vmatmul.mubr.bf16.gmra.mrb[0].mxu0 %v2638
    %v2805 = vpop.f32.mrb[0].mxu0
    %v2806 = vadd.f32 0.0, %v2805
    %v2807 = vpop.f32.mrb[0].mxu0
    %v2808 = vpop.f32.mrb[0].mxu0
    %v2809 = vadd.f32 0.0, %v2808
    %v2810 = vpop.f32.mrb[0].mxu0
    %2811 = vmatprep.mubr.bf16.mxu0 0
    %2812 = vmatmul.mubr.bf16.gmra.mrb[0].mxu0 %v2641
    %v2813 = vpop.f32.mrb[0].mxu0
    %v2814 = vadd.f32 0.0, %v2813
    %v2815 = vpop.f32.mrb[0].mxu0
    %v2816 = vpop.f32.mrb[0].mxu0
    %v2817 = vadd.f32 0.0, %v2816
    %v2818 = vpop.f32.mrb[0].mxu0
    %2819 = vmatprep.mubr.bf16.mxu0 0
    %2820 = vmatmul.mubr.bf16.gmra.mrb[0].mxu0 %v2644
    %v2821 = vpop.f32.mrb[0].mxu0
    %v2822 = vadd.f32 0.0, %v2821
    %v2823 = vpop.f32.mrb[0].mxu0
    %v2824 = vpop.f32.mrb[0].mxu0
    %v2825 = vadd.f32 0.0, %v2824
    %v2826 = vpop.f32.mrb[0].mxu0
    %2827 = vmatprep.mubr.bf16.mxu0 0
    %2828 = vmatmul.mubr.bf16.gmra.mrb[0].mxu0 %v2647
    %v2829 = vpop.f32.mrb[0].mxu0
    %v2830 = vadd.f32 0.0, %v2829
    %v2831 = vpop.f32.mrb[0].mxu0
    %v2832 = vpop.f32.mrb[0].mxu0
    %v2833 = vadd.f32 0.0, %v2832
    %v2834 = vpop.f32.mrb[0].mxu0
    %2835 = vmatprep.mubr.bf16.mxu0 0
    %2836 = vmatmul.mubr.bf16.gmra.mrb[0].mxu0 %v2650
    %v2837 = vpop.f32.mrb[0].mxu0
    %v2838 = vadd.f32 0.0, %v2837
    %v2839 = vpop.f32.mrb[0].mxu0
    %v2840 = vpop.f32.mrb[0].mxu0
    %v2841 = vadd.f32 0.0, %v2840
    %v2842 = vpop.f32.mrb[0].mxu0
    %2843 = vmatprep.mubr.bf16.mxu0 0
    %2844 = vmatmul.mubr.bf16.gmra.mrb[0].mxu0 %v2653
    %v2845 = vpop.f32.mrb[0].mxu0
    %v2846 = vadd.f32 0.0, %v2845
    %v2847 = vpop.f32.mrb[0].mxu0
    %v2848 = vpop.f32.mrb[0].mxu0
    %v2849 = vadd.f32 0.0, %v2848
    %v2850 = vpop.f32.mrb[0].mxu0
    %2851 = vmatprep.mubr.bf16.mxu0 0
    %2852 = vmatmul.mubr.bf16.gmra.mrb[0].mxu0 %v2656
    %v2853 = vpop.f32.mrb[0].mxu0
    %v2854 = vadd.f32 0.0, %v2853
    %v2855 = vpop.f32.mrb[0].mxu0
    %v2856 = vpop.f32.mrb[0].mxu0
    %v2857 = vadd.f32 0.0, %v2856
    %v2858 = vpop.f32.mrb[0].mxu0
    %2859 = vmatprep.mubr.bf16.mxu0 0
    %2860 = vmatmul.mubr.bf16.gmra.mrb[0].mxu0 %v2659
    %v2861 = vpop.f32.mrb[0].mxu0
    %v2862 = vadd.f32 0.0, %v2861
    %v2863 = vpop.f32.mrb[0].mxu0
    %v2864 = vpop.f32.mrb[0].mxu0
    %v2865 = vadd.f32 0.0, %v2864
    %v2866 = vpop.f32.mrb[0].mxu0
    %2867 = vmatprep.mubr.bf16.mxu0 0
    %2868 = vmatmul.mubr.bf16.gmra.mrb[0].mxu0 %v2662
    %v2869 = vpop.f32.mrb[0].mxu0
    %v2870 = vadd.f32 0.0, %v2869
    %v2871 = vpop.f32.mrb[0].mxu0
    %v2872 = vpop.f32.mrb[0].mxu0
    %v2873 = vadd.f32 0.0, %v2872
    %v2874 = vpop.f32.mrb[0].mxu0
    %2875 = vmatprep.mubr.bf16.mxu0 0
    %2876 = vmatmul.mubr.bf16.gmra.mrb[0].mxu0 %v2665
    %v2877 = vpop.f32.mrb[0].mxu0
    %v2878 = vadd.f32 0.0, %v2877
    %v2879 = vpop.f32.mrb[0].mxu0
    %v2880 = vpop.f32.mrb[0].mxu0
    %v2881 = vadd.f32 0.0, %v2880
    %v2882 = vpop.f32.mrb[0].mxu0
    %2883 = vmatprep.mubr.bf16.mxu0 0
    %2884 = vmatmul.mubr.bf16.gmra.mrb[0].mxu0 %v2668
    %v2885 = vpop.f32.mrb[0].mxu0
    %v2886 = vadd.f32 0.0, %v2885
    %v2887 = vpop.f32.mrb[0].mxu0
    %v2888 = vpop.f32.mrb[0].mxu0
    %v2889 = vadd.f32 0.0, %v2888
    %v2890 = vpop.f32.mrb[0].mxu0
    %2891 = vmatprep.mubr.bf16.mxu0 0
    %2892 = vmatmul.mubr.bf16.gmra.mrb[0].mxu0 %v2671
    %v2893 = vpop.f32.mrb[0].mxu0
    %v2894 = vadd.f32 0.0, %v2893
    %v2895 = vpop.f32.mrb[0].mxu0
    %v2896 = vpop.f32.mrb[0].mxu0
    %v2897 = vadd.f32 0.0, %v2896
    %v2898 = vpop.f32.mrb[0].mxu0
    %2899 = vmatprep.mubr.bf16.mxu0 0
    %2900 = vmatmul.mubr.bf16.gmra.mrb[0].mxu0 %v2674
    %v2901 = vpop.f32.mrb[0].mxu0
    %v2902 = vadd.f32 0.0, %v2901
    %v2903 = vpop.f32.mrb[0].mxu0
    %v2904 = vpop.f32.mrb[0].mxu0
    %v2905 = vadd.f32 0.0, %v2904
    %v2906 = vpop.f32.mrb[0].mxu0
    %2907 = vmatprep.mubr.bf16.mxu0 0
    %2908 = vmatmul.mubr.bf16.gmra.mrb[0].mxu0 %v2677
    %v2909 = vpop.f32.mrb[0].mxu0
    %v2910 = vadd.f32 0.0, %v2909
    %v2911 = vpop.f32.mrb[0].mxu0
    %v2912 = vpop.f32.mrb[0].mxu0
    %v2913 = vadd.f32 0.0, %v2912
    %v2914 = vpop.f32.mrb[0].mxu0
    %2915 = vmatprep.mubr.bf16.mxu0 0
    %2916 = vmatmul.mubr.bf16.gmra.mrb[0].mxu0 %v2680
    %v2917 = vpop.f32.mrb[0].mxu0
    %v2918 = vadd.f32 0.0, %v2917
    %v2919 = vpop.f32.mrb[0].mxu0
    %v2920 = vpop.f32.mrb[0].mxu0
    %v2921 = vadd.f32 0.0, %v2920
    %v2922 = vpop.f32.mrb[0].mxu0
    %2923 = vmatprep.mubr.bf16.mxu0 0
    %2924 = vmatmul.mubr.bf16.gmra.mrb[0].mxu0 %v2683
    %v2925 = vpop.f32.mrb[0].mxu0
    %v2926 = vadd.f32 0.0, %v2925
    %v2927 = vpop.f32.mrb[0].mxu0
    %v2928 = vpop.f32.mrb[0].mxu0
    %v2929 = vadd.f32 0.0, %v2928
    %v2930 = vpop.f32.mrb[0].mxu0
    %2931 = vmatprep.mubr.bf16.mxu0 0
    %2932 = vmatmul.mubr.bf16.gmra.mrb[0].mxu0 %v2686
    %v2933 = vpop.f32.mrb[0].mxu0
    %v2934 = vadd.f32 0.0, %v2933
    %v2935 = vpop.f32.mrb[0].mxu0
    %v2936 = vpop.f32.mrb[0].mxu0
    %v2937 = vadd.f32 0.0, %v2936
    %v2938 = vpop.f32.mrb[0].mxu0
    %2939 = vmatprep.mubr.bf16.mxu0 0
    %2940 = vmatmul.mubr.bf16.gmra.mrb[0].mxu0 %v2689
    %v2941 = vpop.f32.mrb[0].mxu0
    %v2942 = vadd.f32 0.0, %v2941
    %v2943 = vpop.f32.mrb[0].mxu0
    %v2944 = vpop.f32.mrb[0].mxu0
    %v2945 = vadd.f32 0.0, %v2944
    %v2946 = vpop.f32.mrb[0].mxu0
    %2947 = vmatprep.mubr.bf16.mxu0 0
    %2948 = vmatmul.mubr.bf16.gmra.mrb[0].mxu0 %v2692
    %v2949 = vpop.f32.mrb[0].mxu0
    %v2950 = vadd.f32 0.0, %v2949
    %v2951 = vpop.f32.mrb[0].mxu0
    %v2952 = vpop.f32.mrb[0].mxu0
    %v2953 = vadd.f32 0.0, %v2952
    %v2954 = vpop.f32.mrb[0].mxu0
    %2955 = vmatprep.mubr.bf16.mxu0 0
    %2956 = vmatmul.mubr.bf16.gmra.mrb[0].mxu0 %v2695
    %v2957 = vpop.f32.mrb[0].mxu0
    %v2958 = vadd.f32 0.0, %v2957
    %v2959 = vpop.f32.mrb[0].mxu0
    %v2960 = vpop.f32.mrb[0].mxu0
    %v2961 = vadd.f32 0.0, %v2960
    %v2962 = vpop.f32.mrb[0].mxu0
    %2963 = vmatprep.mubr.bf16.mxu0 0
    %2964 = vmatmul.mubr.bf16.gmra.mrb[0].mxu0 %v2698
    %v2965 = vpop.f32.mrb[0].mxu0
    %v2966 = vadd.f32 0.0, %v2965
    %v2967 = vpop.f32.mrb[0].mxu0
    %v2968 = vpop.f32.mrb[0].mxu0
    %v2969 = vadd.f32 0.0, %v2968
    %v2970 = vpop.f32.mrb[0].mxu0
    %2971 = vmatprep.mubr.bf16.mxu0 0
    %2972 = vmatmul.mubr.bf16.gmra.mrb[0].mxu0 %v2701
    %v2973 = vpop.f32.mrb[0].mxu0
    %v2974 = vadd.f32 0.0, %v2973
    %v2975 = vpop.f32.mrb[0].mxu0
    %v2976 = vpop.f32.mrb[0].mxu0
    %v2977 = vadd.f32 0.0, %v2976
    %v2978 = vpop.f32.mrb[0].mxu0
    %2979 = vmatprep.mubr.bf16.mxu0 0
    %2980 = vmatmul.mubr.bf16.gmra.mrb[0].mxu0 %v2704
    %v2981 = vpop.f32.mrb[0].mxu0
    %v2982 = vadd.f32 0.0, %v2981
    %v2983 = vpop.f32.mrb[0].mxu0
    %v2984 = vpop.f32.mrb[0].mxu0
    %v2985 = vadd.f32 0.0, %v2984
    %v2986 = vpop.f32.mrb[0].mxu0
    %2987 = vmatprep.mubr.bf16.mxu0 0
    %2988 = vmatmul.mubr.bf16.gmra.mrb[0].mxu0 %v2707
    %v2989 = vpop.f32.mrb[0].mxu0
    %v2990 = vadd.f32 0.0, %v2989
    %v2991 = vpop.f32.mrb[0].mxu0
    %v2992 = vpop.f32.mrb[0].mxu0
    %v2993 = vadd.f32 0.0, %v2992
    %v2994 = vpop.f32.mrb[0].mxu0
    %2995 = vmatprep.mubr.bf16.mxu0 0
    %2996 = vmatmul.mubr.bf16.gmra.mrb[0].mxu0 %v2710
    %v2997 = vpop.f32.mrb[0].mxu0
    %v2998 = vadd.f32 0.0, %v2997
    %v2999 = vpop.f32.mrb[0].mxu0
    %v3000 = vpop.f32.mrb[0].mxu0
    %v3001 = vadd.f32 0.0, %v3000
    %v3002 = vpop.f32.mrb[0].mxu0
    %3003 = vdwg.mxu0
    %v3004 = vadd.f32 %v2325, %v2750
    %v3005 = vadd.f32 %v2326, %v2753
    %v3006 = vadd.f32 %v2327, %v2758
    %v3007 = vadd.f32 %v2328, %v2761
    %v3008 = vadd.f32 %v2329, %v2766
    %v3009 = vadd.f32 %v2330, %v2769
    %v3010 = vadd.f32 %v2331, %v2774
    %v3011 = vadd.f32 %v2332, %v2777
    %v3012 = vadd.f32 %v2333, %v2782
    %v3013 = vadd.f32 %v2334, %v2785
    %v3014 = vadd.f32 %v2335, %v2790
    %v3015 = vadd.f32 %v2336, %v2793
    %v3016 = vadd.f32 %v2337, %v2798
    %v3017 = vadd.f32 %v2338, %v2801
    %v3018 = vadd.f32 %v2339, %v2806
    %v3019 = vadd.f32 %v2340, %v2809
    %v3020 = vadd.f32 %v2341, %v2814
    %v3021 = vadd.f32 %v2342, %v2817
    %v3022 = vadd.f32 %v2343, %v2822
    %v3023 = vadd.f32 %v2344, %v2825
    %v3024 = vadd.f32 %v2345, %v2830
    %v3025 = vadd.f32 %v2346, %v2833
    %v3026 = vadd.f32 %v2347, %v2838
    %v3027 = vadd.f32 %v2348, %v2841
    %v3028 = vadd.f32 %v2349, %v2846
    %v3029 = vadd.f32 %v2350, %v2849
    %v3030 = vadd.f32 %v2351, %v2854
    %v3031 = vadd.f32 %v2352, %v2857
    %v3032 = vadd.f32 %v2353, %v2862
    %v3033 = vadd.f32 %v2354, %v2865
    %v3034 = vadd.f32 %v2355, %v2870
    %v3035 = vadd.f32 %v2356, %v2873
    %v3036 = vadd.f32 %v2357, %v2878
    %v3037 = vadd.f32 %v2358, %v2881
    %v3038 = vadd.f32 %v2359, %v2886
    %v3039 = vadd.f32 %v2360, %v2889
    %v3040 = vadd.f32 %v2361, %v2894
    %v3041 = vadd.f32 %v2362, %v2897
    %v3042 = vadd.f32 %v2363, %v2902
    %v3043 = vadd.f32 %v2364, %v2905
    %v3044 = vadd.f32 %v2365, %v2910
    %v3045 = vadd.f32 %v2366, %v2913
    %v3046 = vadd.f32 %v2367, %v2918
    %v3047 = vadd.f32 %v2368, %v2921
    %v3048 = vadd.f32 %v2369, %v2926
    %v3049 = vadd.f32 %v2370, %v2929
    %v3050 = vadd.f32 %v2371, %v2934
    %v3051 = vadd.f32 %v2372, %v2937
    %v3052 = vadd.f32 %v2373, %v2942
    %v3053 = vadd.f32 %v2374, %v2945
    %v3054 = vadd.f32 %v2375, %v2950
    %v3055 = vadd.f32 %v2376, %v2953
    %v3056 = vadd.f32 %v2377, %v2958
    %v3057 = vadd.f32 %v2378, %v2961
    %v3058 = vadd.f32 %v2379, %v2966
    %v3059 = vadd.f32 %v2380, %v2969
    %v3060 = vadd.f32 %v2381, %v2974
    %v3061 = vadd.f32 %v2382, %v2977
    %v3062 = vadd.f32 %v2383, %v2982
    %v3063 = vadd.f32 %v2384, %v2985
    %v3064 = vadd.f32 %v2385, %v2990
    %v3065 = vadd.f32 %v2386, %v2993
    %v3066 = vadd.f32 %v2387, %v2998
    %v3067 = vadd.f32 %v2388, %v3001
    %v3068 = vld [vmem:[%s2389] sm:$0xe]
    %v3069 = vld [vmem:[%s2389 + $0x4] sm:$0xf]
    %v3070 = vld [vmem:[%s2389 + $0x8] sm:$0x1]
    %v3071 = vld [vmem:[%s2389 + $0xc] sm:$0xe]
    %v3072 = vld [vmem:[%s2389 + $0x10] sm:$0xf]
    %v3073 = vld [vmem:[%s2389 + $0x14] sm:$0x1]
    %v3074 = vld [vmem:[%s2389 + $0x18] sm:$0xe]
    %v3075 = vld [vmem:[%s2389 + $0x1c] sm:$0xf]
    %v3076 = vld [vmem:[%s2389 + $0x20] sm:$0x1]
    %v3077 = vld [vmem:[%s2389 + $0x24] sm:$0xe]
    %v3078 = vld [vmem:[%s2389 + $0x28] sm:$0xf]
    %v3079 = vld [vmem:[%s2389 + $0x2c] sm:$0x1]
    %v3080 = vld [vmem:[%s2389 + $0x30] sm:$0xe]
    %v3081 = vld [vmem:[%s2389 + $0x34] sm:$0xf]
    %v3082 = vld [vmem:[%s2389 + $0x38] sm:$0x1]
    %v3083 = vld [vmem:[%s2389 + $0x3c] sm:$0xe]
    %v3084 = vld [vmem:[%s2389 + $0x40] sm:$0xf]
    %v3085 = vld [vmem:[%s2389 + $0x44] sm:$0x1]
    %v3086 = vld [vmem:[%s2389 + $0x48] sm:$0xe]
    %v3087 = vld [vmem:[%s2389 + $0x4c] sm:$0xf]
    %v3088 = vld [vmem:[%s2389 + $0x50] sm:$0x1]
    %v3089 = vld [vmem:[%s2389 + $0x54] sm:$0xe]
    %v3090 = vld [vmem:[%s2389 + $0x58] sm:$0xf]
    %v3091 = vld [vmem:[%s2389 + $0x5c] sm:$0x1]
    %v3092 = vld [vmem:[%s2389 + $0x60] sm:$0xe]
    %v3093 = vld [vmem:[%s2389 + $0x64] sm:$0xf]
    %v3094 = vld [vmem:[%s2389 + $0x68] sm:$0x1]
    %v3095 = vld [vmem:[%s2389 + $0x6c] sm:$0xe]
    %v3096 = vld [vmem:[%s2389 + $0x70] sm:$0xf]
    %v3097 = vld [vmem:[%s2389 + $0x74] sm:$0x1]
    %v3098 = vld [vmem:[%s2389 + $0x78] sm:$0xe]
    %v3099 = vld [vmem:[%s2389 + $0x7c] sm:$0xf]
    %v3100 = vld [vmem:[%s2389 + $0x80] sm:$0x1]
    %v3101 = vld [vmem:[%s2389 + $0x84] sm:$0xe]
    %v3102 = vld [vmem:[%s2389 + $0x88] sm:$0xf]
    %v3103 = vld [vmem:[%s2389 + $0x8c] sm:$0x1]
    %v3104 = vld [vmem:[%s2389 + $0x90] sm:$0xe]
    %v3105 = vld [vmem:[%s2389 + $0x94] sm:$0xf]
    %v3106 = vld [vmem:[%s2389 + $0x98] sm:$0x1]
    %v3107 = vld [vmem:[%s2389 + $0x9c] sm:$0xe]
    %v3108 = vld [vmem:[%s2389 + $0xa0] sm:$0xf]
    %v3109 = vld [vmem:[%s2389 + $0xa4] sm:$0x1]
    %v3110 = vld [vmem:[%s2389 + $0xa8] sm:$0xe]
    %v3111 = vld [vmem:[%s2389 + $0xac] sm:$0xf]
    %v3112 = vld [vmem:[%s2389 + $0xb0] sm:$0x1]
    %v3113 = vld [vmem:[%s2389 + $0xb4] sm:$0xe]
    %v3114 = vld [vmem:[%s2389 + $0xb8] sm:$0xf]
    %v3115 = vld [vmem:[%s2389 + $0xbc] sm:$0x1]
    %v3116 = vld [vmem:[%s2389 + $0xf0] sm:$0xe]
    %v3117 = vld [vmem:[%s2389 + $0xf4] sm:$0xf]
    %v3118 = vld [vmem:[%s2389 + $0xf8] sm:$0x1]
    %v3119 = vld [vmem:[%s2389 + $0xfc] sm:$0xe]
    %v3120 = vld [vmem:[%s2389 + $0x100] sm:$0xf]
    %v3121 = vld [vmem:[%s2389 + $0x104] sm:$0x1]
    %v3122 = vld [vmem:[%s2389 + $0x108] sm:$0xe]
    %v3123 = vld [vmem:[%s2389 + $0x10c] sm:$0xf]
    %v3124 = vld [vmem:[%s2389 + $0x110] sm:$0x1]
    %v3125 = vld [vmem:[%s2389 + $0x114] sm:$0xe]
    %v3126 = vld [vmem:[%s2389 + $0x118] sm:$0xf]
    %v3127 = vld [vmem:[%s2389 + $0x11c] sm:$0x1]
    %v3128 = vld [vmem:[%s2389 + $0x120] sm:$0xe]
    %v3129 = vld [vmem:[%s2389 + $0x124] sm:$0xf]
    %v3130 = vld [vmem:[%s2389 + $0x128] sm:$0x1]
    %v3131 = vld [vmem:[%s2389 + $0x12c] sm:$0xe]
    %v3132 = vld [vmem:[%s2389 + $0x130] sm:$0xf]
    %v3133 = vld [vmem:[%s2389 + $0x134] sm:$0x1]
    %v3134 = vld [vmem:[%s2389 + $0x138] sm:$0xe]
    %v3135 = vld [vmem:[%s2389 + $0x13c] sm:$0xf]
    %v3136 = vld [vmem:[%s2389 + $0x140] sm:$0x1]
    %v3137 = vld [vmem:[%s2389 + $0x144] sm:$0xe]
    %v3138 = vld [vmem:[%s2389 + $0x148] sm:$0xf]
    %v3139 = vld [vmem:[%s2389 + $0x14c] sm:$0x1]
    %v3140 = vld [vmem:[%s2389 + $0x150] sm:$0xe]
    %v3141 = vld [vmem:[%s2389 + $0x154] sm:$0xf]
    %v3142 = vld [vmem:[%s2389 + $0x158] sm:$0x1]
    %v3143 = vld [vmem:[%s2389 + $0x15c] sm:$0xe]
    %v3144 = vld [vmem:[%s2389 + $0x160] sm:$0xf]
    %v3145 = vld [vmem:[%s2389 + $0x164] sm:$0x1]
    %v3146 = vld [vmem:[%s2389 + $0x168] sm:$0xe]
    %v3147 = vld [vmem:[%s2389 + $0x16c] sm:$0xf]
    %v3148 = vld [vmem:[%s2389 + $0x170] sm:$0x1]
    %v3149 = vld [vmem:[%s2389 + $0x174] sm:$0xe]
    %v3150 = vld [vmem:[%s2389 + $0x178] sm:$0xf]
    %v3151 = vld [vmem:[%s2389 + $0x17c] sm:$0x1]
    %v3152 = vld [vmem:[%s2389 + $0x180] sm:$0xe]
    %v3153 = vld [vmem:[%s2389 + $0x184] sm:$0xf]
    %v3154 = vld [vmem:[%s2389 + $0x188] sm:$0x1]
    %v3155 = vld [vmem:[%s2389 + $0x18c] sm:$0xe]
    %v3156 = vld [vmem:[%s2389 + $0x190] sm:$0xf]
    %v3157 = vld [vmem:[%s2389 + $0x194] sm:$0x1]
    %v3158 = vld [vmem:[%s2389 + $0x198] sm:$0xe]
    %v3159 = vld [vmem:[%s2389 + $0x19c] sm:$0xf]
    %v3160 = vld [vmem:[%s2389 + $0x1a0] sm:$0x1]
    %v3161 = vld [vmem:[%s2389 + $0x1a4] sm:$0xe]
    %v3162 = vld [vmem:[%s2389 + $0x1a8] sm:$0xf]
    %v3163 = vld [vmem:[%s2389 + $0x1ac] sm:$0x1]
    %v3260 = vrot.slane %v3068, 5
    %v3261 = vrot.slane %v3260, 4
    %v3262 = vrot.slane %v3069, 5
    %v3263 = vsel %vm255, %v3261, %v3262
    %v3264 = vrot.slane %v3262, 4
    %v3265 = vrot.slane %v3070, 5
    %v3266 = vsel %vm255, %v3264, %v3265
    %v3267 = vrot.slane %v3071, 5
    %v3268 = vrot.slane %v3267, 4
    %v3269 = vrot.slane %v3072, 5
    %v3270 = vsel %vm255, %v3268, %v3269
    %v3271 = vrot.slane %v3269, 4
    %v3272 = vrot.slane %v3073, 5
    %v3273 = vsel %vm255, %v3271, %v3272
    %v3274 = vrot.slane %v3074, 5
    %v3275 = vrot.slane %v3274, 4
    %v3276 = vrot.slane %v3075, 5
    %v3277 = vsel %vm255, %v3275, %v3276
    %v3278 = vrot.slane %v3276, 4
    %v3279 = vrot.slane %v3076, 5
    %v3280 = vsel %vm255, %v3278, %v3279
    %v3281 = vrot.slane %v3077, 5
    %v3282 = vrot.slane %v3281, 4
    %v3283 = vrot.slane %v3078, 5
    %v3284 = vsel %vm255, %v3282, %v3283
    %v3285 = vrot.slane %v3283, 4
    %v3286 = vrot.slane %v3079, 5
    %v3287 = vsel %vm255, %v3285, %v3286
    %v3288 = vrot.slane %v3080, 5
    %v3289 = vrot.slane %v3288, 4
    %v3290 = vrot.slane %v3081, 5
    %v3291 = vsel %vm255, %v3289, %v3290
    %v3292 = vrot.slane %v3290, 4
    %v3293 = vrot.slane %v3082, 5
    %v3294 = vsel %vm255, %v3292, %v3293
    %v3295 = vrot.slane %v3083, 5
    %v3296 = vrot.slane %v3295, 4
    %v3297 = vrot.slane %v3084, 5
    %v3298 = vsel %vm255, %v3296, %v3297
    %v3299 = vrot.slane %v3297, 4
    %v3300 = vrot.slane %v3085, 5
    %v3301 = vsel %vm255, %v3299, %v3300
    %v3302 = vrot.slane %v3086, 5
    %v3303 = vrot.slane %v3302, 4
    %v3304 = vrot.slane %v3087, 5
    %v3305 = vsel %vm255, %v3303, %v3304
    %v3306 = vrot.slane %v3304, 4
    %v3307 = vrot.slane %v3088, 5
    %v3308 = vsel %vm255, %v3306, %v3307
    %v3309 = vrot.slane %v3089, 5
    %v3310 = vrot.slane %v3309, 4
    %v3311 = vrot.slane %v3090, 5
    %v3312 = vsel %vm255, %v3310, %v3311
    %v3313 = vrot.slane %v3311, 4
    %v3314 = vrot.slane %v3091, 5
    %v3315 = vsel %vm255, %v3313, %v3314
    %v3316 = vrot.slane %v3092, 5
    %v3317 = vrot.slane %v3316, 4
    %v3318 = vrot.slane %v3093, 5
    %v3319 = vsel %vm255, %v3317, %v3318
    %v3320 = vrot.slane %v3318, 4
    %v3321 = vrot.slane %v3094, 5
    %v3322 = vsel %vm255, %v3320, %v3321
    %v3323 = vrot.slane %v3095, 5
    %v3324 = vrot.slane %v3323, 4
    %v3325 = vrot.slane %v3096, 5
    %v3326 = vsel %vm255, %v3324, %v3325
    %v3327 = vrot.slane %v3325, 4
    %v3328 = vrot.slane %v3097, 5
    %v3329 = vsel %vm255, %v3327, %v3328
    %v3330 = vrot.slane %v3098, 5
    %v3331 = vrot.slane %v3330, 4
    %v3332 = vrot.slane %v3099, 5
    %v3333 = vsel %vm255, %v3331, %v3332
    %v3334 = vrot.slane %v3332, 4
    %v3335 = vrot.slane %v3100, 5
    %v3336 = vsel %vm255, %v3334, %v3335
    %v3337 = vrot.slane %v3101, 5
    %v3338 = vrot.slane %v3337, 4
    %v3339 = vrot.slane %v3102, 5
    %v3340 = vsel %vm255, %v3338, %v3339
    %v3341 = vrot.slane %v3339, 4
    %v3342 = vrot.slane %v3103, 5
    %v3343 = vsel %vm255, %v3341, %v3342
    %v3344 = vrot.slane %v3104, 5
    %v3345 = vrot.slane %v3344, 4
    %v3346 = vrot.slane %v3105, 5
    %v3347 = vsel %vm255, %v3345, %v3346
    %v3348 = vrot.slane %v3346, 4
    %v3349 = vrot.slane %v3106, 5
    %v3350 = vsel %vm255, %v3348, %v3349
    %v3351 = vrot.slane %v3107, 5
    %v3352 = vrot.slane %v3351, 4
    %v3353 = vrot.slane %v3108, 5
    %v3354 = vsel %vm255, %v3352, %v3353
    %v3355 = vrot.slane %v3353, 4
    %v3356 = vrot.slane %v3109, 5
    %v3357 = vsel %vm255, %v3355, %v3356
    %v3358 = vrot.slane %v3110, 5
    %v3359 = vrot.slane %v3358, 4
    %v3360 = vrot.slane %v3111, 5
    %v3361 = vsel %vm255, %v3359, %v3360
    %v3362 = vrot.slane %v3360, 4
    %v3363 = vrot.slane %v3112, 5
    %v3364 = vsel %vm255, %v3362, %v3363
    %v3365 = vrot.slane %v3113, 5
    %v3366 = vrot.slane %v3365, 4
    %v3367 = vrot.slane %v3114, 5
    %v3368 = vsel %vm255, %v3366, %v3367
    %v3369 = vrot.slane %v3367, 4
    %v3370 = vrot.slane %v3115, 5
    %v3371 = vsel %vm255, %v3369, %v3370
    %v3372 = vrot.slane %v3116, 5
    %v3373 = vrot.slane %v3372, 4
    %v3374 = vrot.slane %v3117, 5
    %v3375 = vsel %vm255, %v3373, %v3374
    %v3376 = vrot.slane %v3374, 4
    %v3377 = vrot.slane %v3118, 5
    %v3378 = vsel %vm255, %v3376, %v3377
    %v3379 = vrot.slane %v3119, 5
    %v3380 = vrot.slane %v3379, 4
    %v3381 = vrot.slane %v3120, 5
    %v3382 = vsel %vm255, %v3380, %v3381
    %v3383 = vrot.slane %v3381, 4
    %v3384 = vrot.slane %v3121, 5
    %v3385 = vsel %vm255, %v3383, %v3384
    %v3386 = vrot.slane %v3122, 5
    %v3387 = vrot.slane %v3386, 4
    %v3388 = vrot.slane %v3123, 5
    %v3389 = vsel %vm255, %v3387, %v3388
    %v3390 = vrot.slane %v3388, 4
    %v3391 = vrot.slane %v3124, 5
    %v3392 = vsel %vm255, %v3390, %v3391
    %v3393 = vrot.slane %v3125, 5
    %v3394 = vrot.slane %v3393, 4
    %v3395 = vrot.slane %v3126, 5
    %v3396 = vsel %vm255, %v3394, %v3395
    %v3397 = vrot.slane %v3395, 4
    %v3398 = vrot.slane %v3127, 5
    %v3399 = vsel %vm255, %v3397, %v3398
    %v3400 = vrot.slane %v3128, 5
    %v3401 = vrot.slane %v3400, 4
    %v3402 = vrot.slane %v3129, 5
    %v3403 = vsel %vm255, %v3401, %v3402
    %v3404 = vrot.slane %v3402, 4
    %v3405 = vrot.slane %v3130, 5
    %v3406 = vsel %vm255, %v3404, %v3405
    %v3407 = vrot.slane %v3131, 5
    %v3408 = vrot.slane %v3407, 4
    %v3409 = vrot.slane %v3132, 5
    %v3410 = vsel %vm255, %v3408, %v3409
    %v3411 = vrot.slane %v3409, 4
    %v3412 = vrot.slane %v3133, 5
    %v3413 = vsel %vm255, %v3411, %v3412
    %v3414 = vrot.slane %v3134, 5
    %v3415 = vrot.slane %v3414, 4
    %v3416 = vrot.slane %v3135, 5
    %v3417 = vsel %vm255, %v3415, %v3416
    %v3418 = vrot.slane %v3416, 4
    %v3419 = vrot.slane %v3136, 5
    %v3420 = vsel %vm255, %v3418, %v3419
    %v3421 = vrot.slane %v3137, 5
    %v3422 = vrot.slane %v3421, 4
    %v3423 = vrot.slane %v3138, 5
    %v3424 = vsel %vm255, %v3422, %v3423
    %v3425 = vrot.slane %v3423, 4
    %v3426 = vrot.slane %v3139, 5
    %v3427 = vsel %vm255, %v3425, %v3426
    %v3428 = vrot.slane %v3140, 5
    %v3429 = vrot.slane %v3428, 4
    %v3430 = vrot.slane %v3141, 5
    %v3431 = vsel %vm255, %v3429, %v3430
    %v3432 = vrot.slane %v3430, 4
    %v3433 = vrot.slane %v3142, 5
    %v3434 = vsel %vm255, %v3432, %v3433
    %v3435 = vrot.slane %v3143, 5
    %v3436 = vrot.slane %v3435, 4
    %v3437 = vrot.slane %v3144, 5
    %v3438 = vsel %vm255, %v3436, %v3437
    %v3439 = vrot.slane %v3437, 4
    %v3440 = vrot.slane %v3145, 5
    %v3441 = vsel %vm255, %v3439, %v3440
    %v3442 = vrot.slane %v3146, 5
    %v3443 = vrot.slane %v3442, 4
    %v3444 = vrot.slane %v3147, 5
    %v3445 = vsel %vm255, %v3443, %v3444
    %v3446 = vrot.slane %v3444, 4
    %v3447 = vrot.slane %v3148, 5
    %v3448 = vsel %vm255, %v3446, %v3447
    %v3449 = vrot.slane %v3149, 5
    %v3450 = vrot.slane %v3449, 4
    %v3451 = vrot.slane %v3150, 5
    %v3452 = vsel %vm255, %v3450, %v3451
    %v3453 = vrot.slane %v3451, 4
    %v3454 = vrot.slane %v3151, 5
    %v3455 = vsel %vm255, %v3453, %v3454
    %v3456 = vrot.slane %v3152, 5
    %v3457 = vrot.slane %v3456, 4
    %v3458 = vrot.slane %v3153, 5
    %v3459 = vsel %vm255, %v3457, %v3458
    %v3460 = vrot.slane %v3458, 4
    %v3461 = vrot.slane %v3154, 5
    %v3462 = vsel %vm255, %v3460, %v3461
    %v3463 = vrot.slane %v3155, 5
    %v3464 = vrot.slane %v3463, 4
    %v3465 = vrot.slane %v3156, 5
    %v3466 = vsel %vm255, %v3464, %v3465
    %v3467 = vrot.slane %v3465, 4
    %v3468 = vrot.slane %v3157, 5
    %v3469 = vsel %vm255, %v3467, %v3468
    %v3470 = vrot.slane %v3158, 5
    %v3471 = vrot.slane %v3470, 4
    %v3472 = vrot.slane %v3159, 5
    %v3473 = vsel %vm255, %v3471, %v3472
    %v3474 = vrot.slane %v3472, 4
    %v3475 = vrot.slane %v3160, 5
    %v3476 = vsel %vm255, %v3474, %v3475
    %v3477 = vrot.slane %v3161, 5
    %v3478 = vrot.slane %v3477, 4
    %v3479 = vrot.slane %v3162, 5
    %v3480 = vsel %vm255, %v3478, %v3479
    %v3481 = vrot.slane %v3479, 4
    %v3482 = vrot.slane %v3163, 5
    %v3483 = vsel %vm255, %v3481, %v3482
    %s3484 = scalar_lea.vmem %s1, 8
    %v3485 = vld [vmem:[%s3484] sm:$0x3]
    %v3486 = vunpack.c.l.b16 %v3263
    %v3487 = vunpack.c.l.b16 %v3266
    %v3488 = vunpack.c.l.b16 %v3270
    %v3489 = vunpack.c.l.b16 %v3273
    %v3490 = vunpack.c.l.b16 %v3277
    %v3491 = vunpack.c.l.b16 %v3280
    %v3492 = vunpack.c.l.b16 %v3284
    %v3493 = vunpack.c.l.b16 %v3287
    %v3494 = vunpack.c.l.b16 %v3291
    %v3495 = vunpack.c.l.b16 %v3294
    %v3496 = vunpack.c.l.b16 %v3298
    %v3497 = vunpack.c.l.b16 %v3301
    %v3498 = vunpack.c.l.b16 %v3305
    %v3499 = vunpack.c.l.b16 %v3308
    %v3500 = vunpack.c.l.b16 %v3312
    %v3501 = vunpack.c.l.b16 %v3315
    %v3502 = vunpack.c.l.b16 %v3319
    %v3503 = vunpack.c.l.b16 %v3322
    %v3504 = vunpack.c.l.b16 %v3326
    %v3505 = vunpack.c.l.b16 %v3329
    %v3506 = vunpack.c.l.b16 %v3333
    %v3507 = vunpack.c.l.b16 %v3336
    %v3508 = vunpack.c.l.b16 %v3340
    %v3509 = vunpack.c.l.b16 %v3343
    %v3510 = vunpack.c.l.b16 %v3347
    %v3511 = vunpack.c.l.b16 %v3350
    %v3512 = vunpack.c.l.b16 %v3354
    %v3513 = vunpack.c.l.b16 %v3357
    %v3514 = vunpack.c.l.b16 %v3361
    %v3515 = vunpack.c.l.b16 %v3364
    %v3516 = vunpack.c.l.b16 %v3368
    %v3517 = vunpack.c.l.b16 %v3371
    %v3518 = vunpack.c.l.b16 %v3375
    %v3519 = vunpack.c.l.b16 %v3378
    %v3520 = vunpack.c.l.b16 %v3382
    %v3521 = vunpack.c.l.b16 %v3385
    %v3522 = vunpack.c.l.b16 %v3389
    %v3523 = vunpack.c.l.b16 %v3392
    %v3524 = vunpack.c.l.b16 %v3396
    %v3525 = vunpack.c.l.b16 %v3399
    %v3526 = vunpack.c.l.b16 %v3403
    %v3527 = vunpack.c.l.b16 %v3406
    %v3528 = vunpack.c.l.b16 %v3410
    %v3529 = vunpack.c.l.b16 %v3413
    %v3530 = vunpack.c.l.b16 %v3417
    %v3531 = vunpack.c.l.b16 %v3420
    %v3532 = vunpack.c.l.b16 %v3424
    %v3533 = vunpack.c.l.b16 %v3427
    %v3534 = vunpack.c.l.b16 %v3431
    %v3535 = vunpack.c.l.b16 %v3434
    %v3536 = vunpack.c.l.b16 %v3438
    %v3537 = vunpack.c.l.b16 %v3441
    %v3538 = vunpack.c.l.b16 %v3445
    %v3539 = vunpack.c.l.b16 %v3448
    %v3540 = vunpack.c.l.b16 %v3452
    %v3541 = vunpack.c.l.b16 %v3455
    %v3542 = vunpack.c.l.b16 %v3459
    %v3543 = vunpack.c.l.b16 %v3462
    %v3544 = vunpack.c.l.b16 %v3466
    %v3545 = vunpack.c.l.b16 %v3469
    %v3546 = vunpack.c.l.b16 %v3473
    %v3547 = vunpack.c.l.b16 %v3476
    %v3548 = vunpack.c.l.b16 %v3480
    %v3549 = vunpack.c.l.b16 %v3483
    %v3550 = vpack.c.b16 %v3487, %v3486
    %v3551 = vpack.c.b16 %v3489, %v3488
    %v3552 = vpack.c.b16 %v3491, %v3490
    %v3553 = vpack.c.b16 %v3493, %v3492
    %v3554 = vpack.c.b16 %v3495, %v3494
    %v3555 = vpack.c.b16 %v3497, %v3496
    %v3556 = vpack.c.b16 %v3499, %v3498
    %v3557 = vpack.c.b16 %v3501, %v3500
    %v3558 = vpack.c.b16 %v3503, %v3502
    %v3559 = vpack.c.b16 %v3505, %v3504
    %v3560 = vpack.c.b16 %v3507, %v3506
    %v3561 = vpack.c.b16 %v3509, %v3508
    %v3562 = vpack.c.b16 %v3511, %v3510
    %v3563 = vpack.c.b16 %v3513, %v3512
    %v3564 = vpack.c.b16 %v3515, %v3514
    %v3565 = vpack.c.b16 %v3517, %v3516
    %v3566 = vpack.c.b16 %v3519, %v3518
    %v3567 = vpack.c.b16 %v3521, %v3520
    %v3568 = vpack.c.b16 %v3523, %v3522
    %v3569 = vpack.c.b16 %v3525, %v3524
    %v3570 = vpack.c.b16 %v3527, %v3526
    %v3571 = vpack.c.b16 %v3529, %v3528
    %v3572 = vpack.c.b16 %v3531, %v3530
    %v3573 = vpack.c.b16 %v3533, %v3532
    %v3574 = vpack.c.b16 %v3535, %v3534
    %v3575 = vpack.c.b16 %v3537, %v3536
    %v3576 = vpack.c.b16 %v3539, %v3538
    %v3577 = vpack.c.b16 %v3541, %v3540
    %v3578 = vpack.c.b16 %v3543, %v3542
    %v3579 = vpack.c.b16 %v3545, %v3544
    %v3580 = vpack.c.b16 %v3547, %v3546
    %v3581 = vpack.c.b16 %v3549, %v3548
    %v3583 = vsel %vm578, %v3550, 0
    %v3586 = vsel %vm578, %v3551, 0
    %v3589 = vsel %vm578, %v3552, 0
    %v3592 = vsel %vm578, %v3553, 0
    %v3595 = vsel %vm578, %v3554, 0
    %v3598 = vsel %vm578, %v3555, 0
    %v3601 = vsel %vm578, %v3556, 0
    %v3604 = vsel %vm578, %v3557, 0
    %v3607 = vsel %vm578, %v3558, 0
    %v3610 = vsel %vm578, %v3559, 0
    %v3613 = vsel %vm578, %v3560, 0
    %v3616 = vsel %vm578, %v3561, 0
    %v3619 = vsel %vm578, %v3562, 0
    %v3622 = vsel %vm578, %v3563, 0
    %v3625 = vsel %vm578, %v3564, 0
    %v3628 = vsel %vm578, %v3565, 0
    %v3631 = vsel %vm578, %v3566, 0
    %v3634 = vsel %vm578, %v3567, 0
    %v3637 = vsel %vm578, %v3568, 0
    %v3640 = vsel %vm578, %v3569, 0
    %v3643 = vsel %vm578, %v3570, 0
    %v3646 = vsel %vm578, %v3571, 0
    %v3649 = vsel %vm578, %v3572, 0
    %v3652 = vsel %vm578, %v3573, 0
    %v3655 = vsel %vm578, %v3574, 0
    %v3658 = vsel %vm578, %v3575, 0
    %v3661 = vsel %vm578, %v3576, 0
    %v3664 = vsel %vm578, %v3577, 0
    %v3667 = vsel %vm578, %v3578, 0
    %v3670 = vsel %vm578, %v3579, 0
    %v3673 = vsel %vm578, %v3580, 0
    %v3676 = vsel %vm578, %v3581, 0
    %v3679 = vsel %vm675, %v3485, 0
    %3681 = vmatprep.subr.bf16.mxu0 0
    %3682 = vmatpush1.bf16.msra.mxu0 %v3679
    %3683 = vmatprep.subr.bf16.mxu0 0
    %3684 = vmatpush1.bf16.msra.mxu0 0
    %3685 = vmatprep.subr.bf16.mxu0 0
    %3686 = vmatpush1.bf16.msra.mxu0 0
    %3687 = vmatprep.subr.bf16.mxu0 0
    %3688 = vmatpush1.bf16.msra.mxu0 0
    %3689 = vmatprep.subr.bf16.mxu0 0
    %3690 = vmatpush1.bf16.msra.mxu0 0
    %3691 = vmatprep.subr.bf16.mxu0 0
    %3692 = vmatpush1.bf16.msra.mxu0 0
    %3693 = vmatprep.subr.bf16.mxu0 0
    %3694 = vmatpush1.bf16.msra.mxu0 0
    %3695 = vmatprep.subr.bf16.mxu0 0
    %3696 = vmatpush1.bf16.msra.mxu0 0
    %3697 = vmatprep.subr.bf16.mxu0 0
    %3698 = vmatpush1.bf16.msra.mxu0 0
    %3699 = vmatprep.subr.bf16.mxu0 0
    %3700 = vmatpush1.bf16.msra.mxu0 0
    %3701 = vmatprep.subr.bf16.mxu0 0
    %3702 = vmatpush1.bf16.msra.mxu0 0
    %3703 = vmatprep.subr.bf16.mxu0 0
    %3704 = vmatpush1.bf16.msra.mxu0 0
    %3705 = vmatprep.subr.bf16.mxu0 0
    %3706 = vmatpush1.bf16.msra.mxu0 0
    %3707 = vmatprep.subr.bf16.mxu0 0
    %3708 = vmatpush1.bf16.msra.mxu0 0
    %3709 = vmatprep.subr.bf16.mxu0 0
    %3710 = vmatpush1.bf16.msra.mxu0 0
    %3711 = vmatprep.subr.bf16.mxu0 0
    %3712 = vmatpush1.bf16.msra.mxu0 0
    %3713 = vmatprep.mubr.bf16.mxu0 0
    %3714 = vmatmul.mubr.bf16.gmra.mrb[0].mxu0 %v3583
    %v3715 = vpop.f32.mrb[0].mxu0
    %v3716 = vadd.f32 0.0, %v3715
    %v3717 = vpop.f32.mrb[0].mxu0
    %v3718 = vpop.f32.mrb[0].mxu0
    %v3719 = vadd.f32 0.0, %v3718
    %v3720 = vpop.f32.mrb[0].mxu0
    %3721 = vmatprep.mubr.bf16.mxu0 0
    %3722 = vmatmul.mubr.bf16.gmra.mrb[0].mxu0 %v3586
    %v3723 = vpop.f32.mrb[0].mxu0
    %v3724 = vadd.f32 0.0, %v3723
    %v3725 = vpop.f32.mrb[0].mxu0
    %v3726 = vpop.f32.mrb[0].mxu0
    %v3727 = vadd.f32 0.0, %v3726
    %v3728 = vpop.f32.mrb[0].mxu0
    %3729 = vmatprep.mubr.bf16.mxu0 0
    %3730 = vmatmul.mubr.bf16.gmra.mrb[0].mxu0 %v3589
    %v3731 = vpop.f32.mrb[0].mxu0
    %v3732 = vadd.f32 0.0, %v3731
    %v3733 = vpop.f32.mrb[0].mxu0
    %v3734 = vpop.f32.mrb[0].mxu0
    %v3735 = vadd.f32 0.0, %v3734
    %v3736 = vpop.f32.mrb[0].mxu0
    %3737 = vmatprep.mubr.bf16.mxu0 0
    %3738 = vmatmul.mubr.bf16.gmra.mrb[0].mxu0 %v3592
    %v3739 = vpop.f32.mrb[0].mxu0
    %v3740 = vadd.f32 0.0, %v3739
    %v3741 = vpop.f32.mrb[0].mxu0
    %v3742 = vpop.f32.mrb[0].mxu0
    %v3743 = vadd.f32 0.0, %v3742
    %v3744 = vpop.f32.mrb[0].mxu0
    %3745 = vmatprep.mubr.bf16.mxu0 0
    %3746 = vmatmul.mubr.bf16.gmra.mrb[0].mxu0 %v3595
    %v3747 = vpop.f32.mrb[0].mxu0
    %v3748 = vadd.f32 0.0, %v3747
    %v3749 = vpop.f32.mrb[0].mxu0
    %v3750 = vpop.f32.mrb[0].mxu0
    %v3751 = vadd.f32 0.0, %v3750
    %v3752 = vpop.f32.mrb[0].mxu0
    %3753 = vmatprep.mubr.bf16.mxu0 0
    %3754 = vmatmul.mubr.bf16.gmra.mrb[0].mxu0 %v3598
    %v3755 = vpop.f32.mrb[0].mxu0
    %v3756 = vadd.f32 0.0, %v3755
    %v3757 = vpop.f32.mrb[0].mxu0
    %v3758 = vpop.f32.mrb[0].mxu0
    %v3759 = vadd.f32 0.0, %v3758
    %v3760 = vpop.f32.mrb[0].mxu0
    %3761 = vmatprep.mubr.bf16.mxu0 0
    %3762 = vmatmul.mubr.bf16.gmra.mrb[0].mxu0 %v3601
    %v3763 = vpop.f32.mrb[0].mxu0
    %v3764 = vadd.f32 0.0, %v3763
    %v3765 = vpop.f32.mrb[0].mxu0
    %v3766 = vpop.f32.mrb[0].mxu0
    %v3767 = vadd.f32 0.0, %v3766
    %v3768 = vpop.f32.mrb[0].mxu0
    %3769 = vmatprep.mubr.bf16.mxu0 0
    %3770 = vmatmul.mubr.bf16.gmra.mrb[0].mxu0 %v3604
    %v3771 = vpop.f32.mrb[0].mxu0
    %v3772 = vadd.f32 0.0, %v3771
    %v3773 = vpop.f32.mrb[0].mxu0
    %v3774 = vpop.f32.mrb[0].mxu0
    %v3775 = vadd.f32 0.0, %v3774
    %v3776 = vpop.f32.mrb[0].mxu0
    %3777 = vmatprep.mubr.bf16.mxu0 0
    %3778 = vmatmul.mubr.bf16.gmra.mrb[0].mxu0 %v3607
    %v3779 = vpop.f32.mrb[0].mxu0
    %v3780 = vadd.f32 0.0, %v3779
    %v3781 = vpop.f32.mrb[0].mxu0
    %v3782 = vpop.f32.mrb[0].mxu0
    %v3783 = vadd.f32 0.0, %v3782
    %v3784 = vpop.f32.mrb[0].mxu0
    %3785 = vmatprep.mubr.bf16.mxu0 0
    %3786 = vmatmul.mubr.bf16.gmra.mrb[0].mxu0 %v3610
    %v3787 = vpop.f32.mrb[0].mxu0
    %v3788 = vadd.f32 0.0, %v3787
    %v3789 = vpop.f32.mrb[0].mxu0
    %v3790 = vpop.f32.mrb[0].mxu0
    %v3791 = vadd.f32 0.0, %v3790
    %v3792 = vpop.f32.mrb[0].mxu0
    %3793 = vmatprep.mubr.bf16.mxu0 0
    %3794 = vmatmul.mubr.bf16.gmra.mrb[0].mxu0 %v3613
    %v3795 = vpop.f32.mrb[0].mxu0
    %v3796 = vadd.f32 0.0, %v3795
    %v3797 = vpop.f32.mrb[0].mxu0
    %v3798 = vpop.f32.mrb[0].mxu0
    %v3799 = vadd.f32 0.0, %v3798
    %v3800 = vpop.f32.mrb[0].mxu0
    %3801 = vmatprep.mubr.bf16.mxu0 0
    %3802 = vmatmul.mubr.bf16.gmra.mrb[0].mxu0 %v3616
    %v3803 = vpop.f32.mrb[0].mxu0
    %v3804 = vadd.f32 0.0, %v3803
    %v3805 = vpop.f32.mrb[0].mxu0
    %v3806 = vpop.f32.mrb[0].mxu0
    %v3807 = vadd.f32 0.0, %v3806
    %v3808 = vpop.f32.mrb[0].mxu0
    %3809 = vmatprep.mubr.bf16.mxu0 0
    %3810 = vmatmul.mubr.bf16.gmra.mrb[0].mxu0 %v3619
    %v3811 = vpop.f32.mrb[0].mxu0
    %v3812 = vadd.f32 0.0, %v3811
    %v3813 = vpop.f32.mrb[0].mxu0
    %v3814 = vpop.f32.mrb[0].mxu0
    %v3815 = vadd.f32 0.0, %v3814
    %v3816 = vpop.f32.mrb[0].mxu0
    %3817 = vmatprep.mubr.bf16.mxu0 0
    %3818 = vmatmul.mubr.bf16.gmra.mrb[0].mxu0 %v3622
    %v3819 = vpop.f32.mrb[0].mxu0
    %v3820 = vadd.f32 0.0, %v3819
    %v3821 = vpop.f32.mrb[0].mxu0
    %v3822 = vpop.f32.mrb[0].mxu0
    %v3823 = vadd.f32 0.0, %v3822
    %v3824 = vpop.f32.mrb[0].mxu0
    %3825 = vmatprep.mubr.bf16.mxu0 0
    %3826 = vmatmul.mubr.bf16.gmra.mrb[0].mxu0 %v3625
    %v3827 = vpop.f32.mrb[0].mxu0
    %v3828 = vadd.f32 0.0, %v3827
    %v3829 = vpop.f32.mrb[0].mxu0
    %v3830 = vpop.f32.mrb[0].mxu0
    %v3831 = vadd.f32 0.0, %v3830
    %v3832 = vpop.f32.mrb[0].mxu0
    %3833 = vmatprep.mubr.bf16.mxu0 0
    %3834 = vmatmul.mubr.bf16.gmra.mrb[0].mxu0 %v3628
    %v3835 = vpop.f32.mrb[0].mxu0
    %v3836 = vadd.f32 0.0, %v3835
    %v3837 = vpop.f32.mrb[0].mxu0
    %v3838 = vpop.f32.mrb[0].mxu0
    %v3839 = vadd.f32 0.0, %v3838
    %v3840 = vpop.f32.mrb[0].mxu0
    %3841 = vmatprep.mubr.bf16.mxu0 0
    %3842 = vmatmul.mubr.bf16.gmra.mrb[0].mxu0 %v3631
    %v3843 = vpop.f32.mrb[0].mxu0
    %v3844 = vadd.f32 0.0, %v3843
    %v3845 = vpop.f32.mrb[0].mxu0
    %v3846 = vpop.f32.mrb[0].mxu0
    %v3847 = vadd.f32 0.0, %v3846
    %v3848 = vpop.f32.mrb[0].mxu0
    %3849 = vmatprep.mubr.bf16.mxu0 0
    %3850 = vmatmul.mubr.bf16.gmra.mrb[0].mxu0 %v3634
    %v3851 = vpop.f32.mrb[0].mxu0
    %v3852 = vadd.f32 0.0, %v3851
    %v3853 = vpop.f32.mrb[0].mxu0
    %v3854 = vpop.f32.mrb[0].mxu0
    %v3855 = vadd.f32 0.0, %v3854
    %v3856 = vpop.f32.mrb[0].mxu0
    %3857 = vmatprep.mubr.bf16.mxu0 0
    %3858 = vmatmul.mubr.bf16.gmra.mrb[0].mxu0 %v3637
    %v3859 = vpop.f32.mrb[0].mxu0
    %v3860 = vadd.f32 0.0, %v3859
    %v3861 = vpop.f32.mrb[0].mxu0
    %v3862 = vpop.f32.mrb[0].mxu0
    %v3863 = vadd.f32 0.0, %v3862
    %v3864 = vpop.f32.mrb[0].mxu0
    %3865 = vmatprep.mubr.bf16.mxu0 0
    %3866 = vmatmul.mubr.bf16.gmra.mrb[0].mxu0 %v3640
    %v3867 = vpop.f32.mrb[0].mxu0
    %v3868 = vadd.f32 0.0, %v3867
    %v3869 = vpop.f32.mrb[0].mxu0
    %v3870 = vpop.f32.mrb[0].mxu0
    %v3871 = vadd.f32 0.0, %v3870
    %v3872 = vpop.f32.mrb[0].mxu0
    %3873 = vmatprep.mubr.bf16.mxu0 0
    %3874 = vmatmul.mubr.bf16.gmra.mrb[0].mxu0 %v3643
    %v3875 = vpop.f32.mrb[0].mxu0
    %v3876 = vadd.f32 0.0, %v3875
    %v3877 = vpop.f32.mrb[0].mxu0
    %v3878 = vpop.f32.mrb[0].mxu0
    %v3879 = vadd.f32 0.0, %v3878
    %v3880 = vpop.f32.mrb[0].mxu0
    %3881 = vmatprep.mubr.bf16.mxu0 0
    %3882 = vmatmul.mubr.bf16.gmra.mrb[0].mxu0 %v3646
    %v3883 = vpop.f32.mrb[0].mxu0
    %v3884 = vadd.f32 0.0, %v3883
    %v3885 = vpop.f32.mrb[0].mxu0
    %v3886 = vpop.f32.mrb[0].mxu0
    %v3887 = vadd.f32 0.0, %v3886
    %v3888 = vpop.f32.mrb[0].mxu0
    %3889 = vmatprep.mubr.bf16.mxu0 0
    %3890 = vmatmul.mubr.bf16.gmra.mrb[0].mxu0 %v3649
    %v3891 = vpop.f32.mrb[0].mxu0
    %v3892 = vadd.f32 0.0, %v3891
    %v3893 = vpop.f32.mrb[0].mxu0
    %v3894 = vpop.f32.mrb[0].mxu0
    %v3895 = vadd.f32 0.0, %v3894
    %v3896 = vpop.f32.mrb[0].mxu0
    %3897 = vmatprep.mubr.bf16.mxu0 0
    %3898 = vmatmul.mubr.bf16.gmra.mrb[0].mxu0 %v3652
    %v3899 = vpop.f32.mrb[0].mxu0
    %v3900 = vadd.f32 0.0, %v3899
    %v3901 = vpop.f32.mrb[0].mxu0
    %v3902 = vpop.f32.mrb[0].mxu0
    %v3903 = vadd.f32 0.0, %v3902
    %v3904 = vpop.f32.mrb[0].mxu0
    %3905 = vmatprep.mubr.bf16.mxu0 0
    %3906 = vmatmul.mubr.bf16.gmra.mrb[0].mxu0 %v3655
    %v3907 = vpop.f32.mrb[0].mxu0
    %v3908 = vadd.f32 0.0, %v3907
    %v3909 = vpop.f32.mrb[0].mxu0
    %v3910 = vpop.f32.mrb[0].mxu0
    %v3911 = vadd.f32 0.0, %v3910
    %v3912 = vpop.f32.mrb[0].mxu0
    %3913 = vmatprep.mubr.bf16.mxu0 0
    %3914 = vmatmul.mubr.bf16.gmra.mrb[0].mxu0 %v3658
    %v3915 = vpop.f32.mrb[0].mxu0
    %v3916 = vadd.f32 0.0, %v3915
    %v3917 = vpop.f32.mrb[0].mxu0
    %v3918 = vpop.f32.mrb[0].mxu0
    %v3919 = vadd.f32 0.0, %v3918
    %v3920 = vpop.f32.mrb[0].mxu0
    %3921 = vmatprep.mubr.bf16.mxu0 0
    %3922 = vmatmul.mubr.bf16.gmra.mrb[0].mxu0 %v3661
    %v3923 = vpop.f32.mrb[0].mxu0
    %v3924 = vadd.f32 0.0, %v3923
    %v3925 = vpop.f32.mrb[0].mxu0
    %v3926 = vpop.f32.mrb[0].mxu0
    %v3927 = vadd.f32 0.0, %v3926
    %v3928 = vpop.f32.mrb[0].mxu0
    %3929 = vmatprep.mubr.bf16.mxu0 0
    %3930 = vmatmul.mubr.bf16.gmra.mrb[0].mxu0 %v3664
    %v3931 = vpop.f32.mrb[0].mxu0
    %v3932 = vadd.f32 0.0, %v3931
    %v3933 = vpop.f32.mrb[0].mxu0
    %v3934 = vpop.f32.mrb[0].mxu0
    %v3935 = vadd.f32 0.0, %v3934
    %v3936 = vpop.f32.mrb[0].mxu0
    %3937 = vmatprep.mubr.bf16.mxu0 0
    %3938 = vmatmul.mubr.bf16.gmra.mrb[0].mxu0 %v3667
    %v3939 = vpop.f32.mrb[0].mxu0
    %v3940 = vadd.f32 0.0, %v3939
    %v3941 = vpop.f32.mrb[0].mxu0
    %v3942 = vpop.f32.mrb[0].mxu0
    %v3943 = vadd.f32 0.0, %v3942
    %v3944 = vpop.f32.mrb[0].mxu0
    %3945 = vmatprep.mubr.bf16.mxu0 0
    %3946 = vmatmul.mubr.bf16.gmra.mrb[0].mxu0 %v3670
    %v3947 = vpop.f32.mrb[0].mxu0
    %v3948 = vadd.f32 0.0, %v3947
    %v3949 = vpop.f32.mrb[0].mxu0
    %v3950 = vpop.f32.mrb[0].mxu0
    %v3951 = vadd.f32 0.0, %v3950
    %v3952 = vpop.f32.mrb[0].mxu0
    %3953 = vmatprep.mubr.bf16.mxu0 0
    %3954 = vmatmul.mubr.bf16.gmra.mrb[0].mxu0 %v3673
    %v3955 = vpop.f32.mrb[0].mxu0
    %v3956 = vadd.f32 0.0, %v3955
    %v3957 = vpop.f32.mrb[0].mxu0
    %v3958 = vpop.f32.mrb[0].mxu0
    %v3959 = vadd.f32 0.0, %v3958
    %v3960 = vpop.f32.mrb[0].mxu0
    %3961 = vmatprep.mubr.bf16.mxu0 0
    %3962 = vmatmul.mubr.bf16.gmra.mrb[0].mxu0 %v3676
    %v3963 = vpop.f32.mrb[0].mxu0
    %v3964 = vadd.f32 0.0, %v3963
    %v3965 = vpop.f32.mrb[0].mxu0
    %v3966 = vpop.f32.mrb[0].mxu0
    %v3967 = vadd.f32 0.0, %v3966
    %v3968 = vpop.f32.mrb[0].mxu0
    %3969 = vdwg.mxu0
    %v3970 = vadd.f32 %v3004, %v3716
    %v3971 = vadd.f32 %v3005, %v3719
    %v3972 = vadd.f32 %v3006, %v3724
    %v3973 = vadd.f32 %v3007, %v3727
    %v3974 = vadd.f32 %v3008, %v3732
    %v3975 = vadd.f32 %v3009, %v3735
    %v3976 = vadd.f32 %v3010, %v3740
    %v3977 = vadd.f32 %v3011, %v3743
    %v3978 = vadd.f32 %v3012, %v3748
    %v3979 = vadd.f32 %v3013, %v3751
    %v3980 = vadd.f32 %v3014, %v3756
    %v3981 = vadd.f32 %v3015, %v3759
    %v3982 = vadd.f32 %v3016, %v3764
    %v3983 = vadd.f32 %v3017, %v3767
    %v3984 = vadd.f32 %v3018, %v3772
    %v3985 = vadd.f32 %v3019, %v3775
    %v3986 = vadd.f32 %v3020, %v3780
    %v3987 = vadd.f32 %v3021, %v3783
    %v3988 = vadd.f32 %v3022, %v3788
    %v3989 = vadd.f32 %v3023, %v3791
    %v3990 = vadd.f32 %v3024, %v3796
    %v3991 = vadd.f32 %v3025, %v3799
    %v3992 = vadd.f32 %v3026, %v3804
    %v3993 = vadd.f32 %v3027, %v3807
    %v3994 = vadd.f32 %v3028, %v3812
    %v3995 = vadd.f32 %v3029, %v3815
    %v3996 = vadd.f32 %v3030, %v3820
    %v3997 = vadd.f32 %v3031, %v3823
    %v3998 = vadd.f32 %v3032, %v3828
    %v3999 = vadd.f32 %v3033, %v3831
    %v4000 = vadd.f32 %v3034, %v3836
    %v4001 = vadd.f32 %v3035, %v3839
    %v4002 = vadd.f32 %v3036, %v3844
    %v4003 = vadd.f32 %v3037, %v3847
    %v4004 = vadd.f32 %v3038, %v3852
    %v4005 = vadd.f32 %v3039, %v3855
    %v4006 = vadd.f32 %v3040, %v3860
    %v4007 = vadd.f32 %v3041, %v3863
    %v4008 = vadd.f32 %v3042, %v3868
    %v4009 = vadd.f32 %v3043, %v3871
    %v4010 = vadd.f32 %v3044, %v3876
    %v4011 = vadd.f32 %v3045, %v3879
    %v4012 = vadd.f32 %v3046, %v3884
    %v4013 = vadd.f32 %v3047, %v3887
    %v4014 = vadd.f32 %v3048, %v3892
    %v4015 = vadd.f32 %v3049, %v3895
    %v4016 = vadd.f32 %v3050, %v3900
    %v4017 = vadd.f32 %v3051, %v3903
    %v4018 = vadd.f32 %v3052, %v3908
    %v4019 = vadd.f32 %v3053, %v3911
    %v4020 = vadd.f32 %v3054, %v3916
    %v4021 = vadd.f32 %v3055, %v3919
    %v4022 = vadd.f32 %v3056, %v3924
    %v4023 = vadd.f32 %v3057, %v3927
    %v4024 = vadd.f32 %v3058, %v3932
    %v4025 = vadd.f32 %v3059, %v3935
    %v4026 = vadd.f32 %v3060, %v3940
    %v4027 = vadd.f32 %v3061, %v3943
    %v4028 = vadd.f32 %v3062, %v3948
    %v4029 = vadd.f32 %v3063, %v3951
    %v4030 = vadd.f32 %v3064, %v3956
    %v4031 = vadd.f32 %v3065, %v3959
    %v4032 = vadd.f32 %v3066, %v3964
    %v4033 = vadd.f32 %v3067, %v3967
    %v4034 = vld [vmem:[%s2389] sm:$0xc]
    %v4035 = vld [vmem:[%s2389 + $0x8] sm:$0x3]
    %v4036 = vld [vmem:[%s2389 + $0xc] sm:$0xc]
    %v4037 = vld [vmem:[%s2389 + $0x14] sm:$0x3]
    %v4038 = vld [vmem:[%s2389 + $0x18] sm:$0xc]
    %v4039 = vld [vmem:[%s2389 + $0x20] sm:$0x3]
    %v4040 = vld [vmem:[%s2389 + $0x24] sm:$0xc]
    %v4041 = vld [vmem:[%s2389 + $0x2c] sm:$0x3]
    %v4042 = vld [vmem:[%s2389 + $0x30] sm:$0xc]
    %v4043 = vld [vmem:[%s2389 + $0x38] sm:$0x3]
    %v4044 = vld [vmem:[%s2389 + $0x3c] sm:$0xc]
    %v4045 = vld [vmem:[%s2389 + $0x44] sm:$0x3]
    %v4046 = vld [vmem:[%s2389 + $0x48] sm:$0xc]
    %v4047 = vld [vmem:[%s2389 + $0x50] sm:$0x3]
    %v4048 = vld [vmem:[%s2389 + $0x54] sm:$0xc]
    %v4049 = vld [vmem:[%s2389 + $0x5c] sm:$0x3]
    %v4050 = vld [vmem:[%s2389 + $0x60] sm:$0xc]
    %v4051 = vld [vmem:[%s2389 + $0x68] sm:$0x3]
    %v4052 = vld [vmem:[%s2389 + $0x6c] sm:$0xc]
    %v4053 = vld [vmem:[%s2389 + $0x74] sm:$0x3]
    %v4054 = vld [vmem:[%s2389 + $0x78] sm:$0xc]
    %v4055 = vld [vmem:[%s2389 + $0x80] sm:$0x3]
    %v4056 = vld [vmem:[%s2389 + $0x84] sm:$0xc]
    %v4057 = vld [vmem:[%s2389 + $0x8c] sm:$0x3]
    %v4058 = vld [vmem:[%s2389 + $0x90] sm:$0xc]
    %v4059 = vld [vmem:[%s2389 + $0x98] sm:$0x3]
    %v4060 = vld [vmem:[%s2389 + $0x9c] sm:$0xc]
    %v4061 = vld [vmem:[%s2389 + $0xa4] sm:$0x3]
    %v4062 = vld [vmem:[%s2389 + $0xa8] sm:$0xc]
    %v4063 = vld [vmem:[%s2389 + $0xb0] sm:$0x3]
    %v4064 = vld [vmem:[%s2389 + $0xb4] sm:$0xc]
    %v4065 = vld [vmem:[%s2389 + $0xbc] sm:$0x3]
    %v4066 = vld [vmem:[%s2389 + $0xf0] sm:$0xc]
    %v4067 = vld [vmem:[%s2389 + $0xf8] sm:$0x3]
    %v4068 = vld [vmem:[%s2389 + $0xfc] sm:$0xc]
    %v4069 = vld [vmem:[%s2389 + $0x104] sm:$0x3]
    %v4070 = vld [vmem:[%s2389 + $0x108] sm:$0xc]
    %v4071 = vld [vmem:[%s2389 + $0x110] sm:$0x3]
    %v4072 = vld [vmem:[%s2389 + $0x114] sm:$0xc]
    %v4073 = vld [vmem:[%s2389 + $0x11c] sm:$0x3]
    %v4074 = vld [vmem:[%s2389 + $0x120] sm:$0xc]
    %v4075 = vld [vmem:[%s2389 + $0x128] sm:$0x3]
    %v4076 = vld [vmem:[%s2389 + $0x12c] sm:$0xc]
    %v4077 = vld [vmem:[%s2389 + $0x134] sm:$0x3]
    %v4078 = vld [vmem:[%s2389 + $0x138] sm:$0xc]
    %v4079 = vld [vmem:[%s2389 + $0x140] sm:$0x3]
    %v4080 = vld [vmem:[%s2389 + $0x144] sm:$0xc]
    %v4081 = vld [vmem:[%s2389 + $0x14c] sm:$0x3]
    %v4082 = vld [vmem:[%s2389 + $0x150] sm:$0xc]
    %v4083 = vld [vmem:[%s2389 + $0x158] sm:$0x3]
    %v4084 = vld [vmem:[%s2389 + $0x15c] sm:$0xc]
    %v4085 = vld [vmem:[%s2389 + $0x164] sm:$0x3]
    %v4086 = vld [vmem:[%s2389 + $0x168] sm:$0xc]
    %v4087 = vld [vmem:[%s2389 + $0x170] sm:$0x3]
    %v4088 = vld [vmem:[%s2389 + $0x174] sm:$0xc]
    %v4089 = vld [vmem:[%s2389 + $0x17c] sm:$0x3]
    %v4090 = vld [vmem:[%s2389 + $0x180] sm:$0xc]
    %v4091 = vld [vmem:[%s2389 + $0x188] sm:$0x3]
    %v4092 = vld [vmem:[%s2389 + $0x18c] sm:$0xc]
    %v4093 = vld [vmem:[%s2389 + $0x194] sm:$0x3]
    %v4094 = vld [vmem:[%s2389 + $0x198] sm:$0xc]
    %v4095 = vld [vmem:[%s2389 + $0x1a0] sm:$0x3]
    %v4096 = vld [vmem:[%s2389 + $0x1a4] sm:$0xc]
    %v4097 = vld [vmem:[%s2389 + $0x1ac] sm:$0x3]
    %v4162 = vrot.slane %v4034, 6
    %v4163 = vrot.slane %v4162, 4
    %v4164 = vrot.slane %v3069, 6
    %v4165 = vsel %vm1614, %v4163, %v4164
    %v4166 = vrot.slane %v4164, 4
    %v4167 = vrot.slane %v4035, 6
    %v4168 = vsel %vm1614, %v4166, %v4167
    %v4169 = vrot.slane %v4036, 6
    %v4170 = vrot.slane %v4169, 4
    %v4171 = vrot.slane %v3072, 6
    %v4172 = vsel %vm1614, %v4170, %v4171
    %v4173 = vrot.slane %v4171, 4
    %v4174 = vrot.slane %v4037, 6
    %v4175 = vsel %vm1614, %v4173, %v4174
    %v4176 = vrot.slane %v4038, 6
    %v4177 = vrot.slane %v4176, 4
    %v4178 = vrot.slane %v3075, 6
    %v4179 = vsel %vm1614, %v4177, %v4178
    %v4180 = vrot.slane %v4178, 4
    %v4181 = vrot.slane %v4039, 6
    %v4182 = vsel %vm1614, %v4180, %v4181
    %v4183 = vrot.slane %v4040, 6
    %v4184 = vrot.slane %v4183, 4
    %v4185 = vrot.slane %v3078, 6
    %v4186 = vsel %vm1614, %v4184, %v4185
    %v4187 = vrot.slane %v4185, 4
    %v4188 = vrot.slane %v4041, 6
    %v4189 = vsel %vm1614, %v4187, %v4188
    %v4190 = vrot.slane %v4042, 6
    %v4191 = vrot.slane %v4190, 4
    %v4192 = vrot.slane %v3081, 6
    %v4193 = vsel %vm1614, %v4191, %v4192
    %v4194 = vrot.slane %v4192, 4
    %v4195 = vrot.slane %v4043, 6
    %v4196 = vsel %vm1614, %v4194, %v4195
    %v4197 = vrot.slane %v4044, 6
    %v4198 = vrot.slane %v4197, 4
    %v4199 = vrot.slane %v3084, 6
    %v4200 = vsel %vm1614, %v4198, %v4199
    %v4201 = vrot.slane %v4199, 4
    %v4202 = vrot.slane %v4045, 6
    %v4203 = vsel %vm1614, %v4201, %v4202
    %v4204 = vrot.slane %v4046, 6
    %v4205 = vrot.slane %v4204, 4
    %v4206 = vrot.slane %v3087, 6
    %v4207 = vsel %vm1614, %v4205, %v4206
    %v4208 = vrot.slane %v4206, 4
    %v4209 = vrot.slane %v4047, 6
    %v4210 = vsel %vm1614, %v4208, %v4209
    %v4211 = vrot.slane %v4048, 6
    %v4212 = vrot.slane %v4211, 4
    %v4213 = vrot.slane %v3090, 6
    %v4214 = vsel %vm1614, %v4212, %v4213
    %v4215 = vrot.slane %v4213, 4
    %v4216 = vrot.slane %v4049, 6
    %v4217 = vsel %vm1614, %v4215, %v4216
    %v4218 = vrot.slane %v4050, 6
    %v4219 = vrot.slane %v4218, 4
    %v4220 = vrot.slane %v3093, 6
    %v4221 = vsel %vm1614, %v4219, %v4220
    %v4222 = vrot.slane %v4220, 4
    %v4223 = vrot.slane %v4051, 6
    %v4224 = vsel %vm1614, %v4222, %v4223
    %v4225 = vrot.slane %v4052, 6
    %v4226 = vrot.slane %v4225, 4
    %v4227 = vrot.slane %v3096, 6
    %v4228 = vsel %vm1614, %v4226, %v4227
    %v4229 = vrot.slane %v4227, 4
    %v4230 = vrot.slane %v4053, 6
    %v4231 = vsel %vm1614, %v4229, %v4230
    %v4232 = vrot.slane %v4054, 6
    %v4233 = vrot.slane %v4232, 4
    %v4234 = vrot.slane %v3099, 6
    %v4235 = vsel %vm1614, %v4233, %v4234
    %v4236 = vrot.slane %v4234, 4
    %v4237 = vrot.slane %v4055, 6
    %v4238 = vsel %vm1614, %v4236, %v4237
    %v4239 = vrot.slane %v4056, 6
    %v4240 = vrot.slane %v4239, 4
    %v4241 = vrot.slane %v3102, 6
    %v4242 = vsel %vm1614, %v4240, %v4241
    %v4243 = vrot.slane %v4241, 4
    %v4244 = vrot.slane %v4057, 6
    %v4245 = vsel %vm1614, %v4243, %v4244
    %v4246 = vrot.slane %v4058, 6
    %v4247 = vrot.slane %v4246, 4
    %v4248 = vrot.slane %v3105, 6
    %v4249 = vsel %vm1614, %v4247, %v4248
    %v4250 = vrot.slane %v4248, 4
    %v4251 = vrot.slane %v4059, 6
    %v4252 = vsel %vm1614, %v4250, %v4251
    %v4253 = vrot.slane %v4060, 6
    %v4254 = vrot.slane %v4253, 4
    %v4255 = vrot.slane %v3108, 6
    %v4256 = vsel %vm1614, %v4254, %v4255
    %v4257 = vrot.slane %v4255, 4
    %v4258 = vrot.slane %v4061, 6
    %v4259 = vsel %vm1614, %v4257, %v4258
    %v4260 = vrot.slane %v4062, 6
    %v4261 = vrot.slane %v4260, 4
    %v4262 = vrot.slane %v3111, 6
    %v4263 = vsel %vm1614, %v4261, %v4262
    %v4264 = vrot.slane %v4262, 4
    %v4265 = vrot.slane %v4063, 6
    %v4266 = vsel %vm1614, %v4264, %v4265
    %v4267 = vrot.slane %v4064, 6
    %v4268 = vrot.slane %v4267, 4
    %v4269 = vrot.slane %v3114, 6
    %v4270 = vsel %vm1614, %v4268, %v4269
    %v4271 = vrot.slane %v4269, 4
    %v4272 = vrot.slane %v4065, 6
    %v4273 = vsel %vm1614, %v4271, %v4272
    %v4274 = vrot.slane %v4066, 6
    %v4275 = vrot.slane %v4274, 4
    %v4276 = vrot.slane %v3117, 6
    %v4277 = vsel %vm1614, %v4275, %v4276
    %v4278 = vrot.slane %v4276, 4
    %v4279 = vrot.slane %v4067, 6
    %v4280 = vsel %vm1614, %v4278, %v4279
    %v4281 = vrot.slane %v4068, 6
    %v4282 = vrot.slane %v4281, 4
    %v4283 = vrot.slane %v3120, 6
    %v4284 = vsel %vm1614, %v4282, %v4283
    %v4285 = vrot.slane %v4283, 4
    %v4286 = vrot.slane %v4069, 6
    %v4287 = vsel %vm1614, %v4285, %v4286
    %v4288 = vrot.slane %v4070, 6
    %v4289 = vrot.slane %v4288, 4
    %v4290 = vrot.slane %v3123, 6
    %v4291 = vsel %vm1614, %v4289, %v4290
    %v4292 = vrot.slane %v4290, 4
    %v4293 = vrot.slane %v4071, 6
    %v4294 = vsel %vm1614, %v4292, %v4293
    %v4295 = vrot.slane %v4072, 6
    %v4296 = vrot.slane %v4295, 4
    %v4297 = vrot.slane %v3126, 6
    %v4298 = vsel %vm1614, %v4296, %v4297
    %v4299 = vrot.slane %v4297, 4
    %v4300 = vrot.slane %v4073, 6
    %v4301 = vsel %vm1614, %v4299, %v4300
    %v4302 = vrot.slane %v4074, 6
    %v4303 = vrot.slane %v4302, 4
    %v4304 = vrot.slane %v3129, 6
    %v4305 = vsel %vm1614, %v4303, %v4304
    %v4306 = vrot.slane %v4304, 4
    %v4307 = vrot.slane %v4075, 6
    %v4308 = vsel %vm1614, %v4306, %v4307
    %v4309 = vrot.slane %v4076, 6
    %v4310 = vrot.slane %v4309, 4
    %v4311 = vrot.slane %v3132, 6
    %v4312 = vsel %vm1614, %v4310, %v4311
    %v4313 = vrot.slane %v4311, 4
    %v4314 = vrot.slane %v4077, 6
    %v4315 = vsel %vm1614, %v4313, %v4314
    %v4316 = vrot.slane %v4078, 6
    %v4317 = vrot.slane %v4316, 4
    %v4318 = vrot.slane %v3135, 6
    %v4319 = vsel %vm1614, %v4317, %v4318
    %v4320 = vrot.slane %v4318, 4
    %v4321 = vrot.slane %v4079, 6
    %v4322 = vsel %vm1614, %v4320, %v4321
    %v4323 = vrot.slane %v4080, 6
    %v4324 = vrot.slane %v4323, 4
    %v4325 = vrot.slane %v3138, 6
    %v4326 = vsel %vm1614, %v4324, %v4325
    %v4327 = vrot.slane %v4325, 4
    %v4328 = vrot.slane %v4081, 6
    %v4329 = vsel %vm1614, %v4327, %v4328
    %v4330 = vrot.slane %v4082, 6
    %v4331 = vrot.slane %v4330, 4
    %v4332 = vrot.slane %v3141, 6
    %v4333 = vsel %vm1614, %v4331, %v4332
    %v4334 = vrot.slane %v4332, 4
    %v4335 = vrot.slane %v4083, 6
    %v4336 = vsel %vm1614, %v4334, %v4335
    %v4337 = vrot.slane %v4084, 6
    %v4338 = vrot.slane %v4337, 4
    %v4339 = vrot.slane %v3144, 6
    %v4340 = vsel %vm1614, %v4338, %v4339
    %v4341 = vrot.slane %v4339, 4
    %v4342 = vrot.slane %v4085, 6
    %v4343 = vsel %vm1614, %v4341, %v4342
    %v4344 = vrot.slane %v4086, 6
    %v4345 = vrot.slane %v4344, 4
    %v4346 = vrot.slane %v3147, 6
    %v4347 = vsel %vm1614, %v4345, %v4346
    %v4348 = vrot.slane %v4346, 4
    %v4349 = vrot.slane %v4087, 6
    %v4350 = vsel %vm1614, %v4348, %v4349
    %v4351 = vrot.slane %v4088, 6
    %v4352 = vrot.slane %v4351, 4
    %v4353 = vrot.slane %v3150, 6
    %v4354 = vsel %vm1614, %v4352, %v4353
    %v4355 = vrot.slane %v4353, 4
    %v4356 = vrot.slane %v4089, 6
    %v4357 = vsel %vm1614, %v4355, %v4356
    %v4358 = vrot.slane %v4090, 6
    %v4359 = vrot.slane %v4358, 4
    %v4360 = vrot.slane %v3153, 6
    %v4361 = vsel %vm1614, %v4359, %v4360
    %v4362 = vrot.slane %v4360, 4
    %v4363 = vrot.slane %v4091, 6
    %v4364 = vsel %vm1614, %v4362, %v4363
    %v4365 = vrot.slane %v4092, 6
    %v4366 = vrot.slane %v4365, 4
    %v4367 = vrot.slane %v3156, 6
    %v4368 = vsel %vm1614, %v4366, %v4367
    %v4369 = vrot.slane %v4367, 4
    %v4370 = vrot.slane %v4093, 6
    %v4371 = vsel %vm1614, %v4369, %v4370
    %v4372 = vrot.slane %v4094, 6
    %v4373 = vrot.slane %v4372, 4
    %v4374 = vrot.slane %v3159, 6
    %v4375 = vsel %vm1614, %v4373, %v4374
    %v4376 = vrot.slane %v4374, 4
    %v4377 = vrot.slane %v4095, 6
    %v4378 = vsel %vm1614, %v4376, %v4377
    %v4379 = vrot.slane %v4096, 6
    %v4380 = vrot.slane %v4379, 4
    %v4381 = vrot.slane %v3162, 6
    %v4382 = vsel %vm1614, %v4380, %v4381
    %v4383 = vrot.slane %v4381, 4
    %v4384 = vrot.slane %v4097, 6
    %v4385 = vsel %vm1614, %v4383, %v4384
    %s4386 = scalar_lea.vmem %s1, 10
    %v4387 = vld [vmem:[%s4386] sm:$0x3]
    %v4388 = vunpack.c.l.b16 %v4165
    %v4389 = vunpack.c.l.b16 %v4168
    %v4390 = vunpack.c.l.b16 %v4172
    %v4391 = vunpack.c.l.b16 %v4175
    %v4392 = vunpack.c.l.b16 %v4179
    %v4393 = vunpack.c.l.b16 %v4182
    %v4394 = vunpack.c.l.b16 %v4186
    %v4395 = vunpack.c.l.b16 %v4189
    %v4396 = vunpack.c.l.b16 %v4193
    %v4397 = vunpack.c.l.b16 %v4196
    %v4398 = vunpack.c.l.b16 %v4200
    %v4399 = vunpack.c.l.b16 %v4203
    %v4400 = vunpack.c.l.b16 %v4207
    %v4401 = vunpack.c.l.b16 %v4210
    %v4402 = vunpack.c.l.b16 %v4214
    %v4403 = vunpack.c.l.b16 %v4217
    %v4404 = vunpack.c.l.b16 %v4221
    %v4405 = vunpack.c.l.b16 %v4224
    %v4406 = vunpack.c.l.b16 %v4228
    %v4407 = vunpack.c.l.b16 %v4231
    %v4408 = vunpack.c.l.b16 %v4235
    %v4409 = vunpack.c.l.b16 %v4238
    %v4410 = vunpack.c.l.b16 %v4242
    %v4411 = vunpack.c.l.b16 %v4245
    %v4412 = vunpack.c.l.b16 %v4249
    %v4413 = vunpack.c.l.b16 %v4252
    %v4414 = vunpack.c.l.b16 %v4256
    %v4415 = vunpack.c.l.b16 %v4259
    %v4416 = vunpack.c.l.b16 %v4263
    %v4417 = vunpack.c.l.b16 %v4266
    %v4418 = vunpack.c.l.b16 %v4270
    %v4419 = vunpack.c.l.b16 %v4273
    %v4420 = vunpack.c.l.b16 %v4277
    %v4421 = vunpack.c.l.b16 %v4280
    %v4422 = vunpack.c.l.b16 %v4284
    %v4423 = vunpack.c.l.b16 %v4287
    %v4424 = vunpack.c.l.b16 %v4291
    %v4425 = vunpack.c.l.b16 %v4294
    %v4426 = vunpack.c.l.b16 %v4298
    %v4427 = vunpack.c.l.b16 %v4301
    %v4428 = vunpack.c.l.b16 %v4305
    %v4429 = vunpack.c.l.b16 %v4308
    %v4430 = vunpack.c.l.b16 %v4312
    %v4431 = vunpack.c.l.b16 %v4315
    %v4432 = vunpack.c.l.b16 %v4319
    %v4433 = vunpack.c.l.b16 %v4322
    %v4434 = vunpack.c.l.b16 %v4326
    %v4435 = vunpack.c.l.b16 %v4329
    %v4436 = vunpack.c.l.b16 %v4333
    %v4437 = vunpack.c.l.b16 %v4336
    %v4438 = vunpack.c.l.b16 %v4340
    %v4439 = vunpack.c.l.b16 %v4343
    %v4440 = vunpack.c.l.b16 %v4347
    %v4441 = vunpack.c.l.b16 %v4350
    %v4442 = vunpack.c.l.b16 %v4354
    %v4443 = vunpack.c.l.b16 %v4357
    %v4444 = vunpack.c.l.b16 %v4361
    %v4445 = vunpack.c.l.b16 %v4364
    %v4446 = vunpack.c.l.b16 %v4368
    %v4447 = vunpack.c.l.b16 %v4371
    %v4448 = vunpack.c.l.b16 %v4375
    %v4449 = vunpack.c.l.b16 %v4378
    %v4450 = vunpack.c.l.b16 %v4382
    %v4451 = vunpack.c.l.b16 %v4385
    %v4452 = vpack.c.b16 %v4389, %v4388
    %v4453 = vpack.c.b16 %v4391, %v4390
    %v4454 = vpack.c.b16 %v4393, %v4392
    %v4455 = vpack.c.b16 %v4395, %v4394
    %v4456 = vpack.c.b16 %v4397, %v4396
    %v4457 = vpack.c.b16 %v4399, %v4398
    %v4458 = vpack.c.b16 %v4401, %v4400
    %v4459 = vpack.c.b16 %v4403, %v4402
    %v4460 = vpack.c.b16 %v4405, %v4404
    %v4461 = vpack.c.b16 %v4407, %v4406
    %v4462 = vpack.c.b16 %v4409, %v4408
    %v4463 = vpack.c.b16 %v4411, %v4410
    %v4464 = vpack.c.b16 %v4413, %v4412
    %v4465 = vpack.c.b16 %v4415, %v4414
    %v4466 = vpack.c.b16 %v4417, %v4416
    %v4467 = vpack.c.b16 %v4419, %v4418
    %v4468 = vpack.c.b16 %v4421, %v4420
    %v4469 = vpack.c.b16 %v4423, %v4422
    %v4470 = vpack.c.b16 %v4425, %v4424
    %v4471 = vpack.c.b16 %v4427, %v4426
    %v4472 = vpack.c.b16 %v4429, %v4428
    %v4473 = vpack.c.b16 %v4431, %v4430
    %v4474 = vpack.c.b16 %v4433, %v4432
    %v4475 = vpack.c.b16 %v4435, %v4434
    %v4476 = vpack.c.b16 %v4437, %v4436
    %v4477 = vpack.c.b16 %v4439, %v4438
    %v4478 = vpack.c.b16 %v4441, %v4440
    %v4479 = vpack.c.b16 %v4443, %v4442
    %v4480 = vpack.c.b16 %v4445, %v4444
    %v4481 = vpack.c.b16 %v4447, %v4446
    %v4482 = vpack.c.b16 %v4449, %v4448
    %v4483 = vpack.c.b16 %v4451, %v4450
    %v4485 = vsel %vm578, %v4452, 0
    %v4488 = vsel %vm578, %v4453, 0
    %v4491 = vsel %vm578, %v4454, 0
    %v4494 = vsel %vm578, %v4455, 0
    %v4497 = vsel %vm578, %v4456, 0
    %v4500 = vsel %vm578, %v4457, 0
    %v4503 = vsel %vm578, %v4458, 0
    %v4506 = vsel %vm578, %v4459, 0
    %v4509 = vsel %vm578, %v4460, 0
    %v4512 = vsel %vm578, %v4461, 0
    %v4515 = vsel %vm578, %v4462, 0
    %v4518 = vsel %vm578, %v4463, 0
    %v4521 = vsel %vm578, %v4464, 0
    %v4524 = vsel %vm578, %v4465, 0
    %v4527 = vsel %vm578, %v4466, 0
    %v4530 = vsel %vm578, %v4467, 0
    %v4533 = vsel %vm578, %v4468, 0
    %v4536 = vsel %vm578, %v4469, 0
    %v4539 = vsel %vm578, %v4470, 0
    %v4542 = vsel %vm578, %v4471, 0
    %v4545 = vsel %vm578, %v4472, 0
    %v4548 = vsel %vm578, %v4473, 0
    %v4551 = vsel %vm578, %v4474, 0
    %v4554 = vsel %vm578, %v4475, 0
    %v4557 = vsel %vm578, %v4476, 0
    %v4560 = vsel %vm578, %v4477, 0
    %v4563 = vsel %vm578, %v4478, 0
    %v4566 = vsel %vm578, %v4479, 0
    %v4569 = vsel %vm578, %v4480, 0
    %v4572 = vsel %vm578, %v4481, 0
    %v4575 = vsel %vm578, %v4482, 0
    %v4578 = vsel %vm578, %v4483, 0
    %v4581 = vsel %vm675, %v4387, 0
    %4583 = vmatprep.subr.bf16.mxu0 0
    %4584 = vmatpush1.bf16.msra.mxu0 %v4581
    %4585 = vmatprep.subr.bf16.mxu0 0
    %4586 = vmatpush1.bf16.msra.mxu0 0
    %4587 = vmatprep.subr.bf16.mxu0 0
    %4588 = vmatpush1.bf16.msra.mxu0 0
    %4589 = vmatprep.subr.bf16.mxu0 0
    %4590 = vmatpush1.bf16.msra.mxu0 0
    %4591 = vmatprep.subr.bf16.mxu0 0
    %4592 = vmatpush1.bf16.msra.mxu0 0
    %4593 = vmatprep.subr.bf16.mxu0 0
    %4594 = vmatpush1.bf16.msra.mxu0 0
    %4595 = vmatprep.subr.bf16.mxu0 0
    %4596 = vmatpush1.bf16.msra.mxu0 0
    %4597 = vmatprep.subr.bf16.mxu0 0
    %4598 = vmatpush1.bf16.msra.mxu0 0
    %4599 = vmatprep.subr.bf16.mxu0 0
    %4600 = vmatpush1.bf16.msra.mxu0 0
    %4601 = vmatprep.subr.bf16.mxu0 0
    %4602 = vmatpush1.bf16.msra.mxu0 0
    %4603 = vmatprep.subr.bf16.mxu0 0
    %4604 = vmatpush1.bf16.msra.mxu0 0
    %4605 = vmatprep.subr.bf16.mxu0 0
    %4606 = vmatpush1.bf16.msra.mxu0 0
    %4607 = vmatprep.subr.bf16.mxu0 0
    %4608 = vmatpush1.bf16.msra.mxu0 0
    %4609 = vmatprep.subr.bf16.mxu0 0
    %4610 = vmatpush1.bf16.msra.mxu0 0
    %4611 = vmatprep.subr.bf16.mxu0 0
    %4612 = vmatpush1.bf16.msra.mxu0 0
    %4613 = vmatprep.subr.bf16.mxu0 0
    %4614 = vmatpush1.bf16.msra.mxu0 0
    %4615 = vmatprep.mubr.bf16.mxu0 0
    %4616 = vmatmul.mubr.bf16.gmra.mrb[0].mxu0 %v4485
    %v4617 = vpop.f32.mrb[0].mxu0
    %v4618 = vadd.f32 0.0, %v4617
    %v4619 = vpop.f32.mrb[0].mxu0
    %v4620 = vpop.f32.mrb[0].mxu0
    %v4621 = vadd.f32 0.0, %v4620
    %v4622 = vpop.f32.mrb[0].mxu0
    %4623 = vmatprep.mubr.bf16.mxu0 0
    %4624 = vmatmul.mubr.bf16.gmra.mrb[0].mxu0 %v4488
    %v4625 = vpop.f32.mrb[0].mxu0
    %v4626 = vadd.f32 0.0, %v4625
    %v4627 = vpop.f32.mrb[0].mxu0
    %v4628 = vpop.f32.mrb[0].mxu0
    %v4629 = vadd.f32 0.0, %v4628
    %v4630 = vpop.f32.mrb[0].mxu0
    %4631 = vmatprep.mubr.bf16.mxu0 0
    %4632 = vmatmul.mubr.bf16.gmra.mrb[0].mxu0 %v4491
    %v4633 = vpop.f32.mrb[0].mxu0
    %v4634 = vadd.f32 0.0, %v4633
    %v4635 = vpop.f32.mrb[0].mxu0
    %v4636 = vpop.f32.mrb[0].mxu0
    %v4637 = vadd.f32 0.0, %v4636
    %v4638 = vpop.f32.mrb[0].mxu0
    %4639 = vmatprep.mubr.bf16.mxu0 0
    %4640 = vmatmul.mubr.bf16.gmra.mrb[0].mxu0 %v4494
    %v4641 = vpop.f32.mrb[0].mxu0
    %v4642 = vadd.f32 0.0, %v4641
    %v4643 = vpop.f32.mrb[0].mxu0
    %v4644 = vpop.f32.mrb[0].mxu0
    %v4645 = vadd.f32 0.0, %v4644
    %v4646 = vpop.f32.mrb[0].mxu0
    %4647 = vmatprep.mubr.bf16.mxu0 0
    %4648 = vmatmul.mubr.bf16.gmra.mrb[0].mxu0 %v4497
    %v4649 = vpop.f32.mrb[0].mxu0
    %v4650 = vadd.f32 0.0, %v4649
    %v4651 = vpop.f32.mrb[0].mxu0
    %v4652 = vpop.f32.mrb[0].mxu0
    %v4653 = vadd.f32 0.0, %v4652
    %v4654 = vpop.f32.mrb[0].mxu0
    %4655 = vmatprep.mubr.bf16.mxu0 0
    %4656 = vmatmul.mubr.bf16.gmra.mrb[0].mxu0 %v4500
    %v4657 = vpop.f32.mrb[0].mxu0
    %v4658 = vadd.f32 0.0, %v4657
    %v4659 = vpop.f32.mrb[0].mxu0
    %v4660 = vpop.f32.mrb[0].mxu0
    %v4661 = vadd.f32 0.0, %v4660
    %v4662 = vpop.f32.mrb[0].mxu0
    %4663 = vmatprep.mubr.bf16.mxu0 0
    %4664 = vmatmul.mubr.bf16.gmra.mrb[0].mxu0 %v4503
    %v4665 = vpop.f32.mrb[0].mxu0
    %v4666 = vadd.f32 0.0, %v4665
    %v4667 = vpop.f32.mrb[0].mxu0
    %v4668 = vpop.f32.mrb[0].mxu0
    %v4669 = vadd.f32 0.0, %v4668
    %v4670 = vpop.f32.mrb[0].mxu0
    %4671 = vmatprep.mubr.bf16.mxu0 0
    %4672 = vmatmul.mubr.bf16.gmra.mrb[0].mxu0 %v4506
    %v4673 = vpop.f32.mrb[0].mxu0
    %v4674 = vadd.f32 0.0, %v4673
    %v4675 = vpop.f32.mrb[0].mxu0
    %v4676 = vpop.f32.mrb[0].mxu0
    %v4677 = vadd.f32 0.0, %v4676
    %v4678 = vpop.f32.mrb[0].mxu0
    %4679 = vmatprep.mubr.bf16.mxu0 0
    %4680 = vmatmul.mubr.bf16.gmra.mrb[0].mxu0 %v4509
    %v4681 = vpop.f32.mrb[0].mxu0
    %v4682 = vadd.f32 0.0, %v4681
    %v4683 = vpop.f32.mrb[0].mxu0
    %v4684 = vpop.f32.mrb[0].mxu0
    %v4685 = vadd.f32 0.0, %v4684
    %v4686 = vpop.f32.mrb[0].mxu0
    %4687 = vmatprep.mubr.bf16.mxu0 0
    %4688 = vmatmul.mubr.bf16.gmra.mrb[0].mxu0 %v4512
    %v4689 = vpop.f32.mrb[0].mxu0
    %v4690 = vadd.f32 0.0, %v4689
    %v4691 = vpop.f32.mrb[0].mxu0
    %v4692 = vpop.f32.mrb[0].mxu0
    %v4693 = vadd.f32 0.0, %v4692
    %v4694 = vpop.f32.mrb[0].mxu0
    %4695 = vmatprep.mubr.bf16.mxu0 0
    %4696 = vmatmul.mubr.bf16.gmra.mrb[0].mxu0 %v4515
    %v4697 = vpop.f32.mrb[0].mxu0
    %v4698 = vadd.f32 0.0, %v4697
    %v4699 = vpop.f32.mrb[0].mxu0
    %v4700 = vpop.f32.mrb[0].mxu0
    %v4701 = vadd.f32 0.0, %v4700
    %v4702 = vpop.f32.mrb[0].mxu0
    %4703 = vmatprep.mubr.bf16.mxu0 0
    %4704 = vmatmul.mubr.bf16.gmra.mrb[0].mxu0 %v4518
    %v4705 = vpop.f32.mrb[0].mxu0
    %v4706 = vadd.f32 0.0, %v4705
    %v4707 = vpop.f32.mrb[0].mxu0
    %v4708 = vpop.f32.mrb[0].mxu0
    %v4709 = vadd.f32 0.0, %v4708
    %v4710 = vpop.f32.mrb[0].mxu0
    %4711 = vmatprep.mubr.bf16.mxu0 0
    %4712 = vmatmul.mubr.bf16.gmra.mrb[0].mxu0 %v4521
    %v4713 = vpop.f32.mrb[0].mxu0
    %v4714 = vadd.f32 0.0, %v4713
    %v4715 = vpop.f32.mrb[0].mxu0
    %v4716 = vpop.f32.mrb[0].mxu0
    %v4717 = vadd.f32 0.0, %v4716
    %v4718 = vpop.f32.mrb[0].mxu0
    %4719 = vmatprep.mubr.bf16.mxu0 0
    %4720 = vmatmul.mubr.bf16.gmra.mrb[0].mxu0 %v4524
    %v4721 = vpop.f32.mrb[0].mxu0
    %v4722 = vadd.f32 0.0, %v4721
    %v4723 = vpop.f32.mrb[0].mxu0
    %v4724 = vpop.f32.mrb[0].mxu0
    %v4725 = vadd.f32 0.0, %v4724
    %v4726 = vpop.f32.mrb[0].mxu0
    %4727 = vmatprep.mubr.bf16.mxu0 0
    %4728 = vmatmul.mubr.bf16.gmra.mrb[0].mxu0 %v4527
    %v4729 = vpop.f32.mrb[0].mxu0
    %v4730 = vadd.f32 0.0, %v4729
    %v4731 = vpop.f32.mrb[0].mxu0
    %v4732 = vpop.f32.mrb[0].mxu0
    %v4733 = vadd.f32 0.0, %v4732
    %v4734 = vpop.f32.mrb[0].mxu0
    %4735 = vmatprep.mubr.bf16.mxu0 0
    %4736 = vmatmul.mubr.bf16.gmra.mrb[0].mxu0 %v4530
    %v4737 = vpop.f32.mrb[0].mxu0
    %v4738 = vadd.f32 0.0, %v4737
    %v4739 = vpop.f32.mrb[0].mxu0
    %v4740 = vpop.f32.mrb[0].mxu0
    %v4741 = vadd.f32 0.0, %v4740
    %v4742 = vpop.f32.mrb[0].mxu0
    %4743 = vmatprep.mubr.bf16.mxu0 0
    %4744 = vmatmul.mubr.bf16.gmra.mrb[0].mxu0 %v4533
    %v4745 = vpop.f32.mrb[0].mxu0
    %v4746 = vadd.f32 0.0, %v4745
    %v4747 = vpop.f32.mrb[0].mxu0
    %v4748 = vpop.f32.mrb[0].mxu0
    %v4749 = vadd.f32 0.0, %v4748
    %v4750 = vpop.f32.mrb[0].mxu0
    %4751 = vmatprep.mubr.bf16.mxu0 0
    %4752 = vmatmul.mubr.bf16.gmra.mrb[0].mxu0 %v4536
    %v4753 = vpop.f32.mrb[0].mxu0
    %v4754 = vadd.f32 0.0, %v4753
    %v4755 = vpop.f32.mrb[0].mxu0
    %v4756 = vpop.f32.mrb[0].mxu0
    %v4757 = vadd.f32 0.0, %v4756
    %v4758 = vpop.f32.mrb[0].mxu0
    %4759 = vmatprep.mubr.bf16.mxu0 0
    %4760 = vmatmul.mubr.bf16.gmra.mrb[0].mxu0 %v4539
    %v4761 = vpop.f32.mrb[0].mxu0
    %v4762 = vadd.f32 0.0, %v4761
    %v4763 = vpop.f32.mrb[0].mxu0
    %v4764 = vpop.f32.mrb[0].mxu0
    %v4765 = vadd.f32 0.0, %v4764
    %v4766 = vpop.f32.mrb[0].mxu0
    %4767 = vmatprep.mubr.bf16.mxu0 0
    %4768 = vmatmul.mubr.bf16.gmra.mrb[0].mxu0 %v4542
    %v4769 = vpop.f32.mrb[0].mxu0
    %v4770 = vadd.f32 0.0, %v4769
    %v4771 = vpop.f32.mrb[0].mxu0
    %v4772 = vpop.f32.mrb[0].mxu0
    %v4773 = vadd.f32 0.0, %v4772
    %v4774 = vpop.f32.mrb[0].mxu0
    %4775 = vmatprep.mubr.bf16.mxu0 0
    %4776 = vmatmul.mubr.bf16.gmra.mrb[0].mxu0 %v4545
    %v4777 = vpop.f32.mrb[0].mxu0
    %v4778 = vadd.f32 0.0, %v4777
    %v4779 = vpop.f32.mrb[0].mxu0
    %v4780 = vpop.f32.mrb[0].mxu0
    %v4781 = vadd.f32 0.0, %v4780
    %v4782 = vpop.f32.mrb[0].mxu0
    %4783 = vmatprep.mubr.bf16.mxu0 0
    %4784 = vmatmul.mubr.bf16.gmra.mrb[0].mxu0 %v4548
    %v4785 = vpop.f32.mrb[0].mxu0
    %v4786 = vadd.f32 0.0, %v4785
    %v4787 = vpop.f32.mrb[0].mxu0
    %v4788 = vpop.f32.mrb[0].mxu0
    %v4789 = vadd.f32 0.0, %v4788
    %v4790 = vpop.f32.mrb[0].mxu0
    %4791 = vmatprep.mubr.bf16.mxu0 0
    %4792 = vmatmul.mubr.bf16.gmra.mrb[0].mxu0 %v4551
    %v4793 = vpop.f32.mrb[0].mxu0
    %v4794 = vadd.f32 0.0, %v4793
    %v4795 = vpop.f32.mrb[0].mxu0
    %v4796 = vpop.f32.mrb[0].mxu0
    %v4797 = vadd.f32 0.0, %v4796
    %v4798 = vpop.f32.mrb[0].mxu0
    %4799 = vmatprep.mubr.bf16.mxu0 0
    %4800 = vmatmul.mubr.bf16.gmra.mrb[0].mxu0 %v4554
    %v4801 = vpop.f32.mrb[0].mxu0
    %v4802 = vadd.f32 0.0, %v4801
    %v4803 = vpop.f32.mrb[0].mxu0
    %v4804 = vpop.f32.mrb[0].mxu0
    %v4805 = vadd.f32 0.0, %v4804
    %v4806 = vpop.f32.mrb[0].mxu0
    %4807 = vmatprep.mubr.bf16.mxu0 0
    %4808 = vmatmul.mubr.bf16.gmra.mrb[0].mxu0 %v4557
    %v4809 = vpop.f32.mrb[0].mxu0
    %v4810 = vadd.f32 0.0, %v4809
    %v4811 = vpop.f32.mrb[0].mxu0
    %v4812 = vpop.f32.mrb[0].mxu0
    %v4813 = vadd.f32 0.0, %v4812
    %v4814 = vpop.f32.mrb[0].mxu0
    %4815 = vmatprep.mubr.bf16.mxu0 0
    %4816 = vmatmul.mubr.bf16.gmra.mrb[0].mxu0 %v4560
    %v4817 = vpop.f32.mrb[0].mxu0
    %v4818 = vadd.f32 0.0, %v4817
    %v4819 = vpop.f32.mrb[0].mxu0
    %v4820 = vpop.f32.mrb[0].mxu0
    %v4821 = vadd.f32 0.0, %v4820
    %v4822 = vpop.f32.mrb[0].mxu0
    %4823 = vmatprep.mubr.bf16.mxu0 0
    %4824 = vmatmul.mubr.bf16.gmra.mrb[0].mxu0 %v4563
    %v4825 = vpop.f32.mrb[0].mxu0
    %v4826 = vadd.f32 0.0, %v4825
    %v4827 = vpop.f32.mrb[0].mxu0
    %v4828 = vpop.f32.mrb[0].mxu0
    %v4829 = vadd.f32 0.0, %v4828
    %v4830 = vpop.f32.mrb[0].mxu0
    %4831 = vmatprep.mubr.bf16.mxu0 0
    %4832 = vmatmul.mubr.bf16.gmra.mrb[0].mxu0 %v4566
    %v4833 = vpop.f32.mrb[0].mxu0
    %v4834 = vadd.f32 0.0, %v4833
    %v4835 = vpop.f32.mrb[0].mxu0
    %v4836 = vpop.f32.mrb[0].mxu0
    %v4837 = vadd.f32 0.0, %v4836
    %v4838 = vpop.f32.mrb[0].mxu0
    %4839 = vmatprep.mubr.bf16.mxu0 0
    %4840 = vmatmul.mubr.bf16.gmra.mrb[0].mxu0 %v4569
    %v4841 = vpop.f32.mrb[0].mxu0
    %v4842 = vadd.f32 0.0, %v4841
    %v4843 = vpop.f32.mrb[0].mxu0
    %v4844 = vpop.f32.mrb[0].mxu0
    %v4845 = vadd.f32 0.0, %v4844
    %v4846 = vpop.f32.mrb[0].mxu0
    %4847 = vmatprep.mubr.bf16.mxu0 0
    %4848 = vmatmul.mubr.bf16.gmra.mrb[0].mxu0 %v4572
    %v4849 = vpop.f32.mrb[0].mxu0
    %v4850 = vadd.f32 0.0, %v4849
    %v4851 = vpop.f32.mrb[0].mxu0
    %v4852 = vpop.f32.mrb[0].mxu0
    %v4853 = vadd.f32 0.0, %v4852
    %v4854 = vpop.f32.mrb[0].mxu0
    %4855 = vmatprep.mubr.bf16.mxu0 0
    %4856 = vmatmul.mubr.bf16.gmra.mrb[0].mxu0 %v4575
    %v4857 = vpop.f32.mrb[0].mxu0
    %v4858 = vadd.f32 0.0, %v4857
    %v4859 = vpop.f32.mrb[0].mxu0
    %v4860 = vpop.f32.mrb[0].mxu0
    %v4861 = vadd.f32 0.0, %v4860
    %v4862 = vpop.f32.mrb[0].mxu0
    %4863 = vmatprep.mubr.bf16.mxu0 0
    %4864 = vmatmul.mubr.bf16.gmra.mrb[0].mxu0 %v4578
    %v4865 = vpop.f32.mrb[0].mxu0
    %v4866 = vadd.f32 0.0, %v4865
    %v4867 = vpop.f32.mrb[0].mxu0
    %v4868 = vpop.f32.mrb[0].mxu0
    %v4869 = vadd.f32 0.0, %v4868
    %v4870 = vpop.f32.mrb[0].mxu0
    %4871 = vdwg.mxu0
    %v4872 = vadd.f32 %v3970, %v4618
    %v4873 = vadd.f32 %v3971, %v4621
    %v4874 = vadd.f32 %v3972, %v4626
    %v4875 = vadd.f32 %v3973, %v4629
    %v4876 = vadd.f32 %v3974, %v4634
    %v4877 = vadd.f32 %v3975, %v4637
    %v4878 = vadd.f32 %v3976, %v4642
    %v4879 = vadd.f32 %v3977, %v4645
    %v4880 = vadd.f32 %v3978, %v4650
    %v4881 = vadd.f32 %v3979, %v4653
    %v4882 = vadd.f32 %v3980, %v4658
    %v4883 = vadd.f32 %v3981, %v4661
    %v4884 = vadd.f32 %v3982, %v4666
    %v4885 = vadd.f32 %v3983, %v4669
    %v4886 = vadd.f32 %v3984, %v4674
    %v4887 = vadd.f32 %v3985, %v4677
    %v4888 = vadd.f32 %v3986, %v4682
    %v4889 = vadd.f32 %v3987, %v4685
    %v4890 = vadd.f32 %v3988, %v4690
    %v4891 = vadd.f32 %v3989, %v4693
    %v4892 = vadd.f32 %v3990, %v4698
    %v4893 = vadd.f32 %v3991, %v4701
    %v4894 = vadd.f32 %v3992, %v4706
    %v4895 = vadd.f32 %v3993, %v4709
    %v4896 = vadd.f32 %v3994, %v4714
    %v4897 = vadd.f32 %v3995, %v4717
    %v4898 = vadd.f32 %v3996, %v4722
    %v4899 = vadd.f32 %v3997, %v4725
    %v4900 = vadd.f32 %v3998, %v4730
    %v4901 = vadd.f32 %v3999, %v4733
    %v4902 = vadd.f32 %v4000, %v4738
    %v4903 = vadd.f32 %v4001, %v4741
    %v4904 = vadd.f32 %v4002, %v4746
    %v4905 = vadd.f32 %v4003, %v4749
    %v4906 = vadd.f32 %v4004, %v4754
    %v4907 = vadd.f32 %v4005, %v4757
    %v4908 = vadd.f32 %v4006, %v4762
    %v4909 = vadd.f32 %v4007, %v4765
    %v4910 = vadd.f32 %v4008, %v4770
    %v4911 = vadd.f32 %v4009, %v4773
    %v4912 = vadd.f32 %v4010, %v4778
    %v4913 = vadd.f32 %v4011, %v4781
    %v4914 = vadd.f32 %v4012, %v4786
    %v4915 = vadd.f32 %v4013, %v4789
    %v4916 = vadd.f32 %v4014, %v4794
    %v4917 = vadd.f32 %v4015, %v4797
    %v4918 = vadd.f32 %v4016, %v4802
    %v4919 = vadd.f32 %v4017, %v4805
    %v4920 = vadd.f32 %v4018, %v4810
    %v4921 = vadd.f32 %v4019, %v4813
    %v4922 = vadd.f32 %v4020, %v4818
    %v4923 = vadd.f32 %v4021, %v4821
    %v4924 = vadd.f32 %v4022, %v4826
    %v4925 = vadd.f32 %v4023, %v4829
    %v4926 = vadd.f32 %v4024, %v4834
    %v4927 = vadd.f32 %v4025, %v4837
    %v4928 = vadd.f32 %v4026, %v4842
    %v4929 = vadd.f32 %v4027, %v4845
    %v4930 = vadd.f32 %v4028, %v4850
    %v4931 = vadd.f32 %v4029, %v4853
    %v4932 = vadd.f32 %v4030, %v4858
    %v4933 = vadd.f32 %v4031, %v4861
    %v4934 = vadd.f32 %v4032, %v4866
    %v4935 = vadd.f32 %v4033, %v4869
    %s4936 = scalar_lea.vmem %s0, 48
    %v4937 = vld [vmem:[%s4936] sm:$0xf]
    %v4938 = vld [vmem:[%s4936 + $0x4] sm:$0xf]
    %v4939 = vld [vmem:[%s4936 + $0xc] sm:$0xf]
    %v4940 = vld [vmem:[%s4936 + $0x10] sm:$0xf]
    %v4941 = vld [vmem:[%s4936 + $0x18] sm:$0xf]
    %v4942 = vld [vmem:[%s4936 + $0x1c] sm:$0xf]
    %v4943 = vld [vmem:[%s4936 + $0x24] sm:$0xf]
    %v4944 = vld [vmem:[%s4936 + $0x28] sm:$0xf]
    %v4945 = vld [vmem:[%s4936 + $0x30] sm:$0xf]
    %v4946 = vld [vmem:[%s4936 + $0x34] sm:$0xf]
    %v4947 = vld [vmem:[%s4936 + $0x3c] sm:$0xf]
    %v4948 = vld [vmem:[%s4936 + $0x40] sm:$0xf]
    %v4949 = vld [vmem:[%s4936 + $0x48] sm:$0xf]
    %v4950 = vld [vmem:[%s4936 + $0x4c] sm:$0xf]
    %v4951 = vld [vmem:[%s4936 + $0x54] sm:$0xf]
    %v4952 = vld [vmem:[%s4936 + $0x58] sm:$0xf]
    %v4953 = vld [vmem:[%s4936 + $0x60] sm:$0xf]
    %v4954 = vld [vmem:[%s4936 + $0x64] sm:$0xf]
    %v4955 = vld [vmem:[%s4936 + $0x6c] sm:$0xf]
    %v4956 = vld [vmem:[%s4936 + $0x70] sm:$0xf]
    %v4957 = vld [vmem:[%s4936 + $0x78] sm:$0xf]
    %v4958 = vld [vmem:[%s4936 + $0x7c] sm:$0xf]
    %v4959 = vld [vmem:[%s4936 + $0x84] sm:$0xf]
    %v4960 = vld [vmem:[%s4936 + $0x88] sm:$0xf]
    %v4961 = vld [vmem:[%s4936 + $0x90] sm:$0xf]
    %v4962 = vld [vmem:[%s4936 + $0x94] sm:$0xf]
    %v4963 = vld [vmem:[%s4936 + $0x9c] sm:$0xf]
    %v4964 = vld [vmem:[%s4936 + $0xa0] sm:$0xf]
    %v4965 = vld [vmem:[%s4936 + $0xa8] sm:$0xf]
    %v4966 = vld [vmem:[%s4936 + $0xac] sm:$0xf]
    %v4967 = vld [vmem:[%s4936 + $0xb4] sm:$0xf]
    %v4968 = vld [vmem:[%s4936 + $0xb8] sm:$0xf]
    %v4969 = vld [vmem:[%s4936 + $0xf0] sm:$0xf]
    %v4970 = vld [vmem:[%s4936 + $0xf4] sm:$0xf]
    %v4971 = vld [vmem:[%s4936 + $0xfc] sm:$0xf]
    %v4972 = vld [vmem:[%s4936 + $0x100] sm:$0xf]
    %v4973 = vld [vmem:[%s4936 + $0x108] sm:$0xf]
    %v4974 = vld [vmem:[%s4936 + $0x10c] sm:$0xf]
    %v4975 = vld [vmem:[%s4936 + $0x114] sm:$0xf]
    %v4976 = vld [vmem:[%s4936 + $0x118] sm:$0xf]
    %v4977 = vld [vmem:[%s4936 + $0x120] sm:$0xf]
    %v4978 = vld [vmem:[%s4936 + $0x124] sm:$0xf]
    %v4979 = vld [vmem:[%s4936 + $0x12c] sm:$0xf]
    %v4980 = vld [vmem:[%s4936 + $0x130] sm:$0xf]
    %v4981 = vld [vmem:[%s4936 + $0x138] sm:$0xf]
    %v4982 = vld [vmem:[%s4936 + $0x13c] sm:$0xf]
    %v4983 = vld [vmem:[%s4936 + $0x144] sm:$0xf]
    %v4984 = vld [vmem:[%s4936 + $0x148] sm:$0xf]
    %v4985 = vld [vmem:[%s4936 + $0x150] sm:$0xf]
    %v4986 = vld [vmem:[%s4936 + $0x154] sm:$0xf]
    %v4987 = vld [vmem:[%s4936 + $0x15c] sm:$0xf]
    %v4988 = vld [vmem:[%s4936 + $0x160] sm:$0xf]
    %v4989 = vld [vmem:[%s4936 + $0x168] sm:$0xf]
    %v4990 = vld [vmem:[%s4936 + $0x16c] sm:$0xf]
    %v4991 = vld [vmem:[%s4936 + $0x174] sm:$0xf]
    %v4992 = vld [vmem:[%s4936 + $0x178] sm:$0xf]
    %v4993 = vld [vmem:[%s4936 + $0x180] sm:$0xf]
    %v4994 = vld [vmem:[%s4936 + $0x184] sm:$0xf]
    %v4995 = vld [vmem:[%s4936 + $0x18c] sm:$0xf]
    %v4996 = vld [vmem:[%s4936 + $0x190] sm:$0xf]
    %v4997 = vld [vmem:[%s4936 + $0x198] sm:$0xf]
    %v4998 = vld [vmem:[%s4936 + $0x19c] sm:$0xf]
    %v4999 = vld [vmem:[%s4936 + $0x1a4] sm:$0xf]
    %v5000 = vld [vmem:[%s4936 + $0x1a8] sm:$0xf]
    %s5001 = scalar_lea.vmem %s1, 12
    %v5002 = vld [vmem:[%s5001] sm:$0x3]
    %v5067 = vunpack.c.l.b16 %v4937
    %v5068 = vunpack.c.l.b16 %v4938
    %v5069 = vunpack.c.l.b16 %v4939
    %v5070 = vunpack.c.l.b16 %v4940
    %v5071 = vunpack.c.l.b16 %v4941
    %v5072 = vunpack.c.l.b16 %v4942
    %v5073 = vunpack.c.l.b16 %v4943
    %v5074 = vunpack.c.l.b16 %v4944
    %v5075 = vunpack.c.l.b16 %v4945
    %v5076 = vunpack.c.l.b16 %v4946
    %v5077 = vunpack.c.l.b16 %v4947
    %v5078 = vunpack.c.l.b16 %v4948
    %v5079 = vunpack.c.l.b16 %v4949
    %v5080 = vunpack.c.l.b16 %v4950
    %v5081 = vunpack.c.l.b16 %v4951
    %v5082 = vunpack.c.l.b16 %v4952
    %v5083 = vunpack.c.l.b16 %v4953
    %v5084 = vunpack.c.l.b16 %v4954
    %v5085 = vunpack.c.l.b16 %v4955
    %v5086 = vunpack.c.l.b16 %v4956
    %v5087 = vunpack.c.l.b16 %v4957
    %v5088 = vunpack.c.l.b16 %v4958
    %v5089 = vunpack.c.l.b16 %v4959
    %v5090 = vunpack.c.l.b16 %v4960
    %v5091 = vunpack.c.l.b16 %v4961
    %v5092 = vunpack.c.l.b16 %v4962
    %v5093 = vunpack.c.l.b16 %v4963
    %v5094 = vunpack.c.l.b16 %v4964
    %v5095 = vunpack.c.l.b16 %v4965
    %v5096 = vunpack.c.l.b16 %v4966
    %v5097 = vunpack.c.l.b16 %v4967
    %v5098 = vunpack.c.l.b16 %v4968
    %v5099 = vunpack.c.l.b16 %v4969
    %v5100 = vunpack.c.l.b16 %v4970
    %v5101 = vunpack.c.l.b16 %v4971
    %v5102 = vunpack.c.l.b16 %v4972
    %v5103 = vunpack.c.l.b16 %v4973
    %v5104 = vunpack.c.l.b16 %v4974
    %v5105 = vunpack.c.l.b16 %v4975
    %v5106 = vunpack.c.l.b16 %v4976
    %v5107 = vunpack.c.l.b16 %v4977
    %v5108 = vunpack.c.l.b16 %v4978
    %v5109 = vunpack.c.l.b16 %v4979
    %v5110 = vunpack.c.l.b16 %v4980
    %v5111 = vunpack.c.l.b16 %v4981
    %v5112 = vunpack.c.l.b16 %v4982
    %v5113 = vunpack.c.l.b16 %v4983
    %v5114 = vunpack.c.l.b16 %v4984
    %v5115 = vunpack.c.l.b16 %v4985
    %v5116 = vunpack.c.l.b16 %v4986
    %v5117 = vunpack.c.l.b16 %v4987
    %v5118 = vunpack.c.l.b16 %v4988
    %v5119 = vunpack.c.l.b16 %v4989
    %v5120 = vunpack.c.l.b16 %v4990
    %v5121 = vunpack.c.l.b16 %v4991
    %v5122 = vunpack.c.l.b16 %v4992
    %v5123 = vunpack.c.l.b16 %v4993
    %v5124 = vunpack.c.l.b16 %v4994
    %v5125 = vunpack.c.l.b16 %v4995
    %v5126 = vunpack.c.l.b16 %v4996
    %v5127 = vunpack.c.l.b16 %v4997
    %v5128 = vunpack.c.l.b16 %v4998
    %v5129 = vunpack.c.l.b16 %v4999
    %v5130 = vunpack.c.l.b16 %v5000
    %v5131 = vpack.c.b16 %v5068, %v5067
    %v5132 = vpack.c.b16 %v5070, %v5069
    %v5133 = vpack.c.b16 %v5072, %v5071
    %v5134 = vpack.c.b16 %v5074, %v5073
    %v5135 = vpack.c.b16 %v5076, %v5075
    %v5136 = vpack.c.b16 %v5078, %v5077
    %v5137 = vpack.c.b16 %v5080, %v5079
    %v5138 = vpack.c.b16 %v5082, %v5081
    %v5139 = vpack.c.b16 %v5084, %v5083
    %v5140 = vpack.c.b16 %v5086, %v5085
    %v5141 = vpack.c.b16 %v5088, %v5087
    %v5142 = vpack.c.b16 %v5090, %v5089
    %v5143 = vpack.c.b16 %v5092, %v5091
    %v5144 = vpack.c.b16 %v5094, %v5093
    %v5145 = vpack.c.b16 %v5096, %v5095
    %v5146 = vpack.c.b16 %v5098, %v5097
    %v5147 = vpack.c.b16 %v5100, %v5099
    %v5148 = vpack.c.b16 %v5102, %v5101
    %v5149 = vpack.c.b16 %v5104, %v5103
    %v5150 = vpack.c.b16 %v5106, %v5105
    %v5151 = vpack.c.b16 %v5108, %v5107
    %v5152 = vpack.c.b16 %v5110, %v5109
    %v5153 = vpack.c.b16 %v5112, %v5111
    %v5154 = vpack.c.b16 %v5114, %v5113
    %v5155 = vpack.c.b16 %v5116, %v5115
    %v5156 = vpack.c.b16 %v5118, %v5117
    %v5157 = vpack.c.b16 %v5120, %v5119
    %v5158 = vpack.c.b16 %v5122, %v5121
    %v5159 = vpack.c.b16 %v5124, %v5123
    %v5160 = vpack.c.b16 %v5126, %v5125
    %v5161 = vpack.c.b16 %v5128, %v5127
    %v5162 = vpack.c.b16 %v5130, %v5129
    %v5164 = vsel %vm578, %v5131, 0
    %v5167 = vsel %vm578, %v5132, 0
    %v5170 = vsel %vm578, %v5133, 0
    %v5173 = vsel %vm578, %v5134, 0
    %v5176 = vsel %vm578, %v5135, 0
    %v5179 = vsel %vm578, %v5136, 0
    %v5182 = vsel %vm578, %v5137, 0
    %v5185 = vsel %vm578, %v5138, 0
    %v5188 = vsel %vm578, %v5139, 0
    %v5191 = vsel %vm578, %v5140, 0
    %v5194 = vsel %vm578, %v5141, 0
    %v5197 = vsel %vm578, %v5142, 0
    %v5200 = vsel %vm578, %v5143, 0
    %v5203 = vsel %vm578, %v5144, 0
    %v5206 = vsel %vm578, %v5145, 0
    %v5209 = vsel %vm578, %v5146, 0
    %v5212 = vsel %vm578, %v5147, 0
    %v5215 = vsel %vm578, %v5148, 0
    %v5218 = vsel %vm578, %v5149, 0
    %v5221 = vsel %vm578, %v5150, 0
    %v5224 = vsel %vm578, %v5151, 0
    %v5227 = vsel %vm578, %v5152, 0
    %v5230 = vsel %vm578, %v5153, 0
    %v5233 = vsel %vm578, %v5154, 0
    %v5236 = vsel %vm578, %v5155, 0
    %v5239 = vsel %vm578, %v5156, 0
    %v5242 = vsel %vm578, %v5157, 0
    %v5245 = vsel %vm578, %v5158, 0
    %v5248 = vsel %vm578, %v5159, 0
    %v5251 = vsel %vm578, %v5160, 0
    %v5254 = vsel %vm578, %v5161, 0
    %v5257 = vsel %vm578, %v5162, 0
    %v5260 = vsel %vm675, %v5002, 0
    %5262 = vmatprep.subr.bf16.mxu0 0
    %5263 = vmatpush1.bf16.msra.mxu0 %v5260
    %5264 = vmatprep.subr.bf16.mxu0 0
    %5265 = vmatpush1.bf16.msra.mxu0 0
    %5266 = vmatprep.subr.bf16.mxu0 0
    %5267 = vmatpush1.bf16.msra.mxu0 0
    %5268 = vmatprep.subr.bf16.mxu0 0
    %5269 = vmatpush1.bf16.msra.mxu0 0
    %5270 = vmatprep.subr.bf16.mxu0 0
    %5271 = vmatpush1.bf16.msra.mxu0 0
    %5272 = vmatprep.subr.bf16.mxu0 0
    %5273 = vmatpush1.bf16.msra.mxu0 0
    %5274 = vmatprep.subr.bf16.mxu0 0
    %5275 = vmatpush1.bf16.msra.mxu0 0
    %5276 = vmatprep.subr.bf16.mxu0 0
    %5277 = vmatpush1.bf16.msra.mxu0 0
    %5278 = vmatprep.subr.bf16.mxu0 0
    %5279 = vmatpush1.bf16.msra.mxu0 0
    %5280 = vmatprep.subr.bf16.mxu0 0
    %5281 = vmatpush1.bf16.msra.mxu0 0
    %5282 = vmatprep.subr.bf16.mxu0 0
    %5283 = vmatpush1.bf16.msra.mxu0 0
    %5284 = vmatprep.subr.bf16.mxu0 0
    %5285 = vmatpush1.bf16.msra.mxu0 0
    %5286 = vmatprep.subr.bf16.mxu0 0
    %5287 = vmatpush1.bf16.msra.mxu0 0
    %5288 = vmatprep.subr.bf16.mxu0 0
    %5289 = vmatpush1.bf16.msra.mxu0 0
    %5290 = vmatprep.subr.bf16.mxu0 0
    %5291 = vmatpush1.bf16.msra.mxu0 0
    %5292 = vmatprep.subr.bf16.mxu0 0
    %5293 = vmatpush1.bf16.msra.mxu0 0
    %5294 = vmatprep.mubr.bf16.mxu0 0
    %5295 = vmatmul.mubr.bf16.gmra.mrb[0].mxu0 %v5164
    %v5296 = vpop.f32.mrb[0].mxu0
    %v5297 = vadd.f32 0.0, %v5296
    %v5298 = vpop.f32.mrb[0].mxu0
    %v5299 = vpop.f32.mrb[0].mxu0
    %v5300 = vadd.f32 0.0, %v5299
    %v5301 = vpop.f32.mrb[0].mxu0
    %5302 = vmatprep.mubr.bf16.mxu0 0
    %5303 = vmatmul.mubr.bf16.gmra.mrb[0].mxu0 %v5167
    %v5304 = vpop.f32.mrb[0].mxu0
    %v5305 = vadd.f32 0.0, %v5304
    %v5306 = vpop.f32.mrb[0].mxu0
    %v5307 = vpop.f32.mrb[0].mxu0
    %v5308 = vadd.f32 0.0, %v5307
    %v5309 = vpop.f32.mrb[0].mxu0
    %5310 = vmatprep.mubr.bf16.mxu0 0
    %5311 = vmatmul.mubr.bf16.gmra.mrb[0].mxu0 %v5170
    %v5312 = vpop.f32.mrb[0].mxu0
    %v5313 = vadd.f32 0.0, %v5312
    %v5314 = vpop.f32.mrb[0].mxu0
    %v5315 = vpop.f32.mrb[0].mxu0
    %v5316 = vadd.f32 0.0, %v5315
    %v5317 = vpop.f32.mrb[0].mxu0
    %5318 = vmatprep.mubr.bf16.mxu0 0
    %5319 = vmatmul.mubr.bf16.gmra.mrb[0].mxu0 %v5173
    %v5320 = vpop.f32.mrb[0].mxu0
    %v5321 = vadd.f32 0.0, %v5320
    %v5322 = vpop.f32.mrb[0].mxu0
    %v5323 = vpop.f32.mrb[0].mxu0
    %v5324 = vadd.f32 0.0, %v5323
    %v5325 = vpop.f32.mrb[0].mxu0
    %5326 = vmatprep.mubr.bf16.mxu0 0
    %5327 = vmatmul.mubr.bf16.gmra.mrb[0].mxu0 %v5176
    %v5328 = vpop.f32.mrb[0].mxu0
    %v5329 = vadd.f32 0.0, %v5328
    %v5330 = vpop.f32.mrb[0].mxu0
    %v5331 = vpop.f32.mrb[0].mxu0
    %v5332 = vadd.f32 0.0, %v5331
    %v5333 = vpop.f32.mrb[0].mxu0
    %5334 = vmatprep.mubr.bf16.mxu0 0
    %5335 = vmatmul.mubr.bf16.gmra.mrb[0].mxu0 %v5179
    %v5336 = vpop.f32.mrb[0].mxu0
    %v5337 = vadd.f32 0.0, %v5336
    %v5338 = vpop.f32.mrb[0].mxu0
    %v5339 = vpop.f32.mrb[0].mxu0
    %v5340 = vadd.f32 0.0, %v5339
    %v5341 = vpop.f32.mrb[0].mxu0
    %5342 = vmatprep.mubr.bf16.mxu0 0
    %5343 = vmatmul.mubr.bf16.gmra.mrb[0].mxu0 %v5182
    %v5344 = vpop.f32.mrb[0].mxu0
    %v5345 = vadd.f32 0.0, %v5344
    %v5346 = vpop.f32.mrb[0].mxu0
    %v5347 = vpop.f32.mrb[0].mxu0
    %v5348 = vadd.f32 0.0, %v5347
    %v5349 = vpop.f32.mrb[0].mxu0
    %5350 = vmatprep.mubr.bf16.mxu0 0
    %5351 = vmatmul.mubr.bf16.gmra.mrb[0].mxu0 %v5185
    %v5352 = vpop.f32.mrb[0].mxu0
    %v5353 = vadd.f32 0.0, %v5352
    %v5354 = vpop.f32.mrb[0].mxu0
    %v5355 = vpop.f32.mrb[0].mxu0
    %v5356 = vadd.f32 0.0, %v5355
    %v5357 = vpop.f32.mrb[0].mxu0
    %5358 = vmatprep.mubr.bf16.mxu0 0
    %5359 = vmatmul.mubr.bf16.gmra.mrb[0].mxu0 %v5188
    %v5360 = vpop.f32.mrb[0].mxu0
    %v5361 = vadd.f32 0.0, %v5360
    %v5362 = vpop.f32.mrb[0].mxu0
    %v5363 = vpop.f32.mrb[0].mxu0
    %v5364 = vadd.f32 0.0, %v5363
    %v5365 = vpop.f32.mrb[0].mxu0
    %5366 = vmatprep.mubr.bf16.mxu0 0
    %5367 = vmatmul.mubr.bf16.gmra.mrb[0].mxu0 %v5191
    %v5368 = vpop.f32.mrb[0].mxu0
    %v5369 = vadd.f32 0.0, %v5368
    %v5370 = vpop.f32.mrb[0].mxu0
    %v5371 = vpop.f32.mrb[0].mxu0
    %v5372 = vadd.f32 0.0, %v5371
    %v5373 = vpop.f32.mrb[0].mxu0
    %5374 = vmatprep.mubr.bf16.mxu0 0
    %5375 = vmatmul.mubr.bf16.gmra.mrb[0].mxu0 %v5194
    %v5376 = vpop.f32.mrb[0].mxu0
    %v5377 = vadd.f32 0.0, %v5376
    %v5378 = vpop.f32.mrb[0].mxu0
    %v5379 = vpop.f32.mrb[0].mxu0
    %v5380 = vadd.f32 0.0, %v5379
    %v5381 = vpop.f32.mrb[0].mxu0
    %5382 = vmatprep.mubr.bf16.mxu0 0
    %5383 = vmatmul.mubr.bf16.gmra.mrb[0].mxu0 %v5197
    %v5384 = vpop.f32.mrb[0].mxu0
    %v5385 = vadd.f32 0.0, %v5384
    %v5386 = vpop.f32.mrb[0].mxu0
    %v5387 = vpop.f32.mrb[0].mxu0
    %v5388 = vadd.f32 0.0, %v5387
    %v5389 = vpop.f32.mrb[0].mxu0
    %5390 = vmatprep.mubr.bf16.mxu0 0
    %5391 = vmatmul.mubr.bf16.gmra.mrb[0].mxu0 %v5200
    %v5392 = vpop.f32.mrb[0].mxu0
    %v5393 = vadd.f32 0.0, %v5392
    %v5394 = vpop.f32.mrb[0].mxu0
    %v5395 = vpop.f32.mrb[0].mxu0
    %v5396 = vadd.f32 0.0, %v5395
    %v5397 = vpop.f32.mrb[0].mxu0
    %5398 = vmatprep.mubr.bf16.mxu0 0
    %5399 = vmatmul.mubr.bf16.gmra.mrb[0].mxu0 %v5203
    %v5400 = vpop.f32.mrb[0].mxu0
    %v5401 = vadd.f32 0.0, %v5400
    %v5402 = vpop.f32.mrb[0].mxu0
    %v5403 = vpop.f32.mrb[0].mxu0
    %v5404 = vadd.f32 0.0, %v5403
    %v5405 = vpop.f32.mrb[0].mxu0
    %5406 = vmatprep.mubr.bf16.mxu0 0
    %5407 = vmatmul.mubr.bf16.gmra.mrb[0].mxu0 %v5206
    %v5408 = vpop.f32.mrb[0].mxu0
    %v5409 = vadd.f32 0.0, %v5408
    %v5410 = vpop.f32.mrb[0].mxu0
    %v5411 = vpop.f32.mrb[0].mxu0
    %v5412 = vadd.f32 0.0, %v5411
    %v5413 = vpop.f32.mrb[0].mxu0
    %5414 = vmatprep.mubr.bf16.mxu0 0
    %5415 = vmatmul.mubr.bf16.gmra.mrb[0].mxu0 %v5209
    %v5416 = vpop.f32.mrb[0].mxu0
    %v5417 = vadd.f32 0.0, %v5416
    %v5418 = vpop.f32.mrb[0].mxu0
    %v5419 = vpop.f32.mrb[0].mxu0
    %v5420 = vadd.f32 0.0, %v5419
    %v5421 = vpop.f32.mrb[0].mxu0
    %5422 = vmatprep.mubr.bf16.mxu0 0
    %5423 = vmatmul.mubr.bf16.gmra.mrb[0].mxu0 %v5212
    %v5424 = vpop.f32.mrb[0].mxu0
    %v5425 = vadd.f32 0.0, %v5424
    %v5426 = vpop.f32.mrb[0].mxu0
    %v5427 = vpop.f32.mrb[0].mxu0
    %v5428 = vadd.f32 0.0, %v5427
    %v5429 = vpop.f32.mrb[0].mxu0
    %5430 = vmatprep.mubr.bf16.mxu0 0
    %5431 = vmatmul.mubr.bf16.gmra.mrb[0].mxu0 %v5215
    %v5432 = vpop.f32.mrb[0].mxu0
    %v5433 = vadd.f32 0.0, %v5432
    %v5434 = vpop.f32.mrb[0].mxu0
    %v5435 = vpop.f32.mrb[0].mxu0
    %v5436 = vadd.f32 0.0, %v5435
    %v5437 = vpop.f32.mrb[0].mxu0
    %5438 = vmatprep.mubr.bf16.mxu0 0
    %5439 = vmatmul.mubr.bf16.gmra.mrb[0].mxu0 %v5218
    %v5440 = vpop.f32.mrb[0].mxu0
    %v5441 = vadd.f32 0.0, %v5440
    %v5442 = vpop.f32.mrb[0].mxu0
    %v5443 = vpop.f32.mrb[0].mxu0
    %v5444 = vadd.f32 0.0, %v5443
    %v5445 = vpop.f32.mrb[0].mxu0
    %5446 = vmatprep.mubr.bf16.mxu0 0
    %5447 = vmatmul.mubr.bf16.gmra.mrb[0].mxu0 %v5221
    %v5448 = vpop.f32.mrb[0].mxu0
    %v5449 = vadd.f32 0.0, %v5448
    %v5450 = vpop.f32.mrb[0].mxu0
    %v5451 = vpop.f32.mrb[0].mxu0
    %v5452 = vadd.f32 0.0, %v5451
    %v5453 = vpop.f32.mrb[0].mxu0
    %5454 = vmatprep.mubr.bf16.mxu0 0
    %5455 = vmatmul.mubr.bf16.gmra.mrb[0].mxu0 %v5224
    %v5456 = vpop.f32.mrb[0].mxu0
    %v5457 = vadd.f32 0.0, %v5456
    %v5458 = vpop.f32.mrb[0].mxu0
    %v5459 = vpop.f32.mrb[0].mxu0
    %v5460 = vadd.f32 0.0, %v5459
    %v5461 = vpop.f32.mrb[0].mxu0
    %5462 = vmatprep.mubr.bf16.mxu0 0
    %5463 = vmatmul.mubr.bf16.gmra.mrb[0].mxu0 %v5227
    %v5464 = vpop.f32.mrb[0].mxu0
    %v5465 = vadd.f32 0.0, %v5464
    %v5466 = vpop.f32.mrb[0].mxu0
    %v5467 = vpop.f32.mrb[0].mxu0
    %v5468 = vadd.f32 0.0, %v5467
    %v5469 = vpop.f32.mrb[0].mxu0
    %5470 = vmatprep.mubr.bf16.mxu0 0
    %5471 = vmatmul.mubr.bf16.gmra.mrb[0].mxu0 %v5230
    %v5472 = vpop.f32.mrb[0].mxu0
    %v5473 = vadd.f32 0.0, %v5472
    %v5474 = vpop.f32.mrb[0].mxu0
    %v5475 = vpop.f32.mrb[0].mxu0
    %v5476 = vadd.f32 0.0, %v5475
    %v5477 = vpop.f32.mrb[0].mxu0
    %5478 = vmatprep.mubr.bf16.mxu0 0
    %5479 = vmatmul.mubr.bf16.gmra.mrb[0].mxu0 %v5233
    %v5480 = vpop.f32.mrb[0].mxu0
    %v5481 = vadd.f32 0.0, %v5480
    %v5482 = vpop.f32.mrb[0].mxu0
    %v5483 = vpop.f32.mrb[0].mxu0
    %v5484 = vadd.f32 0.0, %v5483
    %v5485 = vpop.f32.mrb[0].mxu0
    %5486 = vmatprep.mubr.bf16.mxu0 0
    %5487 = vmatmul.mubr.bf16.gmra.mrb[0].mxu0 %v5236
    %v5488 = vpop.f32.mrb[0].mxu0
    %v5489 = vadd.f32 0.0, %v5488
    %v5490 = vpop.f32.mrb[0].mxu0
    %v5491 = vpop.f32.mrb[0].mxu0
    %v5492 = vadd.f32 0.0, %v5491
    %v5493 = vpop.f32.mrb[0].mxu0
    %5494 = vmatprep.mubr.bf16.mxu0 0
    %5495 = vmatmul.mubr.bf16.gmra.mrb[0].mxu0 %v5239
    %v5496 = vpop.f32.mrb[0].mxu0
    %v5497 = vadd.f32 0.0, %v5496
    %v5498 = vpop.f32.mrb[0].mxu0
    %v5499 = vpop.f32.mrb[0].mxu0
    %v5500 = vadd.f32 0.0, %v5499
    %v5501 = vpop.f32.mrb[0].mxu0
    %5502 = vmatprep.mubr.bf16.mxu0 0
    %5503 = vmatmul.mubr.bf16.gmra.mrb[0].mxu0 %v5242
    %v5504 = vpop.f32.mrb[0].mxu0
    %v5505 = vadd.f32 0.0, %v5504
    %v5506 = vpop.f32.mrb[0].mxu0
    %v5507 = vpop.f32.mrb[0].mxu0
    %v5508 = vadd.f32 0.0, %v5507
    %v5509 = vpop.f32.mrb[0].mxu0
    %5510 = vmatprep.mubr.bf16.mxu0 0
    %5511 = vmatmul.mubr.bf16.gmra.mrb[0].mxu0 %v5245
    %v5512 = vpop.f32.mrb[0].mxu0
    %v5513 = vadd.f32 0.0, %v5512
    %v5514 = vpop.f32.mrb[0].mxu0
    %v5515 = vpop.f32.mrb[0].mxu0
    %v5516 = vadd.f32 0.0, %v5515
    %v5517 = vpop.f32.mrb[0].mxu0
    %5518 = vmatprep.mubr.bf16.mxu0 0
    %5519 = vmatmul.mubr.bf16.gmra.mrb[0].mxu0 %v5248
    %v5520 = vpop.f32.mrb[0].mxu0
    %v5521 = vadd.f32 0.0, %v5520
    %v5522 = vpop.f32.mrb[0].mxu0
    %v5523 = vpop.f32.mrb[0].mxu0
    %v5524 = vadd.f32 0.0, %v5523
    %v5525 = vpop.f32.mrb[0].mxu0
    %5526 = vmatprep.mubr.bf16.mxu0 0
    %5527 = vmatmul.mubr.bf16.gmra.mrb[0].mxu0 %v5251
    %v5528 = vpop.f32.mrb[0].mxu0
    %v5529 = vadd.f32 0.0, %v5528
    %v5530 = vpop.f32.mrb[0].mxu0
    %v5531 = vpop.f32.mrb[0].mxu0
    %v5532 = vadd.f32 0.0, %v5531
    %v5533 = vpop.f32.mrb[0].mxu0
    %5534 = vmatprep.mubr.bf16.mxu0 0
    %5535 = vmatmul.mubr.bf16.gmra.mrb[0].mxu0 %v5254
    %v5536 = vpop.f32.mrb[0].mxu0
    %v5537 = vadd.f32 0.0, %v5536
    %v5538 = vpop.f32.mrb[0].mxu0
    %v5539 = vpop.f32.mrb[0].mxu0
    %v5540 = vadd.f32 0.0, %v5539
    %v5541 = vpop.f32.mrb[0].mxu0
    %5542 = vmatprep.mubr.bf16.mxu0 0
    %5543 = vmatmul.mubr.bf16.gmra.mrb[0].mxu0 %v5257
    %v5544 = vpop.f32.mrb[0].mxu0
    %v5545 = vadd.f32 0.0, %v5544
    %v5546 = vpop.f32.mrb[0].mxu0
    %v5547 = vpop.f32.mrb[0].mxu0
    %v5548 = vadd.f32 0.0, %v5547
    %v5549 = vpop.f32.mrb[0].mxu0
    %5550 = vdwg.mxu0
    %v5551 = vadd.f32 %v4872, %v5297
    %v5552 = vadd.f32 %v4873, %v5300
    %v5553 = vadd.f32 %v4874, %v5305
    %v5554 = vadd.f32 %v4875, %v5308
    %v5555 = vadd.f32 %v4876, %v5313
    %v5556 = vadd.f32 %v4877, %v5316
    %v5557 = vadd.f32 %v4878, %v5321
    %v5558 = vadd.f32 %v4879, %v5324
    %v5559 = vadd.f32 %v4880, %v5329
    %v5560 = vadd.f32 %v4881, %v5332
    %v5561 = vadd.f32 %v4882, %v5337
    %v5562 = vadd.f32 %v4883, %v5340
    %v5563 = vadd.f32 %v4884, %v5345
    %v5564 = vadd.f32 %v4885, %v5348
    %v5565 = vadd.f32 %v4886, %v5353
    %v5566 = vadd.f32 %v4887, %v5356
    %v5567 = vadd.f32 %v4888, %v5361
    %v5568 = vadd.f32 %v4889, %v5364
    %v5569 = vadd.f32 %v4890, %v5369
    %v5570 = vadd.f32 %v4891, %v5372
    %v5571 = vadd.f32 %v4892, %v5377
    %v5572 = vadd.f32 %v4893, %v5380
    %v5573 = vadd.f32 %v4894, %v5385
    %v5574 = vadd.f32 %v4895, %v5388
    %v5575 = vadd.f32 %v4896, %v5393
    %v5576 = vadd.f32 %v4897, %v5396
    %v5577 = vadd.f32 %v4898, %v5401
    %v5578 = vadd.f32 %v4899, %v5404
    %v5579 = vadd.f32 %v4900, %v5409
    %v5580 = vadd.f32 %v4901, %v5412
    %v5581 = vadd.f32 %v4902, %v5417
    %v5582 = vadd.f32 %v4903, %v5420
    %v5583 = vadd.f32 %v4904, %v5425
    %v5584 = vadd.f32 %v4905, %v5428
    %v5585 = vadd.f32 %v4906, %v5433
    %v5586 = vadd.f32 %v4907, %v5436
    %v5587 = vadd.f32 %v4908, %v5441
    %v5588 = vadd.f32 %v4909, %v5444
    %v5589 = vadd.f32 %v4910, %v5449
    %v5590 = vadd.f32 %v4911, %v5452
    %v5591 = vadd.f32 %v4912, %v5457
    %v5592 = vadd.f32 %v4913, %v5460
    %v5593 = vadd.f32 %v4914, %v5465
    %v5594 = vadd.f32 %v4915, %v5468
    %v5595 = vadd.f32 %v4916, %v5473
    %v5596 = vadd.f32 %v4917, %v5476
    %v5597 = vadd.f32 %v4918, %v5481
    %v5598 = vadd.f32 %v4919, %v5484
    %v5599 = vadd.f32 %v4920, %v5489
    %v5600 = vadd.f32 %v4921, %v5492
    %v5601 = vadd.f32 %v4922, %v5497
    %v5602 = vadd.f32 %v4923, %v5500
    %v5603 = vadd.f32 %v4924, %v5505
    %v5604 = vadd.f32 %v4925, %v5508
    %v5605 = vadd.f32 %v4926, %v5513
    %v5606 = vadd.f32 %v4927, %v5516
    %v5607 = vadd.f32 %v4928, %v5521
    %v5608 = vadd.f32 %v4929, %v5524
    %v5609 = vadd.f32 %v4930, %v5529
    %v5610 = vadd.f32 %v4931, %v5532
    %v5611 = vadd.f32 %v4932, %v5537
    %v5612 = vadd.f32 %v4933, %v5540
    %v5613 = vadd.f32 %v4934, %v5545
    %v5614 = vadd.f32 %v4935, %v5548
    %v5615 = vld [vmem:[%s4936] sm:$0xe]
    %v5616 = vld [vmem:[%s4936 + $0x4] sm:$0xf]
    %v5617 = vld [vmem:[%s4936 + $0x8] sm:$0x1]
    %v5618 = vld [vmem:[%s4936 + $0xc] sm:$0xe]
    %v5619 = vld [vmem:[%s4936 + $0x10] sm:$0xf]
    %v5620 = vld [vmem:[%s4936 + $0x14] sm:$0x1]
    %v5621 = vld [vmem:[%s4936 + $0x18] sm:$0xe]
    %v5622 = vld [vmem:[%s4936 + $0x1c] sm:$0xf]
    %v5623 = vld [vmem:[%s4936 + $0x20] sm:$0x1]
    %v5624 = vld [vmem:[%s4936 + $0x24] sm:$0xe]
    %v5625 = vld [vmem:[%s4936 + $0x28] sm:$0xf]
    %v5626 = vld [vmem:[%s4936 + $0x2c] sm:$0x1]
    %v5627 = vld [vmem:[%s4936 + $0x30] sm:$0xe]
    %v5628 = vld [vmem:[%s4936 + $0x34] sm:$0xf]
    %v5629 = vld [vmem:[%s4936 + $0x38] sm:$0x1]
    %v5630 = vld [vmem:[%s4936 + $0x3c] sm:$0xe]
    %v5631 = vld [vmem:[%s4936 + $0x40] sm:$0xf]
    %v5632 = vld [vmem:[%s4936 + $0x44] sm:$0x1]
    %v5633 = vld [vmem:[%s4936 + $0x48] sm:$0xe]
    %v5634 = vld [vmem:[%s4936 + $0x4c] sm:$0xf]
    %v5635 = vld [vmem:[%s4936 + $0x50] sm:$0x1]
    %v5636 = vld [vmem:[%s4936 + $0x54] sm:$0xe]
    %v5637 = vld [vmem:[%s4936 + $0x58] sm:$0xf]
    %v5638 = vld [vmem:[%s4936 + $0x5c] sm:$0x1]
    %v5639 = vld [vmem:[%s4936 + $0x60] sm:$0xe]
    %v5640 = vld [vmem:[%s4936 + $0x64] sm:$0xf]
    %v5641 = vld [vmem:[%s4936 + $0x68] sm:$0x1]
    %v5642 = vld [vmem:[%s4936 + $0x6c] sm:$0xe]
    %v5643 = vld [vmem:[%s4936 + $0x70] sm:$0xf]
    %v5644 = vld [vmem:[%s4936 + $0x74] sm:$0x1]
    %v5645 = vld [vmem:[%s4936 + $0x78] sm:$0xe]
    %v5646 = vld [vmem:[%s4936 + $0x7c] sm:$0xf]
    %v5647 = vld [vmem:[%s4936 + $0x80] sm:$0x1]
    %v5648 = vld [vmem:[%s4936 + $0x84] sm:$0xe]
    %v5649 = vld [vmem:[%s4936 + $0x88] sm:$0xf]
    %v5650 = vld [vmem:[%s4936 + $0x8c] sm:$0x1]
    %v5651 = vld [vmem:[%s4936 + $0x90] sm:$0xe]
    %v5652 = vld [vmem:[%s4936 + $0x94] sm:$0xf]
    %v5653 = vld [vmem:[%s4936 + $0x98] sm:$0x1]
    %v5654 = vld [vmem:[%s4936 + $0x9c] sm:$0xe]
    %v5655 = vld [vmem:[%s4936 + $0xa0] sm:$0xf]
    %v5656 = vld [vmem:[%s4936 + $0xa4] sm:$0x1]
    %v5657 = vld [vmem:[%s4936 + $0xa8] sm:$0xe]
    %v5658 = vld [vmem:[%s4936 + $0xac] sm:$0xf]
    %v5659 = vld [vmem:[%s4936 + $0xb0] sm:$0x1]
    %v5660 = vld [vmem:[%s4936 + $0xb4] sm:$0xe]
    %v5661 = vld [vmem:[%s4936 + $0xb8] sm:$0xf]
    %v5662 = vld [vmem:[%s4936 + $0xbc] sm:$0x1]
    %v5663 = vld [vmem:[%s4936 + $0xf0] sm:$0xe]
    %v5664 = vld [vmem:[%s4936 + $0xf4] sm:$0xf]
    %v5665 = vld [vmem:[%s4936 + $0xf8] sm:$0x1]
    %v5666 = vld [vmem:[%s4936 + $0xfc] sm:$0xe]
    %v5667 = vld [vmem:[%s4936 + $0x100] sm:$0xf]
    %v5668 = vld [vmem:[%s4936 + $0x104] sm:$0x1]
    %v5669 = vld [vmem:[%s4936 + $0x108] sm:$0xe]
    %v5670 = vld [vmem:[%s4936 + $0x10c] sm:$0xf]
    %v5671 = vld [vmem:[%s4936 + $0x110] sm:$0x1]
    %v5672 = vld [vmem:[%s4936 + $0x114] sm:$0xe]
    %v5673 = vld [vmem:[%s4936 + $0x118] sm:$0xf]
    %v5674 = vld [vmem:[%s4936 + $0x11c] sm:$0x1]
    %v5675 = vld [vmem:[%s4936 + $0x120] sm:$0xe]
    %v5676 = vld [vmem:[%s4936 + $0x124] sm:$0xf]
    %v5677 = vld [vmem:[%s4936 + $0x128] sm:$0x1]
    %v5678 = vld [vmem:[%s4936 + $0x12c] sm:$0xe]
    %v5679 = vld [vmem:[%s4936 + $0x130] sm:$0xf]
    %v5680 = vld [vmem:[%s4936 + $0x134] sm:$0x1]
    %v5681 = vld [vmem:[%s4936 + $0x138] sm:$0xe]
    %v5682 = vld [vmem:[%s4936 + $0x13c] sm:$0xf]
    %v5683 = vld [vmem:[%s4936 + $0x140] sm:$0x1]
    %v5684 = vld [vmem:[%s4936 + $0x144] sm:$0xe]
    %v5685 = vld [vmem:[%s4936 + $0x148] sm:$0xf]
    %v5686 = vld [vmem:[%s4936 + $0x14c] sm:$0x1]
    %v5687 = vld [vmem:[%s4936 + $0x150] sm:$0xe]
    %v5688 = vld [vmem:[%s4936 + $0x154] sm:$0xf]
    %v5689 = vld [vmem:[%s4936 + $0x158] sm:$0x1]
    %v5690 = vld [vmem:[%s4936 + $0x15c] sm:$0xe]
    %v5691 = vld [vmem:[%s4936 + $0x160] sm:$0xf]
    %v5692 = vld [vmem:[%s4936 + $0x164] sm:$0x1]
    %v5693 = vld [vmem:[%s4936 + $0x168] sm:$0xe]
    %v5694 = vld [vmem:[%s4936 + $0x16c] sm:$0xf]
    %v5695 = vld [vmem:[%s4936 + $0x170] sm:$0x1]
    %v5696 = vld [vmem:[%s4936 + $0x174] sm:$0xe]
    %v5697 = vld [vmem:[%s4936 + $0x178] sm:$0xf]
    %v5698 = vld [vmem:[%s4936 + $0x17c] sm:$0x1]
    %v5699 = vld [vmem:[%s4936 + $0x180] sm:$0xe]
    %v5700 = vld [vmem:[%s4936 + $0x184] sm:$0xf]
    %v5701 = vld [vmem:[%s4936 + $0x188] sm:$0x1]
    %v5702 = vld [vmem:[%s4936 + $0x18c] sm:$0xe]
    %v5703 = vld [vmem:[%s4936 + $0x190] sm:$0xf]
    %v5704 = vld [vmem:[%s4936 + $0x194] sm:$0x1]
    %v5705 = vld [vmem:[%s4936 + $0x198] sm:$0xe]
    %v5706 = vld [vmem:[%s4936 + $0x19c] sm:$0xf]
    %v5707 = vld [vmem:[%s4936 + $0x1a0] sm:$0x1]
    %v5708 = vld [vmem:[%s4936 + $0x1a4] sm:$0xe]
    %v5709 = vld [vmem:[%s4936 + $0x1a8] sm:$0xf]
    %v5710 = vld [vmem:[%s4936 + $0x1ac] sm:$0x1]
    %v5807 = vrot.slane %v5615, 5
    %v5808 = vrot.slane %v5807, 4
    %v5809 = vrot.slane %v5616, 5
    %v5810 = vsel %vm255, %v5808, %v5809
    %v5811 = vrot.slane %v5809, 4
    %v5812 = vrot.slane %v5617, 5
    %v5813 = vsel %vm255, %v5811, %v5812
    %v5814 = vrot.slane %v5618, 5
    %v5815 = vrot.slane %v5814, 4
    %v5816 = vrot.slane %v5619, 5
    %v5817 = vsel %vm255, %v5815, %v5816
    %v5818 = vrot.slane %v5816, 4
    %v5819 = vrot.slane %v5620, 5
    %v5820 = vsel %vm255, %v5818, %v5819
    %v5821 = vrot.slane %v5621, 5
    %v5822 = vrot.slane %v5821, 4
    %v5823 = vrot.slane %v5622, 5
    %v5824 = vsel %vm255, %v5822, %v5823
    %v5825 = vrot.slane %v5823, 4
    %v5826 = vrot.slane %v5623, 5
    %v5827 = vsel %vm255, %v5825, %v5826
    %v5828 = vrot.slane %v5624, 5
    %v5829 = vrot.slane %v5828, 4
    %v5830 = vrot.slane %v5625, 5
    %v5831 = vsel %vm255, %v5829, %v5830
    %v5832 = vrot.slane %v5830, 4
    %v5833 = vrot.slane %v5626, 5
    %v5834 = vsel %vm255, %v5832, %v5833
    %v5835 = vrot.slane %v5627, 5
    %v5836 = vrot.slane %v5835, 4
    %v5837 = vrot.slane %v5628, 5
    %v5838 = vsel %vm255, %v5836, %v5837
    %v5839 = vrot.slane %v5837, 4
    %v5840 = vrot.slane %v5629, 5
    %v5841 = vsel %vm255, %v5839, %v5840
    %v5842 = vrot.slane %v5630, 5
    %v5843 = vrot.slane %v5842, 4
    %v5844 = vrot.slane %v5631, 5
    %v5845 = vsel %vm255, %v5843, %v5844
    %v5846 = vrot.slane %v5844, 4
    %v5847 = vrot.slane %v5632, 5
    %v5848 = vsel %vm255, %v5846, %v5847
    %v5849 = vrot.slane %v5633, 5
    %v5850 = vrot.slane %v5849, 4
    %v5851 = vrot.slane %v5634, 5
    %v5852 = vsel %vm255, %v5850, %v5851
    %v5853 = vrot.slane %v5851, 4
    %v5854 = vrot.slane %v5635, 5
    %v5855 = vsel %vm255, %v5853, %v5854
    %v5856 = vrot.slane %v5636, 5
    %v5857 = vrot.slane %v5856, 4
    %v5858 = vrot.slane %v5637, 5
    %v5859 = vsel %vm255, %v5857, %v5858
    %v5860 = vrot.slane %v5858, 4
    %v5861 = vrot.slane %v5638, 5
    %v5862 = vsel %vm255, %v5860, %v5861
    %v5863 = vrot.slane %v5639, 5
    %v5864 = vrot.slane %v5863, 4
    %v5865 = vrot.slane %v5640, 5
    %v5866 = vsel %vm255, %v5864, %v5865
    %v5867 = vrot.slane %v5865, 4
    %v5868 = vrot.slane %v5641, 5
    %v5869 = vsel %vm255, %v5867, %v5868
    %v5870 = vrot.slane %v5642, 5
    %v5871 = vrot.slane %v5870, 4
    %v5872 = vrot.slane %v5643, 5
    %v5873 = vsel %vm255, %v5871, %v5872
    %v5874 = vrot.slane %v5872, 4
    %v5875 = vrot.slane %v5644, 5
    %v5876 = vsel %vm255, %v5874, %v5875
    %v5877 = vrot.slane %v5645, 5
    %v5878 = vrot.slane %v5877, 4
    %v5879 = vrot.slane %v5646, 5
    %v5880 = vsel %vm255, %v5878, %v5879
    %v5881 = vrot.slane %v5879, 4
    %v5882 = vrot.slane %v5647, 5
    %v5883 = vsel %vm255, %v5881, %v5882
    %v5884 = vrot.slane %v5648, 5
    %v5885 = vrot.slane %v5884, 4
    %v5886 = vrot.slane %v5649, 5
    %v5887 = vsel %vm255, %v5885, %v5886
    %v5888 = vrot.slane %v5886, 4
    %v5889 = vrot.slane %v5650, 5
    %v5890 = vsel %vm255, %v5888, %v5889
    %v5891 = vrot.slane %v5651, 5
    %v5892 = vrot.slane %v5891, 4
    %v5893 = vrot.slane %v5652, 5
    %v5894 = vsel %vm255, %v5892, %v5893
    %v5895 = vrot.slane %v5893, 4
    %v5896 = vrot.slane %v5653, 5
    %v5897 = vsel %vm255, %v5895, %v5896
    %v5898 = vrot.slane %v5654, 5
    %v5899 = vrot.slane %v5898, 4
    %v5900 = vrot.slane %v5655, 5
    %v5901 = vsel %vm255, %v5899, %v5900
    %v5902 = vrot.slane %v5900, 4
    %v5903 = vrot.slane %v5656, 5
    %v5904 = vsel %vm255, %v5902, %v5903
    %v5905 = vrot.slane %v5657, 5
    %v5906 = vrot.slane %v5905, 4
    %v5907 = vrot.slane %v5658, 5
    %v5908 = vsel %vm255, %v5906, %v5907
    %v5909 = vrot.slane %v5907, 4
    %v5910 = vrot.slane %v5659, 5
    %v5911 = vsel %vm255, %v5909, %v5910
    %v5912 = vrot.slane %v5660, 5
    %v5913 = vrot.slane %v5912, 4
    %v5914 = vrot.slane %v5661, 5
    %v5915 = vsel %vm255, %v5913, %v5914
    %v5916 = vrot.slane %v5914, 4
    %v5917 = vrot.slane %v5662, 5
    %v5918 = vsel %vm255, %v5916, %v5917
    %v5919 = vrot.slane %v5663, 5
    %v5920 = vrot.slane %v5919, 4
    %v5921 = vrot.slane %v5664, 5
    %v5922 = vsel %vm255, %v5920, %v5921
    %v5923 = vrot.slane %v5921, 4
    %v5924 = vrot.slane %v5665, 5
    %v5925 = vsel %vm255, %v5923, %v5924
    %v5926 = vrot.slane %v5666, 5
    %v5927 = vrot.slane %v5926, 4
    %v5928 = vrot.slane %v5667, 5
    %v5929 = vsel %vm255, %v5927, %v5928
    %v5930 = vrot.slane %v5928, 4
    %v5931 = vrot.slane %v5668, 5
    %v5932 = vsel %vm255, %v5930, %v5931
    %v5933 = vrot.slane %v5669, 5
    %v5934 = vrot.slane %v5933, 4
    %v5935 = vrot.slane %v5670, 5
    %v5936 = vsel %vm255, %v5934, %v5935
    %v5937 = vrot.slane %v5935, 4
    %v5938 = vrot.slane %v5671, 5
    %v5939 = vsel %vm255, %v5937, %v5938
    %v5940 = vrot.slane %v5672, 5
    %v5941 = vrot.slane %v5940, 4
    %v5942 = vrot.slane %v5673, 5
    %v5943 = vsel %vm255, %v5941, %v5942
    %v5944 = vrot.slane %v5942, 4
    %v5945 = vrot.slane %v5674, 5
    %v5946 = vsel %vm255, %v5944, %v5945
    %v5947 = vrot.slane %v5675, 5
    %v5948 = vrot.slane %v5947, 4
    %v5949 = vrot.slane %v5676, 5
    %v5950 = vsel %vm255, %v5948, %v5949
    %v5951 = vrot.slane %v5949, 4
    %v5952 = vrot.slane %v5677, 5
    %v5953 = vsel %vm255, %v5951, %v5952
    %v5954 = vrot.slane %v5678, 5
    %v5955 = vrot.slane %v5954, 4
    %v5956 = vrot.slane %v5679, 5
    %v5957 = vsel %vm255, %v5955, %v5956
    %v5958 = vrot.slane %v5956, 4
    %v5959 = vrot.slane %v5680, 5
    %v5960 = vsel %vm255, %v5958, %v5959
    %v5961 = vrot.slane %v5681, 5
    %v5962 = vrot.slane %v5961, 4
    %v5963 = vrot.slane %v5682, 5
    %v5964 = vsel %vm255, %v5962, %v5963
    %v5965 = vrot.slane %v5963, 4
    %v5966 = vrot.slane %v5683, 5
    %v5967 = vsel %vm255, %v5965, %v5966
    %v5968 = vrot.slane %v5684, 5
    %v5969 = vrot.slane %v5968, 4
    %v5970 = vrot.slane %v5685, 5
    %v5971 = vsel %vm255, %v5969, %v5970
    %v5972 = vrot.slane %v5970, 4
    %v5973 = vrot.slane %v5686, 5
    %v5974 = vsel %vm255, %v5972, %v5973
    %v5975 = vrot.slane %v5687, 5
    %v5976 = vrot.slane %v5975, 4
    %v5977 = vrot.slane %v5688, 5
    %v5978 = vsel %vm255, %v5976, %v5977
    %v5979 = vrot.slane %v5977, 4
    %v5980 = vrot.slane %v5689, 5
    %v5981 = vsel %vm255, %v5979, %v5980
    %v5982 = vrot.slane %v5690, 5
    %v5983 = vrot.slane %v5982, 4
    %v5984 = vrot.slane %v5691, 5
    %v5985 = vsel %vm255, %v5983, %v5984
    %v5986 = vrot.slane %v5984, 4
    %v5987 = vrot.slane %v5692, 5
    %v5988 = vsel %vm255, %v5986, %v5987
    %v5989 = vrot.slane %v5693, 5
    %v5990 = vrot.slane %v5989, 4
    %v5991 = vrot.slane %v5694, 5
    %v5992 = vsel %vm255, %v5990, %v5991
    %v5993 = vrot.slane %v5991, 4
    %v5994 = vrot.slane %v5695, 5
    %v5995 = vsel %vm255, %v5993, %v5994
    %v5996 = vrot.slane %v5696, 5
    %v5997 = vrot.slane %v5996, 4
    %v5998 = vrot.slane %v5697, 5
    %v5999 = vsel %vm255, %v5997, %v5998
    %v6000 = vrot.slane %v5998, 4
    %v6001 = vrot.slane %v5698, 5
    %v6002 = vsel %vm255, %v6000, %v6001
    %v6003 = vrot.slane %v5699, 5
    %v6004 = vrot.slane %v6003, 4
    %v6005 = vrot.slane %v5700, 5
    %v6006 = vsel %vm255, %v6004, %v6005
    %v6007 = vrot.slane %v6005, 4
    %v6008 = vrot.slane %v5701, 5
    %v6009 = vsel %vm255, %v6007, %v6008
    %v6010 = vrot.slane %v5702, 5
    %v6011 = vrot.slane %v6010, 4
    %v6012 = vrot.slane %v5703, 5
    %v6013 = vsel %vm255, %v6011, %v6012
    %v6014 = vrot.slane %v6012, 4
    %v6015 = vrot.slane %v5704, 5
    %v6016 = vsel %vm255, %v6014, %v6015
    %v6017 = vrot.slane %v5705, 5
    %v6018 = vrot.slane %v6017, 4
    %v6019 = vrot.slane %v5706, 5
    %v6020 = vsel %vm255, %v6018, %v6019
    %v6021 = vrot.slane %v6019, 4
    %v6022 = vrot.slane %v5707, 5
    %v6023 = vsel %vm255, %v6021, %v6022
    %v6024 = vrot.slane %v5708, 5
    %v6025 = vrot.slane %v6024, 4
    %v6026 = vrot.slane %v5709, 5
    %v6027 = vsel %vm255, %v6025, %v6026
    %v6028 = vrot.slane %v6026, 4
    %v6029 = vrot.slane %v5710, 5
    %v6030 = vsel %vm255, %v6028, %v6029
    %s6031 = scalar_lea.vmem %s1, 14
    %v6032 = vld [vmem:[%s6031] sm:$0x3]
    %v6033 = vunpack.c.l.b16 %v5810
    %v6034 = vunpack.c.l.b16 %v5813
    %v6035 = vunpack.c.l.b16 %v5817
    %v6036 = vunpack.c.l.b16 %v5820
    %v6037 = vunpack.c.l.b16 %v5824
    %v6038 = vunpack.c.l.b16 %v5827
    %v6039 = vunpack.c.l.b16 %v5831
    %v6040 = vunpack.c.l.b16 %v5834
    %v6041 = vunpack.c.l.b16 %v5838
    %v6042 = vunpack.c.l.b16 %v5841
    %v6043 = vunpack.c.l.b16 %v5845
    %v6044 = vunpack.c.l.b16 %v5848
    %v6045 = vunpack.c.l.b16 %v5852
    %v6046 = vunpack.c.l.b16 %v5855
    %v6047 = vunpack.c.l.b16 %v5859
    %v6048 = vunpack.c.l.b16 %v5862
    %v6049 = vunpack.c.l.b16 %v5866
    %v6050 = vunpack.c.l.b16 %v5869
    %v6051 = vunpack.c.l.b16 %v5873
    %v6052 = vunpack.c.l.b16 %v5876
    %v6053 = vunpack.c.l.b16 %v5880
    %v6054 = vunpack.c.l.b16 %v5883
    %v6055 = vunpack.c.l.b16 %v5887
    %v6056 = vunpack.c.l.b16 %v5890
    %v6057 = vunpack.c.l.b16 %v5894
    %v6058 = vunpack.c.l.b16 %v5897
    %v6059 = vunpack.c.l.b16 %v5901
    %v6060 = vunpack.c.l.b16 %v5904
    %v6061 = vunpack.c.l.b16 %v5908
    %v6062 = vunpack.c.l.b16 %v5911
    %v6063 = vunpack.c.l.b16 %v5915
    %v6064 = vunpack.c.l.b16 %v5918
    %v6065 = vunpack.c.l.b16 %v5922
    %v6066 = vunpack.c.l.b16 %v5925
    %v6067 = vunpack.c.l.b16 %v5929
    %v6068 = vunpack.c.l.b16 %v5932
    %v6069 = vunpack.c.l.b16 %v5936
    %v6070 = vunpack.c.l.b16 %v5939
    %v6071 = vunpack.c.l.b16 %v5943
    %v6072 = vunpack.c.l.b16 %v5946
    %v6073 = vunpack.c.l.b16 %v5950
    %v6074 = vunpack.c.l.b16 %v5953
    %v6075 = vunpack.c.l.b16 %v5957
    %v6076 = vunpack.c.l.b16 %v5960
    %v6077 = vunpack.c.l.b16 %v5964
    %v6078 = vunpack.c.l.b16 %v5967
    %v6079 = vunpack.c.l.b16 %v5971
    %v6080 = vunpack.c.l.b16 %v5974
    %v6081 = vunpack.c.l.b16 %v5978
    %v6082 = vunpack.c.l.b16 %v5981
    %v6083 = vunpack.c.l.b16 %v5985
    %v6084 = vunpack.c.l.b16 %v5988
    %v6085 = vunpack.c.l.b16 %v5992
    %v6086 = vunpack.c.l.b16 %v5995
    %v6087 = vunpack.c.l.b16 %v5999
    %v6088 = vunpack.c.l.b16 %v6002
    %v6089 = vunpack.c.l.b16 %v6006
    %v6090 = vunpack.c.l.b16 %v6009
    %v6091 = vunpack.c.l.b16 %v6013
    %v6092 = vunpack.c.l.b16 %v6016
    %v6093 = vunpack.c.l.b16 %v6020
    %v6094 = vunpack.c.l.b16 %v6023
    %v6095 = vunpack.c.l.b16 %v6027
    %v6096 = vunpack.c.l.b16 %v6030
    %v6097 = vpack.c.b16 %v6034, %v6033
    %v6098 = vpack.c.b16 %v6036, %v6035
    %v6099 = vpack.c.b16 %v6038, %v6037
    %v6100 = vpack.c.b16 %v6040, %v6039
    %v6101 = vpack.c.b16 %v6042, %v6041
    %v6102 = vpack.c.b16 %v6044, %v6043
    %v6103 = vpack.c.b16 %v6046, %v6045
    %v6104 = vpack.c.b16 %v6048, %v6047
    %v6105 = vpack.c.b16 %v6050, %v6049
    %v6106 = vpack.c.b16 %v6052, %v6051
    %v6107 = vpack.c.b16 %v6054, %v6053
    %v6108 = vpack.c.b16 %v6056, %v6055
    %v6109 = vpack.c.b16 %v6058, %v6057
    %v6110 = vpack.c.b16 %v6060, %v6059
    %v6111 = vpack.c.b16 %v6062, %v6061
    %v6112 = vpack.c.b16 %v6064, %v6063
    %v6113 = vpack.c.b16 %v6066, %v6065
    %v6114 = vpack.c.b16 %v6068, %v6067
    %v6115 = vpack.c.b16 %v6070, %v6069
    %v6116 = vpack.c.b16 %v6072, %v6071
    %v6117 = vpack.c.b16 %v6074, %v6073
    %v6118 = vpack.c.b16 %v6076, %v6075
    %v6119 = vpack.c.b16 %v6078, %v6077
    %v6120 = vpack.c.b16 %v6080, %v6079
    %v6121 = vpack.c.b16 %v6082, %v6081
    %v6122 = vpack.c.b16 %v6084, %v6083
    %v6123 = vpack.c.b16 %v6086, %v6085
    %v6124 = vpack.c.b16 %v6088, %v6087
    %v6125 = vpack.c.b16 %v6090, %v6089
    %v6126 = vpack.c.b16 %v6092, %v6091
    %v6127 = vpack.c.b16 %v6094, %v6093
    %v6128 = vpack.c.b16 %v6096, %v6095
    %v6130 = vsel %vm578, %v6097, 0
    %v6133 = vsel %vm578, %v6098, 0
    %v6136 = vsel %vm578, %v6099, 0
    %v6139 = vsel %vm578, %v6100, 0
    %v6142 = vsel %vm578, %v6101, 0
    %v6145 = vsel %vm578, %v6102, 0
    %v6148 = vsel %vm578, %v6103, 0
    %v6151 = vsel %vm578, %v6104, 0
    %v6154 = vsel %vm578, %v6105, 0
    %v6157 = vsel %vm578, %v6106, 0
    %v6160 = vsel %vm578, %v6107, 0
    %v6163 = vsel %vm578, %v6108, 0
    %v6166 = vsel %vm578, %v6109, 0
    %v6169 = vsel %vm578, %v6110, 0
    %v6172 = vsel %vm578, %v6111, 0
    %v6175 = vsel %vm578, %v6112, 0
    %v6178 = vsel %vm578, %v6113, 0
    %v6181 = vsel %vm578, %v6114, 0
    %v6184 = vsel %vm578, %v6115, 0
    %v6187 = vsel %vm578, %v6116, 0
    %v6190 = vsel %vm578, %v6117, 0
    %v6193 = vsel %vm578, %v6118, 0
    %v6196 = vsel %vm578, %v6119, 0
    %v6199 = vsel %vm578, %v6120, 0
    %v6202 = vsel %vm578, %v6121, 0
    %v6205 = vsel %vm578, %v6122, 0
    %v6208 = vsel %vm578, %v6123, 0
    %v6211 = vsel %vm578, %v6124, 0
    %v6214 = vsel %vm578, %v6125, 0
    %v6217 = vsel %vm578, %v6126, 0
    %v6220 = vsel %vm578, %v6127, 0
    %v6223 = vsel %vm578, %v6128, 0
    %v6226 = vsel %vm675, %v6032, 0
    %6228 = vmatprep.subr.bf16.mxu0 0
    %6229 = vmatpush1.bf16.msra.mxu0 %v6226
    %6230 = vmatprep.subr.bf16.mxu0 0
    %6231 = vmatpush1.bf16.msra.mxu0 0
    %6232 = vmatprep.subr.bf16.mxu0 0
    %6233 = vmatpush1.bf16.msra.mxu0 0
    %6234 = vmatprep.subr.bf16.mxu0 0
    %6235 = vmatpush1.bf16.msra.mxu0 0
    %6236 = vmatprep.subr.bf16.mxu0 0
    %6237 = vmatpush1.bf16.msra.mxu0 0
    %6238 = vmatprep.subr.bf16.mxu0 0
    %6239 = vmatpush1.bf16.msra.mxu0 0
    %6240 = vmatprep.subr.bf16.mxu0 0
    %6241 = vmatpush1.bf16.msra.mxu0 0
    %6242 = vmatprep.subr.bf16.mxu0 0
    %6243 = vmatpush1.bf16.msra.mxu0 0
    %6244 = vmatprep.subr.bf16.mxu0 0
    %6245 = vmatpush1.bf16.msra.mxu0 0
    %6246 = vmatprep.subr.bf16.mxu0 0
    %6247 = vmatpush1.bf16.msra.mxu0 0
    %6248 = vmatprep.subr.bf16.mxu0 0
    %6249 = vmatpush1.bf16.msra.mxu0 0
    %6250 = vmatprep.subr.bf16.mxu0 0
    %6251 = vmatpush1.bf16.msra.mxu0 0
    %6252 = vmatprep.subr.bf16.mxu0 0
    %6253 = vmatpush1.bf16.msra.mxu0 0
    %6254 = vmatprep.subr.bf16.mxu0 0
    %6255 = vmatpush1.bf16.msra.mxu0 0
    %6256 = vmatprep.subr.bf16.mxu0 0
    %6257 = vmatpush1.bf16.msra.mxu0 0
    %6258 = vmatprep.subr.bf16.mxu0 0
    %6259 = vmatpush1.bf16.msra.mxu0 0
    %6260 = vmatprep.mubr.bf16.mxu0 0
    %6261 = vmatmul.mubr.bf16.gmra.mrb[0].mxu0 %v6130
    %v6262 = vpop.f32.mrb[0].mxu0
    %v6263 = vadd.f32 0.0, %v6262
    %v6264 = vpop.f32.mrb[0].mxu0
    %v6265 = vpop.f32.mrb[0].mxu0
    %v6266 = vadd.f32 0.0, %v6265
    %v6267 = vpop.f32.mrb[0].mxu0
    %6268 = vmatprep.mubr.bf16.mxu0 0
    %6269 = vmatmul.mubr.bf16.gmra.mrb[0].mxu0 %v6133
    %v6270 = vpop.f32.mrb[0].mxu0
    %v6271 = vadd.f32 0.0, %v6270
    %v6272 = vpop.f32.mrb[0].mxu0
    %v6273 = vpop.f32.mrb[0].mxu0
    %v6274 = vadd.f32 0.0, %v6273
    %v6275 = vpop.f32.mrb[0].mxu0
    %6276 = vmatprep.mubr.bf16.mxu0 0
    %6277 = vmatmul.mubr.bf16.gmra.mrb[0].mxu0 %v6136
    %v6278 = vpop.f32.mrb[0].mxu0
    %v6279 = vadd.f32 0.0, %v6278
    %v6280 = vpop.f32.mrb[0].mxu0
    %v6281 = vpop.f32.mrb[0].mxu0
    %v6282 = vadd.f32 0.0, %v6281
    %v6283 = vpop.f32.mrb[0].mxu0
    %6284 = vmatprep.mubr.bf16.mxu0 0
    %6285 = vmatmul.mubr.bf16.gmra.mrb[0].mxu0 %v6139
    %v6286 = vpop.f32.mrb[0].mxu0
    %v6287 = vadd.f32 0.0, %v6286
    %v6288 = vpop.f32.mrb[0].mxu0
    %v6289 = vpop.f32.mrb[0].mxu0
    %v6290 = vadd.f32 0.0, %v6289
    %v6291 = vpop.f32.mrb[0].mxu0
    %6292 = vmatprep.mubr.bf16.mxu0 0
    %6293 = vmatmul.mubr.bf16.gmra.mrb[0].mxu0 %v6142
    %v6294 = vpop.f32.mrb[0].mxu0
    %v6295 = vadd.f32 0.0, %v6294
    %v6296 = vpop.f32.mrb[0].mxu0
    %v6297 = vpop.f32.mrb[0].mxu0
    %v6298 = vadd.f32 0.0, %v6297
    %v6299 = vpop.f32.mrb[0].mxu0
    %6300 = vmatprep.mubr.bf16.mxu0 0
    %6301 = vmatmul.mubr.bf16.gmra.mrb[0].mxu0 %v6145
    %v6302 = vpop.f32.mrb[0].mxu0
    %v6303 = vadd.f32 0.0, %v6302
    %v6304 = vpop.f32.mrb[0].mxu0
    %v6305 = vpop.f32.mrb[0].mxu0
    %v6306 = vadd.f32 0.0, %v6305
    %v6307 = vpop.f32.mrb[0].mxu0
    %6308 = vmatprep.mubr.bf16.mxu0 0
    %6309 = vmatmul.mubr.bf16.gmra.mrb[0].mxu0 %v6148
    %v6310 = vpop.f32.mrb[0].mxu0
    %v6311 = vadd.f32 0.0, %v6310
    %v6312 = vpop.f32.mrb[0].mxu0
    %v6313 = vpop.f32.mrb[0].mxu0
    %v6314 = vadd.f32 0.0, %v6313
    %v6315 = vpop.f32.mrb[0].mxu0
    %6316 = vmatprep.mubr.bf16.mxu0 0
    %6317 = vmatmul.mubr.bf16.gmra.mrb[0].mxu0 %v6151
    %v6318 = vpop.f32.mrb[0].mxu0
    %v6319 = vadd.f32 0.0, %v6318
    %v6320 = vpop.f32.mrb[0].mxu0
    %v6321 = vpop.f32.mrb[0].mxu0
    %v6322 = vadd.f32 0.0, %v6321
    %v6323 = vpop.f32.mrb[0].mxu0
    %6324 = vmatprep.mubr.bf16.mxu0 0
    %6325 = vmatmul.mubr.bf16.gmra.mrb[0].mxu0 %v6154
    %v6326 = vpop.f32.mrb[0].mxu0
    %v6327 = vadd.f32 0.0, %v6326
    %v6328 = vpop.f32.mrb[0].mxu0
    %v6329 = vpop.f32.mrb[0].mxu0
    %v6330 = vadd.f32 0.0, %v6329
    %v6331 = vpop.f32.mrb[0].mxu0
    %6332 = vmatprep.mubr.bf16.mxu0 0
    %6333 = vmatmul.mubr.bf16.gmra.mrb[0].mxu0 %v6157
    %v6334 = vpop.f32.mrb[0].mxu0
    %v6335 = vadd.f32 0.0, %v6334
    %v6336 = vpop.f32.mrb[0].mxu0
    %v6337 = vpop.f32.mrb[0].mxu0
    %v6338 = vadd.f32 0.0, %v6337
    %v6339 = vpop.f32.mrb[0].mxu0
    %6340 = vmatprep.mubr.bf16.mxu0 0
    %6341 = vmatmul.mubr.bf16.gmra.mrb[0].mxu0 %v6160
    %v6342 = vpop.f32.mrb[0].mxu0
    %v6343 = vadd.f32 0.0, %v6342
    %v6344 = vpop.f32.mrb[0].mxu0
    %v6345 = vpop.f32.mrb[0].mxu0
    %v6346 = vadd.f32 0.0, %v6345
    %v6347 = vpop.f32.mrb[0].mxu0
    %6348 = vmatprep.mubr.bf16.mxu0 0
    %6349 = vmatmul.mubr.bf16.gmra.mrb[0].mxu0 %v6163
    %v6350 = vpop.f32.mrb[0].mxu0
    %v6351 = vadd.f32 0.0, %v6350
    %v6352 = vpop.f32.mrb[0].mxu0
    %v6353 = vpop.f32.mrb[0].mxu0
    %v6354 = vadd.f32 0.0, %v6353
    %v6355 = vpop.f32.mrb[0].mxu0
    %6356 = vmatprep.mubr.bf16.mxu0 0
    %6357 = vmatmul.mubr.bf16.gmra.mrb[0].mxu0 %v6166
    %v6358 = vpop.f32.mrb[0].mxu0
    %v6359 = vadd.f32 0.0, %v6358
    %v6360 = vpop.f32.mrb[0].mxu0
    %v6361 = vpop.f32.mrb[0].mxu0
    %v6362 = vadd.f32 0.0, %v6361
    %v6363 = vpop.f32.mrb[0].mxu0
    %6364 = vmatprep.mubr.bf16.mxu0 0
    %6365 = vmatmul.mubr.bf16.gmra.mrb[0].mxu0 %v6169
    %v6366 = vpop.f32.mrb[0].mxu0
    %v6367 = vadd.f32 0.0, %v6366
    %v6368 = vpop.f32.mrb[0].mxu0
    %v6369 = vpop.f32.mrb[0].mxu0
    %v6370 = vadd.f32 0.0, %v6369
    %v6371 = vpop.f32.mrb[0].mxu0
    %6372 = vmatprep.mubr.bf16.mxu0 0
    %6373 = vmatmul.mubr.bf16.gmra.mrb[0].mxu0 %v6172
    %v6374 = vpop.f32.mrb[0].mxu0
    %v6375 = vadd.f32 0.0, %v6374
    %v6376 = vpop.f32.mrb[0].mxu0
    %v6377 = vpop.f32.mrb[0].mxu0
    %v6378 = vadd.f32 0.0, %v6377
    %v6379 = vpop.f32.mrb[0].mxu0
    %6380 = vmatprep.mubr.bf16.mxu0 0
    %6381 = vmatmul.mubr.bf16.gmra.mrb[0].mxu0 %v6175
    %v6382 = vpop.f32.mrb[0].mxu0
    %v6383 = vadd.f32 0.0, %v6382
    %v6384 = vpop.f32.mrb[0].mxu0
    %v6385 = vpop.f32.mrb[0].mxu0
    %v6386 = vadd.f32 0.0, %v6385
    %v6387 = vpop.f32.mrb[0].mxu0
    %6388 = vmatprep.mubr.bf16.mxu0 0
    %6389 = vmatmul.mubr.bf16.gmra.mrb[0].mxu0 %v6178
    %v6390 = vpop.f32.mrb[0].mxu0
    %v6391 = vadd.f32 0.0, %v6390
    %v6392 = vpop.f32.mrb[0].mxu0
    %v6393 = vpop.f32.mrb[0].mxu0
    %v6394 = vadd.f32 0.0, %v6393
    %v6395 = vpop.f32.mrb[0].mxu0
    %6396 = vmatprep.mubr.bf16.mxu0 0
    %6397 = vmatmul.mubr.bf16.gmra.mrb[0].mxu0 %v6181
    %v6398 = vpop.f32.mrb[0].mxu0
    %v6399 = vadd.f32 0.0, %v6398
    %v6400 = vpop.f32.mrb[0].mxu0
    %v6401 = vpop.f32.mrb[0].mxu0
    %v6402 = vadd.f32 0.0, %v6401
    %v6403 = vpop.f32.mrb[0].mxu0
    %6404 = vmatprep.mubr.bf16.mxu0 0
    %6405 = vmatmul.mubr.bf16.gmra.mrb[0].mxu0 %v6184
    %v6406 = vpop.f32.mrb[0].mxu0
    %v6407 = vadd.f32 0.0, %v6406
    %v6408 = vpop.f32.mrb[0].mxu0
    %v6409 = vpop.f32.mrb[0].mxu0
    %v6410 = vadd.f32 0.0, %v6409
    %v6411 = vpop.f32.mrb[0].mxu0
    %6412 = vmatprep.mubr.bf16.mxu0 0
    %6413 = vmatmul.mubr.bf16.gmra.mrb[0].mxu0 %v6187
    %v6414 = vpop.f32.mrb[0].mxu0
    %v6415 = vadd.f32 0.0, %v6414
    %v6416 = vpop.f32.mrb[0].mxu0
    %v6417 = vpop.f32.mrb[0].mxu0
    %v6418 = vadd.f32 0.0, %v6417
    %v6419 = vpop.f32.mrb[0].mxu0
    %6420 = vmatprep.mubr.bf16.mxu0 0
    %6421 = vmatmul.mubr.bf16.gmra.mrb[0].mxu0 %v6190
    %v6422 = vpop.f32.mrb[0].mxu0
    %v6423 = vadd.f32 0.0, %v6422
    %v6424 = vpop.f32.mrb[0].mxu0
    %v6425 = vpop.f32.mrb[0].mxu0
    %v6426 = vadd.f32 0.0, %v6425
    %v6427 = vpop.f32.mrb[0].mxu0
    %6428 = vmatprep.mubr.bf16.mxu0 0
    %6429 = vmatmul.mubr.bf16.gmra.mrb[0].mxu0 %v6193
    %v6430 = vpop.f32.mrb[0].mxu0
    %v6431 = vadd.f32 0.0, %v6430
    %v6432 = vpop.f32.mrb[0].mxu0
    %v6433 = vpop.f32.mrb[0].mxu0
    %v6434 = vadd.f32 0.0, %v6433
    %v6435 = vpop.f32.mrb[0].mxu0
    %6436 = vmatprep.mubr.bf16.mxu0 0
    %6437 = vmatmul.mubr.bf16.gmra.mrb[0].mxu0 %v6196
    %v6438 = vpop.f32.mrb[0].mxu0
    %v6439 = vadd.f32 0.0, %v6438
    %v6440 = vpop.f32.mrb[0].mxu0
    %v6441 = vpop.f32.mrb[0].mxu0
    %v6442 = vadd.f32 0.0, %v6441
    %v6443 = vpop.f32.mrb[0].mxu0
    %6444 = vmatprep.mubr.bf16.mxu0 0
    %6445 = vmatmul.mubr.bf16.gmra.mrb[0].mxu0 %v6199
    %v6446 = vpop.f32.mrb[0].mxu0
    %v6447 = vadd.f32 0.0, %v6446
    %v6448 = vpop.f32.mrb[0].mxu0
    %v6449 = vpop.f32.mrb[0].mxu0
    %v6450 = vadd.f32 0.0, %v6449
    %v6451 = vpop.f32.mrb[0].mxu0
    %6452 = vmatprep.mubr.bf16.mxu0 0
    %6453 = vmatmul.mubr.bf16.gmra.mrb[0].mxu0 %v6202
    %v6454 = vpop.f32.mrb[0].mxu0
    %v6455 = vadd.f32 0.0, %v6454
    %v6456 = vpop.f32.mrb[0].mxu0
    %v6457 = vpop.f32.mrb[0].mxu0
    %v6458 = vadd.f32 0.0, %v6457
    %v6459 = vpop.f32.mrb[0].mxu0
    %6460 = vmatprep.mubr.bf16.mxu0 0
    %6461 = vmatmul.mubr.bf16.gmra.mrb[0].mxu0 %v6205
    %v6462 = vpop.f32.mrb[0].mxu0
    %v6463 = vadd.f32 0.0, %v6462
    %v6464 = vpop.f32.mrb[0].mxu0
    %v6465 = vpop.f32.mrb[0].mxu0
    %v6466 = vadd.f32 0.0, %v6465
    %v6467 = vpop.f32.mrb[0].mxu0
    %6468 = vmatprep.mubr.bf16.mxu0 0
    %6469 = vmatmul.mubr.bf16.gmra.mrb[0].mxu0 %v6208
    %v6470 = vpop.f32.mrb[0].mxu0
    %v6471 = vadd.f32 0.0, %v6470
    %v6472 = vpop.f32.mrb[0].mxu0
    %v6473 = vpop.f32.mrb[0].mxu0
    %v6474 = vadd.f32 0.0, %v6473
    %v6475 = vpop.f32.mrb[0].mxu0
    %6476 = vmatprep.mubr.bf16.mxu0 0
    %6477 = vmatmul.mubr.bf16.gmra.mrb[0].mxu0 %v6211
    %v6478 = vpop.f32.mrb[0].mxu0
    %v6479 = vadd.f32 0.0, %v6478
    %v6480 = vpop.f32.mrb[0].mxu0
    %v6481 = vpop.f32.mrb[0].mxu0
    %v6482 = vadd.f32 0.0, %v6481
    %v6483 = vpop.f32.mrb[0].mxu0
    %6484 = vmatprep.mubr.bf16.mxu0 0
    %6485 = vmatmul.mubr.bf16.gmra.mrb[0].mxu0 %v6214
    %v6486 = vpop.f32.mrb[0].mxu0
    %v6487 = vadd.f32 0.0, %v6486
    %v6488 = vpop.f32.mrb[0].mxu0
    %v6489 = vpop.f32.mrb[0].mxu0
    %v6490 = vadd.f32 0.0, %v6489
    %v6491 = vpop.f32.mrb[0].mxu0
    %6492 = vmatprep.mubr.bf16.mxu0 0
    %6493 = vmatmul.mubr.bf16.gmra.mrb[0].mxu0 %v6217
    %v6494 = vpop.f32.mrb[0].mxu0
    %v6495 = vadd.f32 0.0, %v6494
    %v6496 = vpop.f32.mrb[0].mxu0
    %v6497 = vpop.f32.mrb[0].mxu0
    %v6498 = vadd.f32 0.0, %v6497
    %v6499 = vpop.f32.mrb[0].mxu0
    %6500 = vmatprep.mubr.bf16.mxu0 0
    %6501 = vmatmul.mubr.bf16.gmra.mrb[0].mxu0 %v6220
    %v6502 = vpop.f32.mrb[0].mxu0
    %v6503 = vadd.f32 0.0, %v6502
    %v6504 = vpop.f32.mrb[0].mxu0
    %v6505 = vpop.f32.mrb[0].mxu0
    %v6506 = vadd.f32 0.0, %v6505
    %v6507 = vpop.f32.mrb[0].mxu0
    %6508 = vmatprep.mubr.bf16.mxu0 0
    %6509 = vmatmul.mubr.bf16.gmra.mrb[0].mxu0 %v6223
    %v6510 = vpop.f32.mrb[0].mxu0
    %v6511 = vadd.f32 0.0, %v6510
    %v6512 = vpop.f32.mrb[0].mxu0
    %v6513 = vpop.f32.mrb[0].mxu0
    %v6514 = vadd.f32 0.0, %v6513
    %v6515 = vpop.f32.mrb[0].mxu0
    %6516 = vdwg.mxu0
    %v6517 = vadd.f32 %v5551, %v6263
    %v6518 = vadd.f32 %v5552, %v6266
    %v6519 = vadd.f32 %v5553, %v6271
    %v6520 = vadd.f32 %v5554, %v6274
    %v6521 = vadd.f32 %v5555, %v6279
    %v6522 = vadd.f32 %v5556, %v6282
    %v6523 = vadd.f32 %v5557, %v6287
    %v6524 = vadd.f32 %v5558, %v6290
    %v6525 = vadd.f32 %v5559, %v6295
    %v6526 = vadd.f32 %v5560, %v6298
    %v6527 = vadd.f32 %v5561, %v6303
    %v6528 = vadd.f32 %v5562, %v6306
    %v6529 = vadd.f32 %v5563, %v6311
    %v6530 = vadd.f32 %v5564, %v6314
    %v6531 = vadd.f32 %v5565, %v6319
    %v6532 = vadd.f32 %v5566, %v6322
    %v6533 = vadd.f32 %v5567, %v6327
    %v6534 = vadd.f32 %v5568, %v6330
    %v6535 = vadd.f32 %v5569, %v6335
    %v6536 = vadd.f32 %v5570, %v6338
    %v6537 = vadd.f32 %v5571, %v6343
    %v6538 = vadd.f32 %v5572, %v6346
    %v6539 = vadd.f32 %v5573, %v6351
    %v6540 = vadd.f32 %v5574, %v6354
    %v6541 = vadd.f32 %v5575, %v6359
    %v6542 = vadd.f32 %v5576, %v6362
    %v6543 = vadd.f32 %v5577, %v6367
    %v6544 = vadd.f32 %v5578, %v6370
    %v6545 = vadd.f32 %v5579, %v6375
    %v6546 = vadd.f32 %v5580, %v6378
    %v6547 = vadd.f32 %v5581, %v6383
    %v6548 = vadd.f32 %v5582, %v6386
    %v6549 = vadd.f32 %v5583, %v6391
    %v6550 = vadd.f32 %v5584, %v6394
    %v6551 = vadd.f32 %v5585, %v6399
    %v6552 = vadd.f32 %v5586, %v6402
    %v6553 = vadd.f32 %v5587, %v6407
    %v6554 = vadd.f32 %v5588, %v6410
    %v6555 = vadd.f32 %v5589, %v6415
    %v6556 = vadd.f32 %v5590, %v6418
    %v6557 = vadd.f32 %v5591, %v6423
    %v6558 = vadd.f32 %v5592, %v6426
    %v6559 = vadd.f32 %v5593, %v6431
    %v6560 = vadd.f32 %v5594, %v6434
    %v6561 = vadd.f32 %v5595, %v6439
    %v6562 = vadd.f32 %v5596, %v6442
    %v6563 = vadd.f32 %v5597, %v6447
    %v6564 = vadd.f32 %v5598, %v6450
    %v6565 = vadd.f32 %v5599, %v6455
    %v6566 = vadd.f32 %v5600, %v6458
    %v6567 = vadd.f32 %v5601, %v6463
    %v6568 = vadd.f32 %v5602, %v6466
    %v6569 = vadd.f32 %v5603, %v6471
    %v6570 = vadd.f32 %v5604, %v6474
    %v6571 = vadd.f32 %v5605, %v6479
    %v6572 = vadd.f32 %v5606, %v6482
    %v6573 = vadd.f32 %v5607, %v6487
    %v6574 = vadd.f32 %v5608, %v6490
    %v6575 = vadd.f32 %v5609, %v6495
    %v6576 = vadd.f32 %v5610, %v6498
    %v6577 = vadd.f32 %v5611, %v6503
    %v6578 = vadd.f32 %v5612, %v6506
    %v6579 = vadd.f32 %v5613, %v6511
    %v6580 = vadd.f32 %v5614, %v6514
    %v6581 = vld [vmem:[%s4936] sm:$0xc]
    %v6582 = vld [vmem:[%s4936 + $0x8] sm:$0x3]
    %v6583 = vld [vmem:[%s4936 + $0xc] sm:$0xc]
    %v6584 = vld [vmem:[%s4936 + $0x14] sm:$0x3]
    %v6585 = vld [vmem:[%s4936 + $0x18] sm:$0xc]
    %v6586 = vld [vmem:[%s4936 + $0x20] sm:$0x3]
    %v6587 = vld [vmem:[%s4936 + $0x24] sm:$0xc]
    %v6588 = vld [vmem:[%s4936 + $0x2c] sm:$0x3]
    %v6589 = vld [vmem:[%s4936 + $0x30] sm:$0xc]
    %v6590 = vld [vmem:[%s4936 + $0x38] sm:$0x3]
    %v6591 = vld [vmem:[%s4936 + $0x3c] sm:$0xc]
    %v6592 = vld [vmem:[%s4936 + $0x44] sm:$0x3]
    %v6593 = vld [vmem:[%s4936 + $0x48] sm:$0xc]
    %v6594 = vld [vmem:[%s4936 + $0x50] sm:$0x3]
    %v6595 = vld [vmem:[%s4936 + $0x54] sm:$0xc]
    %v6596 = vld [vmem:[%s4936 + $0x5c] sm:$0x3]
    %v6597 = vld [vmem:[%s4936 + $0x60] sm:$0xc]
    %v6598 = vld [vmem:[%s4936 + $0x68] sm:$0x3]
    %v6599 = vld [vmem:[%s4936 + $0x6c] sm:$0xc]
    %v6600 = vld [vmem:[%s4936 + $0x74] sm:$0x3]
    %v6601 = vld [vmem:[%s4936 + $0x78] sm:$0xc]
    %v6602 = vld [vmem:[%s4936 + $0x80] sm:$0x3]
    %v6603 = vld [vmem:[%s4936 + $0x84] sm:$0xc]
    %v6604 = vld [vmem:[%s4936 + $0x8c] sm:$0x3]
    %v6605 = vld [vmem:[%s4936 + $0x90] sm:$0xc]
    %v6606 = vld [vmem:[%s4936 + $0x98] sm:$0x3]
    %v6607 = vld [vmem:[%s4936 + $0x9c] sm:$0xc]
    %v6608 = vld [vmem:[%s4936 + $0xa4] sm:$0x3]
    %v6609 = vld [vmem:[%s4936 + $0xa8] sm:$0xc]
    %v6610 = vld [vmem:[%s4936 + $0xb0] sm:$0x3]
    %v6611 = vld [vmem:[%s4936 + $0xb4] sm:$0xc]
    %v6612 = vld [vmem:[%s4936 + $0xbc] sm:$0x3]
    %v6613 = vld [vmem:[%s4936 + $0xf0] sm:$0xc]
    %v6614 = vld [vmem:[%s4936 + $0xf8] sm:$0x3]
    %v6615 = vld [vmem:[%s4936 + $0xfc] sm:$0xc]
    %v6616 = vld [vmem:[%s4936 + $0x104] sm:$0x3]
    %v6617 = vld [vmem:[%s4936 + $0x108] sm:$0xc]
    %v6618 = vld [vmem:[%s4936 + $0x110] sm:$0x3]
    %v6619 = vld [vmem:[%s4936 + $0x114] sm:$0xc]
    %v6620 = vld [vmem:[%s4936 + $0x11c] sm:$0x3]
    %v6621 = vld [vmem:[%s4936 + $0x120] sm:$0xc]
    %v6622 = vld [vmem:[%s4936 + $0x128] sm:$0x3]
    %v6623 = vld [vmem:[%s4936 + $0x12c] sm:$0xc]
    %v6624 = vld [vmem:[%s4936 + $0x134] sm:$0x3]
    %v6625 = vld [vmem:[%s4936 + $0x138] sm:$0xc]
    %v6626 = vld [vmem:[%s4936 + $0x140] sm:$0x3]
    %v6627 = vld [vmem:[%s4936 + $0x144] sm:$0xc]
    %v6628 = vld [vmem:[%s4936 + $0x14c] sm:$0x3]
    %v6629 = vld [vmem:[%s4936 + $0x150] sm:$0xc]
    %v6630 = vld [vmem:[%s4936 + $0x158] sm:$0x3]
    %v6631 = vld [vmem:[%s4936 + $0x15c] sm:$0xc]
    %v6632 = vld [vmem:[%s4936 + $0x164] sm:$0x3]
    %v6633 = vld [vmem:[%s4936 + $0x168] sm:$0xc]
    %v6634 = vld [vmem:[%s4936 + $0x170] sm:$0x3]
    %v6635 = vld [vmem:[%s4936 + $0x174] sm:$0xc]
    %v6636 = vld [vmem:[%s4936 + $0x17c] sm:$0x3]
    %v6637 = vld [vmem:[%s4936 + $0x180] sm:$0xc]
    %v6638 = vld [vmem:[%s4936 + $0x188] sm:$0x3]
    %v6639 = vld [vmem:[%s4936 + $0x18c] sm:$0xc]
    %v6640 = vld [vmem:[%s4936 + $0x194] sm:$0x3]
    %v6641 = vld [vmem:[%s4936 + $0x198] sm:$0xc]
    %v6642 = vld [vmem:[%s4936 + $0x1a0] sm:$0x3]
    %v6643 = vld [vmem:[%s4936 + $0x1a4] sm:$0xc]
    %v6644 = vld [vmem:[%s4936 + $0x1ac] sm:$0x3]
    %v6709 = vrot.slane %v6581, 6
    %v6710 = vrot.slane %v6709, 4
    %v6711 = vrot.slane %v5616, 6
    %v6712 = vsel %vm1614, %v6710, %v6711
    %v6713 = vrot.slane %v6711, 4
    %v6714 = vrot.slane %v6582, 6
    %v6715 = vsel %vm1614, %v6713, %v6714
    %v6716 = vrot.slane %v6583, 6
    %v6717 = vrot.slane %v6716, 4
    %v6718 = vrot.slane %v5619, 6
    %v6719 = vsel %vm1614, %v6717, %v6718
    %v6720 = vrot.slane %v6718, 4
    %v6721 = vrot.slane %v6584, 6
    %v6722 = vsel %vm1614, %v6720, %v6721
    %v6723 = vrot.slane %v6585, 6
    %v6724 = vrot.slane %v6723, 4
    %v6725 = vrot.slane %v5622, 6
    %v6726 = vsel %vm1614, %v6724, %v6725
    %v6727 = vrot.slane %v6725, 4
    %v6728 = vrot.slane %v6586, 6
    %v6729 = vsel %vm1614, %v6727, %v6728
    %v6730 = vrot.slane %v6587, 6
    %v6731 = vrot.slane %v6730, 4
    %v6732 = vrot.slane %v5625, 6
    %v6733 = vsel %vm1614, %v6731, %v6732
    %v6734 = vrot.slane %v6732, 4
    %v6735 = vrot.slane %v6588, 6
    %v6736 = vsel %vm1614, %v6734, %v6735
    %v6737 = vrot.slane %v6589, 6
    %v6738 = vrot.slane %v6737, 4
    %v6739 = vrot.slane %v5628, 6
    %v6740 = vsel %vm1614, %v6738, %v6739
    %v6741 = vrot.slane %v6739, 4
    %v6742 = vrot.slane %v6590, 6
    %v6743 = vsel %vm1614, %v6741, %v6742
    %v6744 = vrot.slane %v6591, 6
    %v6745 = vrot.slane %v6744, 4
    %v6746 = vrot.slane %v5631, 6
    %v6747 = vsel %vm1614, %v6745, %v6746
    %v6748 = vrot.slane %v6746, 4
    %v6749 = vrot.slane %v6592, 6
    %v6750 = vsel %vm1614, %v6748, %v6749
    %v6751 = vrot.slane %v6593, 6
    %v6752 = vrot.slane %v6751, 4
    %v6753 = vrot.slane %v5634, 6
    %v6754 = vsel %vm1614, %v6752, %v6753
    %v6755 = vrot.slane %v6753, 4
    %v6756 = vrot.slane %v6594, 6
    %v6757 = vsel %vm1614, %v6755, %v6756
    %v6758 = vrot.slane %v6595, 6
    %v6759 = vrot.slane %v6758, 4
    %v6760 = vrot.slane %v5637, 6
    %v6761 = vsel %vm1614, %v6759, %v6760
    %v6762 = vrot.slane %v6760, 4
    %v6763 = vrot.slane %v6596, 6
    %v6764 = vsel %vm1614, %v6762, %v6763
    %v6765 = vrot.slane %v6597, 6
    %v6766 = vrot.slane %v6765, 4
    %v6767 = vrot.slane %v5640, 6
    %v6768 = vsel %vm1614, %v6766, %v6767
    %v6769 = vrot.slane %v6767, 4
    %v6770 = vrot.slane %v6598, 6
    %v6771 = vsel %vm1614, %v6769, %v6770
    %v6772 = vrot.slane %v6599, 6
    %v6773 = vrot.slane %v6772, 4
    %v6774 = vrot.slane %v5643, 6
    %v6775 = vsel %vm1614, %v6773, %v6774
    %v6776 = vrot.slane %v6774, 4
    %v6777 = vrot.slane %v6600, 6
    %v6778 = vsel %vm1614, %v6776, %v6777
    %v6779 = vrot.slane %v6601, 6
    %v6780 = vrot.slane %v6779, 4
    %v6781 = vrot.slane %v5646, 6
    %v6782 = vsel %vm1614, %v6780, %v6781
    %v6783 = vrot.slane %v6781, 4
    %v6784 = vrot.slane %v6602, 6
    %v6785 = vsel %vm1614, %v6783, %v6784
    %v6786 = vrot.slane %v6603, 6
    %v6787 = vrot.slane %v6786, 4
    %v6788 = vrot.slane %v5649, 6
    %v6789 = vsel %vm1614, %v6787, %v6788
    %v6790 = vrot.slane %v6788, 4
    %v6791 = vrot.slane %v6604, 6
    %v6792 = vsel %vm1614, %v6790, %v6791
    %v6793 = vrot.slane %v6605, 6
    %v6794 = vrot.slane %v6793, 4
    %v6795 = vrot.slane %v5652, 6
    %v6796 = vsel %vm1614, %v6794, %v6795
    %v6797 = vrot.slane %v6795, 4
    %v6798 = vrot.slane %v6606, 6
    %v6799 = vsel %vm1614, %v6797, %v6798
    %v6800 = vrot.slane %v6607, 6
    %v6801 = vrot.slane %v6800, 4
    %v6802 = vrot.slane %v5655, 6
    %v6803 = vsel %vm1614, %v6801, %v6802
    %v6804 = vrot.slane %v6802, 4
    %v6805 = vrot.slane %v6608, 6
    %v6806 = vsel %vm1614, %v6804, %v6805
    %v6807 = vrot.slane %v6609, 6
    %v6808 = vrot.slane %v6807, 4
    %v6809 = vrot.slane %v5658, 6
    %v6810 = vsel %vm1614, %v6808, %v6809
    %v6811 = vrot.slane %v6809, 4
    %v6812 = vrot.slane %v6610, 6
    %v6813 = vsel %vm1614, %v6811, %v6812
    %v6814 = vrot.slane %v6611, 6
    %v6815 = vrot.slane %v6814, 4
    %v6816 = vrot.slane %v5661, 6
    %v6817 = vsel %vm1614, %v6815, %v6816
    %v6818 = vrot.slane %v6816, 4
    %v6819 = vrot.slane %v6612, 6
    %v6820 = vsel %vm1614, %v6818, %v6819
    %v6821 = vrot.slane %v6613, 6
    %v6822 = vrot.slane %v6821, 4
    %v6823 = vrot.slane %v5664, 6
    %v6824 = vsel %vm1614, %v6822, %v6823
    %v6825 = vrot.slane %v6823, 4
    %v6826 = vrot.slane %v6614, 6
    %v6827 = vsel %vm1614, %v6825, %v6826
    %v6828 = vrot.slane %v6615, 6
    %v6829 = vrot.slane %v6828, 4
    %v6830 = vrot.slane %v5667, 6
    %v6831 = vsel %vm1614, %v6829, %v6830
    %v6832 = vrot.slane %v6830, 4
    %v6833 = vrot.slane %v6616, 6
    %v6834 = vsel %vm1614, %v6832, %v6833
    %v6835 = vrot.slane %v6617, 6
    %v6836 = vrot.slane %v6835, 4
    %v6837 = vrot.slane %v5670, 6
    %v6838 = vsel %vm1614, %v6836, %v6837
    %v6839 = vrot.slane %v6837, 4
    %v6840 = vrot.slane %v6618, 6
    %v6841 = vsel %vm1614, %v6839, %v6840
    %v6842 = vrot.slane %v6619, 6
    %v6843 = vrot.slane %v6842, 4
    %v6844 = vrot.slane %v5673, 6
    %v6845 = vsel %vm1614, %v6843, %v6844
    %v6846 = vrot.slane %v6844, 4
    %v6847 = vrot.slane %v6620, 6
    %v6848 = vsel %vm1614, %v6846, %v6847
    %v6849 = vrot.slane %v6621, 6
    %v6850 = vrot.slane %v6849, 4
    %v6851 = vrot.slane %v5676, 6
    %v6852 = vsel %vm1614, %v6850, %v6851
    %v6853 = vrot.slane %v6851, 4
    %v6854 = vrot.slane %v6622, 6
    %v6855 = vsel %vm1614, %v6853, %v6854
    %v6856 = vrot.slane %v6623, 6
    %v6857 = vrot.slane %v6856, 4
    %v6858 = vrot.slane %v5679, 6
    %v6859 = vsel %vm1614, %v6857, %v6858
    %v6860 = vrot.slane %v6858, 4
    %v6861 = vrot.slane %v6624, 6
    %v6862 = vsel %vm1614, %v6860, %v6861
    %v6863 = vrot.slane %v6625, 6
    %v6864 = vrot.slane %v6863, 4
    %v6865 = vrot.slane %v5682, 6
    %v6866 = vsel %vm1614, %v6864, %v6865
    %v6867 = vrot.slane %v6865, 4
    %v6868 = vrot.slane %v6626, 6
    %v6869 = vsel %vm1614, %v6867, %v6868
    %v6870 = vrot.slane %v6627, 6
    %v6871 = vrot.slane %v6870, 4
    %v6872 = vrot.slane %v5685, 6
    %v6873 = vsel %vm1614, %v6871, %v6872
    %v6874 = vrot.slane %v6872, 4
    %v6875 = vrot.slane %v6628, 6
    %v6876 = vsel %vm1614, %v6874, %v6875
    %v6877 = vrot.slane %v6629, 6
    %v6878 = vrot.slane %v6877, 4
    %v6879 = vrot.slane %v5688, 6
    %v6880 = vsel %vm1614, %v6878, %v6879
    %v6881 = vrot.slane %v6879, 4
    %v6882 = vrot.slane %v6630, 6
    %v6883 = vsel %vm1614, %v6881, %v6882
    %v6884 = vrot.slane %v6631, 6
    %v6885 = vrot.slane %v6884, 4
    %v6886 = vrot.slane %v5691, 6
    %v6887 = vsel %vm1614, %v6885, %v6886
    %v6888 = vrot.slane %v6886, 4
    %v6889 = vrot.slane %v6632, 6
    %v6890 = vsel %vm1614, %v6888, %v6889
    %v6891 = vrot.slane %v6633, 6
    %v6892 = vrot.slane %v6891, 4
    %v6893 = vrot.slane %v5694, 6
    %v6894 = vsel %vm1614, %v6892, %v6893
    %v6895 = vrot.slane %v6893, 4
    %v6896 = vrot.slane %v6634, 6
    %v6897 = vsel %vm1614, %v6895, %v6896
    %v6898 = vrot.slane %v6635, 6
    %v6899 = vrot.slane %v6898, 4
    %v6900 = vrot.slane %v5697, 6
    %v6901 = vsel %vm1614, %v6899, %v6900
    %v6902 = vrot.slane %v6900, 4
    %v6903 = vrot.slane %v6636, 6
    %v6904 = vsel %vm1614, %v6902, %v6903
    %v6905 = vrot.slane %v6637, 6
    %v6906 = vrot.slane %v6905, 4
    %v6907 = vrot.slane %v5700, 6
    %v6908 = vsel %vm1614, %v6906, %v6907
    %v6909 = vrot.slane %v6907, 4
    %v6910 = vrot.slane %v6638, 6
    %v6911 = vsel %vm1614, %v6909, %v6910
    %v6912 = vrot.slane %v6639, 6
    %v6913 = vrot.slane %v6912, 4
    %v6914 = vrot.slane %v5703, 6
    %v6915 = vsel %vm1614, %v6913, %v6914
    %v6916 = vrot.slane %v6914, 4
    %v6917 = vrot.slane %v6640, 6
    %v6918 = vsel %vm1614, %v6916, %v6917
    %v6919 = vrot.slane %v6641, 6
    %v6920 = vrot.slane %v6919, 4
    %v6921 = vrot.slane %v5706, 6
    %v6922 = vsel %vm1614, %v6920, %v6921
    %v6923 = vrot.slane %v6921, 4
    %v6924 = vrot.slane %v6642, 6
    %v6925 = vsel %vm1614, %v6923, %v6924
    %v6926 = vrot.slane %v6643, 6
    %v6927 = vrot.slane %v6926, 4
    %v6928 = vrot.slane %v5709, 6
    %v6929 = vsel %vm1614, %v6927, %v6928
    %v6930 = vrot.slane %v6928, 4
    %v6931 = vrot.slane %v6644, 6
    %v6932 = vsel %vm1614, %v6930, %v6931
    %s6933 = scalar_lea.vmem %s1, 16
    %v6934 = vld [vmem:[%s6933] sm:$0x3]
    %v6935 = vunpack.c.l.b16 %v6712
    %v6936 = vunpack.c.l.b16 %v6715
    %v6937 = vunpack.c.l.b16 %v6719
    %v6938 = vunpack.c.l.b16 %v6722
    %v6939 = vunpack.c.l.b16 %v6726
    %v6940 = vunpack.c.l.b16 %v6729
    %v6941 = vunpack.c.l.b16 %v6733
    %v6942 = vunpack.c.l.b16 %v6736
    %v6943 = vunpack.c.l.b16 %v6740
    %v6944 = vunpack.c.l.b16 %v6743
    %v6945 = vunpack.c.l.b16 %v6747
    %v6946 = vunpack.c.l.b16 %v6750
    %v6947 = vunpack.c.l.b16 %v6754
    %v6948 = vunpack.c.l.b16 %v6757
    %v6949 = vunpack.c.l.b16 %v6761
    %v6950 = vunpack.c.l.b16 %v6764
    %v6951 = vunpack.c.l.b16 %v6768
    %v6952 = vunpack.c.l.b16 %v6771
    %v6953 = vunpack.c.l.b16 %v6775
    %v6954 = vunpack.c.l.b16 %v6778
    %v6955 = vunpack.c.l.b16 %v6782
    %v6956 = vunpack.c.l.b16 %v6785
    %v6957 = vunpack.c.l.b16 %v6789
    %v6958 = vunpack.c.l.b16 %v6792
    %v6959 = vunpack.c.l.b16 %v6796
    %v6960 = vunpack.c.l.b16 %v6799
    %v6961 = vunpack.c.l.b16 %v6803
    %v6962 = vunpack.c.l.b16 %v6806
    %v6963 = vunpack.c.l.b16 %v6810
    %v6964 = vunpack.c.l.b16 %v6813
    %v6965 = vunpack.c.l.b16 %v6817
    %v6966 = vunpack.c.l.b16 %v6820
    %v6967 = vunpack.c.l.b16 %v6824
    %v6968 = vunpack.c.l.b16 %v6827
    %v6969 = vunpack.c.l.b16 %v6831
    %v6970 = vunpack.c.l.b16 %v6834
    %v6971 = vunpack.c.l.b16 %v6838
    %v6972 = vunpack.c.l.b16 %v6841
    %v6973 = vunpack.c.l.b16 %v6845
    %v6974 = vunpack.c.l.b16 %v6848
    %v6975 = vunpack.c.l.b16 %v6852
    %v6976 = vunpack.c.l.b16 %v6855
    %v6977 = vunpack.c.l.b16 %v6859
    %v6978 = vunpack.c.l.b16 %v6862
    %v6979 = vunpack.c.l.b16 %v6866
    %v6980 = vunpack.c.l.b16 %v6869
    %v6981 = vunpack.c.l.b16 %v6873
    %v6982 = vunpack.c.l.b16 %v6876
    %v6983 = vunpack.c.l.b16 %v6880
    %v6984 = vunpack.c.l.b16 %v6883
    %v6985 = vunpack.c.l.b16 %v6887
    %v6986 = vunpack.c.l.b16 %v6890
    %v6987 = vunpack.c.l.b16 %v6894
    %v6988 = vunpack.c.l.b16 %v6897
    %v6989 = vunpack.c.l.b16 %v6901
    %v6990 = vunpack.c.l.b16 %v6904
    %v6991 = vunpack.c.l.b16 %v6908
    %v6992 = vunpack.c.l.b16 %v6911
    %v6993 = vunpack.c.l.b16 %v6915
    %v6994 = vunpack.c.l.b16 %v6918
    %v6995 = vunpack.c.l.b16 %v6922
    %v6996 = vunpack.c.l.b16 %v6925
    %v6997 = vunpack.c.l.b16 %v6929
    %v6998 = vunpack.c.l.b16 %v6932
    %v6999 = vpack.c.b16 %v6936, %v6935
    %v7000 = vpack.c.b16 %v6938, %v6937
    %v7001 = vpack.c.b16 %v6940, %v6939
    %v7002 = vpack.c.b16 %v6942, %v6941
    %v7003 = vpack.c.b16 %v6944, %v6943
    %v7004 = vpack.c.b16 %v6946, %v6945
    %v7005 = vpack.c.b16 %v6948, %v6947
    %v7006 = vpack.c.b16 %v6950, %v6949
    %v7007 = vpack.c.b16 %v6952, %v6951
    %v7008 = vpack.c.b16 %v6954, %v6953
    %v7009 = vpack.c.b16 %v6956, %v6955
    %v7010 = vpack.c.b16 %v6958, %v6957
    %v7011 = vpack.c.b16 %v6960, %v6959
    %v7012 = vpack.c.b16 %v6962, %v6961
    %v7013 = vpack.c.b16 %v6964, %v6963
    %v7014 = vpack.c.b16 %v6966, %v6965
    %v7015 = vpack.c.b16 %v6968, %v6967
    %v7016 = vpack.c.b16 %v6970, %v6969
    %v7017 = vpack.c.b16 %v6972, %v6971
    %v7018 = vpack.c.b16 %v6974, %v6973
    %v7019 = vpack.c.b16 %v6976, %v6975
    %v7020 = vpack.c.b16 %v6978, %v6977
    %v7021 = vpack.c.b16 %v6980, %v6979
    %v7022 = vpack.c.b16 %v6982, %v6981
    %v7023 = vpack.c.b16 %v6984, %v6983
    %v7024 = vpack.c.b16 %v6986, %v6985
    %v7025 = vpack.c.b16 %v6988, %v6987
    %v7026 = vpack.c.b16 %v6990, %v6989
    %v7027 = vpack.c.b16 %v6992, %v6991
    %v7028 = vpack.c.b16 %v6994, %v6993
    %v7029 = vpack.c.b16 %v6996, %v6995
    %v7030 = vpack.c.b16 %v6998, %v6997
    %v7032 = vsel %vm578, %v6999, 0
    %v7035 = vsel %vm578, %v7000, 0
    %v7038 = vsel %vm578, %v7001, 0
    %v7041 = vsel %vm578, %v7002, 0
    %v7044 = vsel %vm578, %v7003, 0
    %v7047 = vsel %vm578, %v7004, 0
    %v7050 = vsel %vm578, %v7005, 0
    %v7053 = vsel %vm578, %v7006, 0
    %v7056 = vsel %vm578, %v7007, 0
    %v7059 = vsel %vm578, %v7008, 0
    %v7062 = vsel %vm578, %v7009, 0
    %v7065 = vsel %vm578, %v7010, 0
    %v7068 = vsel %vm578, %v7011, 0
    %v7071 = vsel %vm578, %v7012, 0
    %v7074 = vsel %vm578, %v7013, 0
    %v7077 = vsel %vm578, %v7014, 0
    %v7080 = vsel %vm578, %v7015, 0
    %v7083 = vsel %vm578, %v7016, 0
    %v7086 = vsel %vm578, %v7017, 0
    %v7089 = vsel %vm578, %v7018, 0
    %v7092 = vsel %vm578, %v7019, 0
    %v7095 = vsel %vm578, %v7020, 0
    %v7098 = vsel %vm578, %v7021, 0
    %v7101 = vsel %vm578, %v7022, 0
    %v7104 = vsel %vm578, %v7023, 0
    %v7107 = vsel %vm578, %v7024, 0
    %v7110 = vsel %vm578, %v7025, 0
    %v7113 = vsel %vm578, %v7026, 0
    %v7116 = vsel %vm578, %v7027, 0
    %v7119 = vsel %vm578, %v7028, 0
    %v7122 = vsel %vm578, %v7029, 0
    %v7125 = vsel %vm578, %v7030, 0
    %v7128 = vsel %vm675, %v6934, 0
    %7130 = vmatprep.subr.bf16.mxu0 0
    %7131 = vmatpush1.bf16.msra.mxu0 %v7128
    %7132 = vmatprep.subr.bf16.mxu0 0
    %7133 = vmatpush1.bf16.msra.mxu0 0
    %7134 = vmatprep.subr.bf16.mxu0 0
    %7135 = vmatpush1.bf16.msra.mxu0 0
    %7136 = vmatprep.subr.bf16.mxu0 0
    %7137 = vmatpush1.bf16.msra.mxu0 0
    %7138 = vmatprep.subr.bf16.mxu0 0
    %7139 = vmatpush1.bf16.msra.mxu0 0
    %7140 = vmatprep.subr.bf16.mxu0 0
    %7141 = vmatpush1.bf16.msra.mxu0 0
    %7142 = vmatprep.subr.bf16.mxu0 0
    %7143 = vmatpush1.bf16.msra.mxu0 0
    %7144 = vmatprep.subr.bf16.mxu0 0
    %7145 = vmatpush1.bf16.msra.mxu0 0
    %7146 = vmatprep.subr.bf16.mxu0 0
    %7147 = vmatpush1.bf16.msra.mxu0 0
    %7148 = vmatprep.subr.bf16.mxu0 0
    %7149 = vmatpush1.bf16.msra.mxu0 0
    %7150 = vmatprep.subr.bf16.mxu0 0
    %7151 = vmatpush1.bf16.msra.mxu0 0
    %7152 = vmatprep.subr.bf16.mxu0 0
    %7153 = vmatpush1.bf16.msra.mxu0 0
    %7154 = vmatprep.subr.bf16.mxu0 0
    %7155 = vmatpush1.bf16.msra.mxu0 0
    %7156 = vmatprep.subr.bf16.mxu0 0
    %7157 = vmatpush1.bf16.msra.mxu0 0
    %7158 = vmatprep.subr.bf16.mxu0 0
    %7159 = vmatpush1.bf16.msra.mxu0 0
    %7160 = vmatprep.subr.bf16.mxu0 0
    %7161 = vmatpush1.bf16.msra.mxu0 0
    %7162 = vmatprep.mubr.bf16.mxu0 0
    %7163 = vmatmul.mubr.bf16.gmra.mrb[0].mxu0 %v7032
    %v7164 = vpop.f32.mrb[0].mxu0
    %v7165 = vadd.f32 0.0, %v7164
    %v7166 = vpop.f32.mrb[0].mxu0
    %v7167 = vpop.f32.mrb[0].mxu0
    %v7168 = vadd.f32 0.0, %v7167
    %v7169 = vpop.f32.mrb[0].mxu0
    %7170 = vmatprep.mubr.bf16.mxu0 0
    %7171 = vmatmul.mubr.bf16.gmra.mrb[0].mxu0 %v7035
    %v7172 = vpop.f32.mrb[0].mxu0
    %v7173 = vadd.f32 0.0, %v7172
    %v7174 = vpop.f32.mrb[0].mxu0
    %v7175 = vpop.f32.mrb[0].mxu0
    %v7176 = vadd.f32 0.0, %v7175
    %v7177 = vpop.f32.mrb[0].mxu0
    %7178 = vmatprep.mubr.bf16.mxu0 0
    %7179 = vmatmul.mubr.bf16.gmra.mrb[0].mxu0 %v7038
    %v7180 = vpop.f32.mrb[0].mxu0
    %v7181 = vadd.f32 0.0, %v7180
    %v7182 = vpop.f32.mrb[0].mxu0
    %v7183 = vpop.f32.mrb[0].mxu0
    %v7184 = vadd.f32 0.0, %v7183
    %v7185 = vpop.f32.mrb[0].mxu0
    %7186 = vmatprep.mubr.bf16.mxu0 0
    %7187 = vmatmul.mubr.bf16.gmra.mrb[0].mxu0 %v7041
    %v7188 = vpop.f32.mrb[0].mxu0
    %v7189 = vadd.f32 0.0, %v7188
    %v7190 = vpop.f32.mrb[0].mxu0
    %v7191 = vpop.f32.mrb[0].mxu0
    %v7192 = vadd.f32 0.0, %v7191
    %v7193 = vpop.f32.mrb[0].mxu0
    %7194 = vmatprep.mubr.bf16.mxu0 0
    %7195 = vmatmul.mubr.bf16.gmra.mrb[0].mxu0 %v7044
    %v7196 = vpop.f32.mrb[0].mxu0
    %v7197 = vadd.f32 0.0, %v7196
    %v7198 = vpop.f32.mrb[0].mxu0
    %v7199 = vpop.f32.mrb[0].mxu0
    %v7200 = vadd.f32 0.0, %v7199
    %v7201 = vpop.f32.mrb[0].mxu0
    %7202 = vmatprep.mubr.bf16.mxu0 0
    %7203 = vmatmul.mubr.bf16.gmra.mrb[0].mxu0 %v7047
    %v7204 = vpop.f32.mrb[0].mxu0
    %v7205 = vadd.f32 0.0, %v7204
    %v7206 = vpop.f32.mrb[0].mxu0
    %v7207 = vpop.f32.mrb[0].mxu0
    %v7208 = vadd.f32 0.0, %v7207
    %v7209 = vpop.f32.mrb[0].mxu0
    %7210 = vmatprep.mubr.bf16.mxu0 0
    %7211 = vmatmul.mubr.bf16.gmra.mrb[0].mxu0 %v7050
    %v7212 = vpop.f32.mrb[0].mxu0
    %v7213 = vadd.f32 0.0, %v7212
    %v7214 = vpop.f32.mrb[0].mxu0
    %v7215 = vpop.f32.mrb[0].mxu0
    %v7216 = vadd.f32 0.0, %v7215
    %v7217 = vpop.f32.mrb[0].mxu0
    %7218 = vmatprep.mubr.bf16.mxu0 0
    %7219 = vmatmul.mubr.bf16.gmra.mrb[0].mxu0 %v7053
    %v7220 = vpop.f32.mrb[0].mxu0
    %v7221 = vadd.f32 0.0, %v7220
    %v7222 = vpop.f32.mrb[0].mxu0
    %v7223 = vpop.f32.mrb[0].mxu0
    %v7224 = vadd.f32 0.0, %v7223
    %v7225 = vpop.f32.mrb[0].mxu0
    %7226 = vmatprep.mubr.bf16.mxu0 0
    %7227 = vmatmul.mubr.bf16.gmra.mrb[0].mxu0 %v7056
    %v7228 = vpop.f32.mrb[0].mxu0
    %v7229 = vadd.f32 0.0, %v7228
    %v7230 = vpop.f32.mrb[0].mxu0
    %v7231 = vpop.f32.mrb[0].mxu0
    %v7232 = vadd.f32 0.0, %v7231
    %v7233 = vpop.f32.mrb[0].mxu0
    %7234 = vmatprep.mubr.bf16.mxu0 0
    %7235 = vmatmul.mubr.bf16.gmra.mrb[0].mxu0 %v7059
    %v7236 = vpop.f32.mrb[0].mxu0
    %v7237 = vadd.f32 0.0, %v7236
    %v7238 = vpop.f32.mrb[0].mxu0
    %v7239 = vpop.f32.mrb[0].mxu0
    %v7240 = vadd.f32 0.0, %v7239
    %v7241 = vpop.f32.mrb[0].mxu0
    %7242 = vmatprep.mubr.bf16.mxu0 0
    %7243 = vmatmul.mubr.bf16.gmra.mrb[0].mxu0 %v7062
    %v7244 = vpop.f32.mrb[0].mxu0
    %v7245 = vadd.f32 0.0, %v7244
    %v7246 = vpop.f32.mrb[0].mxu0
    %v7247 = vpop.f32.mrb[0].mxu0
    %v7248 = vadd.f32 0.0, %v7247
    %v7249 = vpop.f32.mrb[0].mxu0
    %7250 = vmatprep.mubr.bf16.mxu0 0
    %7251 = vmatmul.mubr.bf16.gmra.mrb[0].mxu0 %v7065
    %v7252 = vpop.f32.mrb[0].mxu0
    %v7253 = vadd.f32 0.0, %v7252
    %v7254 = vpop.f32.mrb[0].mxu0
    %v7255 = vpop.f32.mrb[0].mxu0
    %v7256 = vadd.f32 0.0, %v7255
    %v7257 = vpop.f32.mrb[0].mxu0
    %7258 = vmatprep.mubr.bf16.mxu0 0
    %7259 = vmatmul.mubr.bf16.gmra.mrb[0].mxu0 %v7068
    %v7260 = vpop.f32.mrb[0].mxu0
    %v7261 = vadd.f32 0.0, %v7260
    %v7262 = vpop.f32.mrb[0].mxu0
    %v7263 = vpop.f32.mrb[0].mxu0
    %v7264 = vadd.f32 0.0, %v7263
    %v7265 = vpop.f32.mrb[0].mxu0
    %7266 = vmatprep.mubr.bf16.mxu0 0
    %7267 = vmatmul.mubr.bf16.gmra.mrb[0].mxu0 %v7071
    %v7268 = vpop.f32.mrb[0].mxu0
    %v7269 = vadd.f32 0.0, %v7268
    %v7270 = vpop.f32.mrb[0].mxu0
    %v7271 = vpop.f32.mrb[0].mxu0
    %v7272 = vadd.f32 0.0, %v7271
    %v7273 = vpop.f32.mrb[0].mxu0
    %7274 = vmatprep.mubr.bf16.mxu0 0
    %7275 = vmatmul.mubr.bf16.gmra.mrb[0].mxu0 %v7074
    %v7276 = vpop.f32.mrb[0].mxu0
    %v7277 = vadd.f32 0.0, %v7276
    %v7278 = vpop.f32.mrb[0].mxu0
    %v7279 = vpop.f32.mrb[0].mxu0
    %v7280 = vadd.f32 0.0, %v7279
    %v7281 = vpop.f32.mrb[0].mxu0
    %7282 = vmatprep.mubr.bf16.mxu0 0
    %7283 = vmatmul.mubr.bf16.gmra.mrb[0].mxu0 %v7077
    %v7284 = vpop.f32.mrb[0].mxu0
    %v7285 = vadd.f32 0.0, %v7284
    %v7286 = vpop.f32.mrb[0].mxu0
    %v7287 = vpop.f32.mrb[0].mxu0
    %v7288 = vadd.f32 0.0, %v7287
    %v7289 = vpop.f32.mrb[0].mxu0
    %7290 = vmatprep.mubr.bf16.mxu0 0
    %7291 = vmatmul.mubr.bf16.gmra.mrb[0].mxu0 %v7080
    %v7292 = vpop.f32.mrb[0].mxu0
    %v7293 = vadd.f32 0.0, %v7292
    %v7294 = vpop.f32.mrb[0].mxu0
    %v7295 = vpop.f32.mrb[0].mxu0
    %v7296 = vadd.f32 0.0, %v7295
    %v7297 = vpop.f32.mrb[0].mxu0
    %7298 = vmatprep.mubr.bf16.mxu0 0
    %7299 = vmatmul.mubr.bf16.gmra.mrb[0].mxu0 %v7083
    %v7300 = vpop.f32.mrb[0].mxu0
    %v7301 = vadd.f32 0.0, %v7300
    %v7302 = vpop.f32.mrb[0].mxu0
    %v7303 = vpop.f32.mrb[0].mxu0
    %v7304 = vadd.f32 0.0, %v7303
    %v7305 = vpop.f32.mrb[0].mxu0
    %7306 = vmatprep.mubr.bf16.mxu0 0
    %7307 = vmatmul.mubr.bf16.gmra.mrb[0].mxu0 %v7086
    %v7308 = vpop.f32.mrb[0].mxu0
    %v7309 = vadd.f32 0.0, %v7308
    %v7310 = vpop.f32.mrb[0].mxu0
    %v7311 = vpop.f32.mrb[0].mxu0
    %v7312 = vadd.f32 0.0, %v7311
    %v7313 = vpop.f32.mrb[0].mxu0
    %7314 = vmatprep.mubr.bf16.mxu0 0
    %7315 = vmatmul.mubr.bf16.gmra.mrb[0].mxu0 %v7089
    %v7316 = vpop.f32.mrb[0].mxu0
    %v7317 = vadd.f32 0.0, %v7316
    %v7318 = vpop.f32.mrb[0].mxu0
    %v7319 = vpop.f32.mrb[0].mxu0
    %v7320 = vadd.f32 0.0, %v7319
    %v7321 = vpop.f32.mrb[0].mxu0
    %7322 = vmatprep.mubr.bf16.mxu0 0
    %7323 = vmatmul.mubr.bf16.gmra.mrb[0].mxu0 %v7092
    %v7324 = vpop.f32.mrb[0].mxu0
    %v7325 = vadd.f32 0.0, %v7324
    %v7326 = vpop.f32.mrb[0].mxu0
    %v7327 = vpop.f32.mrb[0].mxu0
    %v7328 = vadd.f32 0.0, %v7327
    %v7329 = vpop.f32.mrb[0].mxu0
    %7330 = vmatprep.mubr.bf16.mxu0 0
    %7331 = vmatmul.mubr.bf16.gmra.mrb[0].mxu0 %v7095
    %v7332 = vpop.f32.mrb[0].mxu0
    %v7333 = vadd.f32 0.0, %v7332
    %v7334 = vpop.f32.mrb[0].mxu0
    %v7335 = vpop.f32.mrb[0].mxu0
    %v7336 = vadd.f32 0.0, %v7335
    %v7337 = vpop.f32.mrb[0].mxu0
    %7338 = vmatprep.mubr.bf16.mxu0 0
    %7339 = vmatmul.mubr.bf16.gmra.mrb[0].mxu0 %v7098
    %v7340 = vpop.f32.mrb[0].mxu0
    %v7341 = vadd.f32 0.0, %v7340
    %v7342 = vpop.f32.mrb[0].mxu0
    %v7343 = vpop.f32.mrb[0].mxu0
    %v7344 = vadd.f32 0.0, %v7343
    %v7345 = vpop.f32.mrb[0].mxu0
    %7346 = vmatprep.mubr.bf16.mxu0 0
    %7347 = vmatmul.mubr.bf16.gmra.mrb[0].mxu0 %v7101
    %v7348 = vpop.f32.mrb[0].mxu0
    %v7349 = vadd.f32 0.0, %v7348
    %v7350 = vpop.f32.mrb[0].mxu0
    %v7351 = vpop.f32.mrb[0].mxu0
    %v7352 = vadd.f32 0.0, %v7351
    %v7353 = vpop.f32.mrb[0].mxu0
    %7354 = vmatprep.mubr.bf16.mxu0 0
    %7355 = vmatmul.mubr.bf16.gmra.mrb[0].mxu0 %v7104
    %v7356 = vpop.f32.mrb[0].mxu0
    %v7357 = vadd.f32 0.0, %v7356
    %v7358 = vpop.f32.mrb[0].mxu0
    %v7359 = vpop.f32.mrb[0].mxu0
    %v7360 = vadd.f32 0.0, %v7359
    %v7361 = vpop.f32.mrb[0].mxu0
    %7362 = vmatprep.mubr.bf16.mxu0 0
    %7363 = vmatmul.mubr.bf16.gmra.mrb[0].mxu0 %v7107
    %v7364 = vpop.f32.mrb[0].mxu0
    %v7365 = vadd.f32 0.0, %v7364
    %v7366 = vpop.f32.mrb[0].mxu0
    %v7367 = vpop.f32.mrb[0].mxu0
    %v7368 = vadd.f32 0.0, %v7367
    %v7369 = vpop.f32.mrb[0].mxu0
    %7370 = vmatprep.mubr.bf16.mxu0 0
    %7371 = vmatmul.mubr.bf16.gmra.mrb[0].mxu0 %v7110
    %v7372 = vpop.f32.mrb[0].mxu0
    %v7373 = vadd.f32 0.0, %v7372
    %v7374 = vpop.f32.mrb[0].mxu0
    %v7375 = vpop.f32.mrb[0].mxu0
    %v7376 = vadd.f32 0.0, %v7375
    %v7377 = vpop.f32.mrb[0].mxu0
    %7378 = vmatprep.mubr.bf16.mxu0 0
    %7379 = vmatmul.mubr.bf16.gmra.mrb[0].mxu0 %v7113
    %v7380 = vpop.f32.mrb[0].mxu0
    %v7381 = vadd.f32 0.0, %v7380
    %v7382 = vpop.f32.mrb[0].mxu0
    %v7383 = vpop.f32.mrb[0].mxu0
    %v7384 = vadd.f32 0.0, %v7383
    %v7385 = vpop.f32.mrb[0].mxu0
    %7386 = vmatprep.mubr.bf16.mxu0 0
    %7387 = vmatmul.mubr.bf16.gmra.mrb[0].mxu0 %v7116
    %v7388 = vpop.f32.mrb[0].mxu0
    %v7389 = vadd.f32 0.0, %v7388
    %v7390 = vpop.f32.mrb[0].mxu0
    %v7391 = vpop.f32.mrb[0].mxu0
    %v7392 = vadd.f32 0.0, %v7391
    %v7393 = vpop.f32.mrb[0].mxu0
    %7394 = vmatprep.mubr.bf16.mxu0 0
    %7395 = vmatmul.mubr.bf16.gmra.mrb[0].mxu0 %v7119
    %v7396 = vpop.f32.mrb[0].mxu0
    %v7397 = vadd.f32 0.0, %v7396
    %v7398 = vpop.f32.mrb[0].mxu0
    %v7399 = vpop.f32.mrb[0].mxu0
    %v7400 = vadd.f32 0.0, %v7399
    %v7401 = vpop.f32.mrb[0].mxu0
    %7402 = vmatprep.mubr.bf16.mxu0 0
    %7403 = vmatmul.mubr.bf16.gmra.mrb[0].mxu0 %v7122
    %v7404 = vpop.f32.mrb[0].mxu0
    %v7405 = vadd.f32 0.0, %v7404
    %v7406 = vpop.f32.mrb[0].mxu0
    %v7407 = vpop.f32.mrb[0].mxu0
    %v7408 = vadd.f32 0.0, %v7407
    %v7409 = vpop.f32.mrb[0].mxu0
    %7410 = vmatprep.mubr.bf16.mxu0 0
    %7411 = vmatmul.mubr.bf16.gmra.mrb[0].mxu0 %v7125
    %v7412 = vpop.f32.mrb[0].mxu0
    %v7413 = vadd.f32 0.0, %v7412
    %v7414 = vpop.f32.mrb[0].mxu0
    %v7415 = vpop.f32.mrb[0].mxu0
    %v7416 = vadd.f32 0.0, %v7415
    %v7417 = vpop.f32.mrb[0].mxu0
    %7418 = vdwg.mxu0
    %v7419 = vadd.f32 %v6517, %v7165
    %v7420 = vadd.f32 %v6518, %v7168
    %v7421 = vadd.f32 %v6519, %v7173
    %v7422 = vadd.f32 %v6520, %v7176
    %v7423 = vadd.f32 %v6521, %v7181
    %v7424 = vadd.f32 %v6522, %v7184
    %v7425 = vadd.f32 %v6523, %v7189
    %v7426 = vadd.f32 %v6524, %v7192
    %v7427 = vadd.f32 %v6525, %v7197
    %v7428 = vadd.f32 %v6526, %v7200
    %v7429 = vadd.f32 %v6527, %v7205
    %v7430 = vadd.f32 %v6528, %v7208
    %v7431 = vadd.f32 %v6529, %v7213
    %v7432 = vadd.f32 %v6530, %v7216
    %v7433 = vadd.f32 %v6531, %v7221
    %v7434 = vadd.f32 %v6532, %v7224
    %v7435 = vadd.f32 %v6533, %v7229
    %v7436 = vadd.f32 %v6534, %v7232
    %v7437 = vadd.f32 %v6535, %v7237
    %v7438 = vadd.f32 %v6536, %v7240
    %v7439 = vadd.f32 %v6537, %v7245
    %v7440 = vadd.f32 %v6538, %v7248
    %v7441 = vadd.f32 %v6539, %v7253
    %v7442 = vadd.f32 %v6540, %v7256
    %v7443 = vadd.f32 %v6541, %v7261
    %v7444 = vadd.f32 %v6542, %v7264
    %v7445 = vadd.f32 %v6543, %v7269
    %v7446 = vadd.f32 %v6544, %v7272
    %v7447 = vadd.f32 %v6545, %v7277
    %v7448 = vadd.f32 %v6546, %v7280
    %v7449 = vadd.f32 %v6547, %v7285
    %v7450 = vadd.f32 %v6548, %v7288
    %v7451 = vadd.f32 %v6549, %v7293
    %v7452 = vadd.f32 %v6550, %v7296
    %v7453 = vadd.f32 %v6551, %v7301
    %v7454 = vadd.f32 %v6552, %v7304
    %v7455 = vadd.f32 %v6553, %v7309
    %v7456 = vadd.f32 %v6554, %v7312
    %v7457 = vadd.f32 %v6555, %v7317
    %v7458 = vadd.f32 %v6556, %v7320
    %v7459 = vadd.f32 %v6557, %v7325
    %v7460 = vadd.f32 %v6558, %v7328
    %v7461 = vadd.f32 %v6559, %v7333
    %v7462 = vadd.f32 %v6560, %v7336
    %v7463 = vadd.f32 %v6561, %v7341
    %v7464 = vadd.f32 %v6562, %v7344
    %v7465 = vadd.f32 %v6563, %v7349
    %v7466 = vadd.f32 %v6564, %v7352
    %v7467 = vadd.f32 %v6565, %v7357
    %v7468 = vadd.f32 %v6566, %v7360
    %v7469 = vadd.f32 %v6567, %v7365
    %v7470 = vadd.f32 %v6568, %v7368
    %v7471 = vadd.f32 %v6569, %v7373
    %v7472 = vadd.f32 %v6570, %v7376
    %v7473 = vadd.f32 %v6571, %v7381
    %v7474 = vadd.f32 %v6572, %v7384
    %v7475 = vadd.f32 %v6573, %v7389
    %v7476 = vadd.f32 %v6574, %v7392
    %v7477 = vadd.f32 %v6575, %v7397
    %v7478 = vadd.f32 %v6576, %v7400
    %v7479 = vadd.f32 %v6577, %v7405
    %v7480 = vadd.f32 %v6578, %v7408
    %v7481 = vadd.f32 %v6579, %v7413
    %v7482 = vadd.f32 %v6580, %v7416
    %v7483 = vld [vmem:[%s2] sm:$0x1]
    %v7485 = vlaneseq
    %v7486 = vshrl.u32 %v7485, 7
    %v7487 = vsub.s32 0, %v7486
    %v7488 = vrot.slane %v7483, %v7487
    %v7490 = vadd.f32 %v7419, %v7488
    %v7491 = vadd.f32 %v7420, %v7488
    %v7492 = vadd.f32 %v7421, %v7488
    %v7493 = vadd.f32 %v7422, %v7488
    %v7494 = vadd.f32 %v7423, %v7488
    %v7495 = vadd.f32 %v7424, %v7488
    %v7496 = vadd.f32 %v7425, %v7488
    %v7497 = vadd.f32 %v7426, %v7488
    %v7498 = vadd.f32 %v7427, %v7488
    %v7499 = vadd.f32 %v7428, %v7488
    %v7500 = vadd.f32 %v7429, %v7488
    %v7501 = vadd.f32 %v7430, %v7488
    %v7502 = vadd.f32 %v7431, %v7488
    %v7503 = vadd.f32 %v7432, %v7488
    %v7504 = vadd.f32 %v7433, %v7488
    %v7505 = vadd.f32 %v7434, %v7488
    %v7506 = vadd.f32 %v7435, %v7488
    %v7507 = vadd.f32 %v7436, %v7488
    %v7508 = vadd.f32 %v7437, %v7488
    %v7509 = vadd.f32 %v7438, %v7488
    %v7510 = vadd.f32 %v7439, %v7488
    %v7511 = vadd.f32 %v7440, %v7488
    %v7512 = vadd.f32 %v7441, %v7488
    %v7513 = vadd.f32 %v7442, %v7488
    %v7514 = vadd.f32 %v7443, %v7488
    %v7515 = vadd.f32 %v7444, %v7488
    %v7516 = vadd.f32 %v7445, %v7488
    %v7517 = vadd.f32 %v7446, %v7488
    %v7518 = vadd.f32 %v7447, %v7488
    %v7519 = vadd.f32 %v7448, %v7488
    %v7520 = vadd.f32 %v7449, %v7488
    %v7521 = vadd.f32 %v7450, %v7488
    %v7522 = vadd.f32 %v7451, %v7488
    %v7523 = vadd.f32 %v7452, %v7488
    %v7524 = vadd.f32 %v7453, %v7488
    %v7525 = vadd.f32 %v7454, %v7488
    %v7526 = vadd.f32 %v7455, %v7488
    %v7527 = vadd.f32 %v7456, %v7488
    %v7528 = vadd.f32 %v7457, %v7488
    %v7529 = vadd.f32 %v7458, %v7488
    %v7530 = vadd.f32 %v7459, %v7488
    %v7531 = vadd.f32 %v7460, %v7488
    %v7532 = vadd.f32 %v7461, %v7488
    %v7533 = vadd.f32 %v7462, %v7488
    %v7534 = vadd.f32 %v7463, %v7488
    %v7535 = vadd.f32 %v7464, %v7488
    %v7536 = vadd.f32 %v7465, %v7488
    %v7537 = vadd.f32 %v7466, %v7488
    %v7538 = vadd.f32 %v7467, %v7488
    %v7539 = vadd.f32 %v7468, %v7488
    %v7540 = vadd.f32 %v7469, %v7488
    %v7541 = vadd.f32 %v7470, %v7488
    %v7542 = vadd.f32 %v7471, %v7488
    %v7543 = vadd.f32 %v7472, %v7488
    %v7544 = vadd.f32 %v7473, %v7488
    %v7545 = vadd.f32 %v7474, %v7488
    %v7546 = vadd.f32 %v7475, %v7488
    %v7547 = vadd.f32 %v7476, %v7488
    %v7548 = vadd.f32 %v7477, %v7488
    %v7549 = vadd.f32 %v7478, %v7488
    %v7550 = vadd.f32 %v7479, %v7488
    %v7551 = vadd.f32 %v7480, %v7488
    %v7552 = vadd.f32 %v7481, %v7488
    %v7553 = vadd.f32 %v7482, %v7488
    %v7554 = vmax.f32 %v7490, 0.0
    %v7555 = vmax.f32 %v7491, 0.0
    %v7556 = vmax.f32 %v7492, 0.0
    %v7557 = vmax.f32 %v7493, 0.0
    %v7558 = vmax.f32 %v7494, 0.0
    %v7559 = vmax.f32 %v7495, 0.0
    %v7560 = vmax.f32 %v7496, 0.0
    %v7561 = vmax.f32 %v7497, 0.0
    %v7562 = vmax.f32 %v7498, 0.0
    %v7563 = vmax.f32 %v7499, 0.0
    %v7564 = vmax.f32 %v7500, 0.0
    %v7565 = vmax.f32 %v7501, 0.0
    %v7566 = vmax.f32 %v7502, 0.0
    %v7567 = vmax.f32 %v7503, 0.0
    %v7568 = vmax.f32 %v7504, 0.0
    %v7569 = vmax.f32 %v7505, 0.0
    %v7570 = vmax.f32 %v7506, 0.0
    %v7571 = vmax.f32 %v7507, 0.0
    %v7572 = vmax.f32 %v7508, 0.0
    %v7573 = vmax.f32 %v7509, 0.0
    %v7574 = vmax.f32 %v7510, 0.0
    %v7575 = vmax.f32 %v7511, 0.0
    %v7576 = vmax.f32 %v7512, 0.0
    %v7577 = vmax.f32 %v7513, 0.0
    %v7578 = vmax.f32 %v7514, 0.0
    %v7579 = vmax.f32 %v7515, 0.0
    %v7580 = vmax.f32 %v7516, 0.0
    %v7581 = vmax.f32 %v7517, 0.0
    %v7582 = vmax.f32 %v7518, 0.0
    %v7583 = vmax.f32 %v7519, 0.0
    %v7584 = vmax.f32 %v7520, 0.0
    %v7585 = vmax.f32 %v7521, 0.0
    %v7586 = vmax.f32 %v7522, 0.0
    %v7587 = vmax.f32 %v7523, 0.0
    %v7588 = vmax.f32 %v7524, 0.0
    %v7589 = vmax.f32 %v7525, 0.0
    %v7590 = vmax.f32 %v7526, 0.0
    %v7591 = vmax.f32 %v7527, 0.0
    %v7592 = vmax.f32 %v7528, 0.0
    %v7593 = vmax.f32 %v7529, 0.0
    %v7594 = vmax.f32 %v7530, 0.0
    %v7595 = vmax.f32 %v7531, 0.0
    %v7596 = vmax.f32 %v7532, 0.0
    %v7597 = vmax.f32 %v7533, 0.0
    %v7598 = vmax.f32 %v7534, 0.0
    %v7599 = vmax.f32 %v7535, 0.0
    %v7600 = vmax.f32 %v7536, 0.0
    %v7601 = vmax.f32 %v7537, 0.0
    %v7602 = vmax.f32 %v7538, 0.0
    %v7603 = vmax.f32 %v7539, 0.0
    %v7604 = vmax.f32 %v7540, 0.0
    %v7605 = vmax.f32 %v7541, 0.0
    %v7606 = vmax.f32 %v7542, 0.0
    %v7607 = vmax.f32 %v7543, 0.0
    %v7608 = vmax.f32 %v7544, 0.0
    %v7609 = vmax.f32 %v7545, 0.0
    %v7610 = vmax.f32 %v7546, 0.0
    %v7611 = vmax.f32 %v7547, 0.0
    %v7612 = vmax.f32 %v7548, 0.0
    %v7613 = vmax.f32 %v7549, 0.0
    %v7614 = vmax.f32 %v7550, 0.0
    %v7615 = vmax.f32 %v7551, 0.0
    %v7616 = vmax.f32 %v7552, 0.0
    %v7617 = vmax.f32 %v7553, 0.0
    %v7618 = vadd.f32 %v7554, %v7555
    %v7619 = vadd.f32 %v7618, %v7556
    %v7620 = vadd.f32 %v7619, %v7557
    %v7621 = vadd.f32 %v7620, %v7558
    %v7622 = vadd.f32 %v7621, %v7559
    %v7623 = vadd.f32 %v7622, %v7560
    %v7624 = vadd.f32 %v7623, %v7561
    %v7625 = vadd.f32 %v7624, %v7562
    %v7626 = vadd.f32 %v7625, %v7563
    %v7627 = vadd.f32 %v7626, %v7564
    %v7628 = vadd.f32 %v7627, %v7565
    %v7629 = vadd.f32 %v7628, %v7566
    %v7630 = vadd.f32 %v7629, %v7567
    %v7631 = vadd.f32 %v7630, %v7568
    %v7632 = vadd.f32 %v7631, %v7569
    %v7633 = vadd.f32 %v7632, %v7570
    %v7634 = vadd.f32 %v7633, %v7571
    %v7635 = vadd.f32 %v7634, %v7572
    %v7636 = vadd.f32 %v7635, %v7573
    %v7637 = vadd.f32 %v7636, %v7574
    %v7638 = vadd.f32 %v7637, %v7575
    %v7639 = vadd.f32 %v7638, %v7576
    %v7640 = vadd.f32 %v7639, %v7577
    %v7641 = vadd.f32 %v7640, %v7578
    %v7642 = vadd.f32 %v7641, %v7579
    %v7643 = vadd.f32 %v7642, %v7580
    %v7644 = vadd.f32 %v7643, %v7581
    %v7645 = vadd.f32 %v7644, %v7582
    %v7646 = vadd.f32 %v7645, %v7583
    %v7647 = vadd.f32 %v7646, %v7584
    %v7648 = vadd.f32 %v7647, %v7585
    %v7649 = vrot.slane %v7648, 4
    %v7650 = vadd.f32 %v7648, %v7649
    %v7651 = vrot.slane %v7650, 2
    %v7652 = vadd.f32 %v7650, %v7651
    %v7653 = vrot.slane %v7652, 1
    %v7654 = vadd.f32 %v7652, %v7653
    %v7655 = vadd.f32 %v7586, %v7587
    %v7656 = vadd.f32 %v7655, %v7588
    %v7657 = vadd.f32 %v7656, %v7589
    %v7658 = vadd.f32 %v7657, %v7590
    %v7659 = vadd.f32 %v7658, %v7591
    %v7660 = vadd.f32 %v7659, %v7592
    %v7661 = vadd.f32 %v7660, %v7593
    %v7662 = vadd.f32 %v7661, %v7594
    %v7663 = vadd.f32 %v7662, %v7595
    %v7664 = vadd.f32 %v7663, %v7596
    %v7665 = vadd.f32 %v7664, %v7597
    %v7666 = vadd.f32 %v7665, %v7598
    %v7667 = vadd.f32 %v7666, %v7599
    %v7668 = vadd.f32 %v7667, %v7600
    %v7669 = vadd.f32 %v7668, %v7601
    %v7670 = vadd.f32 %v7669, %v7602
    %v7671 = vadd.f32 %v7670, %v7603
    %v7672 = vadd.f32 %v7671, %v7604
    %v7673 = vadd.f32 %v7672, %v7605
    %v7674 = vadd.f32 %v7673, %v7606
    %v7675 = vadd.f32 %v7674, %v7607
    %v7676 = vadd.f32 %v7675, %v7608
    %v7677 = vadd.f32 %v7676, %v7609
    %v7678 = vadd.f32 %v7677, %v7610
    %v7679 = vadd.f32 %v7678, %v7611
    %v7680 = vadd.f32 %v7679, %v7612
    %v7681 = vadd.f32 %v7680, %v7613
    %v7682 = vadd.f32 %v7681, %v7614
    %v7683 = vadd.f32 %v7682, %v7615
    %v7684 = vadd.f32 %v7683, %v7616
    %v7685 = vadd.f32 %v7684, %v7617
    %v7686 = vrot.slane %v7685, 4
    %v7687 = vadd.f32 %v7685, %v7686
    %v7688 = vrot.slane %v7687, 2
    %v7689 = vadd.f32 %v7687, %v7688
    %v7690 = vrot.slane %v7689, 1
    %v7691 = vadd.f32 %v7689, %v7690
    %v7692 = vmul.f32 %v7654, 0.00390625
    %v7693 = vmul.f32 %v7691, 0.00390625
    %v7694 = vpack.c.bf16 %v7692, %v7692
    %v7695 = vpack.c.bf16 %v7693, %v7693
    %v7696 = vld [vmem:[%s3] sm:$0xf]
    %v7697 = vld [vmem:[%s3 + $0x4] sm:$0xf]
    %v7698 = vld [vmem:[%s3 + $0x8] sm:$0xf]
    %v7699 = vld [vmem:[%s3 + $0xc] sm:$0xf]
    %v7700 = vld [vmem:[%s3 + $0x10] sm:$0xf]
    %v7701 = vld [vmem:[%s3 + $0x14] sm:$0xf]
    %v7702 = vld [vmem:[%s3 + $0x18] sm:$0xf]
    %v7703 = vld [vmem:[%s3 + $0x1c] sm:$0xf]
    %v7704 = vld [vmem:[%s3 + $0x20] sm:$0xf]
    %v7705 = vld [vmem:[%s3 + $0x24] sm:$0xf]
    %v7706 = vld [vmem:[%s3 + $0x28] sm:$0xf]
    %v7707 = vld [vmem:[%s3 + $0x2c] sm:$0xf]
    %v7708 = vld [vmem:[%s3 + $0x30] sm:$0xf]
    %v7709 = vld [vmem:[%s3 + $0x34] sm:$0xf]
    %v7710 = vld [vmem:[%s3 + $0x38] sm:$0xf]
    %v7711 = vld [vmem:[%s3 + $0x3c] sm:$0xf]
    %v7712 = vld [vmem:[%s4] sm:$0x1]
    %v7714 = vlaneseq
    %v7715 = vshrl.u32 %v7714, 7
    %v7716 = vsub.s32 0, %v7715
    %v7717 = vrot.slane %v7712, %v7716
    %v7721 = vunpack.c.l.b16 %v7694
    %v7722 = vunpack.c.l.b16 %v7695
    %vm7723 = vcmask 1041409
    %v7724 = vsel %vm7723, %v7722, %v7721
    %v7725 = vpack.c.b16 %v7724, %v7724
    %v7743 = vunpack.c.l.b16 %v7696
    %v7744 = vunpack.c.l.b16 %v7697
    %v7745 = vunpack.c.l.b16 %v7698
    %v7746 = vunpack.c.l.b16 %v7699
    %v7747 = vunpack.c.l.b16 %v7700
    %v7748 = vunpack.c.l.b16 %v7701
    %v7749 = vunpack.c.l.b16 %v7702
    %v7750 = vunpack.c.l.b16 %v7703
    %v7751 = vunpack.c.l.b16 %v7704
    %v7752 = vunpack.c.l.b16 %v7705
    %v7753 = vunpack.c.l.b16 %v7706
    %v7754 = vunpack.c.l.b16 %v7707
    %v7755 = vunpack.c.l.b16 %v7708
    %v7756 = vunpack.c.l.b16 %v7709
    %v7757 = vunpack.c.l.b16 %v7710
    %v7758 = vunpack.c.l.b16 %v7711
    %v7759 = vpack.c.b16 %v7744, %v7743
    %v7760 = vpack.c.b16 %v7746, %v7745
    %v7761 = vpack.c.b16 %v7748, %v7747
    %v7762 = vpack.c.b16 %v7750, %v7749
    %v7763 = vpack.c.b16 %v7752, %v7751
    %v7764 = vpack.c.b16 %v7754, %v7753
    %v7765 = vpack.c.b16 %v7756, %v7755
    %v7766 = vpack.c.b16 %v7758, %v7757
    %7775 = vmatprep.subr.bf16.mxu0 0
    %7776 = vmatpush1.bf16.msra.mxu0 %v7759
    %7777 = vmatprep.subr.bf16.mxu0 0
    %7778 = vmatpush1.bf16.msra.mxu0 %v7760
    %7779 = vmatprep.subr.bf16.mxu0 0
    %7780 = vmatpush1.bf16.msra.mxu0 %v7761
    %7781 = vmatprep.subr.bf16.mxu0 0
    %7782 = vmatpush1.bf16.msra.mxu0 %v7762
    %7783 = vmatprep.subr.bf16.mxu0 0
    %7784 = vmatpush1.bf16.msra.mxu0 %v7763
    %7785 = vmatprep.subr.bf16.mxu0 0
    %7786 = vmatpush1.bf16.msra.mxu0 %v7764
    %7787 = vmatprep.subr.bf16.mxu0 0
    %7788 = vmatpush1.bf16.msra.mxu0 %v7765
    %7789 = vmatprep.subr.bf16.mxu0 0
    %7790 = vmatpush1.bf16.msra.mxu0 %v7766
    %7791 = vmatprep.subr.bf16.mxu0 0
    %7792 = vmatpush1.bf16.msra.mxu0 0
    %7793 = vmatprep.subr.bf16.mxu0 0
    %7794 = vmatpush1.bf16.msra.mxu0 0
    %7795 = vmatprep.subr.bf16.mxu0 0
    %7796 = vmatpush1.bf16.msra.mxu0 0
    %7797 = vmatprep.subr.bf16.mxu0 0
    %7798 = vmatpush1.bf16.msra.mxu0 0
    %7799 = vmatprep.subr.bf16.mxu0 0
    %7800 = vmatpush1.bf16.msra.mxu0 0
    %7801 = vmatprep.subr.bf16.mxu0 0
    %7802 = vmatpush1.bf16.msra.mxu0 0
    %7803 = vmatprep.subr.bf16.mxu0 0
    %7804 = vmatpush1.bf16.msra.mxu0 0
    %7805 = vmatprep.subr.bf16.mxu0 0
    %7806 = vmatpush1.bf16.msra.mxu0 0
    %7807 = vmatprep.mubr.bf16.mxu0 0
    %7808 = vmatmul.mubr.bf16.gmra.mrb[0].mxu0 %v7725
    %v7809 = vpop.f32.mrb[0].mxu0
    %v7810 = vadd.f32 %v7717, %v7809
    %v7811 = vpop.f32.mrb[0].mxu0
    %v7812 = vpop.f32.mrb[0].mxu0
    %v7813 = vpop.f32.mrb[0].mxu0
    %7814 = vdwg.mxu0
    %v7815 = vmax.f32 %v7810, 0.0
    %v7816 = vpack.c.bf16 %v7815, %v7815
    %v7817 = vld [vmem:[%s5] sm:$0x3]
    %v7818 = vld [vmem:[%s6] sm:$0x1]
    %v7820 = vlaneseq
    %v7821 = vshrl.u32 %v7820, 7
    %v7822 = vsub.s32 0, %v7821
    %v7823 = vrot.slane %v7818, %v7822
    %v7826 = vsel %vm578, %v7816, 0
    %v7829 = vsel %vm675, %v7817, 0
    %7831 = vmatprep.subr.bf16.mxu0 0
    %7832 = vmatpush1.bf16.msra.mxu0 %v7829
    %7833 = vmatprep.subr.bf16.mxu0 0
    %7834 = vmatpush1.bf16.msra.mxu0 0
    %7835 = vmatprep.subr.bf16.mxu0 0
    %7836 = vmatpush1.bf16.msra.mxu0 0
    %7837 = vmatprep.subr.bf16.mxu0 0
    %7838 = vmatpush1.bf16.msra.mxu0 0
    %7839 = vmatprep.subr.bf16.mxu0 0
    %7840 = vmatpush1.bf16.msra.mxu0 0
    %7841 = vmatprep.subr.bf16.mxu0 0
    %7842 = vmatpush1.bf16.msra.mxu0 0
    %7843 = vmatprep.subr.bf16.mxu0 0
    %7844 = vmatpush1.bf16.msra.mxu0 0
    %7845 = vmatprep.subr.bf16.mxu0 0
    %7846 = vmatpush1.bf16.msra.mxu0 0
    %7847 = vmatprep.subr.bf16.mxu0 0
    %7848 = vmatpush1.bf16.msra.mxu0 0
    %7849 = vmatprep.subr.bf16.mxu0 0
    %7850 = vmatpush1.bf16.msra.mxu0 0
    %7851 = vmatprep.subr.bf16.mxu0 0
    %7852 = vmatpush1.bf16.msra.mxu0 0
    %7853 = vmatprep.subr.bf16.mxu0 0
    %7854 = vmatpush1.bf16.msra.mxu0 0
    %7855 = vmatprep.subr.bf16.mxu0 0
    %7856 = vmatpush1.bf16.msra.mxu0 0
    %7857 = vmatprep.subr.bf16.mxu0 0
    %7858 = vmatpush1.bf16.msra.mxu0 0
    %7859 = vmatprep.subr.bf16.mxu0 0
    %7860 = vmatpush1.bf16.msra.mxu0 0
    %7861 = vmatprep.subr.bf16.mxu0 0
    %7862 = vmatpush1.bf16.msra.mxu0 0
    %7863 = vmatprep.mubr.bf16.mxu0 0
    %7864 = vmatmul.mubr.bf16.gmra.mrb[0].mxu0 %v7826
    %v7865 = vpop.f32.mrb[0].mxu0
    %v7866 = vadd.f32 %v7823, %v7865
    %v7867 = vpop.f32.mrb[0].mxu0
    %v7868 = vpop.f32.mrb[0].mxu0
    %v7869 = vpop.f32.mrb[0].mxu0
    %7870 = vdwg.mxu0
    %v7871 = vxor.u32 %v7866, 2147483648
    %v7872 = vmul.f32 %v7871, 1.442695
    %v7873 = vpow.pop %v7872
    %v7874 = vadd.f32 %v7873, 1.0
    %v7875 = vrcp.pop %v7874
    %v7876 = vmul.f32 1.0, %v7875
    %v7879 = vunpack.c.l.s4 1966171168
    %v7880 = vunpack.c.0.s8 %v7879
    %v7881 = vlaneseq
    %v7882 = vshrl.u32 %v7881, 7
    %v7883 = vsub.s32 %v7880, %v7882
    %v7884 = vrot.slane %v7876, %v7883
    %v7885 = vcombine.high %v7884, %v7884
    %v7887 = vunpack.c.l.s4 1966171168
    %v7888 = vunpack.c.0.s8 %v7887
    %v7889 = vlaneseq
    %v7890 = vshrl.u32 %v7889, 7
    %v7891 = vsub.s32 %v7888, %v7890
    %v7892 = vrot.slane %v7884, %v7891
    %v7894 = vunpack.c.l.s4 1966171168
    %v7895 = vunpack.c.0.s8 %v7894
    %v7896 = vlaneseq
    %v7897 = vshrl.u32 %v7896, 7
    %v7898 = vsub.s32 %v7895, %v7897
    %v7899 = vrot.slane %v7885, %v7898
    %v7900 = vlaneseq
    %v7901 = vshrl.u32 %v7900, 7
    %v7902 = vsub.s32 0, %v7901
    %v7903 = vrot.slane %v7892, %v7902
    %v7904 = vlaneseq
    %v7905 = vshrl.u32 %v7904, 7
    %v7906 = vsub.s32 0, %v7905
    %v7907 = vrot.slane %v7899, %v7906
    %v7910 = vmul.f32 %v7554, %v7903
    %v7911 = vmul.f32 %v7555, %v7903
    %v7912 = vmul.f32 %v7556, %v7903
    %v7913 = vmul.f32 %v7557, %v7903
    %v7914 = vmul.f32 %v7558, %v7903
    %v7915 = vmul.f32 %v7559, %v7903
    %v7916 = vmul.f32 %v7560, %v7903
    %v7917 = vmul.f32 %v7561, %v7903
    %v7918 = vmul.f32 %v7562, %v7903
    %v7919 = vmul.f32 %v7563, %v7903
    %v7920 = vmul.f32 %v7564, %v7903
    %v7921 = vmul.f32 %v7565, %v7903
    %v7922 = vmul.f32 %v7566, %v7903
    %v7923 = vmul.f32 %v7567, %v7903
    %v7924 = vmul.f32 %v7568, %v7903
    %v7925 = vmul.f32 %v7569, %v7903
    %v7926 = vmul.f32 %v7570, %v7903
    %v7927 = vmul.f32 %v7571, %v7903
    %v7928 = vmul.f32 %v7572, %v7903
    %v7929 = vmul.f32 %v7573, %v7903
    %v7930 = vmul.f32 %v7574, %v7903
    %v7931 = vmul.f32 %v7575, %v7903
    %v7932 = vmul.f32 %v7576, %v7903
    %v7933 = vmul.f32 %v7577, %v7903
    %v7934 = vmul.f32 %v7578, %v7903
    %v7935 = vmul.f32 %v7579, %v7903
    %v7936 = vmul.f32 %v7580, %v7903
    %v7937 = vmul.f32 %v7581, %v7903
    %v7938 = vmul.f32 %v7582, %v7903
    %v7939 = vmul.f32 %v7583, %v7903
    %v7940 = vmul.f32 %v7584, %v7903
    %v7941 = vmul.f32 %v7585, %v7903
    %v7942 = vmul.f32 %v7586, %v7907
    %v7943 = vmul.f32 %v7587, %v7907
    %v7944 = vmul.f32 %v7588, %v7907
    %v7945 = vmul.f32 %v7589, %v7907
    %v7946 = vmul.f32 %v7590, %v7907
    %v7947 = vmul.f32 %v7591, %v7907
    %v7948 = vmul.f32 %v7592, %v7907
    %v7949 = vmul.f32 %v7593, %v7907
    %v7950 = vmul.f32 %v7594, %v7907
    %v7951 = vmul.f32 %v7595, %v7907
    %v7952 = vmul.f32 %v7596, %v7907
    %v7953 = vmul.f32 %v7597, %v7907
    %v7954 = vmul.f32 %v7598, %v7907
    %v7955 = vmul.f32 %v7599, %v7907
    %v7956 = vmul.f32 %v7600, %v7907
    %v7957 = vmul.f32 %v7601, %v7907
    %v7958 = vmul.f32 %v7602, %v7907
    %v7959 = vmul.f32 %v7603, %v7907
    %v7960 = vmul.f32 %v7604, %v7907
    %v7961 = vmul.f32 %v7605, %v7907
    %v7962 = vmul.f32 %v7606, %v7907
    %v7963 = vmul.f32 %v7607, %v7907
    %v7964 = vmul.f32 %v7608, %v7907
    %v7965 = vmul.f32 %v7609, %v7907
    %v7966 = vmul.f32 %v7610, %v7907
    %v7967 = vmul.f32 %v7611, %v7907
    %v7968 = vmul.f32 %v7612, %v7907
    %v7969 = vmul.f32 %v7613, %v7907
    %v7970 = vmul.f32 %v7614, %v7907
    %v7971 = vmul.f32 %v7615, %v7907
    %v7972 = vmul.f32 %v7616, %v7907
    %v7973 = vmul.f32 %v7617, %v7907
    %7974 = vst [vmem:[#allocation2] sm:$0xff] %v7910
    %7975 = vst [vmem:[#allocation2 + $0x8] sm:$0xff] %v7911
    %7976 = vst [vmem:[#allocation2 + $0x10] sm:$0xff] %v7912
    %7977 = vst [vmem:[#allocation2 + $0x18] sm:$0xff] %v7913
    %7978 = vst [vmem:[#allocation2 + $0x20] sm:$0xff] %v7914
    %7979 = vst [vmem:[#allocation2 + $0x28] sm:$0xff] %v7915
    %7980 = vst [vmem:[#allocation2 + $0x30] sm:$0xff] %v7916
    %7981 = vst [vmem:[#allocation2 + $0x38] sm:$0xff] %v7917
    %7982 = vst [vmem:[#allocation2 + $0x40] sm:$0xff] %v7918
    %7983 = vst [vmem:[#allocation2 + $0x48] sm:$0xff] %v7919
    %7984 = vst [vmem:[#allocation2 + $0x50] sm:$0xff] %v7920
    %7985 = vst [vmem:[#allocation2 + $0x58] sm:$0xff] %v7921
    %7986 = vst [vmem:[#allocation2 + $0x60] sm:$0xff] %v7922
    %7987 = vst [vmem:[#allocation2 + $0x68] sm:$0xff] %v7923
    %7988 = vst [vmem:[#allocation2 + $0x70] sm:$0xff] %v7924
    %7989 = vst [vmem:[#allocation2 + $0x78] sm:$0xff] %v7925
    %7990 = vst [vmem:[#allocation2 + $0x80] sm:$0xff] %v7926
    %7991 = vst [vmem:[#allocation2 + $0x88] sm:$0xff] %v7927
    %7992 = vst [vmem:[#allocation2 + $0x90] sm:$0xff] %v7928
    %7993 = vst [vmem:[#allocation2 + $0x98] sm:$0xff] %v7929
    %7994 = vst [vmem:[#allocation2 + $0xa0] sm:$0xff] %v7930
    %7995 = vst [vmem:[#allocation2 + $0xa8] sm:$0xff] %v7931
    %7996 = vst [vmem:[#allocation2 + $0xb0] sm:$0xff] %v7932
    %7997 = vst [vmem:[#allocation2 + $0xb8] sm:$0xff] %v7933
    %7998 = vst [vmem:[#allocation2 + $0xc0] sm:$0xff] %v7934
    %7999 = vst [vmem:[#allocation2 + $0xc8] sm:$0xff] %v7935
    %8000 = vst [vmem:[#allocation2 + $0xd0] sm:$0xff] %v7936
    %8001 = vst [vmem:[#allocation2 + $0xd8] sm:$0xff] %v7937
    %8002 = vst [vmem:[#allocation2 + $0xe0] sm:$0xff] %v7938
    %8003 = vst [vmem:[#allocation2 + $0xe8] sm:$0xff] %v7939
    %8004 = vst [vmem:[#allocation2 + $0xf0] sm:$0xff] %v7940
    %8005 = vst [vmem:[#allocation2 + $0xf8] sm:$0xff] %v7941
    %8006 = vst [vmem:[#allocation2 + $0x100] sm:$0xff] %v7942
    %8007 = vst [vmem:[#allocation2 + $0x108] sm:$0xff] %v7943
    %8008 = vst [vmem:[#allocation2 + $0x110] sm:$0xff] %v7944
    %8009 = vst [vmem:[#allocation2 + $0x118] sm:$0xff] %v7945
    %8010 = vst [vmem:[#allocation2 + $0x120] sm:$0xff] %v7946
    %8011 = vst [vmem:[#allocation2 + $0x128] sm:$0xff] %v7947
    %8012 = vst [vmem:[#allocation2 + $0x130] sm:$0xff] %v7948
    %8013 = vst [vmem:[#allocation2 + $0x138] sm:$0xff] %v7949
    %8014 = vst [vmem:[#allocation2 + $0x140] sm:$0xff] %v7950
    %8015 = vst [vmem:[#allocation2 + $0x148] sm:$0xff] %v7951
    %8016 = vst [vmem:[#allocation2 + $0x150] sm:$0xff] %v7952
    %8017 = vst [vmem:[#allocation2 + $0x158] sm:$0xff] %v7953
    %8018 = vst [vmem:[#allocation2 + $0x160] sm:$0xff] %v7954
    %8019 = vst [vmem:[#allocation2 + $0x168] sm:$0xff] %v7955
    %8020 = vst [vmem:[#allocation2 + $0x170] sm:$0xff] %v7956
    %8021 = vst [vmem:[#allocation2 + $0x178] sm:$0xff] %v7957
    %8022 = vst [vmem:[#allocation2 + $0x180] sm:$0xff] %v7958
    %8023 = vst [vmem:[#allocation2 + $0x188] sm:$0xff] %v7959
    %8024 = vst [vmem:[#allocation2 + $0x190] sm:$0xff] %v7960
    %8025 = vst [vmem:[#allocation2 + $0x198] sm:$0xff] %v7961
    %8026 = vst [vmem:[#allocation2 + $0x1a0] sm:$0xff] %v7962
    %8027 = vst [vmem:[#allocation2 + $0x1a8] sm:$0xff] %v7963
    %8028 = vst [vmem:[#allocation2 + $0x1b0] sm:$0xff] %v7964
    %8029 = vst [vmem:[#allocation2 + $0x1b8] sm:$0xff] %v7965
    %8030 = vst [vmem:[#allocation2 + $0x1c0] sm:$0xff] %v7966
    %8031 = vst [vmem:[#allocation2 + $0x1c8] sm:$0xff] %v7967
    %8032 = vst [vmem:[#allocation2 + $0x1d0] sm:$0xff] %v7968
    %8033 = vst [vmem:[#allocation2 + $0x1d8] sm:$0xff] %v7969
    %8034 = vst [vmem:[#allocation2 + $0x1e0] sm:$0xff] %v7970
    %8035 = vst [vmem:[#allocation2 + $0x1e8] sm:$0xff] %v7971
    %8036 = vst [vmem:[#allocation2 + $0x1f0] sm:$0xff] %v7972
    %8037 = vst [vmem:[#allocation2 + $0x1f8] sm:$0xff] %v7973
    // Predicated region
    $region30: #{tpu_custom_call.1} parent=1 // pred_check
      _
    $region31: #{tpu_custom_call.1} parent=1 // pred_check_branch
      %8039 = sbr.rel (0) target = $region33
    $region32: #{tpu_custom_call.1} parent=1 // pred_region
      %s8041 = ssub.s32 8192, 8192
      %8042 = vsyncadd [#allocation3], %s8041
      %s8043 = sshll.u32 [#allocation2], 4
      %s8044 = int_to_ptr.vmem [resolvable:$true] %s8043
      %8049 = dma.vmem_to_hbm [thread:$0]  %s8044, 8192, %s7, [#allocation3], 128, 128, 8
    $region33: #{tpu_custom_call.1} parent=1 // pred_fallthru
      _
    // Predicated region
    $region34: #{tpu_custom_call.1} parent=1 // pred_check
      _
    $region35: #{tpu_custom_call.1} parent=1 // pred_check_branch
      %8051 = sbr.rel (0) target = $region37
    $region36: #{tpu_custom_call.1} parent=1 // pred_region
      %8052 = dma.done [#allocation3], 8192
    $region37: #{tpu_custom_call.1} parent=1 // pred_fallthru
      _
    %8053 = vsyncpa [#allocation3], 1

</llo_original>
